<compile_context>
chip_gen: v7x
topology: tpu7x:2x2x1
jax: 0.10.0
libtpu: 0.0.40
codegen_flags: <defaults>
</compile_context>

<pallas_src>
import functools

import jax
import jax.numpy as jnp
import numpy as np
from jax import lax
from jax.experimental import pallas as pl
from jax.experimental.pallas import tpu as pltpu

LRELU_SLOPE = 0.1
KERNEL_SIZE = 3
DILATIONS = (1, 3, 5)


def _round_up(v, m):
    return (v + m - 1) // m * m


def _halo_depth(kernel_size, dilations):
    """Rows from the window edge that may be corrupted by roll-based tap realignment
    after the full fused conv chain (>= the chain's receptive field)."""
    rad = (kernel_size - 1) // 2
    depth = 0
    for d in dilations:
        for r in (rad * d, rad):          # conv1 (dilation d), then conv2 (dilation 1)
            depth = max(depth, r) + r
    return depth


def _resblock1_kernel(x_ref, halo_ref, w_ref, b_ref, o_ref, win_ref, *,
                      seq_len, halo, kernel_size, dilations, compute_dtype):
    """All residual steps (2 dilated convs each) fused, for one time tile.

    x_ref    : (N, TL, C)         current time tile (channels on lanes, C % 128 == 0)
    halo_ref : (1, N, 2*HP, C)    [left | right] halo columns for this tile
    w_ref    : (2*S, K, C, C)     per-conv, per-tap (C_in, C_out) weight matrices
    b_ref    : (2*S, 1, C)        per-conv biases (f32)
    o_ref    : (N, TL, C)         output tile
    win_ref  : (N, TL + 2*HP, C)  f32 VMEM scratch: halo'd window
    """
    N, TL, C = x_ref.shape
    HP = halo
    TB = TL + 2 * HP
    NT = N * TB
    K = kernel_size

    # ---- assemble the halo'd window directly in VMEM scratch (no concat temp) ----
    h = halo_ref[0].astype(jnp.float32)                       # (N, 2*HP, C)
    win_ref[:, :HP, :] = h[:, :HP, :]
    win_ref[:, HP:HP + TL, :] = x_ref[...].astype(jnp.float32)
    win_ref[:, HP + TL:, :] = h[:, HP:, :]

    # ---- row-validity column: global time index in [0, seq_len) ----
    # Built once per tile; (NT, 1), lane-broadcast.  Used as a select (never a
    # multiply) so unspecified rows of a ragged last tile (possibly NaN/Inf) can
    # never leak into valid outputs.
    p = lax.broadcasted_iota(jnp.int32, (N, TB, 1), 1).reshape(NT, 1)
    t = pl.program_id(0) * TL - HP + p
    tvalid = (t >= 0) & (t < seq_len)

    def masked_lrelu(v):
        # leaky_relu fused with the 'same'-padding / ragged-tail zero mask.
        u = jnp.where(v >= 0, v, LRELU_SLOPE * v)
        return jnp.where(tvalid, u, 0.0)

    def shift_rows(v, off):
        # out[r] = v[r + off], circular.  XLU rotate (otherwise-idle slot).  Wrapped
        # rows (and cross-batch-window leakage) only land within `depth` rows of a
        # window edge; the wrapper asserts HP >= depth, so kept rows are exact.
        if off == 0:
            return v
        return pltpu.roll(v, (-off) % NT, axis=0)

    def conv(v, idx, d):
        # 'same'-padded dilated conv1d as K accumulating (C, C) matmuls, one per tap.
        # Per-tap weights are indexed straight from the Ref (no hoisted weight blob).
        acc = None
        for k in range(K):
            off = (k - (K - 1) // 2) * d
            tap = shift_rows(v, off).astype(compute_dtype)
            part = jnp.dot(tap, w_ref[idx, k], preferred_element_type=jnp.float32)
            acc = part if acc is None else acc + part
        return acc + b_ref[idx]

    x = win_ref[...].reshape(NT, C)                            # f32 residual carrier
    for j, d in enumerate(dilations):
        xt = conv(masked_lrelu(x), 2 * j, d)
        xt = conv(masked_lrelu(xt), 2 * j + 1, 1)
        x = x + xt                                             # residual (f32)

    o_ref[...] = x.reshape(N, TB, C)[:, HP:HP + TL, :].astype(o_ref.dtype)


def resblock1_forward_nlc(x_nlc, params, *, dilations=DILATIONS, time_tile=1024,
                          compute_dtype=jnp.bfloat16, out_dtype=None,
                          lane_multiple=128, vmem_limit_bytes=48 * 1024 * 1024,
                          donate_input=False):
    """ResBlock1.forward, NLC (batch, time, channels) layout in and out.

    x_nlc:  (N, L, C) activations.
    params: list of len(dilations) tuples (w1, b1, w2, b2); w* in PyTorch layout
            (C_out, C_in, K) with weight-norm already folded, b* of shape (C,).
    time_tile: time-axis tile length.  Default 1024; raise to 2048-4096 on v5e/v6e
            (128 MiB VMEM, per-step overhead amortization), drop to ~256 for C=512
            on v7x (64 MiB VMEM).  Pick it so the grid has >= 2 tiles on v7x.
    donate_input: set True only if the (N, L, Cp) input buffer is actually donated
            (same dtype as the output); otherwise aliasing forces an extra copy.
    """
    N, L, C = x_nlc.shape
    K = params[0][0].shape[2]
    S = len(dilations)
    assert len(params) == S

    depth = _halo_depth(K, dilations)
    HP = _round_up(max(depth, 8), 8)
    # Rows wrapped across window edges by pltpu.roll (and rows leaked across batch
    # windows by the flattened shift) must stay inside the discarded halo band.
    assert HP >= depth, (HP, depth)

    Cp = _round_up(C, lane_multiple)       # lane-dense stores / full MXU columns

    # ---- one-time weight prep: (C_out, C_in, K) -> (2S, K, Cp_in, Cp_out) ----
    w_list, b_list = [], []
    for (w1, b1, w2, b2) in params:
        for w, b in ((w1, b1), (w2, b2)):
            wt = jnp.transpose(w, (2, 1, 0))                         # (K, C_in, C_out)
            wt = jnp.pad(wt, ((0, 0), (0, Cp - C), (0, Cp - C)))
            w_list.append(wt)
            b_list.append(jnp.pad(b, (0, Cp - C)).reshape(1, Cp))
    w_all = jnp.stack(w_list).astype(compute_dtype)                  # (2S, K, Cp, Cp)
    b_all = jnp.stack(b_list).astype(jnp.float32)                    # (2S, 1, Cp)

    x_p = x_nlc if Cp == C else jnp.pad(x_nlc, ((0, 0), (0, 0), (0, Cp - C)))

    TL = _round_up(min(time_tile, max(L, 8)), 8)
    T = -(-L // TL)                       # ragged last tile handled in-kernel
    TB = TL + 2 * HP

    # ---- per-tile [left | right] halos: tiny gather (T * 2*HP rows total) ----
    col = jnp.arange(HP, dtype=jnp.int32)
    starts = jnp.arange(T, dtype=jnp.int32)[:, None] * TL
    idx = jnp.concatenate([starts - HP + col[None, :],
                           starts + TL + col[None, :]], axis=1)      # (T, 2*HP)
    idx = jnp.clip(idx, 0, L - 1)         # clamped; in-kernel mask zeroes t<0 / t>=L
    x_halo = jnp.transpose(x_p[:, idx, :], (1, 0, 2, 3))             # (T, N, 2HP, Cp)

    kernel = functools.partial(_resblock1_kernel, seq_len=L, halo=HP,
                               kernel_size=K, dilations=tuple(dilations),
                               compute_dtype=compute_dtype)

    act_bytes = jnp.dtype(x_p.dtype).itemsize
    cost = pl.CostEstimate(
        flops=2 * (2 * S * K) * N * L * Cp * Cp,
        transcendentals=0,
        bytes_accessed=(2 * N * L * Cp + T * N * 2 * HP * Cp) * act_bytes
                       + w_all.size * jnp.dtype(compute_dtype).itemsize
                       + b_all.size * 4,
    )

    out = pl.pallas_call(
        kernel,
        grid=(T,),
        in_specs=[
            pl.BlockSpec((N, TL, Cp), lambda i: (0, i, 0)),            # time tile
            pl.BlockSpec((1, N, 2 * HP, Cp), lambda i: (i, 0, 0, 0)),  # its halo
            pl.BlockSpec((2 * S, K, Cp, Cp), lambda i: (0, 0, 0, 0)),  # weights (resident)
            pl.BlockSpec((2 * S, 1, Cp), lambda i: (0, 0, 0)),         # biases  (resident)
        ],
        out_specs=pl.BlockSpec((N, TL, Cp), lambda i: (0, i, 0)),
        out_shape=jax.ShapeDtypeStruct((N, L, Cp), out_dtype or x_p.dtype),
        scratch_shapes=[pltpu.VMEM((N, TB, Cp), jnp.float32)],
        input_output_aliases=({0: 0} if donate_input else {}),
        compiler_params=pltpu.CompilerParams(
            dimension_semantics=("parallel",),   # megacore / v7x 2-TC sharding over tiles
            vmem_limit_bytes=vmem_limit_bytes),
        cost_estimate=cost,
    )(x_p, x_halo, w_all, b_all)

    return out if Cp == C else out[..., :C]


def resblock1_forward(x_ncl, params, **kwargs):
    """PyTorch-layout (N, C, L) convenience wrapper.

    TODO(synk): in the full Generator keep activations NLC end-to-end; these two
    transposes are full HBM passes and exist only for PyTorch-layout callers.
    """
    y = resblock1_forward_nlc(jnp.transpose(x_ncl, (0, 2, 1)), params, **kwargs)
    return jnp.transpose(y, (0, 2, 1))


# ----------------------- pure-JAX reference (for checking) -----------------------
def ref_resblock_ncl(x, params, dilations=DILATIONS):
    for (w1, b1, w2, b2), d in zip(params, dilations):
        xt = jax.nn.leaky_relu(x, LRELU_SLOPE)
        xt = lax.conv_general_dilated(
            xt, w1, (1,), [(d, d)], rhs_dilation=(d,),
            dimension_numbers=('NCH', 'OIH', 'NCH'),
            precision=lax.Precision.HIGHEST) + b1[None, :, None]
        xt = jax.nn.leaky_relu(xt, LRELU_SLOPE)
        xt = lax.conv_general_dilated(
            xt, w2, (1,), [(1, 1)], rhs_dilation=(1,),
            dimension_numbers=('NCH', 'OIH', 'NCH'),
            precision=lax.Precision.HIGHEST) + b2[None, :, None]
        x = xt + x
    return x


if __name__ == "__main__":
    root = jax.random.PRNGKey(0)

    def make_params(key, C):
        ks = jax.random.split(key, 12)
        params = []
        for j in range(3):   # HiFi-GAN init_weights ~ N(0, 0.01), weight norm folded
            w1 = 0.01 * jax.random.normal(ks[4 * j + 0], (C, C, KERNEL_SIZE), jnp.float32)
            b1 = 0.01 * jax.random.normal(ks[4 * j + 1], (C,), jnp.float32)
            w2 = 0.01 * jax.random.normal(ks[4 * j + 2], (C, C, KERNEL_SIZE), jnp.float32)
            b2 = 0.01 * jax.random.normal(ks[4 * j + 3], (C,), jnp.float32)
            params.append((w1, b1, w2, b2))
        return params

    kpA, kpB, kxA, kxB = jax.random.split(root, 4)

    # Case A: C=128 (lane-dense, no channel padding), f32 MXU path, L not a multiple
    # of the time tile (exercises multi-tile halos + ragged-tail masking).
    N, C, L = 2, 128, 200
    xA = jax.random.normal(kxA, (N, L, C), jnp.float32)        # NLC, kernel-native
    pA = make_params(kpA, C)
    fwd_f32 = jax.jit(functools.partial(resblock1_forward_nlc, time_tile=64,
                                        compute_dtype=jnp.float32))
    outA = jax.block_until_ready(fwd_f32(xA, pA))
    refA = jnp.transpose(ref_resblock_ncl(jnp.transpose(xA, (0, 2, 1)), pA), (0, 2, 1))
    np.testing.assert_allclose(np.asarray(outA), np.asarray(refA),
                               atol=5e-4, rtol=5e-4)

    # Case B: C=64 (padded to 128 lanes in the wrapper), bf16 MXU operands
    # (recommended default for v6e/v7x).  Tolerance reflects bf16 operands vs. an
    # f32 HIGHEST-precision reference.
    N, C, L = 2, 64, 192
    xB = jax.random.normal(kxB, (N, L, C), jnp.float32)
    pB = make_params(kpB, C)
    fwd_bf16 = jax.jit(functools.partial(resblock1_forward_nlc, time_tile=64,
                                         compute_dtype=jnp.bfloat16))
    outB = jax.block_until_ready(fwd_bf16(xB, pB))
    refB = jnp.transpose(ref_resblock_ncl(jnp.transpose(xB, (0, 2, 1)), pB), (0, 2, 1))
    np.testing.assert_allclose(np.asarray(outB), np.asarray(refB),
                               atol=2e-2, rtol=2e-2)

    print("KERNEL_OK")
</pallas_src>

<mosaic_0001>
module attributes {stable_mosaic.version = 11 : i64} {
  func.func @_resblock1_kernel(%arg0: i32, %arg1: memref<2x64x128xf32, #tpu.memory_space<vmem>>, %arg2: memref<1x2x32x128xf32, #tpu.memory_space<vmem>>, %arg3: memref<6x3x128x128xf32, #tpu.memory_space<vmem>>, %arg4: memref<6x1x128xf32, #tpu.memory_space<vmem>>, %arg5: memref<2x64x128xf32, #tpu.memory_space<vmem>>, %arg6: memref<2x96x128xf32, #tpu.memory_space<vmem>>) attributes {dimension_semantics = [#tpu.dimension_semantics<parallel>], iteration_bounds = array<i64: 4>, scalar_prefetch = 0 : i64, scratch_operands = 1 : i64, tpu.core_type = #tpu.core_type<tc>, window_params = [{transform_indices = @transform_0, window_bounds = array<i64: 2, 64, 128>}, {transform_indices = @transform_1, window_bounds = array<i64: 1, 2, 32, 128>}, {pipeline_mode = #tpu.pipeline_mode<synchronous>, transform_indices = @transform_2, window_bounds = array<i64: 6, 3, 128, 128>}, {pipeline_mode = #tpu.pipeline_mode<synchronous>, transform_indices = @transform_3, window_bounds = array<i64: 6, 1, 128>}, {transform_indices = @transform_4, window_bounds = array<i64: 2, 64, 128>}]} {
    %c0 = arith.constant 0 : index
    %c0_0 = arith.constant 0 : index
    %c0_1 = arith.constant 0 : index
    %c0_2 = arith.constant 0 : index
    %0 = vector.load %arg2[%c0, %c0_0, %c0_1, %c0_2] : memref<1x2x32x128xf32, #tpu.memory_space<vmem>>, vector<1x2x32x128xf32>
    %1 = vector.shape_cast %0 : vector<1x2x32x128xf32> to vector<2x32x128xf32>
    %2 = vector.extract_strided_slice %1 {offsets = [0, 0, 0], sizes = [2, 16, 128], strides = [1, 1, 1]} : vector<2x32x128xf32> to vector<2x16x128xf32>
    %c0_3 = arith.constant 0 : index
    %c0_4 = arith.constant 0 : index
    %c0_5 = arith.constant 0 : index
    %3 = vector.load %arg6[%c0_3, %c0_4, %c0_5] : memref<2x96x128xf32, #tpu.memory_space<vmem>>, vector<2x16x128xf32>
    tpu.vector_store %arg6[%c0_3, %c0_4, %c0_5], %2 {strides = array<i32>} : memref<2x96x128xf32, #tpu.memory_space<vmem>>, vector<2x16x128xf32>,
    %c0_6 = arith.constant 0 : index
    %c0_7 = arith.constant 0 : index
    %c0_8 = arith.constant 0 : index
    %4 = vector.load %arg1[%c0_6, %c0_7, %c0_8] : memref<2x64x128xf32, #tpu.memory_space<vmem>>, vector<2x64x128xf32>
    %c0_9 = arith.constant 0 : index
    %c16 = arith.constant 16 : index
    %c0_10 = arith.constant 0 : index
    %5 = vector.load %arg6[%c0_9, %c16, %c0_10] : memref<2x96x128xf32, #tpu.memory_space<vmem>>, vector<2x64x128xf32>
    tpu.vector_store %arg6[%c0_9, %c16, %c0_10], %4 {strides = array<i32>} : memref<2x96x128xf32, #tpu.memory_space<vmem>>, vector<2x64x128xf32>,
    %6 = vector.extract_strided_slice %1 {offsets = [0, 16, 0], sizes = [2, 16, 128], strides = [1, 1, 1]} : vector<2x32x128xf32> to vector<2x16x128xf32>
    %c0_11 = arith.constant 0 : index
    %c80 = arith.constant 80 : index
    %c0_12 = arith.constant 0 : index
    %7 = vector.load %arg6[%c0_11, %c80, %c0_12] : memref<2x96x128xf32, #tpu.memory_space<vmem>>, vector<2x16x128xf32>
    tpu.vector_store %arg6[%c0_11, %c80, %c0_12], %6 {strides = array<i32>} : memref<2x96x128xf32, #tpu.memory_space<vmem>>, vector<2x16x128xf32>,
    %8 = tpu.iota {dimensions = array<i32: 1>} : vector<2x96x1xi32>
    %9 = vector.shape_cast %8 : vector<2x96x1xi32> to vector<192x1xi32>
    %c64_i32 = arith.constant 64 : i32
    %10 = arith.muli %arg0, %c64_i32 : i32
    %c16_i32 = arith.constant 16 : i32
    %11 = arith.subi %10, %c16_i32 : i32
    %12 = vector.broadcast %11 : i32 to vector<192x1xi32>
    %13 = arith.addi %12, %9 : vector<192x1xi32>
    %c0_i32 = arith.constant 0 : i32
    %14 = vector.broadcast %c0_i32 : i32 to vector<192x1xi32>
    %15 = arith.cmpi sge, %13, %14 : vector<192x1xi32>
    %c200_i32 = arith.constant 200 : i32
    %16 = vector.broadcast %c200_i32 : i32 to vector<192x1xi32>
    %17 = arith.cmpi slt, %13, %16 : vector<192x1xi32>
    %18 = arith.andi %15, %17 : vector<192x1xi1>
    %c0_13 = arith.constant 0 : index
    %c0_14 = arith.constant 0 : index
    %c0_15 = arith.constant 0 : index
    %19 = vector.load %arg6[%c0_13, %c0_14, %c0_15] : memref<2x96x128xf32, #tpu.memory_space<vmem>>, vector<2x96x128xf32>
    %20 = vector.shape_cast %19 : vector<2x96x128xf32> to vector<192x128xf32>
    %cst = arith.constant 0.000000e+00 : f32
    %21 = vector.broadcast %cst : f32 to vector<192x128xf32>
    %22 = arith.cmpf oge, %20, %21 : vector<192x128xf32>
    %cst_16 = arith.constant 1.000000e-01 : f32
    %23 = vector.broadcast %cst_16 : f32 to vector<192x128xf32>
    %24 = arith.mulf %23, %20 : vector<192x128xf32>
    %25 = arith.select %22, %20, %24 : vector<192x128xi1>, vector<192x128xf32>
    %cst_17 = arith.constant 0.000000e+00 : f32
    %26 = vector.shape_cast %18 : vector<192x1xi1> to vector<192x1xi1>
    %27 = vector.broadcast %26 : vector<192x1xi1> to vector<192x128xi1>
    %28 = vector.broadcast %cst_17 : f32 to vector<192x128xf32>
    %29 = arith.select %27, %25, %28 : vector<192x128xi1>, vector<192x128xf32>
    %c1_i32 = arith.constant 1 : i32
    %30 = tpu.dynamic_rotate %29 by %c1_i32 dim 0 : vector<192x128xf32>, i32 -> vector<192x128xf32>
    %c0_18 = arith.constant 0 : index
    %c0_19 = arith.constant 0 : index
    %c0_20 = arith.constant 0 : index
    %c0_21 = arith.constant 0 : index
    %31 = vector.load %arg3[%c0_18, %c0_19, %c0_20, %c0_21] : memref<6x3x128x128xf32, #tpu.memory_space<vmem>>, vector<1x1x128x128xf32>
    %32 = vector.shape_cast %31 : vector<1x1x128x128xf32> to vector<128x128xf32>
    %cst_22 = arith.constant dense<0.000000e+00> : vector<192x128xf32>
    %33 = tpu.matmul %30, %32, %cst_22 {dimension_numbers = #tpu.dot_dimension_numbers<[1], [0], [0], [1], [0, 0, 1, 1], [], []>} : vector<192x128xf32>, vector<128x128xf32>, vector<192x128xf32> -> vector<192x128xf32>
    %c0_23 = arith.constant 0 : index
    %c1 = arith.constant 1 : index
    %c0_24 = arith.constant 0 : index
    %c0_25 = arith.constant 0 : index
    %34 = vector.load %arg3[%c0_23, %c1, %c0_24, %c0_25] : memref<6x3x128x128xf32, #tpu.memory_space<vmem>>, vector<1x1x128x128xf32>
    %35 = vector.shape_cast %34 : vector<1x1x128x128xf32> to vector<128x128xf32>
    %cst_26 = arith.constant dense<0.000000e+00> : vector<192x128xf32>
    %36 = tpu.matmul %29, %35, %cst_26 {dimension_numbers = #tpu.dot_dimension_numbers<[1], [0], [0], [1], [0, 0, 1, 1], [], []>} : vector<192x128xf32>, vector<128x128xf32>, vector<192x128xf32> -> vector<192x128xf32>
    %37 = arith.addf %33, %36 : vector<192x128xf32>
    %c191_i32 = arith.constant 191 : i32
    %38 = tpu.dynamic_rotate %29 by %c191_i32 dim 0 : vector<192x128xf32>, i32 -> vector<192x128xf32>
    %c0_27 = arith.constant 0 : index
    %c2 = arith.constant 2 : index
    %c0_28 = arith.constant 0 : index
    %c0_29 = arith.constant 0 : index
    %39 = vector.load %arg3[%c0_27, %c2, %c0_28, %c0_29] : memref<6x3x128x128xf32, #tpu.memory_space<vmem>>, vector<1x1x128x128xf32>
    %40 = vector.shape_cast %39 : vector<1x1x128x128xf32> to vector<128x128xf32>
    %cst_30 = arith.constant dense<0.000000e+00> : vector<192x128xf32>
    %41 = tpu.matmul %38, %40, %cst_30 {dimension_numbers = #tpu.dot_dimension_numbers<[1], [0], [0], [1], [0, 0, 1, 1], [], []>} : vector<192x128xf32>, vector<128x128xf32>, vector<192x128xf32> -> vector<192x128xf32>
    %42 = arith.addf %37, %41 : vector<192x128xf32>
    %c0_31 = arith.constant 0 : index
    %c0_32 = arith.constant 0 : index
    %c0_33 = arith.constant 0 : index
    %43 = vector.load %arg4[%c0_31, %c0_32, %c0_33] : memref<6x1x128xf32, #tpu.memory_space<vmem>>, vector<1x1x128xf32>
    %44 = vector.shape_cast %43 : vector<1x1x128xf32> to vector<1x128xf32>
    %45 = vector.broadcast %44 : vector<1x128xf32> to vector<192x128xf32>
    %46 = arith.addf %42, %45 : vector<192x128xf32>
    %cst_34 = arith.constant 0.000000e+00 : f32
    %47 = vector.broadcast %cst_34 : f32 to vector<192x128xf32>
    %48 = arith.cmpf oge, %46, %47 : vector<192x128xf32>
    %cst_35 = arith.constant 1.000000e-01 : f32
    %49 = vector.broadcast %cst_35 : f32 to vector<192x128xf32>
    %50 = arith.mulf %49, %46 : vector<192x128xf32>
    %51 = arith.select %48, %46, %50 : vector<192x128xi1>, vector<192x128xf32>
    %cst_36 = arith.constant 0.000000e+00 : f32
    %52 = vector.shape_cast %18 : vector<192x1xi1> to vector<192x1xi1>
    %53 = vector.broadcast %52 : vector<192x1xi1> to vector<192x128xi1>
    %54 = vector.broadcast %cst_36 : f32 to vector<192x128xf32>
    %55 = arith.select %53, %51, %54 : vector<192x128xi1>, vector<192x128xf32>
    %c1_i32_37 = arith.constant 1 : i32
    %56 = tpu.dynamic_rotate %55 by %c1_i32_37 dim 0 : vector<192x128xf32>, i32 -> vector<192x128xf32>
    %c1_38 = arith.constant 1 : index
    %c0_39 = arith.constant 0 : index
    %c0_40 = arith.constant 0 : index
    %c0_41 = arith.constant 0 : index
    %57 = vector.load %arg3[%c1_38, %c0_39, %c0_40, %c0_41] : memref<6x3x128x128xf32, #tpu.memory_space<vmem>>, vector<1x1x128x128xf32>
    %58 = vector.shape_cast %57 : vector<1x1x128x128xf32> to vector<128x128xf32>
    %cst_42 = arith.constant dense<0.000000e+00> : vector<192x128xf32>
    %59 = tpu.matmul %56, %58, %cst_42 {dimension_numbers = #tpu.dot_dimension_numbers<[1], [0], [0], [1], [0, 0, 1, 1], [], []>} : vector<192x128xf32>, vector<128x128xf32>, vector<192x128xf32> -> vector<192x128xf32>
    %c1_43 = arith.constant 1 : index
    %c1_44 = arith.constant 1 : index
    %c0_45 = arith.constant 0 : index
    %c0_46 = arith.constant 0 : index
    %60 = vector.load %arg3[%c1_43, %c1_44, %c0_45, %c0_46] : memref<6x3x128x128xf32, #tpu.memory_space<vmem>>, vector<1x1x128x128xf32>
    %61 = vector.shape_cast %60 : vector<1x1x128x128xf32> to vector<128x128xf32>
    %cst_47 = arith.constant dense<0.000000e+00> : vector<192x128xf32>
    %62 = tpu.matmul %55, %61, %cst_47 {dimension_numbers = #tpu.dot_dimension_numbers<[1], [0], [0], [1], [0, 0, 1, 1], [], []>} : vector<192x128xf32>, vector<128x128xf32>, vector<192x128xf32> -> vector<192x128xf32>
    %63 = arith.addf %59, %62 : vector<192x128xf32>
    %c191_i32_48 = arith.constant 191 : i32
    %64 = tpu.dynamic_rotate %55 by %c191_i32_48 dim 0 : vector<192x128xf32>, i32 -> vector<192x128xf32>
    %c1_49 = arith.constant 1 : index
    %c2_50 = arith.constant 2 : index
    %c0_51 = arith.constant 0 : index
    %c0_52 = arith.constant 0 : index
    %65 = vector.load %arg3[%c1_49, %c2_50, %c0_51, %c0_52] : memref<6x3x128x128xf32, #tpu.memory_space<vmem>>, vector<1x1x128x128xf32>
    %66 = vector.shape_cast %65 : vector<1x1x128x128xf32> to vector<128x128xf32>
    %cst_53 = arith.constant dense<0.000000e+00> : vector<192x128xf32>
    %67 = tpu.matmul %64, %66, %cst_53 {dimension_numbers = #tpu.dot_dimension_numbers<[1], [0], [0], [1], [0, 0, 1, 1], [], []>} : vector<192x128xf32>, vector<128x128xf32>, vector<192x128xf32> -> vector<192x128xf32>
    %68 = arith.addf %63, %67 : vector<192x128xf32>
    %c1_54 = arith.constant 1 : index
    %c0_55 = arith.constant 0 : index
    %c0_56 = arith.constant 0 : index
    %69 = vector.load %arg4[%c1_54, %c0_55, %c0_56] : memref<6x1x128xf32, #tpu.memory_space<vmem>>, vector<1x1x128xf32>
    %70 = vector.shape_cast %69 : vector<1x1x128xf32> to vector<1x128xf32>
    %71 = vector.broadcast %70 : vector<1x128xf32> to vector<192x128xf32>
    %72 = arith.addf %68, %71 : vector<192x128xf32>
    %73 = arith.addf %20, %72 : vector<192x128xf32>
    %cst_57 = arith.constant 0.000000e+00 : f32
    %74 = vector.broadcast %cst_57 : f32 to vector<192x128xf32>
    %75 = arith.cmpf oge, %73, %74 : vector<192x128xf32>
    %cst_58 = arith.constant 1.000000e-01 : f32
    %76 = vector.broadcast %cst_58 : f32 to vector<192x128xf32>
    %77 = arith.mulf %76, %73 : vector<192x128xf32>
    %78 = arith.select %75, %73, %77 : vector<192x128xi1>, vector<192x128xf32>
    %cst_59 = arith.constant 0.000000e+00 : f32
    %79 = vector.shape_cast %18 : vector<192x1xi1> to vector<192x1xi1>
    %80 = vector.broadcast %79 : vector<192x1xi1> to vector<192x128xi1>
    %81 = vector.broadcast %cst_59 : f32 to vector<192x128xf32>
    %82 = arith.select %80, %78, %81 : vector<192x128xi1>, vector<192x128xf32>
    %c3_i32 = arith.constant 3 : i32
    %83 = tpu.dynamic_rotate %82 by %c3_i32 dim 0 : vector<192x128xf32>, i32 -> vector<192x128xf32>
    %c2_60 = arith.constant 2 : index
    %c0_61 = arith.constant 0 : index
    %c0_62 = arith.constant 0 : index
    %c0_63 = arith.constant 0 : index
    %84 = vector.load %arg3[%c2_60, %c0_61, %c0_62, %c0_63] : memref<6x3x128x128xf32, #tpu.memory_space<vmem>>, vector<1x1x128x128xf32>
    %85 = vector.shape_cast %84 : vector<1x1x128x128xf32> to vector<128x128xf32>
    %cst_64 = arith.constant dense<0.000000e+00> : vector<192x128xf32>
    %86 = tpu.matmul %83, %85, %cst_64 {dimension_numbers = #tpu.dot_dimension_numbers<[1], [0], [0], [1], [0, 0, 1, 1], [], []>} : vector<192x128xf32>, vector<128x128xf32>, vector<192x128xf32> -> vector<192x128xf32>
    %c2_65 = arith.constant 2 : index
    %c1_66 = arith.constant 1 : index
    %c0_67 = arith.constant 0 : index
    %c0_68 = arith.constant 0 : index
    %87 = vector.load %arg3[%c2_65, %c1_66, %c0_67, %c0_68] : memref<6x3x128x128xf32, #tpu.memory_space<vmem>>, vector<1x1x128x128xf32>
    %88 = vector.shape_cast %87 : vector<1x1x128x128xf32> to vector<128x128xf32>
    %cst_69 = arith.constant dense<0.000000e+00> : vector<192x128xf32>
    %89 = tpu.matmul %82, %88, %cst_69 {dimension_numbers = #tpu.dot_dimension_numbers<[1], [0], [0], [1], [0, 0, 1, 1], [], []>} : vector<192x128xf32>, vector<128x128xf32>, vector<192x128xf32> -> vector<192x128xf32>
    %90 = arith.addf %86, %89 : vector<192x128xf32>
    %c189_i32 = arith.constant 189 : i32
    %91 = tpu.dynamic_rotate %82 by %c189_i32 dim 0 : vector<192x128xf32>, i32 -> vector<192x128xf32>
    %c2_70 = arith.constant 2 : index
    %c2_71 = arith.constant 2 : index
    %c0_72 = arith.constant 0 : index
    %c0_73 = arith.constant 0 : index
    %92 = vector.load %arg3[%c2_70, %c2_71, %c0_72, %c0_73] : memref<6x3x128x128xf32, #tpu.memory_space<vmem>>, vector<1x1x128x128xf32>
    %93 = vector.shape_cast %92 : vector<1x1x128x128xf32> to vector<128x128xf32>
    %cst_74 = arith.constant dense<0.000000e+00> : vector<192x128xf32>
    %94 = tpu.matmul %91, %93, %cst_74 {dimension_numbers = #tpu.dot_dimension_numbers<[1], [0], [0], [1], [0, 0, 1, 1], [], []>} : vector<192x128xf32>, vector<128x128xf32>, vector<192x128xf32> -> vector<192x128xf32>
    %95 = arith.addf %90, %94 : vector<192x128xf32>
    %c2_75 = arith.constant 2 : index
    %c0_76 = arith.constant 0 : index
    %c0_77 = arith.constant 0 : index
    %96 = vector.load %arg4[%c2_75, %c0_76, %c0_77] : memref<6x1x128xf32, #tpu.memory_space<vmem>>, vector<1x1x128xf32>
    %97 = vector.shape_cast %96 : vector<1x1x128xf32> to vector<1x128xf32>
    %98 = vector.broadcast %97 : vector<1x128xf32> to vector<192x128xf32>
    %99 = arith.addf %95, %98 : vector<192x128xf32>
    %cst_78 = arith.constant 0.000000e+00 : f32
    %100 = vector.broadcast %cst_78 : f32 to vector<192x128xf32>
    %101 = arith.cmpf oge, %99, %100 : vector<192x128xf32>
    %cst_79 = arith.constant 1.000000e-01 : f32
    %102 = vector.broadcast %cst_79 : f32 to vector<192x128xf32>
    %103 = arith.mulf %102, %99 : vector<192x128xf32>
    %104 = arith.select %101, %99, %103 : vector<192x128xi1>, vector<192x128xf32>
    %cst_80 = arith.constant 0.000000e+00 : f32
    %105 = vector.shape_cast %18 : vector<192x1xi1> to vector<192x1xi1>
    %106 = vector.broadcast %105 : vector<192x1xi1> to vector<192x128xi1>
    %107 = vector.broadcast %cst_80 : f32 to vector<192x128xf32>
    %108 = arith.select %106, %104, %107 : vector<192x128xi1>, vector<192x128xf32>
    %c1_i32_81 = arith.constant 1 : i32
    %109 = tpu.dynamic_rotate %108 by %c1_i32_81 dim 0 : vector<192x128xf32>, i32 -> vector<192x128xf32>
    %c3 = arith.constant 3 : index
    %c0_82 = arith.constant 0 : index
    %c0_83 = arith.constant 0 : index
    %c0_84 = arith.constant 0 : index
    %110 = vector.load %arg3[%c3, %c0_82, %c0_83, %c0_84] : memref<6x3x128x128xf32, #tpu.memory_space<vmem>>, vector<1x1x128x128xf32>
    %111 = vector.shape_cast %110 : vector<1x1x128x128xf32> to vector<128x128xf32>
    %cst_85 = arith.constant dense<0.000000e+00> : vector<192x128xf32>
    %112 = tpu.matmul %109, %111, %cst_85 {dimension_numbers = #tpu.dot_dimension_numbers<[1], [0], [0], [1], [0, 0, 1, 1], [], []>} : vector<192x128xf32>, vector<128x128xf32>, vector<192x128xf32> -> vector<192x128xf32>
    %c3_86 = arith.constant 3 : index
    %c1_87 = arith.constant 1 : index
    %c0_88 = arith.constant 0 : index
    %c0_89 = arith.constant 0 : index
    %113 = vector.load %arg3[%c3_86, %c1_87, %c0_88, %c0_89] : memref<6x3x128x128xf32, #tpu.memory_space<vmem>>, vector<1x1x128x128xf32>
    %114 = vector.shape_cast %113 : vector<1x1x128x128xf32> to vector<128x128xf32>
    %cst_90 = arith.constant dense<0.000000e+00> : vector<192x128xf32>
    %115 = tpu.matmul %108, %114, %cst_90 {dimension_numbers = #tpu.dot_dimension_numbers<[1], [0], [0], [1], [0, 0, 1, 1], [], []>} : vector<192x128xf32>, vector<128x128xf32>, vector<192x128xf32> -> vector<192x128xf32>
    %116 = arith.addf %112, %115 : vector<192x128xf32>
    %c191_i32_91 = arith.constant 191 : i32
    %117 = tpu.dynamic_rotate %108 by %c191_i32_91 dim 0 : vector<192x128xf32>, i32 -> vector<192x128xf32>
    %c3_92 = arith.constant 3 : index
    %c2_93 = arith.constant 2 : index
    %c0_94 = arith.constant 0 : index
    %c0_95 = arith.constant 0 : index
    %118 = vector.load %arg3[%c3_92, %c2_93, %c0_94, %c0_95] : memref<6x3x128x128xf32, #tpu.memory_space<vmem>>, vector<1x1x128x128xf32>
    %119 = vector.shape_cast %118 : vector<1x1x128x128xf32> to vector<128x128xf32>
    %cst_96 = arith.constant dense<0.000000e+00> : vector<192x128xf32>
    %120 = tpu.matmul %117, %119, %cst_96 {dimension_numbers = #tpu.dot_dimension_numbers<[1], [0], [0], [1], [0, 0, 1, 1], [], []>} : vector<192x128xf32>, vector<128x128xf32>, vector<192x128xf32> -> vector<192x128xf32>
    %121 = arith.addf %116, %120 : vector<192x128xf32>
    %c3_97 = arith.constant 3 : index
    %c0_98 = arith.constant 0 : index
    %c0_99 = arith.constant 0 : index
    %122 = vector.load %arg4[%c3_97, %c0_98, %c0_99] : memref<6x1x128xf32, #tpu.memory_space<vmem>>, vector<1x1x128xf32>
    %123 = vector.shape_cast %122 : vector<1x1x128xf32> to vector<1x128xf32>
    %124 = vector.broadcast %123 : vector<1x128xf32> to vector<192x128xf32>
    %125 = arith.addf %121, %124 : vector<192x128xf32>
    %126 = arith.addf %73, %125 : vector<192x128xf32>
    %cst_100 = arith.constant 0.000000e+00 : f32
    %127 = vector.broadcast %cst_100 : f32 to vector<192x128xf32>
    %128 = arith.cmpf oge, %126, %127 : vector<192x128xf32>
    %cst_101 = arith.constant 1.000000e-01 : f32
    %129 = vector.broadcast %cst_101 : f32 to vector<192x128xf32>
    %130 = arith.mulf %129, %126 : vector<192x128xf32>
    %131 = arith.select %128, %126, %130 : vector<192x128xi1>, vector<192x128xf32>
    %cst_102 = arith.constant 0.000000e+00 : f32
    %132 = vector.shape_cast %18 : vector<192x1xi1> to vector<192x1xi1>
    %133 = vector.broadcast %132 : vector<192x1xi1> to vector<192x128xi1>
    %134 = vector.broadcast %cst_102 : f32 to vector<192x128xf32>
    %135 = arith.select %133, %131, %134 : vector<192x128xi1>, vector<192x128xf32>
    %c5_i32 = arith.constant 5 : i32
    %136 = tpu.dynamic_rotate %135 by %c5_i32 dim 0 : vector<192x128xf32>, i32 -> vector<192x128xf32>
    %c4 = arith.constant 4 : index
    %c0_103 = arith.constant 0 : index
    %c0_104 = arith.constant 0 : index
    %c0_105 = arith.constant 0 : index
    %137 = vector.load %arg3[%c4, %c0_103, %c0_104, %c0_105] : memref<6x3x128x128xf32, #tpu.memory_space<vmem>>, vector<1x1x128x128xf32>
    %138 = vector.shape_cast %137 : vector<1x1x128x128xf32> to vector<128x128xf32>
    %cst_106 = arith.constant dense<0.000000e+00> : vector<192x128xf32>
    %139 = tpu.matmul %136, %138, %cst_106 {dimension_numbers = #tpu.dot_dimension_numbers<[1], [0], [0], [1], [0, 0, 1, 1], [], []>} : vector<192x128xf32>, vector<128x128xf32>, vector<192x128xf32> -> vector<192x128xf32>
    %c4_107 = arith.constant 4 : index
    %c1_108 = arith.constant 1 : index
    %c0_109 = arith.constant 0 : index
    %c0_110 = arith.constant 0 : index
    %140 = vector.load %arg3[%c4_107, %c1_108, %c0_109, %c0_110] : memref<6x3x128x128xf32, #tpu.memory_space<vmem>>, vector<1x1x128x128xf32>
    %141 = vector.shape_cast %140 : vector<1x1x128x128xf32> to vector<128x128xf32>
    %cst_111 = arith.constant dense<0.000000e+00> : vector<192x128xf32>
    %142 = tpu.matmul %135, %141, %cst_111 {dimension_numbers = #tpu.dot_dimension_numbers<[1], [0], [0], [1], [0, 0, 1, 1], [], []>} : vector<192x128xf32>, vector<128x128xf32>, vector<192x128xf32> -> vector<192x128xf32>
    %143 = arith.addf %139, %142 : vector<192x128xf32>
    %c187_i32 = arith.constant 187 : i32
    %144 = tpu.dynamic_rotate %135 by %c187_i32 dim 0 : vector<192x128xf32>, i32 -> vector<192x128xf32>
    %c4_112 = arith.constant 4 : index
    %c2_113 = arith.constant 2 : index
    %c0_114 = arith.constant 0 : index
    %c0_115 = arith.constant 0 : index
    %145 = vector.load %arg3[%c4_112, %c2_113, %c0_114, %c0_115] : memref<6x3x128x128xf32, #tpu.memory_space<vmem>>, vector<1x1x128x128xf32>
    %146 = vector.shape_cast %145 : vector<1x1x128x128xf32> to vector<128x128xf32>
    %cst_116 = arith.constant dense<0.000000e+00> : vector<192x128xf32>
    %147 = tpu.matmul %144, %146, %cst_116 {dimension_numbers = #tpu.dot_dimension_numbers<[1], [0], [0], [1], [0, 0, 1, 1], [], []>} : vector<192x128xf32>, vector<128x128xf32>, vector<192x128xf32> -> vector<192x128xf32>
    %148 = arith.addf %143, %147 : vector<192x128xf32>
    %c4_117 = arith.constant 4 : index
    %c0_118 = arith.constant 0 : index
    %c0_119 = arith.constant 0 : index
    %149 = vector.load %arg4[%c4_117, %c0_118, %c0_119] : memref<6x1x128xf32, #tpu.memory_space<vmem>>, vector<1x1x128xf32>
    %150 = vector.shape_cast %149 : vector<1x1x128xf32> to vector<1x128xf32>
    %151 = vector.broadcast %150 : vector<1x128xf32> to vector<192x128xf32>
    %152 = arith.addf %148, %151 : vector<192x128xf32>
    %cst_120 = arith.constant 0.000000e+00 : f32
    %153 = vector.broadcast %cst_120 : f32 to vector<192x128xf32>
    %154 = arith.cmpf oge, %152, %153 : vector<192x128xf32>
    %cst_121 = arith.constant 1.000000e-01 : f32
    %155 = vector.broadcast %cst_121 : f32 to vector<192x128xf32>
    %156 = arith.mulf %155, %152 : vector<192x128xf32>
    %157 = arith.select %154, %152, %156 : vector<192x128xi1>, vector<192x128xf32>
    %cst_122 = arith.constant 0.000000e+00 : f32
    %158 = vector.shape_cast %18 : vector<192x1xi1> to vector<192x1xi1>
    %159 = vector.broadcast %158 : vector<192x1xi1> to vector<192x128xi1>
    %160 = vector.broadcast %cst_122 : f32 to vector<192x128xf32>
    %161 = arith.select %159, %157, %160 : vector<192x128xi1>, vector<192x128xf32>
    %c1_i32_123 = arith.constant 1 : i32
    %162 = tpu.dynamic_rotate %161 by %c1_i32_123 dim 0 : vector<192x128xf32>, i32 -> vector<192x128xf32>
    %c5 = arith.constant 5 : index
    %c0_124 = arith.constant 0 : index
    %c0_125 = arith.constant 0 : index
    %c0_126 = arith.constant 0 : index
    %163 = vector.load %arg3[%c5, %c0_124, %c0_125, %c0_126] : memref<6x3x128x128xf32, #tpu.memory_space<vmem>>, vector<1x1x128x128xf32>
    %164 = vector.shape_cast %163 : vector<1x1x128x128xf32> to vector<128x128xf32>
    %cst_127 = arith.constant dense<0.000000e+00> : vector<192x128xf32>
    %165 = tpu.matmul %162, %164, %cst_127 {dimension_numbers = #tpu.dot_dimension_numbers<[1], [0], [0], [1], [0, 0, 1, 1], [], []>} : vector<192x128xf32>, vector<128x128xf32>, vector<192x128xf32> -> vector<192x128xf32>
    %c5_128 = arith.constant 5 : index
    %c1_129 = arith.constant 1 : index
    %c0_130 = arith.constant 0 : index
    %c0_131 = arith.constant 0 : index
    %166 = vector.load %arg3[%c5_128, %c1_129, %c0_130, %c0_131] : memref<6x3x128x128xf32, #tpu.memory_space<vmem>>, vector<1x1x128x128xf32>
    %167 = vector.shape_cast %166 : vector<1x1x128x128xf32> to vector<128x128xf32>
    %cst_132 = arith.constant dense<0.000000e+00> : vector<192x128xf32>
    %168 = tpu.matmul %161, %167, %cst_132 {dimension_numbers = #tpu.dot_dimension_numbers<[1], [0], [0], [1], [0, 0, 1, 1], [], []>} : vector<192x128xf32>, vector<128x128xf32>, vector<192x128xf32> -> vector<192x128xf32>
    %169 = arith.addf %165, %168 : vector<192x128xf32>
    %c191_i32_133 = arith.constant 191 : i32
    %170 = tpu.dynamic_rotate %161 by %c191_i32_133 dim 0 : vector<192x128xf32>, i32 -> vector<192x128xf32>
    %c5_134 = arith.constant 5 : index
    %c2_135 = arith.constant 2 : index
    %c0_136 = arith.constant 0 : index
    %c0_137 = arith.constant 0 : index
    %171 = vector.load %arg3[%c5_134, %c2_135, %c0_136, %c0_137] : memref<6x3x128x128xf32, #tpu.memory_space<vmem>>, vector<1x1x128x128xf32>
    %172 = vector.shape_cast %171 : vector<1x1x128x128xf32> to vector<128x128xf32>
    %cst_138 = arith.constant dense<0.000000e+00> : vector<192x128xf32>
    %173 = tpu.matmul %170, %172, %cst_138 {dimension_numbers = #tpu.dot_dimension_numbers<[1], [0], [0], [1], [0, 0, 1, 1], [], []>} : vector<192x128xf32>, vector<128x128xf32>, vector<192x128xf32> -> vector<192x128xf32>
    %174 = arith.addf %169, %173 : vector<192x128xf32>
    %c5_139 = arith.constant 5 : index
    %c0_140 = arith.constant 0 : index
    %c0_141 = arith.constant 0 : index
    %175 = vector.load %arg4[%c5_139, %c0_140, %c0_141] : memref<6x1x128xf32, #tpu.memory_space<vmem>>, vector<1x1x128xf32>
    %176 = vector.shape_cast %175 : vector<1x1x128xf32> to vector<1x128xf32>
    %177 = vector.broadcast %176 : vector<1x128xf32> to vector<192x128xf32>
    %178 = arith.addf %174, %177 : vector<192x128xf32>
    %179 = arith.addf %126, %178 : vector<192x128xf32>
    %180 = vector.shape_cast %179 : vector<192x128xf32> to vector<2x96x128xf32>
    %181 = vector.extract_strided_slice %180 {offsets = [0, 16, 0], sizes = [2, 64, 128], strides = [1, 1, 1]} : vector<2x96x128xf32> to vector<2x64x128xf32>
    %c0_142 = arith.constant 0 : index
    %c0_143 = arith.constant 0 : index
    %c0_144 = arith.constant 0 : index
    %182 = vector.load %arg5[%c0_142, %c0_143, %c0_144] : memref<2x64x128xf32, #tpu.memory_space<vmem>>, vector<2x64x128xf32>
    tpu.vector_store %arg5[%c0_142, %c0_143, %c0_144], %181 {strides = array<i32>} : memref<2x64x128xf32, #tpu.memory_space<vmem>>, vector<2x64x128xf32>,
    return
  }
  func.func @transform_0(%arg0: i32) -> (i32, i32, i32) {
    %c0_i32 = arith.constant 0 : i32
    %c0_i32_0 = arith.constant 0 : i32
    %c0_i32_1 = arith.constant 0 : i32
    return %c0_i32, %arg0, %c0_i32_0 : i32, i32, i32
  }
  func.func @transform_1(%arg0: i32) -> (i32, i32, i32, i32) {
    %c0_i32 = arith.constant 0 : i32
    %c0_i32_0 = arith.constant 0 : i32
    %c0_i32_1 = arith.constant 0 : i32
    %c0_i32_2 = arith.constant 0 : i32
    return %arg0, %c0_i32, %c0_i32_0, %c0_i32_1 : i32, i32, i32, i32
  }
  func.func @transform_2(%arg0: i32) -> (i32, i32, i32, i32) {
    %c0_i32 = arith.constant 0 : i32
    %c0_i32_0 = arith.constant 0 : i32
    %c0_i32_1 = arith.constant 0 : i32
    %c0_i32_2 = arith.constant 0 : i32
    %c0_i32_3 = arith.constant 0 : i32
    return %c0_i32, %c0_i32_0, %c0_i32_1, %c0_i32_2 : i32, i32, i32, i32
  }
  func.func @transform_3(%arg0: i32) -> (i32, i32, i32) {
    %c0_i32 = arith.constant 0 : i32
    %c0_i32_0 = arith.constant 0 : i32
    %c0_i32_1 = arith.constant 0 : i32
    %c0_i32_2 = arith.constant 0 : i32
    return %c0_i32, %c0_i32_0, %c0_i32_1 : i32, i32, i32
  }
  func.func @transform_4(%arg0: i32) -> (i32, i32, i32) {
    %c0_i32 = arith.constant 0 : i32
    %c0_i32_0 = arith.constant 0 : i32
    %c0_i32_1 = arith.constant 0 : i32
    return %c0_i32, %arg0, %c0_i32_0 : i32, i32, i32
  }
}

</mosaic_0001>

<llo_original>
// kernel: resblock1_forward_nlc.1
$region0: #{resblock1_forward_nlc.1}
  #allocation0 [shape = 'u32[]', space=smem, size = 0x4, offset = 0x4, fixed_abs, tag = 'smem constant byte address 0x4 - core index']
  #allocation1 [shape = 'u32[144,128]{1,0:T(1,128)}', space=vmem, size = 0x12000, scoped, tag = 'internal scratch']
  #allocation2 [shape = 'f32[2,96,128]{2,1,0:T(8,128)}', space=vmem, size = 0x18000, scoped, tag = 'scratch operand']
  #allocation6 [shape = 's32[]', space=sflag, size = 0x4, offset = 0, fixed_abs, tag = 'sflag constant byte address 0x0 - dummy sync flag']
  %s0 = inlined_call_operand.vmem [shape: f32[2,200,128], index: 0, kind: input, shape index: {}]
  %s1 = inlined_call_operand.vmem [shape: f32[4,2,32,128], index: 1, kind: input, shape index: {}]
  %s2 = inlined_call_operand.vmem [shape: f32[6,3,128,128], index: 2, kind: input, shape index: {}]
  %s3 = inlined_call_operand.vmem [shape: f32[6,1,128], index: 3, kind: input, shape index: {}]
  %s4 = inlined_call_operand.hbm [shape: f32[2,200,128], index: 4, kind: output, shape index: {}]
  %s5 = sld [smem:[#allocation0]]
  $region101: #{resblock1_forward_nlc.1} parent=0
    _
  %s7 = ssub.s32 1, %s5
  %s8 = scalar_select 0, %s7, %s5
  $region1: #{resblock1_forward_nlc.1} parent=0
    #allocation3 [shape = 'u8[131072]{0}', space=vmem, size = 0x20000, scoped, tag = 'input window, operand 0']
    #allocation4 [shape = 'u8[131072]{0}', space=vmem, size = 0x20000, scoped, tag = 'output window, operand 0']
    #allocation5 [shape = 's32[2]{0}', space=sflag, size = 0x8, scoped, tag = 'scoped memory for resblock1_forward_nlc.1']
    %9 = vsyncpa [#allocation5], 0
    %s10 = scalar_lea.sflag [#allocation5], 1
    %11 = vsyncpa %s10, 0
    loop: start=0, step=1, limit=6
    $region2: #{resblock1_forward_nlc.1} parent=1 // loop_pre_header
      _
    $region3: #{resblock1_forward_nlc.1} parent=1 // loop_header
      %s13 = sphi 0, %s17
      %p14 = scmp.ge.s32.totalorder %s13, 6
      %s23 = sphi 0, %s25
      %s26 = sphi 0, %s23
      %s27 = sphi 0, %s26
      %s43 = sphi 0, %s27
      %s49 = sphi 0, %s51
      %s52 = sphi 0, %s49
      %s53 = sphi 0, %s52
      %s69 = sphi 0, %s53
      %s73 = sphi 0, %s73
      %s75 = sphi 0, %s73
      %s76 = sphi 0, %s75
      %s90 = sphi 0, %s76
      %s94 = sphi 0, %s94
      %s96 = sphi 0, %s94
      %s97 = sphi 0, %s96
      %s111 = sphi 0, %s97
      %s117 = sphi 0, %s119
      %s120 = sphi 0, %s117
      %s121 = sphi 0, %s120
      %s137 = sphi 0, %s121
    $region4: #{resblock1_forward_nlc.1} parent=1 // loop_header_branch
      %16 = sbr.rel (%p14) target = $region8
    $region5: #{resblock1_forward_nlc.1} parent=1 // loop_body
      %s18 = ssub.s32 %s13, 1
      %s19 = ssub.s32 %s13, 2
      %s20 = sadd.s32 %s13, 1
      %s21 = ssub.s32 %s13, %s20
      %p22 = scmp.eq.s32.totalorder %s21, 0
      %s24 = sadd.s32 %s23, 1
      %s25 = scalar_select %p22, %s23, %s24
      %p28 = pneg %p22
      %p29 = scmp.eq.s32.totalorder %s13, 3
      %p30 = por %p28, %p29
      %p31 = scmp.ne.s32.totalorder %s23, %s26
      %p32 = scmp.eq.s32.totalorder %s13, 0
      %p33 = por %p31, %p32
      %p34 = scmp.ne.s32.totalorder %s23, %s26
      %p35 = scmp.eq.s32.totalorder %s18, 3
      %p36 = por %p34, %p35
      %p37 = scmp.ne.s32.totalorder %s26, %s27
      %p38 = scmp.eq.s32.totalorder %s18, 0
      %p39 = por %p37, %p38
      %p40 = scmp.ne.s32.totalorder %s26, %s27
      %p41 = scmp.eq.s32.totalorder %s19, 3
      %p42 = por %p40, %p41
      %p44 = scmp.ne.s32.totalorder %s27, %s43
      %p45 = scmp.eq.s32.totalorder %s19, 0
      %p46 = por %p44, %p45
      %s47 = ssub.s32 %s13, %s20
      %p48 = scmp.eq.s32.totalorder %s47, 0
      %s50 = sadd.s32 %s49, 1
      %s51 = scalar_select %p48, %s49, %s50
      %p54 = pneg %p48
      %p55 = scmp.eq.s32.totalorder %s13, 3
      %p56 = por %p54, %p55
      %p57 = scmp.ne.s32.totalorder %s49, %s52
      %p58 = scmp.eq.s32.totalorder %s13, 0
      %p59 = por %p57, %p58
      %p60 = scmp.ne.s32.totalorder %s49, %s52
      %p61 = scmp.eq.s32.totalorder %s18, 3
      %p62 = por %p60, %p61
      %p63 = scmp.ne.s32.totalorder %s52, %s53
      %p64 = scmp.eq.s32.totalorder %s18, 0
      %p65 = por %p63, %p64
      %p66 = scmp.ne.s32.totalorder %s52, %s53
      %p67 = scmp.eq.s32.totalorder %s19, 3
      %p68 = por %p66, %p67
      %p70 = scmp.ne.s32.totalorder %s53, %s69
      %p71 = scmp.eq.s32.totalorder %s19, 0
      %p72 = por %p70, %p71
      %s74 = sadd.s32 %s73, 1
      %p77 = scmp.eq.s32.totalorder %s13, 3
      %p78 = scmp.ne.s32.totalorder %s73, %s75
      %p79 = scmp.eq.s32.totalorder %s13, 0
      %p80 = por %p78, %p79
      %p81 = scmp.ne.s32.totalorder %s73, %s75
      %p82 = scmp.eq.s32.totalorder %s18, 3
      %p83 = por %p81, %p82
      %p84 = scmp.ne.s32.totalorder %s75, %s76
      %p85 = scmp.eq.s32.totalorder %s18, 0
      %p86 = por %p84, %p85
      %p87 = scmp.ne.s32.totalorder %s75, %s76
      %p88 = scmp.eq.s32.totalorder %s19, 3
      %p89 = por %p87, %p88
      %p91 = scmp.ne.s32.totalorder %s76, %s90
      %p92 = scmp.eq.s32.totalorder %s19, 0
      %p93 = por %p91, %p92
      %s95 = sadd.s32 %s94, 1
      %p98 = scmp.eq.s32.totalorder %s13, 3
      %p99 = scmp.ne.s32.totalorder %s94, %s96
      %p100 = scmp.eq.s32.totalorder %s13, 0
      %p101 = por %p99, %p100
      %p102 = scmp.ne.s32.totalorder %s94, %s96
      %p103 = scmp.eq.s32.totalorder %s18, 3
      %p104 = por %p102, %p103
      %p105 = scmp.ne.s32.totalorder %s96, %s97
      %p106 = scmp.eq.s32.totalorder %s18, 0
      %p107 = por %p105, %p106
      %p108 = scmp.ne.s32.totalorder %s96, %s97
      %p109 = scmp.eq.s32.totalorder %s19, 3
      %p110 = por %p108, %p109
      %p112 = scmp.ne.s32.totalorder %s97, %s111
      %p113 = scmp.eq.s32.totalorder %s19, 0
      %p114 = por %p112, %p113
      %s115 = ssub.s32 %s13, %s20
      %p116 = scmp.eq.s32.totalorder %s115, 0
      %s118 = sadd.s32 %s117, 1
      %s119 = scalar_select %p116, %s117, %s118
      %p122 = pneg %p116
      %p123 = scmp.eq.s32.totalorder %s13, 3
      %p124 = por %p122, %p123
      %p125 = scmp.ne.s32.totalorder %s117, %s120
      %p126 = scmp.eq.s32.totalorder %s13, 0
      %p127 = por %p125, %p126
      %p128 = scmp.ne.s32.totalorder %s117, %s120
      %p129 = scmp.eq.s32.totalorder %s18, 3
      %p130 = por %p128, %p129
      %p131 = scmp.ne.s32.totalorder %s120, %s121
      %p132 = scmp.eq.s32.totalorder %s18, 0
      %p133 = por %p131, %p132
      %p134 = scmp.ne.s32.totalorder %s120, %s121
      %p135 = scmp.eq.s32.totalorder %s19, 3
      %p136 = por %p134, %p135
      %p138 = scmp.ne.s32.totalorder %s121, %s137
      %p139 = scmp.eq.s32.totalorder %s19, 0
      %p140 = por %p138, %p139
      %p141 = scmp.le.s32.totalorder 1, %s13
      %p142 = scmp.lt.s32.totalorder %s13, 5
      %p143 = pnand %p141, %p142
      %p144 = pneg %p143
      // Predicated region
      $region9: #{resblock1_forward_nlc.1} parent=5 // pred_check
        _
      $region10: #{resblock1_forward_nlc.1} parent=5 // pred_check_branch
        %146 = sbr.rel (%p143) target = $region12
      $region11: #{resblock1_forward_nlc.1} parent=5 // pred_region
        %s147 = ssub.s32 %s13, 1
        // Predicated region
        $region13: #{resblock1_forward_nlc.1} parent=11 // pred_check
          %p148 = pneg %p86
        $region14: #{resblock1_forward_nlc.1} parent=11 // pred_check_branch
          %150 = sbr.rel (%p148) target = $region16
        $region15: #{resblock1_forward_nlc.1} parent=11 // pred_region
          _
        $region16: #{resblock1_forward_nlc.1} parent=11 // pred_fallthru
          _
        // Predicated region
        $region17: #{resblock1_forward_nlc.1} parent=11 // pred_check
          %p151 = pneg %p107
        $region18: #{resblock1_forward_nlc.1} parent=11 // pred_check_branch
          %153 = sbr.rel (%p151) target = $region20
        $region19: #{resblock1_forward_nlc.1} parent=11 // pred_region
          _
        $region20: #{resblock1_forward_nlc.1} parent=11 // pred_fallthru
          _
      $region12: #{resblock1_forward_nlc.1} parent=5 // pred_fallthru
        _
      %p154 = scmp.lt.s32.totalorder %s13, 4
      // Predicated region
      $region21: #{resblock1_forward_nlc.1} parent=5 // pred_check
        %p155 = pneg %p154
      $region22: #{resblock1_forward_nlc.1} parent=5 // pred_check_branch
        %157 = sbr.rel (%p155) target = $region24
      $region23: #{resblock1_forward_nlc.1} parent=5 // pred_region
        // Predicated region
        $region25: #{resblock1_forward_nlc.1} parent=23 // pred_check
          %p158 = pneg %p33
        $region26: #{resblock1_forward_nlc.1} parent=23 // pred_check_branch
          %160 = sbr.rel (%p158) target = $region28
        $region27: #{resblock1_forward_nlc.1} parent=23 // pred_region
          %s161 = sand.u32 %s23, 1
          %s162 = sand.u32 %s23, 1
          %s163 = smul.addr %s162, 128
          %s164 = scalar_lea.vmem [#allocation3], %s163
          %s165 = smul.u32 8, %s13
          %s166 = ssub.s32 25, %s165
          %p167 = scmp.lt.s32.totalorder %s166, 8
          %s168 = scalar_select %p167, %s166, 8
          %s169 = smul.u32 256, %s168
          %p170 = scmp.ne.s32.totalorder 0, %s169
          %s171 = smul.addr %s165, 8
          %s172 = scalar_lea.vmem %s0, %s171
          // Predicated region
          $region29: #{resblock1_forward_nlc.1} parent=27 // pred_check
            %p173 = pneg %p170
          $region30: #{resblock1_forward_nlc.1} parent=27 // pred_check_branch
            %175 = sbr.rel (%p173) target = $region32
          $region31: #{resblock1_forward_nlc.1} parent=27 // pred_region
            // Predicated region
            $region33: #{resblock1_forward_nlc.1} parent=31 // pred_check
              _
            $region34: #{resblock1_forward_nlc.1} parent=31 // pred_check_branch
              %177 = sbr.rel (0) target = $region36
            $region35: #{resblock1_forward_nlc.1} parent=31 // pred_region
              // Predicated region
              $region55: #{resblock1_forward_nlc.1} parent=35 // pred_check
                _
              $region56: #{resblock1_forward_nlc.1} parent=35 // pred_check_branch
                %258 = sbr.rel (0) target = $region58
              $region57: #{resblock1_forward_nlc.1} parent=35 // pred_region
                %s259 = sshrl.u32 %s168, 3
                // While loop
                $region59: #{resblock1_forward_nlc.1} parent=57 // loop_pre_header
                  _
                $region60: #{resblock1_forward_nlc.1} parent=57 // loop_header
                  %s261 = sphi 0, %s263
                  %p262 = scmp.ge.s32.totalorder %s261, %s259
                  %s266 = sphi 0, %s303
                  %s267 = sphi %s172, %s306
                  %s268 = sphi %s164, %s307
                $region61: #{resblock1_forward_nlc.1} parent=57 // loop_header_branch
                  %265 = sbr.rel (%p262) target = $region65
                $region62: #{resblock1_forward_nlc.1} parent=57 // loop_body
                  %v269 = vld [vmem:[%s267] sm:$0xff]
                  %270 = vst [vmem:[%s268] sm:$0xff] %v269
                  %v271 = vld [vmem:[%s267 + $0x8] sm:$0xff]
                  %272 = vst [vmem:[%s268 + $0x8] sm:$0xff] %v271
                  %v273 = vld [vmem:[%s267 + $0x10] sm:$0xff]
                  %274 = vst [vmem:[%s268 + $0x10] sm:$0xff] %v273
                  %v275 = vld [vmem:[%s267 + $0x18] sm:$0xff]
                  %276 = vst [vmem:[%s268 + $0x18] sm:$0xff] %v275
                  %v277 = vld [vmem:[%s267 + $0x20] sm:$0xff]
                  %278 = vst [vmem:[%s268 + $0x20] sm:$0xff] %v277
                  %v279 = vld [vmem:[%s267 + $0x28] sm:$0xff]
                  %280 = vst [vmem:[%s268 + $0x28] sm:$0xff] %v279
                  %v281 = vld [vmem:[%s267 + $0x30] sm:$0xff]
                  %282 = vst [vmem:[%s268 + $0x30] sm:$0xff] %v281
                  %v283 = vld [vmem:[%s267 + $0x38] sm:$0xff]
                  %284 = vst [vmem:[%s268 + $0x38] sm:$0xff] %v283
                  %v285 = vld [vmem:[%s267 + $0xc8] sm:$0xff]
                  %286 = vst [vmem:[%s268 + $0x40] sm:$0xff] %v285
                  %v287 = vld [vmem:[%s267 + $0xd0] sm:$0xff]
                  %288 = vst [vmem:[%s268 + $0x48] sm:$0xff] %v287
                  %v289 = vld [vmem:[%s267 + $0xd8] sm:$0xff]
                  %290 = vst [vmem:[%s268 + $0x50] sm:$0xff] %v289
                  %v291 = vld [vmem:[%s267 + $0xe0] sm:$0xff]
                  %292 = vst [vmem:[%s268 + $0x58] sm:$0xff] %v291
                  %v293 = vld [vmem:[%s267 + $0xe8] sm:$0xff]
                  %294 = vst [vmem:[%s268 + $0x60] sm:$0xff] %v293
                  %v295 = vld [vmem:[%s267 + $0xf0] sm:$0xff]
                  %296 = vst [vmem:[%s268 + $0x68] sm:$0xff] %v295
                  %v297 = vld [vmem:[%s267 + $0xf8] sm:$0xff]
                  %298 = vst [vmem:[%s268 + $0x70] sm:$0xff] %v297
                  %v299 = vld [vmem:[%s267 + $0x100] sm:$0xff]
                  %300 = vst [vmem:[%s268 + $0x78] sm:$0xff] %v299
                  %s301 = sadd.s32 1, %s266
                  %p302 = scmp.ge.s32.totalorder %s301, %s259
                  %s303 = scalar_select %p302, 0, %s301
                  %s304 = smul.u32 %s303, 64
                  %s305 = smul.u32 %s303, 64
                  %s306 = scalar_lea.vmem %s172, %s304
                  %s307 = scalar_lea.vmem %s164, %s305 [#allocation3]
                $region63: #{resblock1_forward_nlc.1} parent=57 // loop_footer
                  %s263 = sadd.s32 %s261, 1
                $region64: #{resblock1_forward_nlc.1} parent=57 // loop_footer_branch
                  %260 = sbr.rel target = $region60
                $region65: #{resblock1_forward_nlc.1} parent=57 // loop_exit
                  _
                %s308 = sshrl.u32 %s168, 3
                %s309 = sand.u32 %s168, 7
                %s310 = smul.u32 %s308, 8
                %s311 = smul.u32 8, %s310
                %s312 = scalar_lea.vmem %s172, %s311
                %s313 = smul.u32 8, %s310
                %s314 = scalar_lea.vmem %s164, %s313 [#allocation3]
                // While loop
                $region66: #{resblock1_forward_nlc.1} parent=57 // loop_pre_header
                  _
                $region67: #{resblock1_forward_nlc.1} parent=57 // loop_header
                  %s316 = sphi 0, %s318
                  %p317 = scmp.ge.s32.totalorder %s316, %s309
                  %s321 = sphi 0, %s330
                  %s322 = sphi %s312, %s333
                  %s323 = sphi %s314, %s334
                $region68: #{resblock1_forward_nlc.1} parent=57 // loop_header_branch
                  %320 = sbr.rel (%p317) target = $region72
                $region69: #{resblock1_forward_nlc.1} parent=57 // loop_body
                  %v324 = vld [vmem:[%s322] sm:$0xff]
                  %325 = vst [vmem:[%s323] sm:$0xff] %v324
                  %v326 = vld [vmem:[%s322 + $0xc8] sm:$0xff]
                  %327 = vst [vmem:[%s323 + $0x40] sm:$0xff] %v326
                  %s328 = sadd.s32 1, %s321
                  %p329 = scmp.ge.s32.totalorder %s328, %s309
                  %s330 = scalar_select %p329, 0, %s328
                  %s331 = smul.u32 %s330, 8
                  %s332 = smul.u32 %s330, 8
                  %s333 = scalar_lea.vmem %s312, %s331
                  %s334 = scalar_lea.vmem %s314, %s332 [#allocation3]
                $region70: #{resblock1_forward_nlc.1} parent=57 // loop_footer
                  %s318 = sadd.s32 %s316, 1
                $region71: #{resblock1_forward_nlc.1} parent=57 // loop_footer_branch
                  %315 = sbr.rel target = $region67
                $region72: #{resblock1_forward_nlc.1} parent=57 // loop_exit
                  _
              $region58: #{resblock1_forward_nlc.1} parent=35 // pred_fallthru
                _
              // Predicated region
              $region73: #{resblock1_forward_nlc.1} parent=35 // pred_check
                _
              $region74: #{resblock1_forward_nlc.1} parent=35 // pred_check_branch
                %336 = sbr.rel target = $region76
              $region75: #{resblock1_forward_nlc.1} parent=35 // pred_region
                _
              $region76: #{resblock1_forward_nlc.1} parent=35 // pred_fallthru
                _
            $region36: #{resblock1_forward_nlc.1} parent=31 // pred_fallthru
              _
            // Predicated region
            $region37: #{resblock1_forward_nlc.1} parent=31 // pred_check
              _
            $region38: #{resblock1_forward_nlc.1} parent=31 // pred_check_branch
              %179 = sbr.rel target = $region40
            $region39: #{resblock1_forward_nlc.1} parent=31 // pred_region
              %s181 = sshrl.u32 %s168, 3
              // While loop
              $region41: #{resblock1_forward_nlc.1} parent=39 // loop_pre_header
                _
              $region42: #{resblock1_forward_nlc.1} parent=39 // loop_header
                %s183 = sphi 0, %s185
                %p184 = scmp.ge.s32.totalorder %s183, %s181
                %s188 = sphi 0, %s225
                %s189 = sphi %s172, %s228
                %s190 = sphi %s164, %s229
              $region43: #{resblock1_forward_nlc.1} parent=39 // loop_header_branch
                %187 = sbr.rel (%p184) target = $region47
              $region44: #{resblock1_forward_nlc.1} parent=39 // loop_body
                %v191 = vld [vmem:[%s189] sm:$0xff]
                %192 = vst [vmem:[%s190] sm:$0xff] %v191
                %v193 = vld [vmem:[%s189 + $0x8] sm:$0xff]
                %194 = vst [vmem:[%s190 + $0x8] sm:$0xff] %v193
                %v195 = vld [vmem:[%s189 + $0x10] sm:$0xff]
                %196 = vst [vmem:[%s190 + $0x10] sm:$0xff] %v195
                %v197 = vld [vmem:[%s189 + $0x18] sm:$0xff]
                %198 = vst [vmem:[%s190 + $0x18] sm:$0xff] %v197
                %v199 = vld [vmem:[%s189 + $0x20] sm:$0xff]
                %200 = vst [vmem:[%s190 + $0x20] sm:$0xff] %v199
                %v201 = vld [vmem:[%s189 + $0x28] sm:$0xff]
                %202 = vst [vmem:[%s190 + $0x28] sm:$0xff] %v201
                %v203 = vld [vmem:[%s189 + $0x30] sm:$0xff]
                %204 = vst [vmem:[%s190 + $0x30] sm:$0xff] %v203
                %v205 = vld [vmem:[%s189 + $0x38] sm:$0xff]
                %206 = vst [vmem:[%s190 + $0x38] sm:$0xff] %v205
                %v207 = vld [vmem:[%s189 + $0xc8] sm:$0xff]
                %208 = vst [vmem:[%s190 + $0x40] sm:$0xff] %v207
                %v209 = vld [vmem:[%s189 + $0xd0] sm:$0xff]
                %210 = vst [vmem:[%s190 + $0x48] sm:$0xff] %v209
                %v211 = vld [vmem:[%s189 + $0xd8] sm:$0xff]
                %212 = vst [vmem:[%s190 + $0x50] sm:$0xff] %v211
                %v213 = vld [vmem:[%s189 + $0xe0] sm:$0xff]
                %214 = vst [vmem:[%s190 + $0x58] sm:$0xff] %v213
                %v215 = vld [vmem:[%s189 + $0xe8] sm:$0xff]
                %216 = vst [vmem:[%s190 + $0x60] sm:$0xff] %v215
                %v217 = vld [vmem:[%s189 + $0xf0] sm:$0xff]
                %218 = vst [vmem:[%s190 + $0x68] sm:$0xff] %v217
                %v219 = vld [vmem:[%s189 + $0xf8] sm:$0xff]
                %220 = vst [vmem:[%s190 + $0x70] sm:$0xff] %v219
                %v221 = vld [vmem:[%s189 + $0x100] sm:$0xff]
                %222 = vst [vmem:[%s190 + $0x78] sm:$0xff] %v221
                %s223 = sadd.s32 1, %s188
                %p224 = scmp.ge.s32.totalorder %s223, %s181
                %s225 = scalar_select %p224, 0, %s223
                %s226 = smul.u32 %s225, 64
                %s227 = smul.u32 %s225, 64
                %s228 = scalar_lea.vmem %s172, %s226
                %s229 = scalar_lea.vmem %s164, %s227 [#allocation3]
              $region45: #{resblock1_forward_nlc.1} parent=39 // loop_footer
                %s185 = sadd.s32 %s183, 1
              $region46: #{resblock1_forward_nlc.1} parent=39 // loop_footer_branch
                %182 = sbr.rel target = $region42
              $region47: #{resblock1_forward_nlc.1} parent=39 // loop_exit
                _
              %s230 = sshrl.u32 %s168, 3
              %s231 = sand.u32 %s168, 7
              %s232 = smul.u32 %s230, 8
              %s233 = smul.u32 8, %s232
              %s234 = scalar_lea.vmem %s172, %s233
              %s235 = smul.u32 8, %s232
              %s236 = scalar_lea.vmem %s164, %s235 [#allocation3]
              // While loop
              $region48: #{resblock1_forward_nlc.1} parent=39 // loop_pre_header
                _
              $region49: #{resblock1_forward_nlc.1} parent=39 // loop_header
                %s238 = sphi 0, %s240
                %p239 = scmp.ge.s32.totalorder %s238, %s231
                %s243 = sphi 0, %s252
                %s244 = sphi %s234, %s255
                %s245 = sphi %s236, %s256
              $region50: #{resblock1_forward_nlc.1} parent=39 // loop_header_branch
                %242 = sbr.rel (%p239) target = $region54
              $region51: #{resblock1_forward_nlc.1} parent=39 // loop_body
                %v246 = vld [vmem:[%s244] sm:$0xff]
                %247 = vst [vmem:[%s245] sm:$0xff] %v246
                %v248 = vld [vmem:[%s244 + $0xc8] sm:$0xff]
                %249 = vst [vmem:[%s245 + $0x40] sm:$0xff] %v248
                %s250 = sadd.s32 1, %s243
                %p251 = scmp.ge.s32.totalorder %s250, %s231
                %s252 = scalar_select %p251, 0, %s250
                %s253 = smul.u32 %s252, 8
                %s254 = smul.u32 %s252, 8
                %s255 = scalar_lea.vmem %s234, %s253
                %s256 = scalar_lea.vmem %s236, %s254 [#allocation3]
              $region52: #{resblock1_forward_nlc.1} parent=39 // loop_footer
                %s240 = sadd.s32 %s238, 1
              $region53: #{resblock1_forward_nlc.1} parent=39 // loop_footer_branch
                %237 = sbr.rel target = $region49
              $region54: #{resblock1_forward_nlc.1} parent=39 // loop_exit
                _
            $region40: #{resblock1_forward_nlc.1} parent=31 // pred_fallthru
              _
          $region32: #{resblock1_forward_nlc.1} parent=27 // pred_fallthru
            _
          %337 = vnop
        $region28: #{resblock1_forward_nlc.1} parent=23 // pred_fallthru
          _
        // Predicated region
        $region77: #{resblock1_forward_nlc.1} parent=23 // pred_check
          %p338 = pneg %p59
        $region78: #{resblock1_forward_nlc.1} parent=23 // pred_check_branch
          %340 = sbr.rel (%p338) target = $region80
        $region79: #{resblock1_forward_nlc.1} parent=23 // pred_region
          %p341 = scmp.lt.s32.totalorder %s13, 3
          %s342 = scalar_select %p341, %s13, 3
          %s343 = smul.addr %s342, 8
          %s344 = smul.addr %s343, 8
          %s345 = scalar_lea.vmem %s1, %s344
        $region80: #{resblock1_forward_nlc.1} parent=23 // pred_fallthru
          _
      $region24: #{resblock1_forward_nlc.1} parent=5 // pred_fallthru
        _
      %p346 = scmp.le.s32.totalorder 1, %s13
      %p347 = scmp.lt.s32.totalorder %s13, 5
      %p348 = pnand %p346, %p347
      %p349 = pneg %p348
      // Predicated region
      $region81: #{resblock1_forward_nlc.1} parent=5 // pred_check
        _
      $region82: #{resblock1_forward_nlc.1} parent=5 // pred_check_branch
        %351 = sbr.rel (%p348) target = $region84
      $region83: #{resblock1_forward_nlc.1} parent=5 // pred_region
        %s352 = ssub.s32 %s13, 1
        %s353 = sand.u32 %s26, 1
        %s354 = sand.u32 %s26, 1
        %s355 = smul.addr %s354, 128
        %s356 = scalar_lea.vmem [#allocation3], %s355
        // Predicated region
        $region85: #{resblock1_forward_nlc.1} parent=83 // pred_check
          %p357 = pneg %p39
        $region86: #{resblock1_forward_nlc.1} parent=83 // pred_check_branch
          %359 = sbr.rel (%p357) target = $region88
        $region87: #{resblock1_forward_nlc.1} parent=83 // pred_region
          _
        $region88: #{resblock1_forward_nlc.1} parent=83 // pred_fallthru
          _
        %s360 = sand.u32 %s26, 1
        %s361 = sand.u32 %s26, 1
        %s362 = smul.addr %s361, 128
        %s363 = scalar_lea.vmem [#allocation3], %s362
        %p364 = pneg %p39
        %p365 = pneg %p36
        %p366 = scmp.lt.s32.totalorder %s18, 3
        %s367 = scalar_select %p366, %s18, 3
        %s368 = smul.addr %s367, 8
        %s369 = smul.addr %s368, 8
        %s370 = scalar_lea.vmem %s1, %s369
        %p371 = pneg %p65
        %p372 = pneg %p62
        %p373 = pneg %p86
        %p374 = pneg %p83
        %p375 = pneg %p107
        %p376 = pneg %p104
        %p377 = pneg %p133
        %p378 = pneg %p130
        %s379 = sand.u32 %s120, 1
        %s380 = scalar_lea.sflag [#allocation5], %s379
        %s381 = sand.u32 %s120, 1
        %s382 = smul.addr %s381, 128
        %s383 = scalar_lea.vmem [#allocation4], %s382
        %s384 = smul.u32 8, %s18
        %s385 = ssub.s32 25, %s384
        %p386 = scmp.lt.s32.totalorder %s385, 8
        %s387 = scalar_select %p386, %s385, 8
        %s388 = smul.u32 256, %s387
        %p389 = scmp.lt.s32.totalorder %s18, 3
        %s390 = scalar_select %p389, %s18, 3
        %s391 = smul.addr %s390, 8
        %s392 = smul.addr %s391, 8
        %s393 = scalar_lea.vmem %s1, %s392
        %s394 = smul.u32 8, %s18
        %s395 = ssub.s32 25, %s394
        %p396 = scmp.lt.s32.totalorder %s395, 8
        %s397 = scalar_select %p396, %s395, 8
        %s398 = smul.u32 256, %s397
        %v399 = vld [vmem:[%s393] sm:$0xff]
        %v400 = vld [vmem:[%s393 + $0x8] sm:$0xff]
        %v401 = vld [vmem:[%s393 + $0x10] sm:$0xff]
        %v402 = vld [vmem:[%s393 + $0x18] sm:$0xff]
        %v403 = vld [vmem:[%s393 + $0x20] sm:$0xff]
        %v404 = vld [vmem:[%s393 + $0x28] sm:$0xff]
        %v405 = vld [vmem:[%s393 + $0x30] sm:$0xff]
        %v406 = vld [vmem:[%s393 + $0x38] sm:$0xff]
        %407 = vst [vmem:[#allocation2] sm:$0xff] %v399
        %408 = vst [vmem:[#allocation2 + $0x8] sm:$0xff] %v400
        %409 = vst [vmem:[#allocation2 + $0x60] sm:$0xff] %v403
        %410 = vst [vmem:[#allocation2 + $0x68] sm:$0xff] %v404
        %v411 = vld [vmem:[%s356] sm:$0xff]
        %v412 = vld [vmem:[%s356 + $0x8] sm:$0xff]
        %v413 = vld [vmem:[%s356 + $0x10] sm:$0xff]
        %v414 = vld [vmem:[%s356 + $0x18] sm:$0xff]
        %v415 = vld [vmem:[%s356 + $0x20] sm:$0xff]
        %v416 = vld [vmem:[%s356 + $0x28] sm:$0xff]
        %v417 = vld [vmem:[%s356 + $0x30] sm:$0xff]
        %v418 = vld [vmem:[%s356 + $0x38] sm:$0xff]
        %v419 = vld [vmem:[%s356 + $0x40] sm:$0xff]
        %v420 = vld [vmem:[%s356 + $0x48] sm:$0xff]
        %v421 = vld [vmem:[%s356 + $0x50] sm:$0xff]
        %v422 = vld [vmem:[%s356 + $0x58] sm:$0xff]
        %v423 = vld [vmem:[%s356 + $0x60] sm:$0xff]
        %v424 = vld [vmem:[%s356 + $0x68] sm:$0xff]
        %v425 = vld [vmem:[%s356 + $0x70] sm:$0xff]
        %v426 = vld [vmem:[%s356 + $0x78] sm:$0xff]
        %427 = vst [vmem:[#allocation2 + $0x10] sm:$0xff] %v411
        %428 = vst [vmem:[#allocation2 + $0x18] sm:$0xff] %v412
        %429 = vst [vmem:[#allocation2 + $0x20] sm:$0xff] %v413
        %430 = vst [vmem:[#allocation2 + $0x28] sm:$0xff] %v414
        %431 = vst [vmem:[#allocation2 + $0x30] sm:$0xff] %v415
        %432 = vst [vmem:[#allocation2 + $0x38] sm:$0xff] %v416
        %433 = vst [vmem:[#allocation2 + $0x40] sm:$0xff] %v417
        %434 = vst [vmem:[#allocation2 + $0x48] sm:$0xff] %v418
        %435 = vst [vmem:[#allocation2 + $0x70] sm:$0xff] %v419
        %436 = vst [vmem:[#allocation2 + $0x78] sm:$0xff] %v420
        %437 = vst [vmem:[#allocation2 + $0x80] sm:$0xff] %v421
        %438 = vst [vmem:[#allocation2 + $0x88] sm:$0xff] %v422
        %439 = vst [vmem:[#allocation2 + $0x90] sm:$0xff] %v423
        %440 = vst [vmem:[#allocation2 + $0x98] sm:$0xff] %v424
        %441 = vst [vmem:[#allocation2 + $0xa0] sm:$0xff] %v425
        %442 = vst [vmem:[#allocation2 + $0xa8] sm:$0xff] %v426
        %443 = vst [vmem:[#allocation2 + $0x50] sm:$0xff] %v401
        %444 = vst [vmem:[#allocation2 + $0x58] sm:$0xff] %v402
        %445 = vst [vmem:[#allocation2 + $0xb0] sm:$0xff] %v405
        %446 = vst [vmem:[#allocation2 + $0xb8] sm:$0xff] %v406
        %v447 = vlaneseq
        %v448 = vshrl.u32 %v447, 7
        %v449 = vadd.s32 %v448, 8
        %v450 = vadd.s32 %v448, 16
        %v451 = vadd.s32 %v448, 24
        %v452 = vadd.s32 %v448, 32
        %v453 = vadd.s32 %v448, 40
        %v454 = vadd.s32 %v448, 48
        %v455 = vadd.s32 %v448, 56
        %v456 = vadd.s32 %v448, 64
        %v457 = vadd.s32 %v448, 72
        %v458 = vadd.s32 %v448, 80
        %v459 = vadd.s32 %v448, 88
        %s460 = smul.u32 %s18, 64
        %s461 = ssub.s32 %s460, 16
        %v462 = vstv %s461
        %v463 = vadd.s32 %v462, %v448
        %v464 = vadd.s32 %v462, %v449
        %v465 = vadd.s32 %v462, %v450
        %v466 = vadd.s32 %v462, %v451
        %v467 = vadd.s32 %v462, %v452
        %v468 = vadd.s32 %v462, %v453
        %v469 = vadd.s32 %v462, %v454
        %v470 = vadd.s32 %v462, %v455
        %v471 = vadd.s32 %v462, %v456
        %v472 = vadd.s32 %v462, %v457
        %v473 = vadd.s32 %v462, %v458
        %v474 = vadd.s32 %v462, %v459
        %vm475 = vcmp.ge.s32.totalorder %v463, 0
        %vm476 = vcmp.ge.s32.totalorder %v464, 0
        %vm477 = vcmp.ge.s32.totalorder %v465, 0
        %vm478 = vcmp.ge.s32.totalorder %v466, 0
        %vm479 = vcmp.ge.s32.totalorder %v467, 0
        %vm480 = vcmp.ge.s32.totalorder %v468, 0
        %vm481 = vcmp.ge.s32.totalorder %v469, 0
        %vm482 = vcmp.ge.s32.totalorder %v470, 0
        %vm483 = vcmp.ge.s32.totalorder %v471, 0
        %vm484 = vcmp.ge.s32.totalorder %v472, 0
        %vm485 = vcmp.ge.s32.totalorder %v473, 0
        %vm486 = vcmp.ge.s32.totalorder %v474, 0
        %vm487 = vcmp.lt.s32.totalorder %v463, 200
        %vm488 = vcmp.lt.s32.totalorder %v464, 200
        %vm489 = vcmp.lt.s32.totalorder %v465, 200
        %vm490 = vcmp.lt.s32.totalorder %v466, 200
        %vm491 = vcmp.lt.s32.totalorder %v467, 200
        %vm492 = vcmp.lt.s32.totalorder %v468, 200
        %vm493 = vcmp.lt.s32.totalorder %v469, 200
        %vm494 = vcmp.lt.s32.totalorder %v470, 200
        %vm495 = vcmp.lt.s32.totalorder %v471, 200
        %vm496 = vcmp.lt.s32.totalorder %v472, 200
        %vm497 = vcmp.lt.s32.totalorder %v473, 200
        %vm498 = vcmp.lt.s32.totalorder %v474, 200
        %vm499 = vmand %vm475, %vm487
        %vm500 = vmand %vm476, %vm488
        %vm501 = vmand %vm477, %vm489
        %vm502 = vmand %vm478, %vm490
        %vm503 = vmand %vm479, %vm491
        %vm504 = vmand %vm480, %vm492
        %vm505 = vmand %vm481, %vm493
        %vm506 = vmand %vm482, %vm494
        %vm507 = vmand %vm483, %vm495
        %vm508 = vmand %vm484, %vm496
        %vm509 = vmand %vm485, %vm497
        %vm510 = vmand %vm486, %vm498
        %v511 = vld [vmem:[#allocation2] sm:$0xff]
        %v512 = vld [vmem:[#allocation2 + $0x8] sm:$0xff]
        %v513 = vld [vmem:[#allocation2 + $0x10] sm:$0xff]
        %v514 = vld [vmem:[#allocation2 + $0x18] sm:$0xff]
        %v515 = vld [vmem:[#allocation2 + $0x20] sm:$0xff]
        %v516 = vld [vmem:[#allocation2 + $0x28] sm:$0xff]
        %v517 = vld [vmem:[#allocation2 + $0x30] sm:$0xff]
        %v518 = vld [vmem:[#allocation2 + $0x38] sm:$0xff]
        %v519 = vld [vmem:[#allocation2 + $0x40] sm:$0xff]
        %v520 = vld [vmem:[#allocation2 + $0x48] sm:$0xff]
        %v521 = vld [vmem:[#allocation2 + $0x50] sm:$0xff]
        %v522 = vld [vmem:[#allocation2 + $0x58] sm:$0xff]
        %v523 = vld [vmem:[#allocation2 + $0x60] sm:$0xff]
        %v524 = vld [vmem:[#allocation2 + $0x68] sm:$0xff]
        %v525 = vld [vmem:[#allocation2 + $0x70] sm:$0xff]
        %v526 = vld [vmem:[#allocation2 + $0x78] sm:$0xff]
        %v527 = vld [vmem:[#allocation2 + $0x80] sm:$0xff]
        %v528 = vld [vmem:[#allocation2 + $0x88] sm:$0xff]
        %v529 = vld [vmem:[#allocation2 + $0x90] sm:$0xff]
        %v530 = vld [vmem:[#allocation2 + $0x98] sm:$0xff]
        %v531 = vld [vmem:[#allocation2 + $0xa0] sm:$0xff]
        %v532 = vld [vmem:[#allocation2 + $0xa8] sm:$0xff]
        %v533 = vld [vmem:[#allocation2 + $0xb0] sm:$0xff]
        %v534 = vld [vmem:[#allocation2 + $0xb8] sm:$0xff]
        %vm535 = vcmp.ge.f32.partialorder %v511, 0.0
        %vm536 = vcmp.ge.f32.partialorder %v512, 0.0
        %vm537 = vcmp.ge.f32.partialorder %v513, 0.0
        %vm538 = vcmp.ge.f32.partialorder %v514, 0.0
        %vm539 = vcmp.ge.f32.partialorder %v515, 0.0
        %vm540 = vcmp.ge.f32.partialorder %v516, 0.0
        %vm541 = vcmp.ge.f32.partialorder %v517, 0.0
        %vm542 = vcmp.ge.f32.partialorder %v518, 0.0
        %vm543 = vcmp.ge.f32.partialorder %v519, 0.0
        %vm544 = vcmp.ge.f32.partialorder %v520, 0.0
        %vm545 = vcmp.ge.f32.partialorder %v521, 0.0
        %vm546 = vcmp.ge.f32.partialorder %v522, 0.0
        %vm547 = vcmp.ge.f32.partialorder %v523, 0.0
        %vm548 = vcmp.ge.f32.partialorder %v524, 0.0
        %vm549 = vcmp.ge.f32.partialorder %v525, 0.0
        %vm550 = vcmp.ge.f32.partialorder %v526, 0.0
        %vm551 = vcmp.ge.f32.partialorder %v527, 0.0
        %vm552 = vcmp.ge.f32.partialorder %v528, 0.0
        %vm553 = vcmp.ge.f32.partialorder %v529, 0.0
        %vm554 = vcmp.ge.f32.partialorder %v530, 0.0
        %vm555 = vcmp.ge.f32.partialorder %v531, 0.0
        %vm556 = vcmp.ge.f32.partialorder %v532, 0.0
        %vm557 = vcmp.ge.f32.partialorder %v533, 0.0
        %vm558 = vcmp.ge.f32.partialorder %v534, 0.0
        %v559 = vmul.f32 %v511, 0.1
        %v560 = vmul.f32 %v512, 0.1
        %v561 = vmul.f32 %v513, 0.1
        %v562 = vmul.f32 %v514, 0.1
        %v563 = vmul.f32 %v515, 0.1
        %v564 = vmul.f32 %v516, 0.1
        %v565 = vmul.f32 %v517, 0.1
        %v566 = vmul.f32 %v518, 0.1
        %v567 = vmul.f32 %v519, 0.1
        %v568 = vmul.f32 %v520, 0.1
        %v569 = vmul.f32 %v521, 0.1
        %v570 = vmul.f32 %v522, 0.1
        %v571 = vmul.f32 %v523, 0.1
        %v572 = vmul.f32 %v524, 0.1
        %v573 = vmul.f32 %v525, 0.1
        %v574 = vmul.f32 %v526, 0.1
        %v575 = vmul.f32 %v527, 0.1
        %v576 = vmul.f32 %v528, 0.1
        %v577 = vmul.f32 %v529, 0.1
        %v578 = vmul.f32 %v530, 0.1
        %v579 = vmul.f32 %v531, 0.1
        %v580 = vmul.f32 %v532, 0.1
        %v581 = vmul.f32 %v533, 0.1
        %v582 = vmul.f32 %v534, 0.1
        %v583 = vsel %vm535, %v511, %v559
        %v584 = vsel %vm536, %v512, %v560
        %v585 = vsel %vm537, %v513, %v561
        %v586 = vsel %vm538, %v514, %v562
        %v587 = vsel %vm539, %v515, %v563
        %v588 = vsel %vm540, %v516, %v564
        %v589 = vsel %vm541, %v517, %v565
        %v590 = vsel %vm542, %v518, %v566
        %v591 = vsel %vm543, %v519, %v567
        %v592 = vsel %vm544, %v520, %v568
        %v593 = vsel %vm545, %v521, %v569
        %v594 = vsel %vm546, %v522, %v570
        %v595 = vsel %vm547, %v523, %v571
        %v596 = vsel %vm548, %v524, %v572
        %v597 = vsel %vm549, %v525, %v573
        %v598 = vsel %vm550, %v526, %v574
        %v599 = vsel %vm551, %v527, %v575
        %v600 = vsel %vm552, %v528, %v576
        %v601 = vsel %vm553, %v529, %v577
        %v602 = vsel %vm554, %v530, %v578
        %v603 = vsel %vm555, %v531, %v579
        %v604 = vsel %vm556, %v532, %v580
        %v605 = vsel %vm557, %v533, %v581
        %v606 = vsel %vm558, %v534, %v582
        %v607 = vsel %vm499, 1, 0
        %v608 = vsel %vm500, 1, 0
        %v609 = vsel %vm501, 1, 0
        %v610 = vsel %vm502, 1, 0
        %v611 = vsel %vm503, 1, 0
        %v612 = vsel %vm504, 1, 0
        %v613 = vsel %vm505, 1, 0
        %v614 = vsel %vm506, 1, 0
        %v615 = vsel %vm507, 1, 0
        %v616 = vsel %vm508, 1, 0
        %v617 = vsel %vm509, 1, 0
        %v618 = vsel %vm510, 1, 0
        %vm619 = vcmp.eq.s32.totalorder %v607, 1
        %vm620 = vcmp.eq.s32.totalorder %v608, 1
        %vm621 = vcmp.eq.s32.totalorder %v609, 1
        %vm622 = vcmp.eq.s32.totalorder %v610, 1
        %vm623 = vcmp.eq.s32.totalorder %v611, 1
        %vm624 = vcmp.eq.s32.totalorder %v612, 1
        %vm625 = vcmp.eq.s32.totalorder %v613, 1
        %vm626 = vcmp.eq.s32.totalorder %v614, 1
        %vm627 = vcmp.eq.s32.totalorder %v615, 1
        %vm628 = vcmp.eq.s32.totalorder %v616, 1
        %vm629 = vcmp.eq.s32.totalorder %v617, 1
        %vm630 = vcmp.eq.s32.totalorder %v618, 1
        %v631 = vsel %vm619, %v583, 0.0
        %v632 = vsel %vm620, %v584, 0.0
        %v633 = vsel %vm621, %v585, 0.0
        %v634 = vsel %vm622, %v586, 0.0
        %v635 = vsel %vm623, %v587, 0.0
        %v636 = vsel %vm624, %v588, 0.0
        %v637 = vsel %vm625, %v589, 0.0
        %v638 = vsel %vm626, %v590, 0.0
        %v639 = vsel %vm627, %v591, 0.0
        %v640 = vsel %vm628, %v592, 0.0
        %v641 = vsel %vm629, %v593, 0.0
        %v642 = vsel %vm630, %v594, 0.0
        %v643 = vsel %vm619, %v595, 0.0
        %v644 = vsel %vm620, %v596, 0.0
        %v645 = vsel %vm621, %v597, 0.0
        %v646 = vsel %vm622, %v598, 0.0
        %v647 = vsel %vm623, %v599, 0.0
        %v648 = vsel %vm624, %v600, 0.0
        %v649 = vsel %vm625, %v601, 0.0
        %v650 = vsel %vm626, %v602, 0.0
        %v651 = vsel %vm627, %v603, 0.0
        %v652 = vsel %vm628, %v604, 0.0
        %v653 = vsel %vm629, %v605, 0.0
        %v654 = vsel %vm630, %v606, 0.0
        %v655 = vrot.slane %v631, 7
        %v656 = vrot.slane %v632, 7
        %v657 = vrot.slane %v633, 7
        %v658 = vrot.slane %v634, 7
        %v659 = vrot.slane %v635, 7
        %v660 = vrot.slane %v636, 7
        %v661 = vrot.slane %v637, 7
        %v662 = vrot.slane %v638, 7
        %v663 = vrot.slane %v639, 7
        %v664 = vrot.slane %v640, 7
        %v665 = vrot.slane %v641, 7
        %v666 = vrot.slane %v642, 7
        %v667 = vrot.slane %v643, 7
        %v668 = vrot.slane %v644, 7
        %v669 = vrot.slane %v645, 7
        %v670 = vrot.slane %v646, 7
        %v671 = vrot.slane %v647, 7
        %v672 = vrot.slane %v648, 7
        %v673 = vrot.slane %v649, 7
        %v674 = vrot.slane %v650, 7
        %v675 = vrot.slane %v651, 7
        %v676 = vrot.slane %v652, 7
        %v677 = vrot.slane %v653, 7
        %v678 = vrot.slane %v654, 7
        %vm679 = vcmp.lt.s32.totalorder %v448, 1
        %v680 = vsel %vm679, %v677, %v678
        %v681 = vsel %vm679, %v676, %v677
        %v682 = vsel %vm679, %v675, %v676
        %v683 = vsel %vm679, %v674, %v675
        %v684 = vsel %vm679, %v673, %v674
        %v685 = vsel %vm679, %v672, %v673
        %v686 = vsel %vm679, %v671, %v672
        %v687 = vsel %vm679, %v670, %v671
        %v688 = vsel %vm679, %v669, %v670
        %v689 = vsel %vm679, %v668, %v669
        %v690 = vsel %vm679, %v667, %v668
        %v691 = vsel %vm679, %v666, %v667
        %v692 = vsel %vm679, %v665, %v666
        %v693 = vsel %vm679, %v664, %v665
        %v694 = vsel %vm679, %v663, %v664
        %v695 = vsel %vm679, %v662, %v663
        %v696 = vsel %vm679, %v661, %v662
        %v697 = vsel %vm679, %v660, %v661
        %v698 = vsel %vm679, %v659, %v660
        %v699 = vsel %vm679, %v658, %v659
        %v700 = vsel %vm679, %v657, %v658
        %v701 = vsel %vm679, %v656, %v657
        %v702 = vsel %vm679, %v655, %v656
        %v703 = vsel %vm679, %v678, %v655
        %v704 = vld [vmem:[%s2] sm:$0xff]
        %v705 = vld [vmem:[%s2 + $0x8] sm:$0xff]
        %v706 = vld [vmem:[%s2 + $0x10] sm:$0xff]
        %v707 = vld [vmem:[%s2 + $0x18] sm:$0xff]
        %v708 = vld [vmem:[%s2 + $0x20] sm:$0xff]
        %v709 = vld [vmem:[%s2 + $0x28] sm:$0xff]
        %v710 = vld [vmem:[%s2 + $0x30] sm:$0xff]
        %v711 = vld [vmem:[%s2 + $0x38] sm:$0xff]
        %v712 = vld [vmem:[%s2 + $0x40] sm:$0xff]
        %v713 = vld [vmem:[%s2 + $0x48] sm:$0xff]
        %v714 = vld [vmem:[%s2 + $0x50] sm:$0xff]
        %v715 = vld [vmem:[%s2 + $0x58] sm:$0xff]
        %v716 = vld [vmem:[%s2 + $0x60] sm:$0xff]
        %v717 = vld [vmem:[%s2 + $0x68] sm:$0xff]
        %v718 = vld [vmem:[%s2 + $0x70] sm:$0xff]
        %v719 = vld [vmem:[%s2 + $0x78] sm:$0xff]
        %s720 = scalar_lea.vmem %s2, 128
        %v721 = vld [vmem:[%s720] sm:$0xff]
        %v722 = vld [vmem:[%s720 + $0x8] sm:$0xff]
        %v723 = vld [vmem:[%s720 + $0x10] sm:$0xff]
        %v724 = vld [vmem:[%s720 + $0x18] sm:$0xff]
        %v725 = vld [vmem:[%s720 + $0x20] sm:$0xff]
        %v726 = vld [vmem:[%s720 + $0x28] sm:$0xff]
        %v727 = vld [vmem:[%s720 + $0x30] sm:$0xff]
        %v728 = vld [vmem:[%s720 + $0x38] sm:$0xff]
        %v729 = vld [vmem:[%s720 + $0x40] sm:$0xff]
        %v730 = vld [vmem:[%s720 + $0x48] sm:$0xff]
        %v731 = vld [vmem:[%s720 + $0x50] sm:$0xff]
        %v732 = vld [vmem:[%s720 + $0x58] sm:$0xff]
        %v733 = vld [vmem:[%s720 + $0x60] sm:$0xff]
        %v734 = vld [vmem:[%s720 + $0x68] sm:$0xff]
        %v735 = vld [vmem:[%s720 + $0x70] sm:$0xff]
        %v736 = vld [vmem:[%s720 + $0x78] sm:$0xff]
        %737 = vmatprep.subr.mxu0 0.0
        %738 = vmatpush1.msra.mxu0 %v721
        %739 = vmatprep.subr.mxu0 0.0
        %740 = vmatpush1.msra.mxu0 %v722
        %741 = vmatprep.subr.mxu0 0.0
        %742 = vmatpush1.msra.mxu0 %v723
        %743 = vmatprep.subr.mxu0 0.0
        %744 = vmatpush1.msra.mxu0 %v724
        %745 = vmatprep.subr.mxu0 0.0
        %746 = vmatpush1.msra.mxu0 %v725
        %747 = vmatprep.subr.mxu0 0.0
        %748 = vmatpush1.msra.mxu0 %v726
        %749 = vmatprep.subr.mxu0 0.0
        %750 = vmatpush1.msra.mxu0 %v727
        %751 = vmatprep.subr.mxu0 0.0
        %752 = vmatpush1.msra.mxu0 %v728
        %753 = vmatprep.subr.mxu0 0.0
        %754 = vmatpush1.msra.mxu0 %v729
        %755 = vmatprep.subr.mxu0 0.0
        %756 = vmatpush1.msra.mxu0 %v730
        %757 = vmatprep.subr.mxu0 0.0
        %758 = vmatpush1.msra.mxu0 %v731
        %759 = vmatprep.subr.mxu0 0.0
        %760 = vmatpush1.msra.mxu0 %v732
        %761 = vmatprep.subr.mxu0 0.0
        %762 = vmatpush1.msra.mxu0 %v733
        %763 = vmatprep.subr.mxu0 0.0
        %764 = vmatpush1.msra.mxu0 %v734
        %765 = vmatprep.subr.mxu0 0.0
        %766 = vmatpush1.msra.mxu0 %v735
        %767 = vmatprep.subr.mxu0 0.0
        %768 = vmatpush1.msra.mxu0 %v736
        %769 = vmatprep.subr.mxu0 0.0
        %770 = vmatpush1.msra.mxu0 0.0
        %771 = vmatprep.subr.mxu0 0.0
        %772 = vmatpush1.msra.mxu0 0.0
        %773 = vmatprep.subr.mxu0 0.0
        %774 = vmatpush1.msra.mxu0 0.0
        %775 = vmatprep.subr.mxu0 0.0
        %776 = vmatpush1.msra.mxu0 0.0
        %777 = vmatprep.subr.mxu0 0.0
        %778 = vmatpush1.msra.mxu0 0.0
        %779 = vmatprep.subr.mxu0 0.0
        %780 = vmatpush1.msra.mxu0 0.0
        %781 = vmatprep.subr.mxu0 0.0
        %782 = vmatpush1.msra.mxu0 0.0
        %783 = vmatprep.subr.mxu0 0.0
        %784 = vmatpush1.msra.mxu0 0.0
        %785 = vmatprep.subr.mxu0 0.0
        %786 = vmatpush1.msra.mxu0 0.0
        %787 = vmatprep.subr.mxu0 0.0
        %788 = vmatpush1.msra.mxu0 0.0
        %789 = vmatprep.subr.mxu0 0.0
        %790 = vmatpush1.msra.mxu0 0.0
        %791 = vmatprep.subr.mxu0 0.0
        %792 = vmatpush1.msra.mxu0 0.0
        %793 = vmatprep.subr.mxu0 0.0
        %794 = vmatpush1.msra.mxu0 0.0
        %795 = vmatprep.subr.mxu0 0.0
        %796 = vmatpush1.msra.mxu0 0.0
        %797 = vmatprep.subr.mxu0 0.0
        %798 = vmatpush1.msra.mxu0 0.0
        %799 = vmatprep.subr.mxu0 0.0
        %800 = vmatpush1.msra.mxu0 0.0
        %801 = vmatprep.mubr.f32.mxu0 0.0
        %802 = vmatmul.mubr.f32.gmra.mrb[0].mxu0 %v631
        %v803 = vpop.f32.mrb[0].mxu0
        %v804 = vadd.f32 0.0, %v803
        %v805 = vpop.f32.mrb[0].mxu0
        %806 = vmatprep.mubr.f32.mxu0 0.0
        %807 = vmatmul.mubr.f32.gmra.mrb[0].mxu0 %v632
        %v808 = vpop.f32.mrb[0].mxu0
        %v809 = vadd.f32 0.0, %v808
        %v810 = vpop.f32.mrb[0].mxu0
        %811 = vmatprep.mubr.f32.mxu0 0.0
        %812 = vmatmul.mubr.f32.gmra.mrb[0].mxu0 %v633
        %v813 = vpop.f32.mrb[0].mxu0
        %v814 = vadd.f32 0.0, %v813
        %v815 = vpop.f32.mrb[0].mxu0
        %816 = vmatprep.mubr.f32.mxu0 0.0
        %817 = vmatmul.mubr.f32.gmra.mrb[0].mxu0 %v634
        %v818 = vpop.f32.mrb[0].mxu0
        %v819 = vadd.f32 0.0, %v818
        %v820 = vpop.f32.mrb[0].mxu0
        %821 = vmatprep.mubr.f32.mxu0 0.0
        %822 = vmatmul.mubr.f32.gmra.mrb[0].mxu0 %v635
        %v823 = vpop.f32.mrb[0].mxu0
        %v824 = vadd.f32 0.0, %v823
        %v825 = vpop.f32.mrb[0].mxu0
        %826 = vmatprep.mubr.f32.mxu0 0.0
        %827 = vmatmul.mubr.f32.gmra.mrb[0].mxu0 %v636
        %v828 = vpop.f32.mrb[0].mxu0
        %v829 = vadd.f32 0.0, %v828
        %v830 = vpop.f32.mrb[0].mxu0
        %831 = vmatprep.mubr.f32.mxu0 0.0
        %832 = vmatmul.mubr.f32.gmra.mrb[0].mxu0 %v637
        %v833 = vpop.f32.mrb[0].mxu0
        %v834 = vadd.f32 0.0, %v833
        %v835 = vpop.f32.mrb[0].mxu0
        %836 = vmatprep.mubr.f32.mxu0 0.0
        %837 = vmatmul.mubr.f32.gmra.mrb[0].mxu0 %v638
        %v838 = vpop.f32.mrb[0].mxu0
        %v839 = vadd.f32 0.0, %v838
        %v840 = vpop.f32.mrb[0].mxu0
        %841 = vmatprep.mubr.f32.mxu0 0.0
        %842 = vmatmul.mubr.f32.gmra.mrb[0].mxu0 %v639
        %v843 = vpop.f32.mrb[0].mxu0
        %v844 = vadd.f32 0.0, %v843
        %v845 = vpop.f32.mrb[0].mxu0
        %846 = vmatprep.mubr.f32.mxu0 0.0
        %847 = vmatmul.mubr.f32.gmra.mrb[0].mxu0 %v640
        %v848 = vpop.f32.mrb[0].mxu0
        %v849 = vadd.f32 0.0, %v848
        %v850 = vpop.f32.mrb[0].mxu0
        %851 = vmatprep.mubr.f32.mxu0 0.0
        %852 = vmatmul.mubr.f32.gmra.mrb[0].mxu0 %v641
        %v853 = vpop.f32.mrb[0].mxu0
        %v854 = vadd.f32 0.0, %v853
        %v855 = vpop.f32.mrb[0].mxu0
        %856 = vmatprep.mubr.f32.mxu0 0.0
        %857 = vmatmul.mubr.f32.gmra.mrb[0].mxu0 %v642
        %v858 = vpop.f32.mrb[0].mxu0
        %v859 = vadd.f32 0.0, %v858
        %v860 = vpop.f32.mrb[0].mxu0
        %861 = vmatprep.mubr.f32.mxu0 0.0
        %862 = vmatmul.mubr.f32.gmra.mrb[0].mxu0 %v643
        %v863 = vpop.f32.mrb[0].mxu0
        %v864 = vadd.f32 0.0, %v863
        %v865 = vpop.f32.mrb[0].mxu0
        %866 = vmatprep.mubr.f32.mxu0 0.0
        %867 = vmatmul.mubr.f32.gmra.mrb[0].mxu0 %v644
        %v868 = vpop.f32.mrb[0].mxu0
        %v869 = vadd.f32 0.0, %v868
        %v870 = vpop.f32.mrb[0].mxu0
        %871 = vmatprep.mubr.f32.mxu0 0.0
        %872 = vmatmul.mubr.f32.gmra.mrb[0].mxu0 %v645
        %v873 = vpop.f32.mrb[0].mxu0
        %v874 = vadd.f32 0.0, %v873
        %v875 = vpop.f32.mrb[0].mxu0
        %876 = vmatprep.mubr.f32.mxu0 0.0
        %877 = vmatmul.mubr.f32.gmra.mrb[0].mxu0 %v646
        %v878 = vpop.f32.mrb[0].mxu0
        %v879 = vadd.f32 0.0, %v878
        %v880 = vpop.f32.mrb[0].mxu0
        %881 = vmatprep.mubr.f32.mxu0 0.0
        %882 = vmatmul.mubr.f32.gmra.mrb[0].mxu0 %v647
        %v883 = vpop.f32.mrb[0].mxu0
        %v884 = vadd.f32 0.0, %v883
        %v885 = vpop.f32.mrb[0].mxu0
        %886 = vmatprep.mubr.f32.mxu0 0.0
        %887 = vmatmul.mubr.f32.gmra.mrb[0].mxu0 %v648
        %v888 = vpop.f32.mrb[0].mxu0
        %v889 = vadd.f32 0.0, %v888
        %v890 = vpop.f32.mrb[0].mxu0
        %891 = vmatprep.mubr.f32.mxu0 0.0
        %892 = vmatmul.mubr.f32.gmra.mrb[0].mxu0 %v649
        %v893 = vpop.f32.mrb[0].mxu0
        %v894 = vadd.f32 0.0, %v893
        %v895 = vpop.f32.mrb[0].mxu0
        %896 = vmatprep.mubr.f32.mxu0 0.0
        %897 = vmatmul.mubr.f32.gmra.mrb[0].mxu0 %v650
        %v898 = vpop.f32.mrb[0].mxu0
        %v899 = vadd.f32 0.0, %v898
        %v900 = vpop.f32.mrb[0].mxu0
        %901 = vmatprep.mubr.f32.mxu0 0.0
        %902 = vmatmul.mubr.f32.gmra.mrb[0].mxu0 %v651
        %v903 = vpop.f32.mrb[0].mxu0
        %v904 = vadd.f32 0.0, %v903
        %v905 = vpop.f32.mrb[0].mxu0
        %906 = vmatprep.mubr.f32.mxu0 0.0
        %907 = vmatmul.mubr.f32.gmra.mrb[0].mxu0 %v652
        %v908 = vpop.f32.mrb[0].mxu0
        %v909 = vadd.f32 0.0, %v908
        %v910 = vpop.f32.mrb[0].mxu0
        %911 = vmatprep.mubr.f32.mxu0 0.0
        %912 = vmatmul.mubr.f32.gmra.mrb[0].mxu0 %v653
        %v913 = vpop.f32.mrb[0].mxu0
        %v914 = vadd.f32 0.0, %v913
        %v915 = vpop.f32.mrb[0].mxu0
        %916 = vmatprep.mubr.f32.mxu0 0.0
        %917 = vmatmul.mubr.f32.gmra.mrb[0].mxu0 %v654
        %v918 = vpop.f32.mrb[0].mxu0
        %v919 = vadd.f32 0.0, %v918
        %v920 = vpop.f32.mrb[0].mxu0
        %921 = vdwg.mxu0
        %922 = vmatprep.subr.mxu0 0.0
        %923 = vmatpush1.msra.mxu0 %v704
        %924 = vmatprep.subr.mxu0 0.0
        %925 = vmatpush1.msra.mxu0 %v705
        %926 = vmatprep.subr.mxu0 0.0
        %927 = vmatpush1.msra.mxu0 %v706
        %928 = vmatprep.subr.mxu0 0.0
        %929 = vmatpush1.msra.mxu0 %v707
        %930 = vmatprep.subr.mxu0 0.0
        %931 = vmatpush1.msra.mxu0 %v708
        %932 = vmatprep.subr.mxu0 0.0
        %933 = vmatpush1.msra.mxu0 %v709
        %934 = vmatprep.subr.mxu0 0.0
        %935 = vmatpush1.msra.mxu0 %v710
        %936 = vmatprep.subr.mxu0 0.0
        %937 = vmatpush1.msra.mxu0 %v711
        %938 = vmatprep.subr.mxu0 0.0
        %939 = vmatpush1.msra.mxu0 %v712
        %940 = vmatprep.subr.mxu0 0.0
        %941 = vmatpush1.msra.mxu0 %v713
        %942 = vmatprep.subr.mxu0 0.0
        %943 = vmatpush1.msra.mxu0 %v714
        %944 = vmatprep.subr.mxu0 0.0
        %945 = vmatpush1.msra.mxu0 %v715
        %946 = vmatprep.subr.mxu0 0.0
        %947 = vmatpush1.msra.mxu0 %v716
        %948 = vmatprep.subr.mxu0 0.0
        %949 = vmatpush1.msra.mxu0 %v717
        %950 = vmatprep.subr.mxu0 0.0
        %951 = vmatpush1.msra.mxu0 %v718
        %952 = vmatprep.subr.mxu0 0.0
        %953 = vmatpush1.msra.mxu0 %v719
        %954 = vmatprep.subr.mxu0 0.0
        %955 = vmatpush1.msra.mxu0 0.0
        %956 = vmatprep.subr.mxu0 0.0
        %957 = vmatpush1.msra.mxu0 0.0
        %958 = vmatprep.subr.mxu0 0.0
        %959 = vmatpush1.msra.mxu0 0.0
        %960 = vmatprep.subr.mxu0 0.0
        %961 = vmatpush1.msra.mxu0 0.0
        %962 = vmatprep.subr.mxu0 0.0
        %963 = vmatpush1.msra.mxu0 0.0
        %964 = vmatprep.subr.mxu0 0.0
        %965 = vmatpush1.msra.mxu0 0.0
        %966 = vmatprep.subr.mxu0 0.0
        %967 = vmatpush1.msra.mxu0 0.0
        %968 = vmatprep.subr.mxu0 0.0
        %969 = vmatpush1.msra.mxu0 0.0
        %970 = vmatprep.subr.mxu0 0.0
        %971 = vmatpush1.msra.mxu0 0.0
        %972 = vmatprep.subr.mxu0 0.0
        %973 = vmatpush1.msra.mxu0 0.0
        %974 = vmatprep.subr.mxu0 0.0
        %975 = vmatpush1.msra.mxu0 0.0
        %976 = vmatprep.subr.mxu0 0.0
        %977 = vmatpush1.msra.mxu0 0.0
        %978 = vmatprep.subr.mxu0 0.0
        %979 = vmatpush1.msra.mxu0 0.0
        %980 = vmatprep.subr.mxu0 0.0
        %981 = vmatpush1.msra.mxu0 0.0
        %982 = vmatprep.subr.mxu0 0.0
        %983 = vmatpush1.msra.mxu0 0.0
        %984 = vmatprep.subr.mxu0 0.0
        %985 = vmatpush1.msra.mxu0 0.0
        %986 = vmatprep.mubr.f32.mxu0 0.0
        %987 = vmatmul.mubr.f32.gmra.mrb[0].mxu0 %v703
        %v988 = vpop.f32.mrb[0].mxu0
        %v989 = vadd.f32 %v804, %v988
        %v990 = vpop.f32.mrb[0].mxu0
        %991 = vmatprep.mubr.f32.mxu0 0.0
        %992 = vmatmul.mubr.f32.gmra.mrb[0].mxu0 %v702
        %v993 = vpop.f32.mrb[0].mxu0
        %v994 = vadd.f32 %v809, %v993
        %v995 = vpop.f32.mrb[0].mxu0
        %996 = vmatprep.mubr.f32.mxu0 0.0
        %997 = vmatmul.mubr.f32.gmra.mrb[0].mxu0 %v701
        %v998 = vpop.f32.mrb[0].mxu0
        %v999 = vadd.f32 %v814, %v998
        %v1000 = vpop.f32.mrb[0].mxu0
        %1001 = vmatprep.mubr.f32.mxu0 0.0
        %1002 = vmatmul.mubr.f32.gmra.mrb[0].mxu0 %v700
        %v1003 = vpop.f32.mrb[0].mxu0
        %v1004 = vadd.f32 %v819, %v1003
        %v1005 = vpop.f32.mrb[0].mxu0
        %1006 = vmatprep.mubr.f32.mxu0 0.0
        %1007 = vmatmul.mubr.f32.gmra.mrb[0].mxu0 %v699
        %v1008 = vpop.f32.mrb[0].mxu0
        %v1009 = vadd.f32 %v824, %v1008
        %v1010 = vpop.f32.mrb[0].mxu0
        %1011 = vmatprep.mubr.f32.mxu0 0.0
        %1012 = vmatmul.mubr.f32.gmra.mrb[0].mxu0 %v698
        %v1013 = vpop.f32.mrb[0].mxu0
        %v1014 = vadd.f32 %v829, %v1013
        %v1015 = vpop.f32.mrb[0].mxu0
        %1016 = vmatprep.mubr.f32.mxu0 0.0
        %1017 = vmatmul.mubr.f32.gmra.mrb[0].mxu0 %v697
        %v1018 = vpop.f32.mrb[0].mxu0
        %v1019 = vadd.f32 %v834, %v1018
        %v1020 = vpop.f32.mrb[0].mxu0
        %1021 = vmatprep.mubr.f32.mxu0 0.0
        %1022 = vmatmul.mubr.f32.gmra.mrb[0].mxu0 %v696
        %v1023 = vpop.f32.mrb[0].mxu0
        %v1024 = vadd.f32 %v839, %v1023
        %v1025 = vpop.f32.mrb[0].mxu0
        %1026 = vmatprep.mubr.f32.mxu0 0.0
        %1027 = vmatmul.mubr.f32.gmra.mrb[0].mxu0 %v695
        %v1028 = vpop.f32.mrb[0].mxu0
        %v1029 = vadd.f32 %v844, %v1028
        %v1030 = vpop.f32.mrb[0].mxu0
        %1031 = vmatprep.mubr.f32.mxu0 0.0
        %1032 = vmatmul.mubr.f32.gmra.mrb[0].mxu0 %v694
        %v1033 = vpop.f32.mrb[0].mxu0
        %v1034 = vadd.f32 %v849, %v1033
        %v1035 = vpop.f32.mrb[0].mxu0
        %1036 = vmatprep.mubr.f32.mxu0 0.0
        %1037 = vmatmul.mubr.f32.gmra.mrb[0].mxu0 %v693
        %v1038 = vpop.f32.mrb[0].mxu0
        %v1039 = vadd.f32 %v854, %v1038
        %v1040 = vpop.f32.mrb[0].mxu0
        %1041 = vmatprep.mubr.f32.mxu0 0.0
        %1042 = vmatmul.mubr.f32.gmra.mrb[0].mxu0 %v692
        %v1043 = vpop.f32.mrb[0].mxu0
        %v1044 = vadd.f32 %v859, %v1043
        %v1045 = vpop.f32.mrb[0].mxu0
        %1046 = vmatprep.mubr.f32.mxu0 0.0
        %1047 = vmatmul.mubr.f32.gmra.mrb[0].mxu0 %v691
        %v1048 = vpop.f32.mrb[0].mxu0
        %v1049 = vadd.f32 %v864, %v1048
        %v1050 = vpop.f32.mrb[0].mxu0
        %1051 = vmatprep.mubr.f32.mxu0 0.0
        %1052 = vmatmul.mubr.f32.gmra.mrb[0].mxu0 %v690
        %v1053 = vpop.f32.mrb[0].mxu0
        %v1054 = vadd.f32 %v869, %v1053
        %v1055 = vpop.f32.mrb[0].mxu0
        %1056 = vmatprep.mubr.f32.mxu0 0.0
        %1057 = vmatmul.mubr.f32.gmra.mrb[0].mxu0 %v689
        %v1058 = vpop.f32.mrb[0].mxu0
        %v1059 = vadd.f32 %v874, %v1058
        %v1060 = vpop.f32.mrb[0].mxu0
        %1061 = vmatprep.mubr.f32.mxu0 0.0
        %1062 = vmatmul.mubr.f32.gmra.mrb[0].mxu0 %v688
        %v1063 = vpop.f32.mrb[0].mxu0
        %v1064 = vadd.f32 %v879, %v1063
        %v1065 = vpop.f32.mrb[0].mxu0
        %1066 = vmatprep.mubr.f32.mxu0 0.0
        %1067 = vmatmul.mubr.f32.gmra.mrb[0].mxu0 %v687
        %v1068 = vpop.f32.mrb[0].mxu0
        %v1069 = vadd.f32 %v884, %v1068
        %v1070 = vpop.f32.mrb[0].mxu0
        %1071 = vmatprep.mubr.f32.mxu0 0.0
        %1072 = vmatmul.mubr.f32.gmra.mrb[0].mxu0 %v686
        %v1073 = vpop.f32.mrb[0].mxu0
        %v1074 = vadd.f32 %v889, %v1073
        %v1075 = vpop.f32.mrb[0].mxu0
        %1076 = vmatprep.mubr.f32.mxu0 0.0
        %1077 = vmatmul.mubr.f32.gmra.mrb[0].mxu0 %v685
        %v1078 = vpop.f32.mrb[0].mxu0
        %v1079 = vadd.f32 %v894, %v1078
        %v1080 = vpop.f32.mrb[0].mxu0
        %1081 = vmatprep.mubr.f32.mxu0 0.0
        %1082 = vmatmul.mubr.f32.gmra.mrb[0].mxu0 %v684
        %v1083 = vpop.f32.mrb[0].mxu0
        %v1084 = vadd.f32 %v899, %v1083
        %v1085 = vpop.f32.mrb[0].mxu0
        %1086 = vmatprep.mubr.f32.mxu0 0.0
        %1087 = vmatmul.mubr.f32.gmra.mrb[0].mxu0 %v683
        %v1088 = vpop.f32.mrb[0].mxu0
        %v1089 = vadd.f32 %v904, %v1088
        %v1090 = vpop.f32.mrb[0].mxu0
        %1091 = vmatprep.mubr.f32.mxu0 0.0
        %1092 = vmatmul.mubr.f32.gmra.mrb[0].mxu0 %v682
        %v1093 = vpop.f32.mrb[0].mxu0
        %v1094 = vadd.f32 %v909, %v1093
        %v1095 = vpop.f32.mrb[0].mxu0
        %1096 = vmatprep.mubr.f32.mxu0 0.0
        %1097 = vmatmul.mubr.f32.gmra.mrb[0].mxu0 %v681
        %v1098 = vpop.f32.mrb[0].mxu0
        %v1099 = vadd.f32 %v914, %v1098
        %v1100 = vpop.f32.mrb[0].mxu0
        %1101 = vmatprep.mubr.f32.mxu0 0.0
        %1102 = vmatmul.mubr.f32.gmra.mrb[0].mxu0 %v680
        %v1103 = vpop.f32.mrb[0].mxu0
        %v1104 = vadd.f32 %v919, %v1103
        %v1105 = vpop.f32.mrb[0].mxu0
        %1106 = vdwg.mxu0
        %v1107 = vrot.slane %v631, 1
        %v1108 = vrot.slane %v632, 1
        %v1109 = vrot.slane %v633, 1
        %v1110 = vrot.slane %v634, 1
        %v1111 = vrot.slane %v635, 1
        %v1112 = vrot.slane %v636, 1
        %v1113 = vrot.slane %v637, 1
        %v1114 = vrot.slane %v638, 1
        %v1115 = vrot.slane %v639, 1
        %v1116 = vrot.slane %v640, 1
        %v1117 = vrot.slane %v641, 1
        %v1118 = vrot.slane %v642, 1
        %v1119 = vrot.slane %v643, 1
        %v1120 = vrot.slane %v644, 1
        %v1121 = vrot.slane %v645, 1
        %v1122 = vrot.slane %v646, 1
        %v1123 = vrot.slane %v647, 1
        %v1124 = vrot.slane %v648, 1
        %v1125 = vrot.slane %v649, 1
        %v1126 = vrot.slane %v650, 1
        %v1127 = vrot.slane %v651, 1
        %v1128 = vrot.slane %v652, 1
        %v1129 = vrot.slane %v653, 1
        %v1130 = vrot.slane %v654, 1
        %vm1131 = vcmp.lt.s32.totalorder %v448, 7
        %v1132 = vsel %vm1131, %v1129, %v1130
        %v1133 = vsel %vm1131, %v1128, %v1129
        %v1134 = vsel %vm1131, %v1127, %v1128
        %v1135 = vsel %vm1131, %v1126, %v1127
        %v1136 = vsel %vm1131, %v1125, %v1126
        %v1137 = vsel %vm1131, %v1124, %v1125
        %v1138 = vsel %vm1131, %v1123, %v1124
        %v1139 = vsel %vm1131, %v1122, %v1123
        %v1140 = vsel %vm1131, %v1121, %v1122
        %v1141 = vsel %vm1131, %v1120, %v1121
        %v1142 = vsel %vm1131, %v1119, %v1120
        %v1143 = vsel %vm1131, %v1118, %v1119
        %v1144 = vsel %vm1131, %v1117, %v1118
        %v1145 = vsel %vm1131, %v1116, %v1117
        %v1146 = vsel %vm1131, %v1115, %v1116
        %v1147 = vsel %vm1131, %v1114, %v1115
        %v1148 = vsel %vm1131, %v1113, %v1114
        %v1149 = vsel %vm1131, %v1112, %v1113
        %v1150 = vsel %vm1131, %v1111, %v1112
        %v1151 = vsel %vm1131, %v1110, %v1111
        %v1152 = vsel %vm1131, %v1109, %v1110
        %v1153 = vsel %vm1131, %v1108, %v1109
        %v1154 = vsel %vm1131, %v1107, %v1108
        %v1155 = vsel %vm1131, %v1130, %v1107
        %s1156 = scalar_lea.vmem %s2, 256
        %v1157 = vld [vmem:[%s1156] sm:$0xff]
        %v1158 = vld [vmem:[%s1156 + $0x8] sm:$0xff]
        %v1159 = vld [vmem:[%s1156 + $0x10] sm:$0xff]
        %v1160 = vld [vmem:[%s1156 + $0x18] sm:$0xff]
        %v1161 = vld [vmem:[%s1156 + $0x20] sm:$0xff]
        %v1162 = vld [vmem:[%s1156 + $0x28] sm:$0xff]
        %v1163 = vld [vmem:[%s1156 + $0x30] sm:$0xff]
        %v1164 = vld [vmem:[%s1156 + $0x38] sm:$0xff]
        %v1165 = vld [vmem:[%s1156 + $0x40] sm:$0xff]
        %v1166 = vld [vmem:[%s1156 + $0x48] sm:$0xff]
        %v1167 = vld [vmem:[%s1156 + $0x50] sm:$0xff]
        %v1168 = vld [vmem:[%s1156 + $0x58] sm:$0xff]
        %v1169 = vld [vmem:[%s1156 + $0x60] sm:$0xff]
        %v1170 = vld [vmem:[%s1156 + $0x68] sm:$0xff]
        %v1171 = vld [vmem:[%s1156 + $0x70] sm:$0xff]
        %v1172 = vld [vmem:[%s1156 + $0x78] sm:$0xff]
        %1173 = vmatprep.subr.mxu0 0.0
        %1174 = vmatpush1.msra.mxu0 %v1157
        %1175 = vmatprep.subr.mxu0 0.0
        %1176 = vmatpush1.msra.mxu0 %v1158
        %1177 = vmatprep.subr.mxu0 0.0
        %1178 = vmatpush1.msra.mxu0 %v1159
        %1179 = vmatprep.subr.mxu0 0.0
        %1180 = vmatpush1.msra.mxu0 %v1160
        %1181 = vmatprep.subr.mxu0 0.0
        %1182 = vmatpush1.msra.mxu0 %v1161
        %1183 = vmatprep.subr.mxu0 0.0
        %1184 = vmatpush1.msra.mxu0 %v1162
        %1185 = vmatprep.subr.mxu0 0.0
        %1186 = vmatpush1.msra.mxu0 %v1163
        %1187 = vmatprep.subr.mxu0 0.0
        %1188 = vmatpush1.msra.mxu0 %v1164
        %1189 = vmatprep.subr.mxu0 0.0
        %1190 = vmatpush1.msra.mxu0 %v1165
        %1191 = vmatprep.subr.mxu0 0.0
        %1192 = vmatpush1.msra.mxu0 %v1166
        %1193 = vmatprep.subr.mxu0 0.0
        %1194 = vmatpush1.msra.mxu0 %v1167
        %1195 = vmatprep.subr.mxu0 0.0
        %1196 = vmatpush1.msra.mxu0 %v1168
        %1197 = vmatprep.subr.mxu0 0.0
        %1198 = vmatpush1.msra.mxu0 %v1169
        %1199 = vmatprep.subr.mxu0 0.0
        %1200 = vmatpush1.msra.mxu0 %v1170
        %1201 = vmatprep.subr.mxu0 0.0
        %1202 = vmatpush1.msra.mxu0 %v1171
        %1203 = vmatprep.subr.mxu0 0.0
        %1204 = vmatpush1.msra.mxu0 %v1172
        %1205 = vmatprep.subr.mxu0 0.0
        %1206 = vmatpush1.msra.mxu0 0.0
        %1207 = vmatprep.subr.mxu0 0.0
        %1208 = vmatpush1.msra.mxu0 0.0
        %1209 = vmatprep.subr.mxu0 0.0
        %1210 = vmatpush1.msra.mxu0 0.0
        %1211 = vmatprep.subr.mxu0 0.0
        %1212 = vmatpush1.msra.mxu0 0.0
        %1213 = vmatprep.subr.mxu0 0.0
        %1214 = vmatpush1.msra.mxu0 0.0
        %1215 = vmatprep.subr.mxu0 0.0
        %1216 = vmatpush1.msra.mxu0 0.0
        %1217 = vmatprep.subr.mxu0 0.0
        %1218 = vmatpush1.msra.mxu0 0.0
        %1219 = vmatprep.subr.mxu0 0.0
        %1220 = vmatpush1.msra.mxu0 0.0
        %1221 = vmatprep.subr.mxu0 0.0
        %1222 = vmatpush1.msra.mxu0 0.0
        %1223 = vmatprep.subr.mxu0 0.0
        %1224 = vmatpush1.msra.mxu0 0.0
        %1225 = vmatprep.subr.mxu0 0.0
        %1226 = vmatpush1.msra.mxu0 0.0
        %1227 = vmatprep.subr.mxu0 0.0
        %1228 = vmatpush1.msra.mxu0 0.0
        %1229 = vmatprep.subr.mxu0 0.0
        %1230 = vmatpush1.msra.mxu0 0.0
        %1231 = vmatprep.subr.mxu0 0.0
        %1232 = vmatpush1.msra.mxu0 0.0
        %1233 = vmatprep.subr.mxu0 0.0
        %1234 = vmatpush1.msra.mxu0 0.0
        %1235 = vmatprep.subr.mxu0 0.0
        %1236 = vmatpush1.msra.mxu0 0.0
        %1237 = vmatprep.mubr.f32.mxu0 0.0
        %1238 = vmatmul.mubr.f32.gmra.mrb[0].mxu0 %v1154
        %v1239 = vpop.f32.mrb[0].mxu0
        %v1240 = vadd.f32 0.0, %v1239
        %v1241 = vpop.f32.mrb[0].mxu0
        %1242 = vmatprep.mubr.f32.mxu0 0.0
        %1243 = vmatmul.mubr.f32.gmra.mrb[0].mxu0 %v1153
        %v1244 = vpop.f32.mrb[0].mxu0
        %v1245 = vadd.f32 0.0, %v1244
        %v1246 = vpop.f32.mrb[0].mxu0
        %1247 = vmatprep.mubr.f32.mxu0 0.0
        %1248 = vmatmul.mubr.f32.gmra.mrb[0].mxu0 %v1152
        %v1249 = vpop.f32.mrb[0].mxu0
        %v1250 = vadd.f32 0.0, %v1249
        %v1251 = vpop.f32.mrb[0].mxu0
        %1252 = vmatprep.mubr.f32.mxu0 0.0
        %1253 = vmatmul.mubr.f32.gmra.mrb[0].mxu0 %v1151
        %v1254 = vpop.f32.mrb[0].mxu0
        %v1255 = vadd.f32 0.0, %v1254
        %v1256 = vpop.f32.mrb[0].mxu0
        %1257 = vmatprep.mubr.f32.mxu0 0.0
        %1258 = vmatmul.mubr.f32.gmra.mrb[0].mxu0 %v1150
        %v1259 = vpop.f32.mrb[0].mxu0
        %v1260 = vadd.f32 0.0, %v1259
        %v1261 = vpop.f32.mrb[0].mxu0
        %1262 = vmatprep.mubr.f32.mxu0 0.0
        %1263 = vmatmul.mubr.f32.gmra.mrb[0].mxu0 %v1149
        %v1264 = vpop.f32.mrb[0].mxu0
        %v1265 = vadd.f32 0.0, %v1264
        %v1266 = vpop.f32.mrb[0].mxu0
        %1267 = vmatprep.mubr.f32.mxu0 0.0
        %1268 = vmatmul.mubr.f32.gmra.mrb[0].mxu0 %v1148
        %v1269 = vpop.f32.mrb[0].mxu0
        %v1270 = vadd.f32 0.0, %v1269
        %v1271 = vpop.f32.mrb[0].mxu0
        %1272 = vmatprep.mubr.f32.mxu0 0.0
        %1273 = vmatmul.mubr.f32.gmra.mrb[0].mxu0 %v1147
        %v1274 = vpop.f32.mrb[0].mxu0
        %v1275 = vadd.f32 0.0, %v1274
        %v1276 = vpop.f32.mrb[0].mxu0
        %1277 = vmatprep.mubr.f32.mxu0 0.0
        %1278 = vmatmul.mubr.f32.gmra.mrb[0].mxu0 %v1146
        %v1279 = vpop.f32.mrb[0].mxu0
        %v1280 = vadd.f32 0.0, %v1279
        %v1281 = vpop.f32.mrb[0].mxu0
        %1282 = vmatprep.mubr.f32.mxu0 0.0
        %1283 = vmatmul.mubr.f32.gmra.mrb[0].mxu0 %v1145
        %v1284 = vpop.f32.mrb[0].mxu0
        %v1285 = vadd.f32 0.0, %v1284
        %v1286 = vpop.f32.mrb[0].mxu0
        %1287 = vmatprep.mubr.f32.mxu0 0.0
        %1288 = vmatmul.mubr.f32.gmra.mrb[0].mxu0 %v1144
        %v1289 = vpop.f32.mrb[0].mxu0
        %v1290 = vadd.f32 0.0, %v1289
        %v1291 = vpop.f32.mrb[0].mxu0
        %1292 = vmatprep.mubr.f32.mxu0 0.0
        %1293 = vmatmul.mubr.f32.gmra.mrb[0].mxu0 %v1143
        %v1294 = vpop.f32.mrb[0].mxu0
        %v1295 = vadd.f32 0.0, %v1294
        %v1296 = vpop.f32.mrb[0].mxu0
        %1297 = vmatprep.mubr.f32.mxu0 0.0
        %1298 = vmatmul.mubr.f32.gmra.mrb[0].mxu0 %v1142
        %v1299 = vpop.f32.mrb[0].mxu0
        %v1300 = vadd.f32 0.0, %v1299
        %v1301 = vpop.f32.mrb[0].mxu0
        %1302 = vmatprep.mubr.f32.mxu0 0.0
        %1303 = vmatmul.mubr.f32.gmra.mrb[0].mxu0 %v1141
        %v1304 = vpop.f32.mrb[0].mxu0
        %v1305 = vadd.f32 0.0, %v1304
        %v1306 = vpop.f32.mrb[0].mxu0
        %1307 = vmatprep.mubr.f32.mxu0 0.0
        %1308 = vmatmul.mubr.f32.gmra.mrb[0].mxu0 %v1140
        %v1309 = vpop.f32.mrb[0].mxu0
        %v1310 = vadd.f32 0.0, %v1309
        %v1311 = vpop.f32.mrb[0].mxu0
        %1312 = vmatprep.mubr.f32.mxu0 0.0
        %1313 = vmatmul.mubr.f32.gmra.mrb[0].mxu0 %v1139
        %v1314 = vpop.f32.mrb[0].mxu0
        %v1315 = vadd.f32 0.0, %v1314
        %v1316 = vpop.f32.mrb[0].mxu0
        %1317 = vmatprep.mubr.f32.mxu0 0.0
        %1318 = vmatmul.mubr.f32.gmra.mrb[0].mxu0 %v1138
        %v1319 = vpop.f32.mrb[0].mxu0
        %v1320 = vadd.f32 0.0, %v1319
        %v1321 = vpop.f32.mrb[0].mxu0
        %1322 = vmatprep.mubr.f32.mxu0 0.0
        %1323 = vmatmul.mubr.f32.gmra.mrb[0].mxu0 %v1137
        %v1324 = vpop.f32.mrb[0].mxu0
        %v1325 = vadd.f32 0.0, %v1324
        %v1326 = vpop.f32.mrb[0].mxu0
        %1327 = vmatprep.mubr.f32.mxu0 0.0
        %1328 = vmatmul.mubr.f32.gmra.mrb[0].mxu0 %v1136
        %v1329 = vpop.f32.mrb[0].mxu0
        %v1330 = vadd.f32 0.0, %v1329
        %v1331 = vpop.f32.mrb[0].mxu0
        %1332 = vmatprep.mubr.f32.mxu0 0.0
        %1333 = vmatmul.mubr.f32.gmra.mrb[0].mxu0 %v1135
        %v1334 = vpop.f32.mrb[0].mxu0
        %v1335 = vadd.f32 0.0, %v1334
        %v1336 = vpop.f32.mrb[0].mxu0
        %1337 = vmatprep.mubr.f32.mxu0 0.0
        %1338 = vmatmul.mubr.f32.gmra.mrb[0].mxu0 %v1134
        %v1339 = vpop.f32.mrb[0].mxu0
        %v1340 = vadd.f32 0.0, %v1339
        %v1341 = vpop.f32.mrb[0].mxu0
        %1342 = vmatprep.mubr.f32.mxu0 0.0
        %1343 = vmatmul.mubr.f32.gmra.mrb[0].mxu0 %v1133
        %v1344 = vpop.f32.mrb[0].mxu0
        %v1345 = vadd.f32 0.0, %v1344
        %v1346 = vpop.f32.mrb[0].mxu0
        %1347 = vmatprep.mubr.f32.mxu0 0.0
        %1348 = vmatmul.mubr.f32.gmra.mrb[0].mxu0 %v1132
        %v1349 = vpop.f32.mrb[0].mxu0
        %v1350 = vadd.f32 0.0, %v1349
        %v1351 = vpop.f32.mrb[0].mxu0
        %1352 = vmatprep.mubr.f32.mxu0 0.0
        %1353 = vmatmul.mubr.f32.gmra.mrb[0].mxu0 %v1155
        %v1354 = vpop.f32.mrb[0].mxu0
        %v1355 = vadd.f32 0.0, %v1354
        %v1356 = vpop.f32.mrb[0].mxu0
        %1357 = vdwg.mxu0
        %v1358 = vadd.f32 %v989, %v1240
        %v1359 = vadd.f32 %v994, %v1245
        %v1360 = vadd.f32 %v999, %v1250
        %v1361 = vadd.f32 %v1004, %v1255
        %v1362 = vadd.f32 %v1009, %v1260
        %v1363 = vadd.f32 %v1014, %v1265
        %v1364 = vadd.f32 %v1019, %v1270
        %v1365 = vadd.f32 %v1024, %v1275
        %v1366 = vadd.f32 %v1029, %v1280
        %v1367 = vadd.f32 %v1034, %v1285
        %v1368 = vadd.f32 %v1039, %v1290
        %v1369 = vadd.f32 %v1044, %v1295
        %v1370 = vadd.f32 %v1049, %v1300
        %v1371 = vadd.f32 %v1054, %v1305
        %v1372 = vadd.f32 %v1059, %v1310
        %v1373 = vadd.f32 %v1064, %v1315
        %v1374 = vadd.f32 %v1069, %v1320
        %v1375 = vadd.f32 %v1074, %v1325
        %v1376 = vadd.f32 %v1079, %v1330
        %v1377 = vadd.f32 %v1084, %v1335
        %v1378 = vadd.f32 %v1089, %v1340
        %v1379 = vadd.f32 %v1094, %v1345
        %v1380 = vadd.f32 %v1099, %v1350
        %v1381 = vadd.f32 %v1104, %v1355
        %v1382 = vld [vmem:[%s3] sm:$0x1]
        %v1384 = vlaneseq
        %v1385 = vshrl.u32 %v1384, 7
        %v1386 = vsub.s32 0, %v1385
        %v1387 = vrot.slane %v1382, %v1386
        %v1389 = vadd.f32 %v1358, %v1387
        %v1390 = vadd.f32 %v1359, %v1387
        %v1391 = vadd.f32 %v1360, %v1387
        %v1392 = vadd.f32 %v1361, %v1387
        %v1393 = vadd.f32 %v1362, %v1387
        %v1394 = vadd.f32 %v1363, %v1387
        %v1395 = vadd.f32 %v1364, %v1387
        %v1396 = vadd.f32 %v1365, %v1387
        %v1397 = vadd.f32 %v1366, %v1387
        %v1398 = vadd.f32 %v1367, %v1387
        %v1399 = vadd.f32 %v1368, %v1387
        %v1400 = vadd.f32 %v1369, %v1387
        %v1401 = vadd.f32 %v1370, %v1387
        %v1402 = vadd.f32 %v1371, %v1387
        %v1403 = vadd.f32 %v1372, %v1387
        %v1404 = vadd.f32 %v1373, %v1387
        %v1405 = vadd.f32 %v1374, %v1387
        %v1406 = vadd.f32 %v1375, %v1387
        %v1407 = vadd.f32 %v1376, %v1387
        %v1408 = vadd.f32 %v1377, %v1387
        %v1409 = vadd.f32 %v1378, %v1387
        %v1410 = vadd.f32 %v1379, %v1387
        %v1411 = vadd.f32 %v1380, %v1387
        %v1412 = vadd.f32 %v1381, %v1387
        %vm1413 = vcmp.ge.f32.partialorder %v1389, 0.0
        %vm1414 = vcmp.ge.f32.partialorder %v1390, 0.0
        %vm1415 = vcmp.ge.f32.partialorder %v1391, 0.0
        %vm1416 = vcmp.ge.f32.partialorder %v1392, 0.0
        %vm1417 = vcmp.ge.f32.partialorder %v1393, 0.0
        %vm1418 = vcmp.ge.f32.partialorder %v1394, 0.0
        %vm1419 = vcmp.ge.f32.partialorder %v1395, 0.0
        %vm1420 = vcmp.ge.f32.partialorder %v1396, 0.0
        %vm1421 = vcmp.ge.f32.partialorder %v1397, 0.0
        %vm1422 = vcmp.ge.f32.partialorder %v1398, 0.0
        %vm1423 = vcmp.ge.f32.partialorder %v1399, 0.0
        %vm1424 = vcmp.ge.f32.partialorder %v1400, 0.0
        %vm1425 = vcmp.ge.f32.partialorder %v1401, 0.0
        %vm1426 = vcmp.ge.f32.partialorder %v1402, 0.0
        %vm1427 = vcmp.ge.f32.partialorder %v1403, 0.0
        %vm1428 = vcmp.ge.f32.partialorder %v1404, 0.0
        %vm1429 = vcmp.ge.f32.partialorder %v1405, 0.0
        %vm1430 = vcmp.ge.f32.partialorder %v1406, 0.0
        %vm1431 = vcmp.ge.f32.partialorder %v1407, 0.0
        %vm1432 = vcmp.ge.f32.partialorder %v1408, 0.0
        %vm1433 = vcmp.ge.f32.partialorder %v1409, 0.0
        %vm1434 = vcmp.ge.f32.partialorder %v1410, 0.0
        %vm1435 = vcmp.ge.f32.partialorder %v1411, 0.0
        %vm1436 = vcmp.ge.f32.partialorder %v1412, 0.0
        %v1437 = vmul.f32 %v1389, 0.1
        %v1438 = vmul.f32 %v1390, 0.1
        %v1439 = vmul.f32 %v1391, 0.1
        %v1440 = vmul.f32 %v1392, 0.1
        %v1441 = vmul.f32 %v1393, 0.1
        %v1442 = vmul.f32 %v1394, 0.1
        %v1443 = vmul.f32 %v1395, 0.1
        %v1444 = vmul.f32 %v1396, 0.1
        %v1445 = vmul.f32 %v1397, 0.1
        %v1446 = vmul.f32 %v1398, 0.1
        %v1447 = vmul.f32 %v1399, 0.1
        %v1448 = vmul.f32 %v1400, 0.1
        %v1449 = vmul.f32 %v1401, 0.1
        %v1450 = vmul.f32 %v1402, 0.1
        %v1451 = vmul.f32 %v1403, 0.1
        %v1452 = vmul.f32 %v1404, 0.1
        %v1453 = vmul.f32 %v1405, 0.1
        %v1454 = vmul.f32 %v1406, 0.1
        %v1455 = vmul.f32 %v1407, 0.1
        %v1456 = vmul.f32 %v1408, 0.1
        %v1457 = vmul.f32 %v1409, 0.1
        %v1458 = vmul.f32 %v1410, 0.1
        %v1459 = vmul.f32 %v1411, 0.1
        %v1460 = vmul.f32 %v1412, 0.1
        %v1461 = vsel %vm1413, %v1389, %v1437
        %v1462 = vsel %vm1414, %v1390, %v1438
        %v1463 = vsel %vm1415, %v1391, %v1439
        %v1464 = vsel %vm1416, %v1392, %v1440
        %v1465 = vsel %vm1417, %v1393, %v1441
        %v1466 = vsel %vm1418, %v1394, %v1442
        %v1467 = vsel %vm1419, %v1395, %v1443
        %v1468 = vsel %vm1420, %v1396, %v1444
        %v1469 = vsel %vm1421, %v1397, %v1445
        %v1470 = vsel %vm1422, %v1398, %v1446
        %v1471 = vsel %vm1423, %v1399, %v1447
        %v1472 = vsel %vm1424, %v1400, %v1448
        %v1473 = vsel %vm1425, %v1401, %v1449
        %v1474 = vsel %vm1426, %v1402, %v1450
        %v1475 = vsel %vm1427, %v1403, %v1451
        %v1476 = vsel %vm1428, %v1404, %v1452
        %v1477 = vsel %vm1429, %v1405, %v1453
        %v1478 = vsel %vm1430, %v1406, %v1454
        %v1479 = vsel %vm1431, %v1407, %v1455
        %v1480 = vsel %vm1432, %v1408, %v1456
        %v1481 = vsel %vm1433, %v1409, %v1457
        %v1482 = vsel %vm1434, %v1410, %v1458
        %v1483 = vsel %vm1435, %v1411, %v1459
        %v1484 = vsel %vm1436, %v1412, %v1460
        %v1485 = vsel %vm619, %v1461, 0.0
        %v1486 = vsel %vm620, %v1462, 0.0
        %v1487 = vsel %vm621, %v1463, 0.0
        %v1488 = vsel %vm622, %v1464, 0.0
        %v1489 = vsel %vm623, %v1465, 0.0
        %v1490 = vsel %vm624, %v1466, 0.0
        %v1491 = vsel %vm625, %v1467, 0.0
        %v1492 = vsel %vm626, %v1468, 0.0
        %v1493 = vsel %vm627, %v1469, 0.0
        %v1494 = vsel %vm628, %v1470, 0.0
        %v1495 = vsel %vm629, %v1471, 0.0
        %v1496 = vsel %vm630, %v1472, 0.0
        %v1497 = vsel %vm619, %v1473, 0.0
        %v1498 = vsel %vm620, %v1474, 0.0
        %v1499 = vsel %vm621, %v1475, 0.0
        %v1500 = vsel %vm622, %v1476, 0.0
        %v1501 = vsel %vm623, %v1477, 0.0
        %v1502 = vsel %vm624, %v1478, 0.0
        %v1503 = vsel %vm625, %v1479, 0.0
        %v1504 = vsel %vm626, %v1480, 0.0
        %v1505 = vsel %vm627, %v1481, 0.0
        %v1506 = vsel %vm628, %v1482, 0.0
        %v1507 = vsel %vm629, %v1483, 0.0
        %v1508 = vsel %vm630, %v1484, 0.0
        %v1509 = vrot.slane %v1485, 7
        %v1510 = vrot.slane %v1486, 7
        %v1511 = vrot.slane %v1487, 7
        %v1512 = vrot.slane %v1488, 7
        %v1513 = vrot.slane %v1489, 7
        %v1514 = vrot.slane %v1490, 7
        %v1515 = vrot.slane %v1491, 7
        %v1516 = vrot.slane %v1492, 7
        %v1517 = vrot.slane %v1493, 7
        %v1518 = vrot.slane %v1494, 7
        %v1519 = vrot.slane %v1495, 7
        %v1520 = vrot.slane %v1496, 7
        %v1521 = vrot.slane %v1497, 7
        %v1522 = vrot.slane %v1498, 7
        %v1523 = vrot.slane %v1499, 7
        %v1524 = vrot.slane %v1500, 7
        %v1525 = vrot.slane %v1501, 7
        %v1526 = vrot.slane %v1502, 7
        %v1527 = vrot.slane %v1503, 7
        %v1528 = vrot.slane %v1504, 7
        %v1529 = vrot.slane %v1505, 7
        %v1530 = vrot.slane %v1506, 7
        %v1531 = vrot.slane %v1507, 7
        %v1532 = vrot.slane %v1508, 7
        %v1533 = vsel %vm679, %v1531, %v1532
        %v1534 = vsel %vm679, %v1530, %v1531
        %v1535 = vsel %vm679, %v1529, %v1530
        %v1536 = vsel %vm679, %v1528, %v1529
        %v1537 = vsel %vm679, %v1527, %v1528
        %v1538 = vsel %vm679, %v1526, %v1527
        %v1539 = vsel %vm679, %v1525, %v1526
        %v1540 = vsel %vm679, %v1524, %v1525
        %v1541 = vsel %vm679, %v1523, %v1524
        %v1542 = vsel %vm679, %v1522, %v1523
        %v1543 = vsel %vm679, %v1521, %v1522
        %v1544 = vsel %vm679, %v1520, %v1521
        %v1545 = vsel %vm679, %v1519, %v1520
        %v1546 = vsel %vm679, %v1518, %v1519
        %v1547 = vsel %vm679, %v1517, %v1518
        %v1548 = vsel %vm679, %v1516, %v1517
        %v1549 = vsel %vm679, %v1515, %v1516
        %v1550 = vsel %vm679, %v1514, %v1515
        %v1551 = vsel %vm679, %v1513, %v1514
        %v1552 = vsel %vm679, %v1512, %v1513
        %v1553 = vsel %vm679, %v1511, %v1512
        %v1554 = vsel %vm679, %v1510, %v1511
        %v1555 = vsel %vm679, %v1509, %v1510
        %v1556 = vsel %vm679, %v1532, %v1509
        %s1557 = scalar_lea.vmem %s2, 384
        %v1558 = vld [vmem:[%s1557] sm:$0xff]
        %v1559 = vld [vmem:[%s1557 + $0x8] sm:$0xff]
        %v1560 = vld [vmem:[%s1557 + $0x10] sm:$0xff]
        %v1561 = vld [vmem:[%s1557 + $0x18] sm:$0xff]
        %v1562 = vld [vmem:[%s1557 + $0x20] sm:$0xff]
        %v1563 = vld [vmem:[%s1557 + $0x28] sm:$0xff]
        %v1564 = vld [vmem:[%s1557 + $0x30] sm:$0xff]
        %v1565 = vld [vmem:[%s1557 + $0x38] sm:$0xff]
        %v1566 = vld [vmem:[%s1557 + $0x40] sm:$0xff]
        %v1567 = vld [vmem:[%s1557 + $0x48] sm:$0xff]
        %v1568 = vld [vmem:[%s1557 + $0x50] sm:$0xff]
        %v1569 = vld [vmem:[%s1557 + $0x58] sm:$0xff]
        %v1570 = vld [vmem:[%s1557 + $0x60] sm:$0xff]
        %v1571 = vld [vmem:[%s1557 + $0x68] sm:$0xff]
        %v1572 = vld [vmem:[%s1557 + $0x70] sm:$0xff]
        %v1573 = vld [vmem:[%s1557 + $0x78] sm:$0xff]
        %s1574 = scalar_lea.vmem %s2, 512
        %v1575 = vld [vmem:[%s1574] sm:$0xff]
        %v1576 = vld [vmem:[%s1574 + $0x8] sm:$0xff]
        %v1577 = vld [vmem:[%s1574 + $0x10] sm:$0xff]
        %v1578 = vld [vmem:[%s1574 + $0x18] sm:$0xff]
        %v1579 = vld [vmem:[%s1574 + $0x20] sm:$0xff]
        %v1580 = vld [vmem:[%s1574 + $0x28] sm:$0xff]
        %v1581 = vld [vmem:[%s1574 + $0x30] sm:$0xff]
        %v1582 = vld [vmem:[%s1574 + $0x38] sm:$0xff]
        %v1583 = vld [vmem:[%s1574 + $0x40] sm:$0xff]
        %v1584 = vld [vmem:[%s1574 + $0x48] sm:$0xff]
        %v1585 = vld [vmem:[%s1574 + $0x50] sm:$0xff]
        %v1586 = vld [vmem:[%s1574 + $0x58] sm:$0xff]
        %v1587 = vld [vmem:[%s1574 + $0x60] sm:$0xff]
        %v1588 = vld [vmem:[%s1574 + $0x68] sm:$0xff]
        %v1589 = vld [vmem:[%s1574 + $0x70] sm:$0xff]
        %v1590 = vld [vmem:[%s1574 + $0x78] sm:$0xff]
        %1591 = vmatprep.subr.mxu0 0.0
        %1592 = vmatpush1.msra.mxu0 %v1575
        %1593 = vmatprep.subr.mxu0 0.0
        %1594 = vmatpush1.msra.mxu0 %v1576
        %1595 = vmatprep.subr.mxu0 0.0
        %1596 = vmatpush1.msra.mxu0 %v1577
        %1597 = vmatprep.subr.mxu0 0.0
        %1598 = vmatpush1.msra.mxu0 %v1578
        %1599 = vmatprep.subr.mxu0 0.0
        %1600 = vmatpush1.msra.mxu0 %v1579
        %1601 = vmatprep.subr.mxu0 0.0
        %1602 = vmatpush1.msra.mxu0 %v1580
        %1603 = vmatprep.subr.mxu0 0.0
        %1604 = vmatpush1.msra.mxu0 %v1581
        %1605 = vmatprep.subr.mxu0 0.0
        %1606 = vmatpush1.msra.mxu0 %v1582
        %1607 = vmatprep.subr.mxu0 0.0
        %1608 = vmatpush1.msra.mxu0 %v1583
        %1609 = vmatprep.subr.mxu0 0.0
        %1610 = vmatpush1.msra.mxu0 %v1584
        %1611 = vmatprep.subr.mxu0 0.0
        %1612 = vmatpush1.msra.mxu0 %v1585
        %1613 = vmatprep.subr.mxu0 0.0
        %1614 = vmatpush1.msra.mxu0 %v1586
        %1615 = vmatprep.subr.mxu0 0.0
        %1616 = vmatpush1.msra.mxu0 %v1587
        %1617 = vmatprep.subr.mxu0 0.0
        %1618 = vmatpush1.msra.mxu0 %v1588
        %1619 = vmatprep.subr.mxu0 0.0
        %1620 = vmatpush1.msra.mxu0 %v1589
        %1621 = vmatprep.subr.mxu0 0.0
        %1622 = vmatpush1.msra.mxu0 %v1590
        %1623 = vmatprep.subr.mxu0 0.0
        %1624 = vmatpush1.msra.mxu0 0.0
        %1625 = vmatprep.subr.mxu0 0.0
        %1626 = vmatpush1.msra.mxu0 0.0
        %1627 = vmatprep.subr.mxu0 0.0
        %1628 = vmatpush1.msra.mxu0 0.0
        %1629 = vmatprep.subr.mxu0 0.0
        %1630 = vmatpush1.msra.mxu0 0.0
        %1631 = vmatprep.subr.mxu0 0.0
        %1632 = vmatpush1.msra.mxu0 0.0
        %1633 = vmatprep.subr.mxu0 0.0
        %1634 = vmatpush1.msra.mxu0 0.0
        %1635 = vmatprep.subr.mxu0 0.0
        %1636 = vmatpush1.msra.mxu0 0.0
        %1637 = vmatprep.subr.mxu0 0.0
        %1638 = vmatpush1.msra.mxu0 0.0
        %1639 = vmatprep.subr.mxu0 0.0
        %1640 = vmatpush1.msra.mxu0 0.0
        %1641 = vmatprep.subr.mxu0 0.0
        %1642 = vmatpush1.msra.mxu0 0.0
        %1643 = vmatprep.subr.mxu0 0.0
        %1644 = vmatpush1.msra.mxu0 0.0
        %1645 = vmatprep.subr.mxu0 0.0
        %1646 = vmatpush1.msra.mxu0 0.0
        %1647 = vmatprep.subr.mxu0 0.0
        %1648 = vmatpush1.msra.mxu0 0.0
        %1649 = vmatprep.subr.mxu0 0.0
        %1650 = vmatpush1.msra.mxu0 0.0
        %1651 = vmatprep.subr.mxu0 0.0
        %1652 = vmatpush1.msra.mxu0 0.0
        %1653 = vmatprep.subr.mxu0 0.0
        %1654 = vmatpush1.msra.mxu0 0.0
        %1655 = vmatprep.mubr.f32.mxu0 0.0
        %1656 = vmatmul.mubr.f32.gmra.mrb[0].mxu0 %v1485
        %v1657 = vpop.f32.mrb[0].mxu0
        %v1658 = vadd.f32 0.0, %v1657
        %v1659 = vpop.f32.mrb[0].mxu0
        %1660 = vmatprep.mubr.f32.mxu0 0.0
        %1661 = vmatmul.mubr.f32.gmra.mrb[0].mxu0 %v1486
        %v1662 = vpop.f32.mrb[0].mxu0
        %v1663 = vadd.f32 0.0, %v1662
        %v1664 = vpop.f32.mrb[0].mxu0
        %1665 = vmatprep.mubr.f32.mxu0 0.0
        %1666 = vmatmul.mubr.f32.gmra.mrb[0].mxu0 %v1487
        %v1667 = vpop.f32.mrb[0].mxu0
        %v1668 = vadd.f32 0.0, %v1667
        %v1669 = vpop.f32.mrb[0].mxu0
        %1670 = vmatprep.mubr.f32.mxu0 0.0
        %1671 = vmatmul.mubr.f32.gmra.mrb[0].mxu0 %v1488
        %v1672 = vpop.f32.mrb[0].mxu0
        %v1673 = vadd.f32 0.0, %v1672
        %v1674 = vpop.f32.mrb[0].mxu0
        %1675 = vmatprep.mubr.f32.mxu0 0.0
        %1676 = vmatmul.mubr.f32.gmra.mrb[0].mxu0 %v1489
        %v1677 = vpop.f32.mrb[0].mxu0
        %v1678 = vadd.f32 0.0, %v1677
        %v1679 = vpop.f32.mrb[0].mxu0
        %1680 = vmatprep.mubr.f32.mxu0 0.0
        %1681 = vmatmul.mubr.f32.gmra.mrb[0].mxu0 %v1490
        %v1682 = vpop.f32.mrb[0].mxu0
        %v1683 = vadd.f32 0.0, %v1682
        %v1684 = vpop.f32.mrb[0].mxu0
        %1685 = vmatprep.mubr.f32.mxu0 0.0
        %1686 = vmatmul.mubr.f32.gmra.mrb[0].mxu0 %v1491
        %v1687 = vpop.f32.mrb[0].mxu0
        %v1688 = vadd.f32 0.0, %v1687
        %v1689 = vpop.f32.mrb[0].mxu0
        %1690 = vmatprep.mubr.f32.mxu0 0.0
        %1691 = vmatmul.mubr.f32.gmra.mrb[0].mxu0 %v1492
        %v1692 = vpop.f32.mrb[0].mxu0
        %v1693 = vadd.f32 0.0, %v1692
        %v1694 = vpop.f32.mrb[0].mxu0
        %1695 = vmatprep.mubr.f32.mxu0 0.0
        %1696 = vmatmul.mubr.f32.gmra.mrb[0].mxu0 %v1493
        %v1697 = vpop.f32.mrb[0].mxu0
        %v1698 = vadd.f32 0.0, %v1697
        %v1699 = vpop.f32.mrb[0].mxu0
        %1700 = vmatprep.mubr.f32.mxu0 0.0
        %1701 = vmatmul.mubr.f32.gmra.mrb[0].mxu0 %v1494
        %v1702 = vpop.f32.mrb[0].mxu0
        %v1703 = vadd.f32 0.0, %v1702
        %v1704 = vpop.f32.mrb[0].mxu0
        %1705 = vmatprep.mubr.f32.mxu0 0.0
        %1706 = vmatmul.mubr.f32.gmra.mrb[0].mxu0 %v1495
        %v1707 = vpop.f32.mrb[0].mxu0
        %v1708 = vadd.f32 0.0, %v1707
        %v1709 = vpop.f32.mrb[0].mxu0
        %1710 = vmatprep.mubr.f32.mxu0 0.0
        %1711 = vmatmul.mubr.f32.gmra.mrb[0].mxu0 %v1496
        %v1712 = vpop.f32.mrb[0].mxu0
        %v1713 = vadd.f32 0.0, %v1712
        %v1714 = vpop.f32.mrb[0].mxu0
        %1715 = vmatprep.mubr.f32.mxu0 0.0
        %1716 = vmatmul.mubr.f32.gmra.mrb[0].mxu0 %v1497
        %v1717 = vpop.f32.mrb[0].mxu0
        %v1718 = vadd.f32 0.0, %v1717
        %v1719 = vpop.f32.mrb[0].mxu0
        %1720 = vmatprep.mubr.f32.mxu0 0.0
        %1721 = vmatmul.mubr.f32.gmra.mrb[0].mxu0 %v1498
        %v1722 = vpop.f32.mrb[0].mxu0
        %v1723 = vadd.f32 0.0, %v1722
        %v1724 = vpop.f32.mrb[0].mxu0
        %1725 = vmatprep.mubr.f32.mxu0 0.0
        %1726 = vmatmul.mubr.f32.gmra.mrb[0].mxu0 %v1499
        %v1727 = vpop.f32.mrb[0].mxu0
        %v1728 = vadd.f32 0.0, %v1727
        %v1729 = vpop.f32.mrb[0].mxu0
        %1730 = vmatprep.mubr.f32.mxu0 0.0
        %1731 = vmatmul.mubr.f32.gmra.mrb[0].mxu0 %v1500
        %v1732 = vpop.f32.mrb[0].mxu0
        %v1733 = vadd.f32 0.0, %v1732
        %v1734 = vpop.f32.mrb[0].mxu0
        %1735 = vmatprep.mubr.f32.mxu0 0.0
        %1736 = vmatmul.mubr.f32.gmra.mrb[0].mxu0 %v1501
        %v1737 = vpop.f32.mrb[0].mxu0
        %v1738 = vadd.f32 0.0, %v1737
        %v1739 = vpop.f32.mrb[0].mxu0
        %1740 = vmatprep.mubr.f32.mxu0 0.0
        %1741 = vmatmul.mubr.f32.gmra.mrb[0].mxu0 %v1502
        %v1742 = vpop.f32.mrb[0].mxu0
        %v1743 = vadd.f32 0.0, %v1742
        %v1744 = vpop.f32.mrb[0].mxu0
        %1745 = vmatprep.mubr.f32.mxu0 0.0
        %1746 = vmatmul.mubr.f32.gmra.mrb[0].mxu0 %v1503
        %v1747 = vpop.f32.mrb[0].mxu0
        %v1748 = vadd.f32 0.0, %v1747
        %v1749 = vpop.f32.mrb[0].mxu0
        %1750 = vmatprep.mubr.f32.mxu0 0.0
        %1751 = vmatmul.mubr.f32.gmra.mrb[0].mxu0 %v1504
        %v1752 = vpop.f32.mrb[0].mxu0
        %v1753 = vadd.f32 0.0, %v1752
        %v1754 = vpop.f32.mrb[0].mxu0
        %1755 = vmatprep.mubr.f32.mxu0 0.0
        %1756 = vmatmul.mubr.f32.gmra.mrb[0].mxu0 %v1505
        %v1757 = vpop.f32.mrb[0].mxu0
        %v1758 = vadd.f32 0.0, %v1757
        %v1759 = vpop.f32.mrb[0].mxu0
        %1760 = vmatprep.mubr.f32.mxu0 0.0
        %1761 = vmatmul.mubr.f32.gmra.mrb[0].mxu0 %v1506
        %v1762 = vpop.f32.mrb[0].mxu0
        %v1763 = vadd.f32 0.0, %v1762
        %v1764 = vpop.f32.mrb[0].mxu0
        %1765 = vmatprep.mubr.f32.mxu0 0.0
        %1766 = vmatmul.mubr.f32.gmra.mrb[0].mxu0 %v1507
        %v1767 = vpop.f32.mrb[0].mxu0
        %v1768 = vadd.f32 0.0, %v1767
        %v1769 = vpop.f32.mrb[0].mxu0
        %1770 = vmatprep.mubr.f32.mxu0 0.0
        %1771 = vmatmul.mubr.f32.gmra.mrb[0].mxu0 %v1508
        %v1772 = vpop.f32.mrb[0].mxu0
        %v1773 = vadd.f32 0.0, %v1772
        %v1774 = vpop.f32.mrb[0].mxu0
        %1775 = vdwg.mxu0
        %1776 = vmatprep.subr.mxu0 0.0
        %1777 = vmatpush1.msra.mxu0 %v1558
        %1778 = vmatprep.subr.mxu0 0.0
        %1779 = vmatpush1.msra.mxu0 %v1559
        %1780 = vmatprep.subr.mxu0 0.0
        %1781 = vmatpush1.msra.mxu0 %v1560
        %1782 = vmatprep.subr.mxu0 0.0
        %1783 = vmatpush1.msra.mxu0 %v1561
        %1784 = vmatprep.subr.mxu0 0.0
        %1785 = vmatpush1.msra.mxu0 %v1562
        %1786 = vmatprep.subr.mxu0 0.0
        %1787 = vmatpush1.msra.mxu0 %v1563
        %1788 = vmatprep.subr.mxu0 0.0
        %1789 = vmatpush1.msra.mxu0 %v1564
        %1790 = vmatprep.subr.mxu0 0.0
        %1791 = vmatpush1.msra.mxu0 %v1565
        %1792 = vmatprep.subr.mxu0 0.0
        %1793 = vmatpush1.msra.mxu0 %v1566
        %1794 = vmatprep.subr.mxu0 0.0
        %1795 = vmatpush1.msra.mxu0 %v1567
        %1796 = vmatprep.subr.mxu0 0.0
        %1797 = vmatpush1.msra.mxu0 %v1568
        %1798 = vmatprep.subr.mxu0 0.0
        %1799 = vmatpush1.msra.mxu0 %v1569
        %1800 = vmatprep.subr.mxu0 0.0
        %1801 = vmatpush1.msra.mxu0 %v1570
        %1802 = vmatprep.subr.mxu0 0.0
        %1803 = vmatpush1.msra.mxu0 %v1571
        %1804 = vmatprep.subr.mxu0 0.0
        %1805 = vmatpush1.msra.mxu0 %v1572
        %1806 = vmatprep.subr.mxu0 0.0
        %1807 = vmatpush1.msra.mxu0 %v1573
        %1808 = vmatprep.subr.mxu0 0.0
        %1809 = vmatpush1.msra.mxu0 0.0
        %1810 = vmatprep.subr.mxu0 0.0
        %1811 = vmatpush1.msra.mxu0 0.0
        %1812 = vmatprep.subr.mxu0 0.0
        %1813 = vmatpush1.msra.mxu0 0.0
        %1814 = vmatprep.subr.mxu0 0.0
        %1815 = vmatpush1.msra.mxu0 0.0
        %1816 = vmatprep.subr.mxu0 0.0
        %1817 = vmatpush1.msra.mxu0 0.0
        %1818 = vmatprep.subr.mxu0 0.0
        %1819 = vmatpush1.msra.mxu0 0.0
        %1820 = vmatprep.subr.mxu0 0.0
        %1821 = vmatpush1.msra.mxu0 0.0
        %1822 = vmatprep.subr.mxu0 0.0
        %1823 = vmatpush1.msra.mxu0 0.0
        %1824 = vmatprep.subr.mxu0 0.0
        %1825 = vmatpush1.msra.mxu0 0.0
        %1826 = vmatprep.subr.mxu0 0.0
        %1827 = vmatpush1.msra.mxu0 0.0
        %1828 = vmatprep.subr.mxu0 0.0
        %1829 = vmatpush1.msra.mxu0 0.0
        %1830 = vmatprep.subr.mxu0 0.0
        %1831 = vmatpush1.msra.mxu0 0.0
        %1832 = vmatprep.subr.mxu0 0.0
        %1833 = vmatpush1.msra.mxu0 0.0
        %1834 = vmatprep.subr.mxu0 0.0
        %1835 = vmatpush1.msra.mxu0 0.0
        %1836 = vmatprep.subr.mxu0 0.0
        %1837 = vmatpush1.msra.mxu0 0.0
        %1838 = vmatprep.subr.mxu0 0.0
        %1839 = vmatpush1.msra.mxu0 0.0
        %1840 = vmatprep.mubr.f32.mxu0 0.0
        %1841 = vmatmul.mubr.f32.gmra.mrb[0].mxu0 %v1556
        %v1842 = vpop.f32.mrb[0].mxu0
        %v1843 = vadd.f32 %v1658, %v1842
        %v1844 = vpop.f32.mrb[0].mxu0
        %1845 = vmatprep.mubr.f32.mxu0 0.0
        %1846 = vmatmul.mubr.f32.gmra.mrb[0].mxu0 %v1555
        %v1847 = vpop.f32.mrb[0].mxu0
        %v1848 = vadd.f32 %v1663, %v1847
        %v1849 = vpop.f32.mrb[0].mxu0
        %1850 = vmatprep.mubr.f32.mxu0 0.0
        %1851 = vmatmul.mubr.f32.gmra.mrb[0].mxu0 %v1554
        %v1852 = vpop.f32.mrb[0].mxu0
        %v1853 = vadd.f32 %v1668, %v1852
        %v1854 = vpop.f32.mrb[0].mxu0
        %1855 = vmatprep.mubr.f32.mxu0 0.0
        %1856 = vmatmul.mubr.f32.gmra.mrb[0].mxu0 %v1553
        %v1857 = vpop.f32.mrb[0].mxu0
        %v1858 = vadd.f32 %v1673, %v1857
        %v1859 = vpop.f32.mrb[0].mxu0
        %1860 = vmatprep.mubr.f32.mxu0 0.0
        %1861 = vmatmul.mubr.f32.gmra.mrb[0].mxu0 %v1552
        %v1862 = vpop.f32.mrb[0].mxu0
        %v1863 = vadd.f32 %v1678, %v1862
        %v1864 = vpop.f32.mrb[0].mxu0
        %1865 = vmatprep.mubr.f32.mxu0 0.0
        %1866 = vmatmul.mubr.f32.gmra.mrb[0].mxu0 %v1551
        %v1867 = vpop.f32.mrb[0].mxu0
        %v1868 = vadd.f32 %v1683, %v1867
        %v1869 = vpop.f32.mrb[0].mxu0
        %1870 = vmatprep.mubr.f32.mxu0 0.0
        %1871 = vmatmul.mubr.f32.gmra.mrb[0].mxu0 %v1550
        %v1872 = vpop.f32.mrb[0].mxu0
        %v1873 = vadd.f32 %v1688, %v1872
        %v1874 = vpop.f32.mrb[0].mxu0
        %1875 = vmatprep.mubr.f32.mxu0 0.0
        %1876 = vmatmul.mubr.f32.gmra.mrb[0].mxu0 %v1549
        %v1877 = vpop.f32.mrb[0].mxu0
        %v1878 = vadd.f32 %v1693, %v1877
        %v1879 = vpop.f32.mrb[0].mxu0
        %1880 = vmatprep.mubr.f32.mxu0 0.0
        %1881 = vmatmul.mubr.f32.gmra.mrb[0].mxu0 %v1548
        %v1882 = vpop.f32.mrb[0].mxu0
        %v1883 = vadd.f32 %v1698, %v1882
        %v1884 = vpop.f32.mrb[0].mxu0
        %1885 = vmatprep.mubr.f32.mxu0 0.0
        %1886 = vmatmul.mubr.f32.gmra.mrb[0].mxu0 %v1547
        %v1887 = vpop.f32.mrb[0].mxu0
        %v1888 = vadd.f32 %v1703, %v1887
        %v1889 = vpop.f32.mrb[0].mxu0
        %1890 = vmatprep.mubr.f32.mxu0 0.0
        %1891 = vmatmul.mubr.f32.gmra.mrb[0].mxu0 %v1546
        %v1892 = vpop.f32.mrb[0].mxu0
        %v1893 = vadd.f32 %v1708, %v1892
        %v1894 = vpop.f32.mrb[0].mxu0
        %1895 = vmatprep.mubr.f32.mxu0 0.0
        %1896 = vmatmul.mubr.f32.gmra.mrb[0].mxu0 %v1545
        %v1897 = vpop.f32.mrb[0].mxu0
        %v1898 = vadd.f32 %v1713, %v1897
        %v1899 = vpop.f32.mrb[0].mxu0
        %1900 = vmatprep.mubr.f32.mxu0 0.0
        %1901 = vmatmul.mubr.f32.gmra.mrb[0].mxu0 %v1544
        %v1902 = vpop.f32.mrb[0].mxu0
        %v1903 = vadd.f32 %v1718, %v1902
        %v1904 = vpop.f32.mrb[0].mxu0
        %1905 = vmatprep.mubr.f32.mxu0 0.0
        %1906 = vmatmul.mubr.f32.gmra.mrb[0].mxu0 %v1543
        %v1907 = vpop.f32.mrb[0].mxu0
        %v1908 = vadd.f32 %v1723, %v1907
        %v1909 = vpop.f32.mrb[0].mxu0
        %1910 = vmatprep.mubr.f32.mxu0 0.0
        %1911 = vmatmul.mubr.f32.gmra.mrb[0].mxu0 %v1542
        %v1912 = vpop.f32.mrb[0].mxu0
        %v1913 = vadd.f32 %v1728, %v1912
        %v1914 = vpop.f32.mrb[0].mxu0
        %1915 = vmatprep.mubr.f32.mxu0 0.0
        %1916 = vmatmul.mubr.f32.gmra.mrb[0].mxu0 %v1541
        %v1917 = vpop.f32.mrb[0].mxu0
        %v1918 = vadd.f32 %v1733, %v1917
        %v1919 = vpop.f32.mrb[0].mxu0
        %1920 = vmatprep.mubr.f32.mxu0 0.0
        %1921 = vmatmul.mubr.f32.gmra.mrb[0].mxu0 %v1540
        %v1922 = vpop.f32.mrb[0].mxu0
        %v1923 = vadd.f32 %v1738, %v1922
        %v1924 = vpop.f32.mrb[0].mxu0
        %1925 = vmatprep.mubr.f32.mxu0 0.0
        %1926 = vmatmul.mubr.f32.gmra.mrb[0].mxu0 %v1539
        %v1927 = vpop.f32.mrb[0].mxu0
        %v1928 = vadd.f32 %v1743, %v1927
        %v1929 = vpop.f32.mrb[0].mxu0
        %1930 = vmatprep.mubr.f32.mxu0 0.0
        %1931 = vmatmul.mubr.f32.gmra.mrb[0].mxu0 %v1538
        %v1932 = vpop.f32.mrb[0].mxu0
        %v1933 = vadd.f32 %v1748, %v1932
        %v1934 = vpop.f32.mrb[0].mxu0
        %1935 = vmatprep.mubr.f32.mxu0 0.0
        %1936 = vmatmul.mubr.f32.gmra.mrb[0].mxu0 %v1537
        %v1937 = vpop.f32.mrb[0].mxu0
        %v1938 = vadd.f32 %v1753, %v1937
        %v1939 = vpop.f32.mrb[0].mxu0
        %1940 = vmatprep.mubr.f32.mxu0 0.0
        %1941 = vmatmul.mubr.f32.gmra.mrb[0].mxu0 %v1536
        %v1942 = vpop.f32.mrb[0].mxu0
        %v1943 = vadd.f32 %v1758, %v1942
        %v1944 = vpop.f32.mrb[0].mxu0
        %1945 = vmatprep.mubr.f32.mxu0 0.0
        %1946 = vmatmul.mubr.f32.gmra.mrb[0].mxu0 %v1535
        %v1947 = vpop.f32.mrb[0].mxu0
        %v1948 = vadd.f32 %v1763, %v1947
        %v1949 = vpop.f32.mrb[0].mxu0
        %1950 = vmatprep.mubr.f32.mxu0 0.0
        %1951 = vmatmul.mubr.f32.gmra.mrb[0].mxu0 %v1534
        %v1952 = vpop.f32.mrb[0].mxu0
        %v1953 = vadd.f32 %v1768, %v1952
        %v1954 = vpop.f32.mrb[0].mxu0
        %1955 = vmatprep.mubr.f32.mxu0 0.0
        %1956 = vmatmul.mubr.f32.gmra.mrb[0].mxu0 %v1533
        %v1957 = vpop.f32.mrb[0].mxu0
        %v1958 = vadd.f32 %v1773, %v1957
        %v1959 = vpop.f32.mrb[0].mxu0
        %1960 = vdwg.mxu0
        %v1961 = vrot.slane %v1485, 1
        %v1962 = vrot.slane %v1486, 1
        %v1963 = vrot.slane %v1487, 1
        %v1964 = vrot.slane %v1488, 1
        %v1965 = vrot.slane %v1489, 1
        %v1966 = vrot.slane %v1490, 1
        %v1967 = vrot.slane %v1491, 1
        %v1968 = vrot.slane %v1492, 1
        %v1969 = vrot.slane %v1493, 1
        %v1970 = vrot.slane %v1494, 1
        %v1971 = vrot.slane %v1495, 1
        %v1972 = vrot.slane %v1496, 1
        %v1973 = vrot.slane %v1497, 1
        %v1974 = vrot.slane %v1498, 1
        %v1975 = vrot.slane %v1499, 1
        %v1976 = vrot.slane %v1500, 1
        %v1977 = vrot.slane %v1501, 1
        %v1978 = vrot.slane %v1502, 1
        %v1979 = vrot.slane %v1503, 1
        %v1980 = vrot.slane %v1504, 1
        %v1981 = vrot.slane %v1505, 1
        %v1982 = vrot.slane %v1506, 1
        %v1983 = vrot.slane %v1507, 1
        %v1984 = vrot.slane %v1508, 1
        %v1985 = vsel %vm1131, %v1983, %v1984
        %v1986 = vsel %vm1131, %v1982, %v1983
        %v1987 = vsel %vm1131, %v1981, %v1982
        %v1988 = vsel %vm1131, %v1980, %v1981
        %v1989 = vsel %vm1131, %v1979, %v1980
        %v1990 = vsel %vm1131, %v1978, %v1979
        %v1991 = vsel %vm1131, %v1977, %v1978
        %v1992 = vsel %vm1131, %v1976, %v1977
        %v1993 = vsel %vm1131, %v1975, %v1976
        %v1994 = vsel %vm1131, %v1974, %v1975
        %v1995 = vsel %vm1131, %v1973, %v1974
        %v1996 = vsel %vm1131, %v1972, %v1973
        %v1997 = vsel %vm1131, %v1971, %v1972
        %v1998 = vsel %vm1131, %v1970, %v1971
        %v1999 = vsel %vm1131, %v1969, %v1970
        %v2000 = vsel %vm1131, %v1968, %v1969
        %v2001 = vsel %vm1131, %v1967, %v1968
        %v2002 = vsel %vm1131, %v1966, %v1967
        %v2003 = vsel %vm1131, %v1965, %v1966
        %v2004 = vsel %vm1131, %v1964, %v1965
        %v2005 = vsel %vm1131, %v1963, %v1964
        %v2006 = vsel %vm1131, %v1962, %v1963
        %v2007 = vsel %vm1131, %v1961, %v1962
        %v2008 = vsel %vm1131, %v1984, %v1961
        %s2009 = scalar_lea.vmem %s2, 640
        %v2010 = vld [vmem:[%s2009] sm:$0xff]
        %v2011 = vld [vmem:[%s2009 + $0x8] sm:$0xff]
        %v2012 = vld [vmem:[%s2009 + $0x10] sm:$0xff]
        %v2013 = vld [vmem:[%s2009 + $0x18] sm:$0xff]
        %v2014 = vld [vmem:[%s2009 + $0x20] sm:$0xff]
        %v2015 = vld [vmem:[%s2009 + $0x28] sm:$0xff]
        %v2016 = vld [vmem:[%s2009 + $0x30] sm:$0xff]
        %v2017 = vld [vmem:[%s2009 + $0x38] sm:$0xff]
        %v2018 = vld [vmem:[%s2009 + $0x40] sm:$0xff]
        %v2019 = vld [vmem:[%s2009 + $0x48] sm:$0xff]
        %v2020 = vld [vmem:[%s2009 + $0x50] sm:$0xff]
        %v2021 = vld [vmem:[%s2009 + $0x58] sm:$0xff]
        %v2022 = vld [vmem:[%s2009 + $0x60] sm:$0xff]
        %v2023 = vld [vmem:[%s2009 + $0x68] sm:$0xff]
        %v2024 = vld [vmem:[%s2009 + $0x70] sm:$0xff]
        %v2025 = vld [vmem:[%s2009 + $0x78] sm:$0xff]
        %2026 = vmatprep.subr.mxu0 0.0
        %2027 = vmatpush1.msra.mxu0 %v2010
        %2028 = vmatprep.subr.mxu0 0.0
        %2029 = vmatpush1.msra.mxu0 %v2011
        %2030 = vmatprep.subr.mxu0 0.0
        %2031 = vmatpush1.msra.mxu0 %v2012
        %2032 = vmatprep.subr.mxu0 0.0
        %2033 = vmatpush1.msra.mxu0 %v2013
        %2034 = vmatprep.subr.mxu0 0.0
        %2035 = vmatpush1.msra.mxu0 %v2014
        %2036 = vmatprep.subr.mxu0 0.0
        %2037 = vmatpush1.msra.mxu0 %v2015
        %2038 = vmatprep.subr.mxu0 0.0
        %2039 = vmatpush1.msra.mxu0 %v2016
        %2040 = vmatprep.subr.mxu0 0.0
        %2041 = vmatpush1.msra.mxu0 %v2017
        %2042 = vmatprep.subr.mxu0 0.0
        %2043 = vmatpush1.msra.mxu0 %v2018
        %2044 = vmatprep.subr.mxu0 0.0
        %2045 = vmatpush1.msra.mxu0 %v2019
        %2046 = vmatprep.subr.mxu0 0.0
        %2047 = vmatpush1.msra.mxu0 %v2020
        %2048 = vmatprep.subr.mxu0 0.0
        %2049 = vmatpush1.msra.mxu0 %v2021
        %2050 = vmatprep.subr.mxu0 0.0
        %2051 = vmatpush1.msra.mxu0 %v2022
        %2052 = vmatprep.subr.mxu0 0.0
        %2053 = vmatpush1.msra.mxu0 %v2023
        %2054 = vmatprep.subr.mxu0 0.0
        %2055 = vmatpush1.msra.mxu0 %v2024
        %2056 = vmatprep.subr.mxu0 0.0
        %2057 = vmatpush1.msra.mxu0 %v2025
        %2058 = vmatprep.subr.mxu0 0.0
        %2059 = vmatpush1.msra.mxu0 0.0
        %2060 = vmatprep.subr.mxu0 0.0
        %2061 = vmatpush1.msra.mxu0 0.0
        %2062 = vmatprep.subr.mxu0 0.0
        %2063 = vmatpush1.msra.mxu0 0.0
        %2064 = vmatprep.subr.mxu0 0.0
        %2065 = vmatpush1.msra.mxu0 0.0
        %2066 = vmatprep.subr.mxu0 0.0
        %2067 = vmatpush1.msra.mxu0 0.0
        %2068 = vmatprep.subr.mxu0 0.0
        %2069 = vmatpush1.msra.mxu0 0.0
        %2070 = vmatprep.subr.mxu0 0.0
        %2071 = vmatpush1.msra.mxu0 0.0
        %2072 = vmatprep.subr.mxu0 0.0
        %2073 = vmatpush1.msra.mxu0 0.0
        %2074 = vmatprep.subr.mxu0 0.0
        %2075 = vmatpush1.msra.mxu0 0.0
        %2076 = vmatprep.subr.mxu0 0.0
        %2077 = vmatpush1.msra.mxu0 0.0
        %2078 = vmatprep.subr.mxu0 0.0
        %2079 = vmatpush1.msra.mxu0 0.0
        %2080 = vmatprep.subr.mxu0 0.0
        %2081 = vmatpush1.msra.mxu0 0.0
        %2082 = vmatprep.subr.mxu0 0.0
        %2083 = vmatpush1.msra.mxu0 0.0
        %2084 = vmatprep.subr.mxu0 0.0
        %2085 = vmatpush1.msra.mxu0 0.0
        %2086 = vmatprep.subr.mxu0 0.0
        %2087 = vmatpush1.msra.mxu0 0.0
        %2088 = vmatprep.subr.mxu0 0.0
        %2089 = vmatpush1.msra.mxu0 0.0
        %2090 = vmatprep.mubr.f32.mxu0 0.0
        %2091 = vmatmul.mubr.f32.gmra.mrb[0].mxu0 %v2007
        %v2092 = vpop.f32.mrb[0].mxu0
        %v2093 = vadd.f32 0.0, %v2092
        %v2094 = vpop.f32.mrb[0].mxu0
        %2095 = vmatprep.mubr.f32.mxu0 0.0
        %2096 = vmatmul.mubr.f32.gmra.mrb[0].mxu0 %v2006
        %v2097 = vpop.f32.mrb[0].mxu0
        %v2098 = vadd.f32 0.0, %v2097
        %v2099 = vpop.f32.mrb[0].mxu0
        %2100 = vmatprep.mubr.f32.mxu0 0.0
        %2101 = vmatmul.mubr.f32.gmra.mrb[0].mxu0 %v2005
        %v2102 = vpop.f32.mrb[0].mxu0
        %v2103 = vadd.f32 0.0, %v2102
        %v2104 = vpop.f32.mrb[0].mxu0
        %2105 = vmatprep.mubr.f32.mxu0 0.0
        %2106 = vmatmul.mubr.f32.gmra.mrb[0].mxu0 %v2004
        %v2107 = vpop.f32.mrb[0].mxu0
        %v2108 = vadd.f32 0.0, %v2107
        %v2109 = vpop.f32.mrb[0].mxu0
        %2110 = vmatprep.mubr.f32.mxu0 0.0
        %2111 = vmatmul.mubr.f32.gmra.mrb[0].mxu0 %v2003
        %v2112 = vpop.f32.mrb[0].mxu0
        %v2113 = vadd.f32 0.0, %v2112
        %v2114 = vpop.f32.mrb[0].mxu0
        %2115 = vmatprep.mubr.f32.mxu0 0.0
        %2116 = vmatmul.mubr.f32.gmra.mrb[0].mxu0 %v2002
        %v2117 = vpop.f32.mrb[0].mxu0
        %v2118 = vadd.f32 0.0, %v2117
        %v2119 = vpop.f32.mrb[0].mxu0
        %2120 = vmatprep.mubr.f32.mxu0 0.0
        %2121 = vmatmul.mubr.f32.gmra.mrb[0].mxu0 %v2001
        %v2122 = vpop.f32.mrb[0].mxu0
        %v2123 = vadd.f32 0.0, %v2122
        %v2124 = vpop.f32.mrb[0].mxu0
        %2125 = vmatprep.mubr.f32.mxu0 0.0
        %2126 = vmatmul.mubr.f32.gmra.mrb[0].mxu0 %v2000
        %v2127 = vpop.f32.mrb[0].mxu0
        %v2128 = vadd.f32 0.0, %v2127
        %v2129 = vpop.f32.mrb[0].mxu0
        %2130 = vmatprep.mubr.f32.mxu0 0.0
        %2131 = vmatmul.mubr.f32.gmra.mrb[0].mxu0 %v1999
        %v2132 = vpop.f32.mrb[0].mxu0
        %v2133 = vadd.f32 0.0, %v2132
        %v2134 = vpop.f32.mrb[0].mxu0
        %2135 = vmatprep.mubr.f32.mxu0 0.0
        %2136 = vmatmul.mubr.f32.gmra.mrb[0].mxu0 %v1998
        %v2137 = vpop.f32.mrb[0].mxu0
        %v2138 = vadd.f32 0.0, %v2137
        %v2139 = vpop.f32.mrb[0].mxu0
        %2140 = vmatprep.mubr.f32.mxu0 0.0
        %2141 = vmatmul.mubr.f32.gmra.mrb[0].mxu0 %v1997
        %v2142 = vpop.f32.mrb[0].mxu0
        %v2143 = vadd.f32 0.0, %v2142
        %v2144 = vpop.f32.mrb[0].mxu0
        %2145 = vmatprep.mubr.f32.mxu0 0.0
        %2146 = vmatmul.mubr.f32.gmra.mrb[0].mxu0 %v1996
        %v2147 = vpop.f32.mrb[0].mxu0
        %v2148 = vadd.f32 0.0, %v2147
        %v2149 = vpop.f32.mrb[0].mxu0
        %2150 = vmatprep.mubr.f32.mxu0 0.0
        %2151 = vmatmul.mubr.f32.gmra.mrb[0].mxu0 %v1995
        %v2152 = vpop.f32.mrb[0].mxu0
        %v2153 = vadd.f32 0.0, %v2152
        %v2154 = vpop.f32.mrb[0].mxu0
        %2155 = vmatprep.mubr.f32.mxu0 0.0
        %2156 = vmatmul.mubr.f32.gmra.mrb[0].mxu0 %v1994
        %v2157 = vpop.f32.mrb[0].mxu0
        %v2158 = vadd.f32 0.0, %v2157
        %v2159 = vpop.f32.mrb[0].mxu0
        %2160 = vmatprep.mubr.f32.mxu0 0.0
        %2161 = vmatmul.mubr.f32.gmra.mrb[0].mxu0 %v1993
        %v2162 = vpop.f32.mrb[0].mxu0
        %v2163 = vadd.f32 0.0, %v2162
        %v2164 = vpop.f32.mrb[0].mxu0
        %2165 = vmatprep.mubr.f32.mxu0 0.0
        %2166 = vmatmul.mubr.f32.gmra.mrb[0].mxu0 %v1992
        %v2167 = vpop.f32.mrb[0].mxu0
        %v2168 = vadd.f32 0.0, %v2167
        %v2169 = vpop.f32.mrb[0].mxu0
        %2170 = vmatprep.mubr.f32.mxu0 0.0
        %2171 = vmatmul.mubr.f32.gmra.mrb[0].mxu0 %v1991
        %v2172 = vpop.f32.mrb[0].mxu0
        %v2173 = vadd.f32 0.0, %v2172
        %v2174 = vpop.f32.mrb[0].mxu0
        %2175 = vmatprep.mubr.f32.mxu0 0.0
        %2176 = vmatmul.mubr.f32.gmra.mrb[0].mxu0 %v1990
        %v2177 = vpop.f32.mrb[0].mxu0
        %v2178 = vadd.f32 0.0, %v2177
        %v2179 = vpop.f32.mrb[0].mxu0
        %2180 = vmatprep.mubr.f32.mxu0 0.0
        %2181 = vmatmul.mubr.f32.gmra.mrb[0].mxu0 %v1989
        %v2182 = vpop.f32.mrb[0].mxu0
        %v2183 = vadd.f32 0.0, %v2182
        %v2184 = vpop.f32.mrb[0].mxu0
        %2185 = vmatprep.mubr.f32.mxu0 0.0
        %2186 = vmatmul.mubr.f32.gmra.mrb[0].mxu0 %v1988
        %v2187 = vpop.f32.mrb[0].mxu0
        %v2188 = vadd.f32 0.0, %v2187
        %v2189 = vpop.f32.mrb[0].mxu0
        %2190 = vmatprep.mubr.f32.mxu0 0.0
        %2191 = vmatmul.mubr.f32.gmra.mrb[0].mxu0 %v1987
        %v2192 = vpop.f32.mrb[0].mxu0
        %v2193 = vadd.f32 0.0, %v2192
        %v2194 = vpop.f32.mrb[0].mxu0
        %2195 = vmatprep.mubr.f32.mxu0 0.0
        %2196 = vmatmul.mubr.f32.gmra.mrb[0].mxu0 %v1986
        %v2197 = vpop.f32.mrb[0].mxu0
        %v2198 = vadd.f32 0.0, %v2197
        %v2199 = vpop.f32.mrb[0].mxu0
        %2200 = vmatprep.mubr.f32.mxu0 0.0
        %2201 = vmatmul.mubr.f32.gmra.mrb[0].mxu0 %v1985
        %v2202 = vpop.f32.mrb[0].mxu0
        %v2203 = vadd.f32 0.0, %v2202
        %v2204 = vpop.f32.mrb[0].mxu0
        %2205 = vmatprep.mubr.f32.mxu0 0.0
        %2206 = vmatmul.mubr.f32.gmra.mrb[0].mxu0 %v2008
        %v2207 = vpop.f32.mrb[0].mxu0
        %v2208 = vadd.f32 0.0, %v2207
        %v2209 = vpop.f32.mrb[0].mxu0
        %2210 = vdwg.mxu0
        %v2211 = vadd.f32 %v1843, %v2093
        %v2212 = vadd.f32 %v1848, %v2098
        %v2213 = vadd.f32 %v1853, %v2103
        %v2214 = vadd.f32 %v1858, %v2108
        %v2215 = vadd.f32 %v1863, %v2113
        %v2216 = vadd.f32 %v1868, %v2118
        %v2217 = vadd.f32 %v1873, %v2123
        %v2218 = vadd.f32 %v1878, %v2128
        %v2219 = vadd.f32 %v1883, %v2133
        %v2220 = vadd.f32 %v1888, %v2138
        %v2221 = vadd.f32 %v1893, %v2143
        %v2222 = vadd.f32 %v1898, %v2148
        %v2223 = vadd.f32 %v1903, %v2153
        %v2224 = vadd.f32 %v1908, %v2158
        %v2225 = vadd.f32 %v1913, %v2163
        %v2226 = vadd.f32 %v1918, %v2168
        %v2227 = vadd.f32 %v1923, %v2173
        %v2228 = vadd.f32 %v1928, %v2178
        %v2229 = vadd.f32 %v1933, %v2183
        %v2230 = vadd.f32 %v1938, %v2188
        %v2231 = vadd.f32 %v1943, %v2193
        %v2232 = vadd.f32 %v1948, %v2198
        %v2233 = vadd.f32 %v1953, %v2203
        %v2234 = vadd.f32 %v1958, %v2208
        %s2235 = scalar_lea.vmem %s3, 1
        %v2236 = vld [vmem:[%s2235] sm:$0x1]
        %v2238 = vlaneseq
        %v2239 = vshrl.u32 %v2238, 7
        %v2240 = vsub.s32 0, %v2239
        %v2241 = vrot.slane %v2236, %v2240
        %v2243 = vadd.f32 %v2211, %v2241
        %v2244 = vadd.f32 %v2212, %v2241
        %v2245 = vadd.f32 %v2213, %v2241
        %v2246 = vadd.f32 %v2214, %v2241
        %v2247 = vadd.f32 %v2215, %v2241
        %v2248 = vadd.f32 %v2216, %v2241
        %v2249 = vadd.f32 %v2217, %v2241
        %v2250 = vadd.f32 %v2218, %v2241
        %v2251 = vadd.f32 %v2219, %v2241
        %v2252 = vadd.f32 %v2220, %v2241
        %v2253 = vadd.f32 %v2221, %v2241
        %v2254 = vadd.f32 %v2222, %v2241
        %v2255 = vadd.f32 %v2223, %v2241
        %v2256 = vadd.f32 %v2224, %v2241
        %v2257 = vadd.f32 %v2225, %v2241
        %v2258 = vadd.f32 %v2226, %v2241
        %v2259 = vadd.f32 %v2227, %v2241
        %v2260 = vadd.f32 %v2228, %v2241
        %v2261 = vadd.f32 %v2229, %v2241
        %v2262 = vadd.f32 %v2230, %v2241
        %v2263 = vadd.f32 %v2231, %v2241
        %v2264 = vadd.f32 %v2232, %v2241
        %v2265 = vadd.f32 %v2233, %v2241
        %v2266 = vadd.f32 %v2234, %v2241
        %v2267 = vadd.f32 %v511, %v2243
        %v2268 = vadd.f32 %v512, %v2244
        %v2269 = vadd.f32 %v513, %v2245
        %v2270 = vadd.f32 %v514, %v2246
        %v2271 = vadd.f32 %v515, %v2247
        %v2272 = vadd.f32 %v516, %v2248
        %v2273 = vadd.f32 %v517, %v2249
        %v2274 = vadd.f32 %v518, %v2250
        %v2275 = vadd.f32 %v519, %v2251
        %v2276 = vadd.f32 %v520, %v2252
        %v2277 = vadd.f32 %v521, %v2253
        %v2278 = vadd.f32 %v522, %v2254
        %v2279 = vadd.f32 %v523, %v2255
        %v2280 = vadd.f32 %v524, %v2256
        %v2281 = vadd.f32 %v525, %v2257
        %v2282 = vadd.f32 %v526, %v2258
        %v2283 = vadd.f32 %v527, %v2259
        %v2284 = vadd.f32 %v528, %v2260
        %v2285 = vadd.f32 %v529, %v2261
        %v2286 = vadd.f32 %v530, %v2262
        %v2287 = vadd.f32 %v531, %v2263
        %v2288 = vadd.f32 %v532, %v2264
        %v2289 = vadd.f32 %v533, %v2265
        %v2290 = vadd.f32 %v534, %v2266
        %vm2291 = vcmp.ge.f32.partialorder %v2267, 0.0
        %vm2292 = vcmp.ge.f32.partialorder %v2268, 0.0
        %vm2293 = vcmp.ge.f32.partialorder %v2269, 0.0
        %vm2294 = vcmp.ge.f32.partialorder %v2270, 0.0
        %vm2295 = vcmp.ge.f32.partialorder %v2271, 0.0
        %vm2296 = vcmp.ge.f32.partialorder %v2272, 0.0
        %vm2297 = vcmp.ge.f32.partialorder %v2273, 0.0
        %vm2298 = vcmp.ge.f32.partialorder %v2274, 0.0
        %vm2299 = vcmp.ge.f32.partialorder %v2275, 0.0
        %vm2300 = vcmp.ge.f32.partialorder %v2276, 0.0
        %vm2301 = vcmp.ge.f32.partialorder %v2277, 0.0
        %vm2302 = vcmp.ge.f32.partialorder %v2278, 0.0
        %vm2303 = vcmp.ge.f32.partialorder %v2279, 0.0
        %vm2304 = vcmp.ge.f32.partialorder %v2280, 0.0
        %vm2305 = vcmp.ge.f32.partialorder %v2281, 0.0
        %vm2306 = vcmp.ge.f32.partialorder %v2282, 0.0
        %vm2307 = vcmp.ge.f32.partialorder %v2283, 0.0
        %vm2308 = vcmp.ge.f32.partialorder %v2284, 0.0
        %vm2309 = vcmp.ge.f32.partialorder %v2285, 0.0
        %vm2310 = vcmp.ge.f32.partialorder %v2286, 0.0
        %vm2311 = vcmp.ge.f32.partialorder %v2287, 0.0
        %vm2312 = vcmp.ge.f32.partialorder %v2288, 0.0
        %vm2313 = vcmp.ge.f32.partialorder %v2289, 0.0
        %vm2314 = vcmp.ge.f32.partialorder %v2290, 0.0
        %v2315 = vmul.f32 %v2267, 0.1
        %v2316 = vmul.f32 %v2268, 0.1
        %v2317 = vmul.f32 %v2269, 0.1
        %v2318 = vmul.f32 %v2270, 0.1
        %v2319 = vmul.f32 %v2271, 0.1
        %v2320 = vmul.f32 %v2272, 0.1
        %v2321 = vmul.f32 %v2273, 0.1
        %v2322 = vmul.f32 %v2274, 0.1
        %v2323 = vmul.f32 %v2275, 0.1
        %v2324 = vmul.f32 %v2276, 0.1
        %v2325 = vmul.f32 %v2277, 0.1
        %v2326 = vmul.f32 %v2278, 0.1
        %v2327 = vmul.f32 %v2279, 0.1
        %v2328 = vmul.f32 %v2280, 0.1
        %v2329 = vmul.f32 %v2281, 0.1
        %v2330 = vmul.f32 %v2282, 0.1
        %v2331 = vmul.f32 %v2283, 0.1
        %v2332 = vmul.f32 %v2284, 0.1
        %v2333 = vmul.f32 %v2285, 0.1
        %v2334 = vmul.f32 %v2286, 0.1
        %v2335 = vmul.f32 %v2287, 0.1
        %v2336 = vmul.f32 %v2288, 0.1
        %v2337 = vmul.f32 %v2289, 0.1
        %v2338 = vmul.f32 %v2290, 0.1
        %v2339 = vsel %vm2291, %v2267, %v2315
        %v2340 = vsel %vm2292, %v2268, %v2316
        %v2341 = vsel %vm2293, %v2269, %v2317
        %v2342 = vsel %vm2294, %v2270, %v2318
        %v2343 = vsel %vm2295, %v2271, %v2319
        %v2344 = vsel %vm2296, %v2272, %v2320
        %v2345 = vsel %vm2297, %v2273, %v2321
        %v2346 = vsel %vm2298, %v2274, %v2322
        %v2347 = vsel %vm2299, %v2275, %v2323
        %v2348 = vsel %vm2300, %v2276, %v2324
        %v2349 = vsel %vm2301, %v2277, %v2325
        %v2350 = vsel %vm2302, %v2278, %v2326
        %v2351 = vsel %vm2303, %v2279, %v2327
        %v2352 = vsel %vm2304, %v2280, %v2328
        %v2353 = vsel %vm2305, %v2281, %v2329
        %v2354 = vsel %vm2306, %v2282, %v2330
        %v2355 = vsel %vm2307, %v2283, %v2331
        %v2356 = vsel %vm2308, %v2284, %v2332
        %v2357 = vsel %vm2309, %v2285, %v2333
        %v2358 = vsel %vm2310, %v2286, %v2334
        %v2359 = vsel %vm2311, %v2287, %v2335
        %v2360 = vsel %vm2312, %v2288, %v2336
        %v2361 = vsel %vm2313, %v2289, %v2337
        %v2362 = vsel %vm2314, %v2290, %v2338
        %v2363 = vsel %vm619, %v2339, 0.0
        %v2364 = vsel %vm620, %v2340, 0.0
        %v2365 = vsel %vm621, %v2341, 0.0
        %v2366 = vsel %vm622, %v2342, 0.0
        %v2367 = vsel %vm623, %v2343, 0.0
        %v2368 = vsel %vm624, %v2344, 0.0
        %v2369 = vsel %vm625, %v2345, 0.0
        %v2370 = vsel %vm626, %v2346, 0.0
        %v2371 = vsel %vm627, %v2347, 0.0
        %v2372 = vsel %vm628, %v2348, 0.0
        %v2373 = vsel %vm629, %v2349, 0.0
        %v2374 = vsel %vm630, %v2350, 0.0
        %v2375 = vsel %vm619, %v2351, 0.0
        %v2376 = vsel %vm620, %v2352, 0.0
        %v2377 = vsel %vm621, %v2353, 0.0
        %v2378 = vsel %vm622, %v2354, 0.0
        %v2379 = vsel %vm623, %v2355, 0.0
        %v2380 = vsel %vm624, %v2356, 0.0
        %v2381 = vsel %vm625, %v2357, 0.0
        %v2382 = vsel %vm626, %v2358, 0.0
        %v2383 = vsel %vm627, %v2359, 0.0
        %v2384 = vsel %vm628, %v2360, 0.0
        %v2385 = vsel %vm629, %v2361, 0.0
        %v2386 = vsel %vm630, %v2362, 0.0
        %v2387 = vrot.slane %v2363, 5
        %v2388 = vrot.slane %v2364, 5
        %v2389 = vrot.slane %v2365, 5
        %v2390 = vrot.slane %v2366, 5
        %v2391 = vrot.slane %v2367, 5
        %v2392 = vrot.slane %v2368, 5
        %v2393 = vrot.slane %v2369, 5
        %v2394 = vrot.slane %v2370, 5
        %v2395 = vrot.slane %v2371, 5
        %v2396 = vrot.slane %v2372, 5
        %v2397 = vrot.slane %v2373, 5
        %v2398 = vrot.slane %v2374, 5
        %v2399 = vrot.slane %v2375, 5
        %v2400 = vrot.slane %v2376, 5
        %v2401 = vrot.slane %v2377, 5
        %v2402 = vrot.slane %v2378, 5
        %v2403 = vrot.slane %v2379, 5
        %v2404 = vrot.slane %v2380, 5
        %v2405 = vrot.slane %v2381, 5
        %v2406 = vrot.slane %v2382, 5
        %v2407 = vrot.slane %v2383, 5
        %v2408 = vrot.slane %v2384, 5
        %v2409 = vrot.slane %v2385, 5
        %v2410 = vrot.slane %v2386, 5
        %vm2411 = vcmp.lt.s32.totalorder %v448, 3
        %v2412 = vsel %vm2411, %v2409, %v2410
        %v2413 = vsel %vm2411, %v2408, %v2409
        %v2414 = vsel %vm2411, %v2407, %v2408
        %v2415 = vsel %vm2411, %v2406, %v2407
        %v2416 = vsel %vm2411, %v2405, %v2406
        %v2417 = vsel %vm2411, %v2404, %v2405
        %v2418 = vsel %vm2411, %v2403, %v2404
        %v2419 = vsel %vm2411, %v2402, %v2403
        %v2420 = vsel %vm2411, %v2401, %v2402
        %v2421 = vsel %vm2411, %v2400, %v2401
        %v2422 = vsel %vm2411, %v2399, %v2400
        %v2423 = vsel %vm2411, %v2398, %v2399
        %v2424 = vsel %vm2411, %v2397, %v2398
        %v2425 = vsel %vm2411, %v2396, %v2397
        %v2426 = vsel %vm2411, %v2395, %v2396
        %v2427 = vsel %vm2411, %v2394, %v2395
        %v2428 = vsel %vm2411, %v2393, %v2394
        %v2429 = vsel %vm2411, %v2392, %v2393
        %v2430 = vsel %vm2411, %v2391, %v2392
        %v2431 = vsel %vm2411, %v2390, %v2391
        %v2432 = vsel %vm2411, %v2389, %v2390
        %v2433 = vsel %vm2411, %v2388, %v2389
        %v2434 = vsel %vm2411, %v2387, %v2388
        %v2435 = vsel %vm2411, %v2410, %v2387
        %s2436 = scalar_lea.vmem %s2, 768
        %v2437 = vld [vmem:[%s2436] sm:$0xff]
        %v2438 = vld [vmem:[%s2436 + $0x8] sm:$0xff]
        %v2439 = vld [vmem:[%s2436 + $0x10] sm:$0xff]
        %v2440 = vld [vmem:[%s2436 + $0x18] sm:$0xff]
        %v2441 = vld [vmem:[%s2436 + $0x20] sm:$0xff]
        %v2442 = vld [vmem:[%s2436 + $0x28] sm:$0xff]
        %v2443 = vld [vmem:[%s2436 + $0x30] sm:$0xff]
        %v2444 = vld [vmem:[%s2436 + $0x38] sm:$0xff]
        %v2445 = vld [vmem:[%s2436 + $0x40] sm:$0xff]
        %v2446 = vld [vmem:[%s2436 + $0x48] sm:$0xff]
        %v2447 = vld [vmem:[%s2436 + $0x50] sm:$0xff]
        %v2448 = vld [vmem:[%s2436 + $0x58] sm:$0xff]
        %v2449 = vld [vmem:[%s2436 + $0x60] sm:$0xff]
        %v2450 = vld [vmem:[%s2436 + $0x68] sm:$0xff]
        %v2451 = vld [vmem:[%s2436 + $0x70] sm:$0xff]
        %v2452 = vld [vmem:[%s2436 + $0x78] sm:$0xff]
        %s2453 = scalar_lea.vmem %s2, 896
        %v2454 = vld [vmem:[%s2453] sm:$0xff]
        %v2455 = vld [vmem:[%s2453 + $0x8] sm:$0xff]
        %v2456 = vld [vmem:[%s2453 + $0x10] sm:$0xff]
        %v2457 = vld [vmem:[%s2453 + $0x18] sm:$0xff]
        %v2458 = vld [vmem:[%s2453 + $0x20] sm:$0xff]
        %v2459 = vld [vmem:[%s2453 + $0x28] sm:$0xff]
        %v2460 = vld [vmem:[%s2453 + $0x30] sm:$0xff]
        %v2461 = vld [vmem:[%s2453 + $0x38] sm:$0xff]
        %v2462 = vld [vmem:[%s2453 + $0x40] sm:$0xff]
        %v2463 = vld [vmem:[%s2453 + $0x48] sm:$0xff]
        %v2464 = vld [vmem:[%s2453 + $0x50] sm:$0xff]
        %v2465 = vld [vmem:[%s2453 + $0x58] sm:$0xff]
        %v2466 = vld [vmem:[%s2453 + $0x60] sm:$0xff]
        %v2467 = vld [vmem:[%s2453 + $0x68] sm:$0xff]
        %v2468 = vld [vmem:[%s2453 + $0x70] sm:$0xff]
        %v2469 = vld [vmem:[%s2453 + $0x78] sm:$0xff]
        %2470 = vmatprep.subr.mxu0 0.0
        %2471 = vmatpush1.msra.mxu0 %v2454
        %2472 = vmatprep.subr.mxu0 0.0
        %2473 = vmatpush1.msra.mxu0 %v2455
        %2474 = vmatprep.subr.mxu0 0.0
        %2475 = vmatpush1.msra.mxu0 %v2456
        %2476 = vmatprep.subr.mxu0 0.0
        %2477 = vmatpush1.msra.mxu0 %v2457
        %2478 = vmatprep.subr.mxu0 0.0
        %2479 = vmatpush1.msra.mxu0 %v2458
        %2480 = vmatprep.subr.mxu0 0.0
        %2481 = vmatpush1.msra.mxu0 %v2459
        %2482 = vmatprep.subr.mxu0 0.0
        %2483 = vmatpush1.msra.mxu0 %v2460
        %2484 = vmatprep.subr.mxu0 0.0
        %2485 = vmatpush1.msra.mxu0 %v2461
        %2486 = vmatprep.subr.mxu0 0.0
        %2487 = vmatpush1.msra.mxu0 %v2462
        %2488 = vmatprep.subr.mxu0 0.0
        %2489 = vmatpush1.msra.mxu0 %v2463
        %2490 = vmatprep.subr.mxu0 0.0
        %2491 = vmatpush1.msra.mxu0 %v2464
        %2492 = vmatprep.subr.mxu0 0.0
        %2493 = vmatpush1.msra.mxu0 %v2465
        %2494 = vmatprep.subr.mxu0 0.0
        %2495 = vmatpush1.msra.mxu0 %v2466
        %2496 = vmatprep.subr.mxu0 0.0
        %2497 = vmatpush1.msra.mxu0 %v2467
        %2498 = vmatprep.subr.mxu0 0.0
        %2499 = vmatpush1.msra.mxu0 %v2468
        %2500 = vmatprep.subr.mxu0 0.0
        %2501 = vmatpush1.msra.mxu0 %v2469
        %2502 = vmatprep.subr.mxu0 0.0
        %2503 = vmatpush1.msra.mxu0 0.0
        %2504 = vmatprep.subr.mxu0 0.0
        %2505 = vmatpush1.msra.mxu0 0.0
        %2506 = vmatprep.subr.mxu0 0.0
        %2507 = vmatpush1.msra.mxu0 0.0
        %2508 = vmatprep.subr.mxu0 0.0
        %2509 = vmatpush1.msra.mxu0 0.0
        %2510 = vmatprep.subr.mxu0 0.0
        %2511 = vmatpush1.msra.mxu0 0.0
        %2512 = vmatprep.subr.mxu0 0.0
        %2513 = vmatpush1.msra.mxu0 0.0
        %2514 = vmatprep.subr.mxu0 0.0
        %2515 = vmatpush1.msra.mxu0 0.0
        %2516 = vmatprep.subr.mxu0 0.0
        %2517 = vmatpush1.msra.mxu0 0.0
        %2518 = vmatprep.subr.mxu0 0.0
        %2519 = vmatpush1.msra.mxu0 0.0
        %2520 = vmatprep.subr.mxu0 0.0
        %2521 = vmatpush1.msra.mxu0 0.0
        %2522 = vmatprep.subr.mxu0 0.0
        %2523 = vmatpush1.msra.mxu0 0.0
        %2524 = vmatprep.subr.mxu0 0.0
        %2525 = vmatpush1.msra.mxu0 0.0
        %2526 = vmatprep.subr.mxu0 0.0
        %2527 = vmatpush1.msra.mxu0 0.0
        %2528 = vmatprep.subr.mxu0 0.0
        %2529 = vmatpush1.msra.mxu0 0.0
        %2530 = vmatprep.subr.mxu0 0.0
        %2531 = vmatpush1.msra.mxu0 0.0
        %2532 = vmatprep.subr.mxu0 0.0
        %2533 = vmatpush1.msra.mxu0 0.0
        %2534 = vmatprep.mubr.f32.mxu0 0.0
        %2535 = vmatmul.mubr.f32.gmra.mrb[0].mxu0 %v2363
        %v2536 = vpop.f32.mrb[0].mxu0
        %v2537 = vadd.f32 0.0, %v2536
        %v2538 = vpop.f32.mrb[0].mxu0
        %2539 = vmatprep.mubr.f32.mxu0 0.0
        %2540 = vmatmul.mubr.f32.gmra.mrb[0].mxu0 %v2364
        %v2541 = vpop.f32.mrb[0].mxu0
        %v2542 = vadd.f32 0.0, %v2541
        %v2543 = vpop.f32.mrb[0].mxu0
        %2544 = vmatprep.mubr.f32.mxu0 0.0
        %2545 = vmatmul.mubr.f32.gmra.mrb[0].mxu0 %v2365
        %v2546 = vpop.f32.mrb[0].mxu0
        %v2547 = vadd.f32 0.0, %v2546
        %v2548 = vpop.f32.mrb[0].mxu0
        %2549 = vmatprep.mubr.f32.mxu0 0.0
        %2550 = vmatmul.mubr.f32.gmra.mrb[0].mxu0 %v2366
        %v2551 = vpop.f32.mrb[0].mxu0
        %v2552 = vadd.f32 0.0, %v2551
        %v2553 = vpop.f32.mrb[0].mxu0
        %2554 = vmatprep.mubr.f32.mxu0 0.0
        %2555 = vmatmul.mubr.f32.gmra.mrb[0].mxu0 %v2367
        %v2556 = vpop.f32.mrb[0].mxu0
        %v2557 = vadd.f32 0.0, %v2556
        %v2558 = vpop.f32.mrb[0].mxu0
        %2559 = vmatprep.mubr.f32.mxu0 0.0
        %2560 = vmatmul.mubr.f32.gmra.mrb[0].mxu0 %v2368
        %v2561 = vpop.f32.mrb[0].mxu0
        %v2562 = vadd.f32 0.0, %v2561
        %v2563 = vpop.f32.mrb[0].mxu0
        %2564 = vmatprep.mubr.f32.mxu0 0.0
        %2565 = vmatmul.mubr.f32.gmra.mrb[0].mxu0 %v2369
        %v2566 = vpop.f32.mrb[0].mxu0
        %v2567 = vadd.f32 0.0, %v2566
        %v2568 = vpop.f32.mrb[0].mxu0
        %2569 = vmatprep.mubr.f32.mxu0 0.0
        %2570 = vmatmul.mubr.f32.gmra.mrb[0].mxu0 %v2370
        %v2571 = vpop.f32.mrb[0].mxu0
        %v2572 = vadd.f32 0.0, %v2571
        %v2573 = vpop.f32.mrb[0].mxu0
        %2574 = vmatprep.mubr.f32.mxu0 0.0
        %2575 = vmatmul.mubr.f32.gmra.mrb[0].mxu0 %v2371
        %v2576 = vpop.f32.mrb[0].mxu0
        %v2577 = vadd.f32 0.0, %v2576
        %v2578 = vpop.f32.mrb[0].mxu0
        %2579 = vmatprep.mubr.f32.mxu0 0.0
        %2580 = vmatmul.mubr.f32.gmra.mrb[0].mxu0 %v2372
        %v2581 = vpop.f32.mrb[0].mxu0
        %v2582 = vadd.f32 0.0, %v2581
        %v2583 = vpop.f32.mrb[0].mxu0
        %2584 = vmatprep.mubr.f32.mxu0 0.0
        %2585 = vmatmul.mubr.f32.gmra.mrb[0].mxu0 %v2373
        %v2586 = vpop.f32.mrb[0].mxu0
        %v2587 = vadd.f32 0.0, %v2586
        %v2588 = vpop.f32.mrb[0].mxu0
        %2589 = vmatprep.mubr.f32.mxu0 0.0
        %2590 = vmatmul.mubr.f32.gmra.mrb[0].mxu0 %v2374
        %v2591 = vpop.f32.mrb[0].mxu0
        %v2592 = vadd.f32 0.0, %v2591
        %v2593 = vpop.f32.mrb[0].mxu0
        %2594 = vmatprep.mubr.f32.mxu0 0.0
        %2595 = vmatmul.mubr.f32.gmra.mrb[0].mxu0 %v2375
        %v2596 = vpop.f32.mrb[0].mxu0
        %v2597 = vadd.f32 0.0, %v2596
        %v2598 = vpop.f32.mrb[0].mxu0
        %2599 = vmatprep.mubr.f32.mxu0 0.0
        %2600 = vmatmul.mubr.f32.gmra.mrb[0].mxu0 %v2376
        %v2601 = vpop.f32.mrb[0].mxu0
        %v2602 = vadd.f32 0.0, %v2601
        %v2603 = vpop.f32.mrb[0].mxu0
        %2604 = vmatprep.mubr.f32.mxu0 0.0
        %2605 = vmatmul.mubr.f32.gmra.mrb[0].mxu0 %v2377
        %v2606 = vpop.f32.mrb[0].mxu0
        %v2607 = vadd.f32 0.0, %v2606
        %v2608 = vpop.f32.mrb[0].mxu0
        %2609 = vmatprep.mubr.f32.mxu0 0.0
        %2610 = vmatmul.mubr.f32.gmra.mrb[0].mxu0 %v2378
        %v2611 = vpop.f32.mrb[0].mxu0
        %v2612 = vadd.f32 0.0, %v2611
        %v2613 = vpop.f32.mrb[0].mxu0
        %2614 = vmatprep.mubr.f32.mxu0 0.0
        %2615 = vmatmul.mubr.f32.gmra.mrb[0].mxu0 %v2379
        %v2616 = vpop.f32.mrb[0].mxu0
        %v2617 = vadd.f32 0.0, %v2616
        %v2618 = vpop.f32.mrb[0].mxu0
        %2619 = vmatprep.mubr.f32.mxu0 0.0
        %2620 = vmatmul.mubr.f32.gmra.mrb[0].mxu0 %v2380
        %v2621 = vpop.f32.mrb[0].mxu0
        %v2622 = vadd.f32 0.0, %v2621
        %v2623 = vpop.f32.mrb[0].mxu0
        %2624 = vmatprep.mubr.f32.mxu0 0.0
        %2625 = vmatmul.mubr.f32.gmra.mrb[0].mxu0 %v2381
        %v2626 = vpop.f32.mrb[0].mxu0
        %v2627 = vadd.f32 0.0, %v2626
        %v2628 = vpop.f32.mrb[0].mxu0
        %2629 = vmatprep.mubr.f32.mxu0 0.0
        %2630 = vmatmul.mubr.f32.gmra.mrb[0].mxu0 %v2382
        %v2631 = vpop.f32.mrb[0].mxu0
        %v2632 = vadd.f32 0.0, %v2631
        %v2633 = vpop.f32.mrb[0].mxu0
        %2634 = vmatprep.mubr.f32.mxu0 0.0
        %2635 = vmatmul.mubr.f32.gmra.mrb[0].mxu0 %v2383
        %v2636 = vpop.f32.mrb[0].mxu0
        %v2637 = vadd.f32 0.0, %v2636
        %v2638 = vpop.f32.mrb[0].mxu0
        %2639 = vmatprep.mubr.f32.mxu0 0.0
        %2640 = vmatmul.mubr.f32.gmra.mrb[0].mxu0 %v2384
        %v2641 = vpop.f32.mrb[0].mxu0
        %v2642 = vadd.f32 0.0, %v2641
        %v2643 = vpop.f32.mrb[0].mxu0
        %2644 = vmatprep.mubr.f32.mxu0 0.0
        %2645 = vmatmul.mubr.f32.gmra.mrb[0].mxu0 %v2385
        %v2646 = vpop.f32.mrb[0].mxu0
        %v2647 = vadd.f32 0.0, %v2646
        %v2648 = vpop.f32.mrb[0].mxu0
        %2649 = vmatprep.mubr.f32.mxu0 0.0
        %2650 = vmatmul.mubr.f32.gmra.mrb[0].mxu0 %v2386
        %v2651 = vpop.f32.mrb[0].mxu0
        %v2652 = vadd.f32 0.0, %v2651
        %v2653 = vpop.f32.mrb[0].mxu0
        %2654 = vdwg.mxu0
        %2655 = vmatprep.subr.mxu0 0.0
        %2656 = vmatpush1.msra.mxu0 %v2437
        %2657 = vmatprep.subr.mxu0 0.0
        %2658 = vmatpush1.msra.mxu0 %v2438
        %2659 = vmatprep.subr.mxu0 0.0
        %2660 = vmatpush1.msra.mxu0 %v2439
        %2661 = vmatprep.subr.mxu0 0.0
        %2662 = vmatpush1.msra.mxu0 %v2440
        %2663 = vmatprep.subr.mxu0 0.0
        %2664 = vmatpush1.msra.mxu0 %v2441
        %2665 = vmatprep.subr.mxu0 0.0
        %2666 = vmatpush1.msra.mxu0 %v2442
        %2667 = vmatprep.subr.mxu0 0.0
        %2668 = vmatpush1.msra.mxu0 %v2443
        %2669 = vmatprep.subr.mxu0 0.0
        %2670 = vmatpush1.msra.mxu0 %v2444
        %2671 = vmatprep.subr.mxu0 0.0
        %2672 = vmatpush1.msra.mxu0 %v2445
        %2673 = vmatprep.subr.mxu0 0.0
        %2674 = vmatpush1.msra.mxu0 %v2446
        %2675 = vmatprep.subr.mxu0 0.0
        %2676 = vmatpush1.msra.mxu0 %v2447
        %2677 = vmatprep.subr.mxu0 0.0
        %2678 = vmatpush1.msra.mxu0 %v2448
        %2679 = vmatprep.subr.mxu0 0.0
        %2680 = vmatpush1.msra.mxu0 %v2449
        %2681 = vmatprep.subr.mxu0 0.0
        %2682 = vmatpush1.msra.mxu0 %v2450
        %2683 = vmatprep.subr.mxu0 0.0
        %2684 = vmatpush1.msra.mxu0 %v2451
        %2685 = vmatprep.subr.mxu0 0.0
        %2686 = vmatpush1.msra.mxu0 %v2452
        %2687 = vmatprep.subr.mxu0 0.0
        %2688 = vmatpush1.msra.mxu0 0.0
        %2689 = vmatprep.subr.mxu0 0.0
        %2690 = vmatpush1.msra.mxu0 0.0
        %2691 = vmatprep.subr.mxu0 0.0
        %2692 = vmatpush1.msra.mxu0 0.0
        %2693 = vmatprep.subr.mxu0 0.0
        %2694 = vmatpush1.msra.mxu0 0.0
        %2695 = vmatprep.subr.mxu0 0.0
        %2696 = vmatpush1.msra.mxu0 0.0
        %2697 = vmatprep.subr.mxu0 0.0
        %2698 = vmatpush1.msra.mxu0 0.0
        %2699 = vmatprep.subr.mxu0 0.0
        %2700 = vmatpush1.msra.mxu0 0.0
        %2701 = vmatprep.subr.mxu0 0.0
        %2702 = vmatpush1.msra.mxu0 0.0
        %2703 = vmatprep.subr.mxu0 0.0
        %2704 = vmatpush1.msra.mxu0 0.0
        %2705 = vmatprep.subr.mxu0 0.0
        %2706 = vmatpush1.msra.mxu0 0.0
        %2707 = vmatprep.subr.mxu0 0.0
        %2708 = vmatpush1.msra.mxu0 0.0
        %2709 = vmatprep.subr.mxu0 0.0
        %2710 = vmatpush1.msra.mxu0 0.0
        %2711 = vmatprep.subr.mxu0 0.0
        %2712 = vmatpush1.msra.mxu0 0.0
        %2713 = vmatprep.subr.mxu0 0.0
        %2714 = vmatpush1.msra.mxu0 0.0
        %2715 = vmatprep.subr.mxu0 0.0
        %2716 = vmatpush1.msra.mxu0 0.0
        %2717 = vmatprep.subr.mxu0 0.0
        %2718 = vmatpush1.msra.mxu0 0.0
        %2719 = vmatprep.mubr.f32.mxu0 0.0
        %2720 = vmatmul.mubr.f32.gmra.mrb[0].mxu0 %v2435
        %v2721 = vpop.f32.mrb[0].mxu0
        %v2722 = vadd.f32 %v2537, %v2721
        %v2723 = vpop.f32.mrb[0].mxu0
        %2724 = vmatprep.mubr.f32.mxu0 0.0
        %2725 = vmatmul.mubr.f32.gmra.mrb[0].mxu0 %v2434
        %v2726 = vpop.f32.mrb[0].mxu0
        %v2727 = vadd.f32 %v2542, %v2726
        %v2728 = vpop.f32.mrb[0].mxu0
        %2729 = vmatprep.mubr.f32.mxu0 0.0
        %2730 = vmatmul.mubr.f32.gmra.mrb[0].mxu0 %v2433
        %v2731 = vpop.f32.mrb[0].mxu0
        %v2732 = vadd.f32 %v2547, %v2731
        %v2733 = vpop.f32.mrb[0].mxu0
        %2734 = vmatprep.mubr.f32.mxu0 0.0
        %2735 = vmatmul.mubr.f32.gmra.mrb[0].mxu0 %v2432
        %v2736 = vpop.f32.mrb[0].mxu0
        %v2737 = vadd.f32 %v2552, %v2736
        %v2738 = vpop.f32.mrb[0].mxu0
        %2739 = vmatprep.mubr.f32.mxu0 0.0
        %2740 = vmatmul.mubr.f32.gmra.mrb[0].mxu0 %v2431
        %v2741 = vpop.f32.mrb[0].mxu0
        %v2742 = vadd.f32 %v2557, %v2741
        %v2743 = vpop.f32.mrb[0].mxu0
        %2744 = vmatprep.mubr.f32.mxu0 0.0
        %2745 = vmatmul.mubr.f32.gmra.mrb[0].mxu0 %v2430
        %v2746 = vpop.f32.mrb[0].mxu0
        %v2747 = vadd.f32 %v2562, %v2746
        %v2748 = vpop.f32.mrb[0].mxu0
        %2749 = vmatprep.mubr.f32.mxu0 0.0
        %2750 = vmatmul.mubr.f32.gmra.mrb[0].mxu0 %v2429
        %v2751 = vpop.f32.mrb[0].mxu0
        %v2752 = vadd.f32 %v2567, %v2751
        %v2753 = vpop.f32.mrb[0].mxu0
        %2754 = vmatprep.mubr.f32.mxu0 0.0
        %2755 = vmatmul.mubr.f32.gmra.mrb[0].mxu0 %v2428
        %v2756 = vpop.f32.mrb[0].mxu0
        %v2757 = vadd.f32 %v2572, %v2756
        %v2758 = vpop.f32.mrb[0].mxu0
        %2759 = vmatprep.mubr.f32.mxu0 0.0
        %2760 = vmatmul.mubr.f32.gmra.mrb[0].mxu0 %v2427
        %v2761 = vpop.f32.mrb[0].mxu0
        %v2762 = vadd.f32 %v2577, %v2761
        %v2763 = vpop.f32.mrb[0].mxu0
        %2764 = vmatprep.mubr.f32.mxu0 0.0
        %2765 = vmatmul.mubr.f32.gmra.mrb[0].mxu0 %v2426
        %v2766 = vpop.f32.mrb[0].mxu0
        %v2767 = vadd.f32 %v2582, %v2766
        %v2768 = vpop.f32.mrb[0].mxu0
        %2769 = vmatprep.mubr.f32.mxu0 0.0
        %2770 = vmatmul.mubr.f32.gmra.mrb[0].mxu0 %v2425
        %v2771 = vpop.f32.mrb[0].mxu0
        %v2772 = vadd.f32 %v2587, %v2771
        %v2773 = vpop.f32.mrb[0].mxu0
        %2774 = vmatprep.mubr.f32.mxu0 0.0
        %2775 = vmatmul.mubr.f32.gmra.mrb[0].mxu0 %v2424
        %v2776 = vpop.f32.mrb[0].mxu0
        %v2777 = vadd.f32 %v2592, %v2776
        %v2778 = vpop.f32.mrb[0].mxu0
        %2779 = vmatprep.mubr.f32.mxu0 0.0
        %2780 = vmatmul.mubr.f32.gmra.mrb[0].mxu0 %v2423
        %v2781 = vpop.f32.mrb[0].mxu0
        %v2782 = vadd.f32 %v2597, %v2781
        %v2783 = vpop.f32.mrb[0].mxu0
        %2784 = vmatprep.mubr.f32.mxu0 0.0
        %2785 = vmatmul.mubr.f32.gmra.mrb[0].mxu0 %v2422
        %v2786 = vpop.f32.mrb[0].mxu0
        %v2787 = vadd.f32 %v2602, %v2786
        %v2788 = vpop.f32.mrb[0].mxu0
        %2789 = vmatprep.mubr.f32.mxu0 0.0
        %2790 = vmatmul.mubr.f32.gmra.mrb[0].mxu0 %v2421
        %v2791 = vpop.f32.mrb[0].mxu0
        %v2792 = vadd.f32 %v2607, %v2791
        %v2793 = vpop.f32.mrb[0].mxu0
        %2794 = vmatprep.mubr.f32.mxu0 0.0
        %2795 = vmatmul.mubr.f32.gmra.mrb[0].mxu0 %v2420
        %v2796 = vpop.f32.mrb[0].mxu0
        %v2797 = vadd.f32 %v2612, %v2796
        %v2798 = vpop.f32.mrb[0].mxu0
        %2799 = vmatprep.mubr.f32.mxu0 0.0
        %2800 = vmatmul.mubr.f32.gmra.mrb[0].mxu0 %v2419
        %v2801 = vpop.f32.mrb[0].mxu0
        %v2802 = vadd.f32 %v2617, %v2801
        %v2803 = vpop.f32.mrb[0].mxu0
        %2804 = vmatprep.mubr.f32.mxu0 0.0
        %2805 = vmatmul.mubr.f32.gmra.mrb[0].mxu0 %v2418
        %v2806 = vpop.f32.mrb[0].mxu0
        %v2807 = vadd.f32 %v2622, %v2806
        %v2808 = vpop.f32.mrb[0].mxu0
        %2809 = vmatprep.mubr.f32.mxu0 0.0
        %2810 = vmatmul.mubr.f32.gmra.mrb[0].mxu0 %v2417
        %v2811 = vpop.f32.mrb[0].mxu0
        %v2812 = vadd.f32 %v2627, %v2811
        %v2813 = vpop.f32.mrb[0].mxu0
        %2814 = vmatprep.mubr.f32.mxu0 0.0
        %2815 = vmatmul.mubr.f32.gmra.mrb[0].mxu0 %v2416
        %v2816 = vpop.f32.mrb[0].mxu0
        %v2817 = vadd.f32 %v2632, %v2816
        %v2818 = vpop.f32.mrb[0].mxu0
        %2819 = vmatprep.mubr.f32.mxu0 0.0
        %2820 = vmatmul.mubr.f32.gmra.mrb[0].mxu0 %v2415
        %v2821 = vpop.f32.mrb[0].mxu0
        %v2822 = vadd.f32 %v2637, %v2821
        %v2823 = vpop.f32.mrb[0].mxu0
        %2824 = vmatprep.mubr.f32.mxu0 0.0
        %2825 = vmatmul.mubr.f32.gmra.mrb[0].mxu0 %v2414
        %v2826 = vpop.f32.mrb[0].mxu0
        %v2827 = vadd.f32 %v2642, %v2826
        %v2828 = vpop.f32.mrb[0].mxu0
        %2829 = vmatprep.mubr.f32.mxu0 0.0
        %2830 = vmatmul.mubr.f32.gmra.mrb[0].mxu0 %v2413
        %v2831 = vpop.f32.mrb[0].mxu0
        %v2832 = vadd.f32 %v2647, %v2831
        %v2833 = vpop.f32.mrb[0].mxu0
        %2834 = vmatprep.mubr.f32.mxu0 0.0
        %2835 = vmatmul.mubr.f32.gmra.mrb[0].mxu0 %v2412
        %v2836 = vpop.f32.mrb[0].mxu0
        %v2837 = vadd.f32 %v2652, %v2836
        %v2838 = vpop.f32.mrb[0].mxu0
        %2839 = vdwg.mxu0
        %v2840 = vrot.slane %v2363, 3
        %v2841 = vrot.slane %v2364, 3
        %v2842 = vrot.slane %v2365, 3
        %v2843 = vrot.slane %v2366, 3
        %v2844 = vrot.slane %v2367, 3
        %v2845 = vrot.slane %v2368, 3
        %v2846 = vrot.slane %v2369, 3
        %v2847 = vrot.slane %v2370, 3
        %v2848 = vrot.slane %v2371, 3
        %v2849 = vrot.slane %v2372, 3
        %v2850 = vrot.slane %v2373, 3
        %v2851 = vrot.slane %v2374, 3
        %v2852 = vrot.slane %v2375, 3
        %v2853 = vrot.slane %v2376, 3
        %v2854 = vrot.slane %v2377, 3
        %v2855 = vrot.slane %v2378, 3
        %v2856 = vrot.slane %v2379, 3
        %v2857 = vrot.slane %v2380, 3
        %v2858 = vrot.slane %v2381, 3
        %v2859 = vrot.slane %v2382, 3
        %v2860 = vrot.slane %v2383, 3
        %v2861 = vrot.slane %v2384, 3
        %v2862 = vrot.slane %v2385, 3
        %v2863 = vrot.slane %v2386, 3
        %vm2864 = vcmp.lt.s32.totalorder %v448, 5
        %v2865 = vsel %vm2864, %v2862, %v2863
        %v2866 = vsel %vm2864, %v2861, %v2862
        %v2867 = vsel %vm2864, %v2860, %v2861
        %v2868 = vsel %vm2864, %v2859, %v2860
        %v2869 = vsel %vm2864, %v2858, %v2859
        %v2870 = vsel %vm2864, %v2857, %v2858
        %v2871 = vsel %vm2864, %v2856, %v2857
        %v2872 = vsel %vm2864, %v2855, %v2856
        %v2873 = vsel %vm2864, %v2854, %v2855
        %v2874 = vsel %vm2864, %v2853, %v2854
        %v2875 = vsel %vm2864, %v2852, %v2853
        %v2876 = vsel %vm2864, %v2851, %v2852
        %v2877 = vsel %vm2864, %v2850, %v2851
        %v2878 = vsel %vm2864, %v2849, %v2850
        %v2879 = vsel %vm2864, %v2848, %v2849
        %v2880 = vsel %vm2864, %v2847, %v2848
        %v2881 = vsel %vm2864, %v2846, %v2847
        %v2882 = vsel %vm2864, %v2845, %v2846
        %v2883 = vsel %vm2864, %v2844, %v2845
        %v2884 = vsel %vm2864, %v2843, %v2844
        %v2885 = vsel %vm2864, %v2842, %v2843
        %v2886 = vsel %vm2864, %v2841, %v2842
        %v2887 = vsel %vm2864, %v2840, %v2841
        %v2888 = vsel %vm2864, %v2863, %v2840
        %s2889 = scalar_lea.vmem %s2, 1024
        %v2890 = vld [vmem:[%s2889] sm:$0xff]
        %v2891 = vld [vmem:[%s2889 + $0x8] sm:$0xff]
        %v2892 = vld [vmem:[%s2889 + $0x10] sm:$0xff]
        %v2893 = vld [vmem:[%s2889 + $0x18] sm:$0xff]
        %v2894 = vld [vmem:[%s2889 + $0x20] sm:$0xff]
        %v2895 = vld [vmem:[%s2889 + $0x28] sm:$0xff]
        %v2896 = vld [vmem:[%s2889 + $0x30] sm:$0xff]
        %v2897 = vld [vmem:[%s2889 + $0x38] sm:$0xff]
        %v2898 = vld [vmem:[%s2889 + $0x40] sm:$0xff]
        %v2899 = vld [vmem:[%s2889 + $0x48] sm:$0xff]
        %v2900 = vld [vmem:[%s2889 + $0x50] sm:$0xff]
        %v2901 = vld [vmem:[%s2889 + $0x58] sm:$0xff]
        %v2902 = vld [vmem:[%s2889 + $0x60] sm:$0xff]
        %v2903 = vld [vmem:[%s2889 + $0x68] sm:$0xff]
        %v2904 = vld [vmem:[%s2889 + $0x70] sm:$0xff]
        %v2905 = vld [vmem:[%s2889 + $0x78] sm:$0xff]
        %2906 = vmatprep.subr.mxu0 0.0
        %2907 = vmatpush1.msra.mxu0 %v2890
        %2908 = vmatprep.subr.mxu0 0.0
        %2909 = vmatpush1.msra.mxu0 %v2891
        %2910 = vmatprep.subr.mxu0 0.0
        %2911 = vmatpush1.msra.mxu0 %v2892
        %2912 = vmatprep.subr.mxu0 0.0
        %2913 = vmatpush1.msra.mxu0 %v2893
        %2914 = vmatprep.subr.mxu0 0.0
        %2915 = vmatpush1.msra.mxu0 %v2894
        %2916 = vmatprep.subr.mxu0 0.0
        %2917 = vmatpush1.msra.mxu0 %v2895
        %2918 = vmatprep.subr.mxu0 0.0
        %2919 = vmatpush1.msra.mxu0 %v2896
        %2920 = vmatprep.subr.mxu0 0.0
        %2921 = vmatpush1.msra.mxu0 %v2897
        %2922 = vmatprep.subr.mxu0 0.0
        %2923 = vmatpush1.msra.mxu0 %v2898
        %2924 = vmatprep.subr.mxu0 0.0
        %2925 = vmatpush1.msra.mxu0 %v2899
        %2926 = vmatprep.subr.mxu0 0.0
        %2927 = vmatpush1.msra.mxu0 %v2900
        %2928 = vmatprep.subr.mxu0 0.0
        %2929 = vmatpush1.msra.mxu0 %v2901
        %2930 = vmatprep.subr.mxu0 0.0
        %2931 = vmatpush1.msra.mxu0 %v2902
        %2932 = vmatprep.subr.mxu0 0.0
        %2933 = vmatpush1.msra.mxu0 %v2903
        %2934 = vmatprep.subr.mxu0 0.0
        %2935 = vmatpush1.msra.mxu0 %v2904
        %2936 = vmatprep.subr.mxu0 0.0
        %2937 = vmatpush1.msra.mxu0 %v2905
        %2938 = vmatprep.subr.mxu0 0.0
        %2939 = vmatpush1.msra.mxu0 0.0
        %2940 = vmatprep.subr.mxu0 0.0
        %2941 = vmatpush1.msra.mxu0 0.0
        %2942 = vmatprep.subr.mxu0 0.0
        %2943 = vmatpush1.msra.mxu0 0.0
        %2944 = vmatprep.subr.mxu0 0.0
        %2945 = vmatpush1.msra.mxu0 0.0
        %2946 = vmatprep.subr.mxu0 0.0
        %2947 = vmatpush1.msra.mxu0 0.0
        %2948 = vmatprep.subr.mxu0 0.0
        %2949 = vmatpush1.msra.mxu0 0.0
        %2950 = vmatprep.subr.mxu0 0.0
        %2951 = vmatpush1.msra.mxu0 0.0
        %2952 = vmatprep.subr.mxu0 0.0
        %2953 = vmatpush1.msra.mxu0 0.0
        %2954 = vmatprep.subr.mxu0 0.0
        %2955 = vmatpush1.msra.mxu0 0.0
        %2956 = vmatprep.subr.mxu0 0.0
        %2957 = vmatpush1.msra.mxu0 0.0
        %2958 = vmatprep.subr.mxu0 0.0
        %2959 = vmatpush1.msra.mxu0 0.0
        %2960 = vmatprep.subr.mxu0 0.0
        %2961 = vmatpush1.msra.mxu0 0.0
        %2962 = vmatprep.subr.mxu0 0.0
        %2963 = vmatpush1.msra.mxu0 0.0
        %2964 = vmatprep.subr.mxu0 0.0
        %2965 = vmatpush1.msra.mxu0 0.0
        %2966 = vmatprep.subr.mxu0 0.0
        %2967 = vmatpush1.msra.mxu0 0.0
        %2968 = vmatprep.subr.mxu0 0.0
        %2969 = vmatpush1.msra.mxu0 0.0
        %2970 = vmatprep.mubr.f32.mxu0 0.0
        %2971 = vmatmul.mubr.f32.gmra.mrb[0].mxu0 %v2887
        %v2972 = vpop.f32.mrb[0].mxu0
        %v2973 = vadd.f32 0.0, %v2972
        %v2974 = vpop.f32.mrb[0].mxu0
        %2975 = vmatprep.mubr.f32.mxu0 0.0
        %2976 = vmatmul.mubr.f32.gmra.mrb[0].mxu0 %v2886
        %v2977 = vpop.f32.mrb[0].mxu0
        %v2978 = vadd.f32 0.0, %v2977
        %v2979 = vpop.f32.mrb[0].mxu0
        %2980 = vmatprep.mubr.f32.mxu0 0.0
        %2981 = vmatmul.mubr.f32.gmra.mrb[0].mxu0 %v2885
        %v2982 = vpop.f32.mrb[0].mxu0
        %v2983 = vadd.f32 0.0, %v2982
        %v2984 = vpop.f32.mrb[0].mxu0
        %2985 = vmatprep.mubr.f32.mxu0 0.0
        %2986 = vmatmul.mubr.f32.gmra.mrb[0].mxu0 %v2884
        %v2987 = vpop.f32.mrb[0].mxu0
        %v2988 = vadd.f32 0.0, %v2987
        %v2989 = vpop.f32.mrb[0].mxu0
        %2990 = vmatprep.mubr.f32.mxu0 0.0
        %2991 = vmatmul.mubr.f32.gmra.mrb[0].mxu0 %v2883
        %v2992 = vpop.f32.mrb[0].mxu0
        %v2993 = vadd.f32 0.0, %v2992
        %v2994 = vpop.f32.mrb[0].mxu0
        %2995 = vmatprep.mubr.f32.mxu0 0.0
        %2996 = vmatmul.mubr.f32.gmra.mrb[0].mxu0 %v2882
        %v2997 = vpop.f32.mrb[0].mxu0
        %v2998 = vadd.f32 0.0, %v2997
        %v2999 = vpop.f32.mrb[0].mxu0
        %3000 = vmatprep.mubr.f32.mxu0 0.0
        %3001 = vmatmul.mubr.f32.gmra.mrb[0].mxu0 %v2881
        %v3002 = vpop.f32.mrb[0].mxu0
        %v3003 = vadd.f32 0.0, %v3002
        %v3004 = vpop.f32.mrb[0].mxu0
        %3005 = vmatprep.mubr.f32.mxu0 0.0
        %3006 = vmatmul.mubr.f32.gmra.mrb[0].mxu0 %v2880
        %v3007 = vpop.f32.mrb[0].mxu0
        %v3008 = vadd.f32 0.0, %v3007
        %v3009 = vpop.f32.mrb[0].mxu0
        %3010 = vmatprep.mubr.f32.mxu0 0.0
        %3011 = vmatmul.mubr.f32.gmra.mrb[0].mxu0 %v2879
        %v3012 = vpop.f32.mrb[0].mxu0
        %v3013 = vadd.f32 0.0, %v3012
        %v3014 = vpop.f32.mrb[0].mxu0
        %3015 = vmatprep.mubr.f32.mxu0 0.0
        %3016 = vmatmul.mubr.f32.gmra.mrb[0].mxu0 %v2878
        %v3017 = vpop.f32.mrb[0].mxu0
        %v3018 = vadd.f32 0.0, %v3017
        %v3019 = vpop.f32.mrb[0].mxu0
        %3020 = vmatprep.mubr.f32.mxu0 0.0
        %3021 = vmatmul.mubr.f32.gmra.mrb[0].mxu0 %v2877
        %v3022 = vpop.f32.mrb[0].mxu0
        %v3023 = vadd.f32 0.0, %v3022
        %v3024 = vpop.f32.mrb[0].mxu0
        %3025 = vmatprep.mubr.f32.mxu0 0.0
        %3026 = vmatmul.mubr.f32.gmra.mrb[0].mxu0 %v2876
        %v3027 = vpop.f32.mrb[0].mxu0
        %v3028 = vadd.f32 0.0, %v3027
        %v3029 = vpop.f32.mrb[0].mxu0
        %3030 = vmatprep.mubr.f32.mxu0 0.0
        %3031 = vmatmul.mubr.f32.gmra.mrb[0].mxu0 %v2875
        %v3032 = vpop.f32.mrb[0].mxu0
        %v3033 = vadd.f32 0.0, %v3032
        %v3034 = vpop.f32.mrb[0].mxu0
        %3035 = vmatprep.mubr.f32.mxu0 0.0
        %3036 = vmatmul.mubr.f32.gmra.mrb[0].mxu0 %v2874
        %v3037 = vpop.f32.mrb[0].mxu0
        %v3038 = vadd.f32 0.0, %v3037
        %v3039 = vpop.f32.mrb[0].mxu0
        %3040 = vmatprep.mubr.f32.mxu0 0.0
        %3041 = vmatmul.mubr.f32.gmra.mrb[0].mxu0 %v2873
        %v3042 = vpop.f32.mrb[0].mxu0
        %v3043 = vadd.f32 0.0, %v3042
        %v3044 = vpop.f32.mrb[0].mxu0
        %3045 = vmatprep.mubr.f32.mxu0 0.0
        %3046 = vmatmul.mubr.f32.gmra.mrb[0].mxu0 %v2872
        %v3047 = vpop.f32.mrb[0].mxu0
        %v3048 = vadd.f32 0.0, %v3047
        %v3049 = vpop.f32.mrb[0].mxu0
        %3050 = vmatprep.mubr.f32.mxu0 0.0
        %3051 = vmatmul.mubr.f32.gmra.mrb[0].mxu0 %v2871
        %v3052 = vpop.f32.mrb[0].mxu0
        %v3053 = vadd.f32 0.0, %v3052
        %v3054 = vpop.f32.mrb[0].mxu0
        %3055 = vmatprep.mubr.f32.mxu0 0.0
        %3056 = vmatmul.mubr.f32.gmra.mrb[0].mxu0 %v2870
        %v3057 = vpop.f32.mrb[0].mxu0
        %v3058 = vadd.f32 0.0, %v3057
        %v3059 = vpop.f32.mrb[0].mxu0
        %3060 = vmatprep.mubr.f32.mxu0 0.0
        %3061 = vmatmul.mubr.f32.gmra.mrb[0].mxu0 %v2869
        %v3062 = vpop.f32.mrb[0].mxu0
        %v3063 = vadd.f32 0.0, %v3062
        %v3064 = vpop.f32.mrb[0].mxu0
        %3065 = vmatprep.mubr.f32.mxu0 0.0
        %3066 = vmatmul.mubr.f32.gmra.mrb[0].mxu0 %v2868
        %v3067 = vpop.f32.mrb[0].mxu0
        %v3068 = vadd.f32 0.0, %v3067
        %v3069 = vpop.f32.mrb[0].mxu0
        %3070 = vmatprep.mubr.f32.mxu0 0.0
        %3071 = vmatmul.mubr.f32.gmra.mrb[0].mxu0 %v2867
        %v3072 = vpop.f32.mrb[0].mxu0
        %v3073 = vadd.f32 0.0, %v3072
        %v3074 = vpop.f32.mrb[0].mxu0
        %3075 = vmatprep.mubr.f32.mxu0 0.0
        %3076 = vmatmul.mubr.f32.gmra.mrb[0].mxu0 %v2866
        %v3077 = vpop.f32.mrb[0].mxu0
        %v3078 = vadd.f32 0.0, %v3077
        %v3079 = vpop.f32.mrb[0].mxu0
        %3080 = vmatprep.mubr.f32.mxu0 0.0
        %3081 = vmatmul.mubr.f32.gmra.mrb[0].mxu0 %v2865
        %v3082 = vpop.f32.mrb[0].mxu0
        %v3083 = vadd.f32 0.0, %v3082
        %v3084 = vpop.f32.mrb[0].mxu0
        %3085 = vmatprep.mubr.f32.mxu0 0.0
        %3086 = vmatmul.mubr.f32.gmra.mrb[0].mxu0 %v2888
        %v3087 = vpop.f32.mrb[0].mxu0
        %v3088 = vadd.f32 0.0, %v3087
        %v3089 = vpop.f32.mrb[0].mxu0
        %3090 = vdwg.mxu0
        %v3091 = vadd.f32 %v2722, %v2973
        %v3092 = vadd.f32 %v2727, %v2978
        %v3093 = vadd.f32 %v2732, %v2983
        %v3094 = vadd.f32 %v2737, %v2988
        %v3095 = vadd.f32 %v2742, %v2993
        %v3096 = vadd.f32 %v2747, %v2998
        %v3097 = vadd.f32 %v2752, %v3003
        %v3098 = vadd.f32 %v2757, %v3008
        %v3099 = vadd.f32 %v2762, %v3013
        %v3100 = vadd.f32 %v2767, %v3018
        %v3101 = vadd.f32 %v2772, %v3023
        %v3102 = vadd.f32 %v2777, %v3028
        %v3103 = vadd.f32 %v2782, %v3033
        %v3104 = vadd.f32 %v2787, %v3038
        %v3105 = vadd.f32 %v2792, %v3043
        %v3106 = vadd.f32 %v2797, %v3048
        %v3107 = vadd.f32 %v2802, %v3053
        %v3108 = vadd.f32 %v2807, %v3058
        %v3109 = vadd.f32 %v2812, %v3063
        %v3110 = vadd.f32 %v2817, %v3068
        %v3111 = vadd.f32 %v2822, %v3073
        %v3112 = vadd.f32 %v2827, %v3078
        %v3113 = vadd.f32 %v2832, %v3083
        %v3114 = vadd.f32 %v2837, %v3088
        %s3115 = scalar_lea.vmem %s3, 2
        %v3116 = vld [vmem:[%s3115] sm:$0x1]
        %v3118 = vlaneseq
        %v3119 = vshrl.u32 %v3118, 7
        %v3120 = vsub.s32 0, %v3119
        %v3121 = vrot.slane %v3116, %v3120
        %v3123 = vadd.f32 %v3091, %v3121
        %v3124 = vadd.f32 %v3092, %v3121
        %v3125 = vadd.f32 %v3093, %v3121
        %v3126 = vadd.f32 %v3094, %v3121
        %v3127 = vadd.f32 %v3095, %v3121
        %v3128 = vadd.f32 %v3096, %v3121
        %v3129 = vadd.f32 %v3097, %v3121
        %v3130 = vadd.f32 %v3098, %v3121
        %v3131 = vadd.f32 %v3099, %v3121
        %v3132 = vadd.f32 %v3100, %v3121
        %v3133 = vadd.f32 %v3101, %v3121
        %v3134 = vadd.f32 %v3102, %v3121
        %v3135 = vadd.f32 %v3103, %v3121
        %v3136 = vadd.f32 %v3104, %v3121
        %v3137 = vadd.f32 %v3105, %v3121
        %v3138 = vadd.f32 %v3106, %v3121
        %v3139 = vadd.f32 %v3107, %v3121
        %v3140 = vadd.f32 %v3108, %v3121
        %v3141 = vadd.f32 %v3109, %v3121
        %v3142 = vadd.f32 %v3110, %v3121
        %v3143 = vadd.f32 %v3111, %v3121
        %v3144 = vadd.f32 %v3112, %v3121
        %v3145 = vadd.f32 %v3113, %v3121
        %v3146 = vadd.f32 %v3114, %v3121
        %vm3147 = vcmp.ge.f32.partialorder %v3123, 0.0
        %vm3148 = vcmp.ge.f32.partialorder %v3124, 0.0
        %vm3149 = vcmp.ge.f32.partialorder %v3125, 0.0
        %vm3150 = vcmp.ge.f32.partialorder %v3126, 0.0
        %vm3151 = vcmp.ge.f32.partialorder %v3127, 0.0
        %vm3152 = vcmp.ge.f32.partialorder %v3128, 0.0
        %vm3153 = vcmp.ge.f32.partialorder %v3129, 0.0
        %vm3154 = vcmp.ge.f32.partialorder %v3130, 0.0
        %vm3155 = vcmp.ge.f32.partialorder %v3131, 0.0
        %vm3156 = vcmp.ge.f32.partialorder %v3132, 0.0
        %vm3157 = vcmp.ge.f32.partialorder %v3133, 0.0
        %vm3158 = vcmp.ge.f32.partialorder %v3134, 0.0
        %vm3159 = vcmp.ge.f32.partialorder %v3135, 0.0
        %vm3160 = vcmp.ge.f32.partialorder %v3136, 0.0
        %vm3161 = vcmp.ge.f32.partialorder %v3137, 0.0
        %vm3162 = vcmp.ge.f32.partialorder %v3138, 0.0
        %vm3163 = vcmp.ge.f32.partialorder %v3139, 0.0
        %vm3164 = vcmp.ge.f32.partialorder %v3140, 0.0
        %vm3165 = vcmp.ge.f32.partialorder %v3141, 0.0
        %vm3166 = vcmp.ge.f32.partialorder %v3142, 0.0
        %vm3167 = vcmp.ge.f32.partialorder %v3143, 0.0
        %vm3168 = vcmp.ge.f32.partialorder %v3144, 0.0
        %vm3169 = vcmp.ge.f32.partialorder %v3145, 0.0
        %vm3170 = vcmp.ge.f32.partialorder %v3146, 0.0
        %v3171 = vmul.f32 %v3123, 0.1
        %v3172 = vmul.f32 %v3124, 0.1
        %v3173 = vmul.f32 %v3125, 0.1
        %v3174 = vmul.f32 %v3126, 0.1
        %v3175 = vmul.f32 %v3127, 0.1
        %v3176 = vmul.f32 %v3128, 0.1
        %v3177 = vmul.f32 %v3129, 0.1
        %v3178 = vmul.f32 %v3130, 0.1
        %v3179 = vmul.f32 %v3131, 0.1
        %v3180 = vmul.f32 %v3132, 0.1
        %v3181 = vmul.f32 %v3133, 0.1
        %v3182 = vmul.f32 %v3134, 0.1
        %v3183 = vmul.f32 %v3135, 0.1
        %v3184 = vmul.f32 %v3136, 0.1
        %v3185 = vmul.f32 %v3137, 0.1
        %v3186 = vmul.f32 %v3138, 0.1
        %v3187 = vmul.f32 %v3139, 0.1
        %v3188 = vmul.f32 %v3140, 0.1
        %v3189 = vmul.f32 %v3141, 0.1
        %v3190 = vmul.f32 %v3142, 0.1
        %v3191 = vmul.f32 %v3143, 0.1
        %v3192 = vmul.f32 %v3144, 0.1
        %v3193 = vmul.f32 %v3145, 0.1
        %v3194 = vmul.f32 %v3146, 0.1
        %v3195 = vsel %vm3147, %v3123, %v3171
        %v3196 = vsel %vm3148, %v3124, %v3172
        %v3197 = vsel %vm3149, %v3125, %v3173
        %v3198 = vsel %vm3150, %v3126, %v3174
        %v3199 = vsel %vm3151, %v3127, %v3175
        %v3200 = vsel %vm3152, %v3128, %v3176
        %v3201 = vsel %vm3153, %v3129, %v3177
        %v3202 = vsel %vm3154, %v3130, %v3178
        %v3203 = vsel %vm3155, %v3131, %v3179
        %v3204 = vsel %vm3156, %v3132, %v3180
        %v3205 = vsel %vm3157, %v3133, %v3181
        %v3206 = vsel %vm3158, %v3134, %v3182
        %v3207 = vsel %vm3159, %v3135, %v3183
        %v3208 = vsel %vm3160, %v3136, %v3184
        %v3209 = vsel %vm3161, %v3137, %v3185
        %v3210 = vsel %vm3162, %v3138, %v3186
        %v3211 = vsel %vm3163, %v3139, %v3187
        %v3212 = vsel %vm3164, %v3140, %v3188
        %v3213 = vsel %vm3165, %v3141, %v3189
        %v3214 = vsel %vm3166, %v3142, %v3190
        %v3215 = vsel %vm3167, %v3143, %v3191
        %v3216 = vsel %vm3168, %v3144, %v3192
        %v3217 = vsel %vm3169, %v3145, %v3193
        %v3218 = vsel %vm3170, %v3146, %v3194
        %v3219 = vsel %vm619, %v3195, 0.0
        %v3220 = vsel %vm620, %v3196, 0.0
        %v3221 = vsel %vm621, %v3197, 0.0
        %v3222 = vsel %vm622, %v3198, 0.0
        %v3223 = vsel %vm623, %v3199, 0.0
        %v3224 = vsel %vm624, %v3200, 0.0
        %v3225 = vsel %vm625, %v3201, 0.0
        %v3226 = vsel %vm626, %v3202, 0.0
        %v3227 = vsel %vm627, %v3203, 0.0
        %v3228 = vsel %vm628, %v3204, 0.0
        %v3229 = vsel %vm629, %v3205, 0.0
        %v3230 = vsel %vm630, %v3206, 0.0
        %v3231 = vsel %vm619, %v3207, 0.0
        %v3232 = vsel %vm620, %v3208, 0.0
        %v3233 = vsel %vm621, %v3209, 0.0
        %v3234 = vsel %vm622, %v3210, 0.0
        %v3235 = vsel %vm623, %v3211, 0.0
        %v3236 = vsel %vm624, %v3212, 0.0
        %v3237 = vsel %vm625, %v3213, 0.0
        %v3238 = vsel %vm626, %v3214, 0.0
        %v3239 = vsel %vm627, %v3215, 0.0
        %v3240 = vsel %vm628, %v3216, 0.0
        %v3241 = vsel %vm629, %v3217, 0.0
        %v3242 = vsel %vm630, %v3218, 0.0
        %v3243 = vrot.slane %v3219, 7
        %v3244 = vrot.slane %v3220, 7
        %v3245 = vrot.slane %v3221, 7
        %v3246 = vrot.slane %v3222, 7
        %v3247 = vrot.slane %v3223, 7
        %v3248 = vrot.slane %v3224, 7
        %v3249 = vrot.slane %v3225, 7
        %v3250 = vrot.slane %v3226, 7
        %v3251 = vrot.slane %v3227, 7
        %v3252 = vrot.slane %v3228, 7
        %v3253 = vrot.slane %v3229, 7
        %v3254 = vrot.slane %v3230, 7
        %v3255 = vrot.slane %v3231, 7
        %v3256 = vrot.slane %v3232, 7
        %v3257 = vrot.slane %v3233, 7
        %v3258 = vrot.slane %v3234, 7
        %v3259 = vrot.slane %v3235, 7
        %v3260 = vrot.slane %v3236, 7
        %v3261 = vrot.slane %v3237, 7
        %v3262 = vrot.slane %v3238, 7
        %v3263 = vrot.slane %v3239, 7
        %v3264 = vrot.slane %v3240, 7
        %v3265 = vrot.slane %v3241, 7
        %v3266 = vrot.slane %v3242, 7
        %v3267 = vsel %vm679, %v3265, %v3266
        %v3268 = vsel %vm679, %v3264, %v3265
        %v3269 = vsel %vm679, %v3263, %v3264
        %v3270 = vsel %vm679, %v3262, %v3263
        %v3271 = vsel %vm679, %v3261, %v3262
        %v3272 = vsel %vm679, %v3260, %v3261
        %v3273 = vsel %vm679, %v3259, %v3260
        %v3274 = vsel %vm679, %v3258, %v3259
        %v3275 = vsel %vm679, %v3257, %v3258
        %v3276 = vsel %vm679, %v3256, %v3257
        %v3277 = vsel %vm679, %v3255, %v3256
        %v3278 = vsel %vm679, %v3254, %v3255
        %v3279 = vsel %vm679, %v3253, %v3254
        %v3280 = vsel %vm679, %v3252, %v3253
        %v3281 = vsel %vm679, %v3251, %v3252
        %v3282 = vsel %vm679, %v3250, %v3251
        %v3283 = vsel %vm679, %v3249, %v3250
        %v3284 = vsel %vm679, %v3248, %v3249
        %v3285 = vsel %vm679, %v3247, %v3248
        %v3286 = vsel %vm679, %v3246, %v3247
        %v3287 = vsel %vm679, %v3245, %v3246
        %v3288 = vsel %vm679, %v3244, %v3245
        %v3289 = vsel %vm679, %v3243, %v3244
        %v3290 = vsel %vm679, %v3266, %v3243
        %s3291 = scalar_lea.vmem %s2, 1152
        %v3292 = vld [vmem:[%s3291] sm:$0xff]
        %v3293 = vld [vmem:[%s3291 + $0x8] sm:$0xff]
        %v3294 = vld [vmem:[%s3291 + $0x10] sm:$0xff]
        %v3295 = vld [vmem:[%s3291 + $0x18] sm:$0xff]
        %v3296 = vld [vmem:[%s3291 + $0x20] sm:$0xff]
        %v3297 = vld [vmem:[%s3291 + $0x28] sm:$0xff]
        %v3298 = vld [vmem:[%s3291 + $0x30] sm:$0xff]
        %v3299 = vld [vmem:[%s3291 + $0x38] sm:$0xff]
        %v3300 = vld [vmem:[%s3291 + $0x40] sm:$0xff]
        %v3301 = vld [vmem:[%s3291 + $0x48] sm:$0xff]
        %v3302 = vld [vmem:[%s3291 + $0x50] sm:$0xff]
        %v3303 = vld [vmem:[%s3291 + $0x58] sm:$0xff]
        %v3304 = vld [vmem:[%s3291 + $0x60] sm:$0xff]
        %v3305 = vld [vmem:[%s3291 + $0x68] sm:$0xff]
        %v3306 = vld [vmem:[%s3291 + $0x70] sm:$0xff]
        %v3307 = vld [vmem:[%s3291 + $0x78] sm:$0xff]
        %s3308 = scalar_lea.vmem %s2, 1280
        %v3309 = vld [vmem:[%s3308] sm:$0xff]
        %v3310 = vld [vmem:[%s3308 + $0x8] sm:$0xff]
        %v3311 = vld [vmem:[%s3308 + $0x10] sm:$0xff]
        %v3312 = vld [vmem:[%s3308 + $0x18] sm:$0xff]
        %v3313 = vld [vmem:[%s3308 + $0x20] sm:$0xff]
        %v3314 = vld [vmem:[%s3308 + $0x28] sm:$0xff]
        %v3315 = vld [vmem:[%s3308 + $0x30] sm:$0xff]
        %v3316 = vld [vmem:[%s3308 + $0x38] sm:$0xff]
        %v3317 = vld [vmem:[%s3308 + $0x40] sm:$0xff]
        %v3318 = vld [vmem:[%s3308 + $0x48] sm:$0xff]
        %v3319 = vld [vmem:[%s3308 + $0x50] sm:$0xff]
        %v3320 = vld [vmem:[%s3308 + $0x58] sm:$0xff]
        %v3321 = vld [vmem:[%s3308 + $0x60] sm:$0xff]
        %v3322 = vld [vmem:[%s3308 + $0x68] sm:$0xff]
        %v3323 = vld [vmem:[%s3308 + $0x70] sm:$0xff]
        %v3324 = vld [vmem:[%s3308 + $0x78] sm:$0xff]
        %3325 = vmatprep.subr.mxu0 0.0
        %3326 = vmatpush1.msra.mxu0 %v3309
        %3327 = vmatprep.subr.mxu0 0.0
        %3328 = vmatpush1.msra.mxu0 %v3310
        %3329 = vmatprep.subr.mxu0 0.0
        %3330 = vmatpush1.msra.mxu0 %v3311
        %3331 = vmatprep.subr.mxu0 0.0
        %3332 = vmatpush1.msra.mxu0 %v3312
        %3333 = vmatprep.subr.mxu0 0.0
        %3334 = vmatpush1.msra.mxu0 %v3313
        %3335 = vmatprep.subr.mxu0 0.0
        %3336 = vmatpush1.msra.mxu0 %v3314
        %3337 = vmatprep.subr.mxu0 0.0
        %3338 = vmatpush1.msra.mxu0 %v3315
        %3339 = vmatprep.subr.mxu0 0.0
        %3340 = vmatpush1.msra.mxu0 %v3316
        %3341 = vmatprep.subr.mxu0 0.0
        %3342 = vmatpush1.msra.mxu0 %v3317
        %3343 = vmatprep.subr.mxu0 0.0
        %3344 = vmatpush1.msra.mxu0 %v3318
        %3345 = vmatprep.subr.mxu0 0.0
        %3346 = vmatpush1.msra.mxu0 %v3319
        %3347 = vmatprep.subr.mxu0 0.0
        %3348 = vmatpush1.msra.mxu0 %v3320
        %3349 = vmatprep.subr.mxu0 0.0
        %3350 = vmatpush1.msra.mxu0 %v3321
        %3351 = vmatprep.subr.mxu0 0.0
        %3352 = vmatpush1.msra.mxu0 %v3322
        %3353 = vmatprep.subr.mxu0 0.0
        %3354 = vmatpush1.msra.mxu0 %v3323
        %3355 = vmatprep.subr.mxu0 0.0
        %3356 = vmatpush1.msra.mxu0 %v3324
        %3357 = vmatprep.subr.mxu0 0.0
        %3358 = vmatpush1.msra.mxu0 0.0
        %3359 = vmatprep.subr.mxu0 0.0
        %3360 = vmatpush1.msra.mxu0 0.0
        %3361 = vmatprep.subr.mxu0 0.0
        %3362 = vmatpush1.msra.mxu0 0.0
        %3363 = vmatprep.subr.mxu0 0.0
        %3364 = vmatpush1.msra.mxu0 0.0
        %3365 = vmatprep.subr.mxu0 0.0
        %3366 = vmatpush1.msra.mxu0 0.0
        %3367 = vmatprep.subr.mxu0 0.0
        %3368 = vmatpush1.msra.mxu0 0.0
        %3369 = vmatprep.subr.mxu0 0.0
        %3370 = vmatpush1.msra.mxu0 0.0
        %3371 = vmatprep.subr.mxu0 0.0
        %3372 = vmatpush1.msra.mxu0 0.0
        %3373 = vmatprep.subr.mxu0 0.0
        %3374 = vmatpush1.msra.mxu0 0.0
        %3375 = vmatprep.subr.mxu0 0.0
        %3376 = vmatpush1.msra.mxu0 0.0
        %3377 = vmatprep.subr.mxu0 0.0
        %3378 = vmatpush1.msra.mxu0 0.0
        %3379 = vmatprep.subr.mxu0 0.0
        %3380 = vmatpush1.msra.mxu0 0.0
        %3381 = vmatprep.subr.mxu0 0.0
        %3382 = vmatpush1.msra.mxu0 0.0
        %3383 = vmatprep.subr.mxu0 0.0
        %3384 = vmatpush1.msra.mxu0 0.0
        %3385 = vmatprep.subr.mxu0 0.0
        %3386 = vmatpush1.msra.mxu0 0.0
        %3387 = vmatprep.subr.mxu0 0.0
        %3388 = vmatpush1.msra.mxu0 0.0
        %3389 = vmatprep.mubr.f32.mxu0 0.0
        %3390 = vmatmul.mubr.f32.gmra.mrb[0].mxu0 %v3219
        %v3391 = vpop.f32.mrb[0].mxu0
        %v3392 = vadd.f32 0.0, %v3391
        %v3393 = vpop.f32.mrb[0].mxu0
        %3394 = vmatprep.mubr.f32.mxu0 0.0
        %3395 = vmatmul.mubr.f32.gmra.mrb[0].mxu0 %v3220
        %v3396 = vpop.f32.mrb[0].mxu0
        %v3397 = vadd.f32 0.0, %v3396
        %v3398 = vpop.f32.mrb[0].mxu0
        %3399 = vmatprep.mubr.f32.mxu0 0.0
        %3400 = vmatmul.mubr.f32.gmra.mrb[0].mxu0 %v3221
        %v3401 = vpop.f32.mrb[0].mxu0
        %v3402 = vadd.f32 0.0, %v3401
        %v3403 = vpop.f32.mrb[0].mxu0
        %3404 = vmatprep.mubr.f32.mxu0 0.0
        %3405 = vmatmul.mubr.f32.gmra.mrb[0].mxu0 %v3222
        %v3406 = vpop.f32.mrb[0].mxu0
        %v3407 = vadd.f32 0.0, %v3406
        %v3408 = vpop.f32.mrb[0].mxu0
        %3409 = vmatprep.mubr.f32.mxu0 0.0
        %3410 = vmatmul.mubr.f32.gmra.mrb[0].mxu0 %v3223
        %v3411 = vpop.f32.mrb[0].mxu0
        %v3412 = vadd.f32 0.0, %v3411
        %v3413 = vpop.f32.mrb[0].mxu0
        %3414 = vmatprep.mubr.f32.mxu0 0.0
        %3415 = vmatmul.mubr.f32.gmra.mrb[0].mxu0 %v3224
        %v3416 = vpop.f32.mrb[0].mxu0
        %v3417 = vadd.f32 0.0, %v3416
        %v3418 = vpop.f32.mrb[0].mxu0
        %3419 = vmatprep.mubr.f32.mxu0 0.0
        %3420 = vmatmul.mubr.f32.gmra.mrb[0].mxu0 %v3225
        %v3421 = vpop.f32.mrb[0].mxu0
        %v3422 = vadd.f32 0.0, %v3421
        %v3423 = vpop.f32.mrb[0].mxu0
        %3424 = vmatprep.mubr.f32.mxu0 0.0
        %3425 = vmatmul.mubr.f32.gmra.mrb[0].mxu0 %v3226
        %v3426 = vpop.f32.mrb[0].mxu0
        %v3427 = vadd.f32 0.0, %v3426
        %v3428 = vpop.f32.mrb[0].mxu0
        %3429 = vmatprep.mubr.f32.mxu0 0.0
        %3430 = vmatmul.mubr.f32.gmra.mrb[0].mxu0 %v3227
        %v3431 = vpop.f32.mrb[0].mxu0
        %v3432 = vadd.f32 0.0, %v3431
        %v3433 = vpop.f32.mrb[0].mxu0
        %3434 = vmatprep.mubr.f32.mxu0 0.0
        %3435 = vmatmul.mubr.f32.gmra.mrb[0].mxu0 %v3228
        %v3436 = vpop.f32.mrb[0].mxu0
        %v3437 = vadd.f32 0.0, %v3436
        %v3438 = vpop.f32.mrb[0].mxu0
        %3439 = vmatprep.mubr.f32.mxu0 0.0
        %3440 = vmatmul.mubr.f32.gmra.mrb[0].mxu0 %v3229
        %v3441 = vpop.f32.mrb[0].mxu0
        %v3442 = vadd.f32 0.0, %v3441
        %v3443 = vpop.f32.mrb[0].mxu0
        %3444 = vmatprep.mubr.f32.mxu0 0.0
        %3445 = vmatmul.mubr.f32.gmra.mrb[0].mxu0 %v3230
        %v3446 = vpop.f32.mrb[0].mxu0
        %v3447 = vadd.f32 0.0, %v3446
        %v3448 = vpop.f32.mrb[0].mxu0
        %3449 = vmatprep.mubr.f32.mxu0 0.0
        %3450 = vmatmul.mubr.f32.gmra.mrb[0].mxu0 %v3231
        %v3451 = vpop.f32.mrb[0].mxu0
        %v3452 = vadd.f32 0.0, %v3451
        %v3453 = vpop.f32.mrb[0].mxu0
        %3454 = vmatprep.mubr.f32.mxu0 0.0
        %3455 = vmatmul.mubr.f32.gmra.mrb[0].mxu0 %v3232
        %v3456 = vpop.f32.mrb[0].mxu0
        %v3457 = vadd.f32 0.0, %v3456
        %v3458 = vpop.f32.mrb[0].mxu0
        %3459 = vmatprep.mubr.f32.mxu0 0.0
        %3460 = vmatmul.mubr.f32.gmra.mrb[0].mxu0 %v3233
        %v3461 = vpop.f32.mrb[0].mxu0
        %v3462 = vadd.f32 0.0, %v3461
        %v3463 = vpop.f32.mrb[0].mxu0
        %3464 = vmatprep.mubr.f32.mxu0 0.0
        %3465 = vmatmul.mubr.f32.gmra.mrb[0].mxu0 %v3234
        %v3466 = vpop.f32.mrb[0].mxu0
        %v3467 = vadd.f32 0.0, %v3466
        %v3468 = vpop.f32.mrb[0].mxu0
        %3469 = vmatprep.mubr.f32.mxu0 0.0
        %3470 = vmatmul.mubr.f32.gmra.mrb[0].mxu0 %v3235
        %v3471 = vpop.f32.mrb[0].mxu0
        %v3472 = vadd.f32 0.0, %v3471
        %v3473 = vpop.f32.mrb[0].mxu0
        %3474 = vmatprep.mubr.f32.mxu0 0.0
        %3475 = vmatmul.mubr.f32.gmra.mrb[0].mxu0 %v3236
        %v3476 = vpop.f32.mrb[0].mxu0
        %v3477 = vadd.f32 0.0, %v3476
        %v3478 = vpop.f32.mrb[0].mxu0
        %3479 = vmatprep.mubr.f32.mxu0 0.0
        %3480 = vmatmul.mubr.f32.gmra.mrb[0].mxu0 %v3237
        %v3481 = vpop.f32.mrb[0].mxu0
        %v3482 = vadd.f32 0.0, %v3481
        %v3483 = vpop.f32.mrb[0].mxu0
        %3484 = vmatprep.mubr.f32.mxu0 0.0
        %3485 = vmatmul.mubr.f32.gmra.mrb[0].mxu0 %v3238
        %v3486 = vpop.f32.mrb[0].mxu0
        %v3487 = vadd.f32 0.0, %v3486
        %v3488 = vpop.f32.mrb[0].mxu0
        %3489 = vmatprep.mubr.f32.mxu0 0.0
        %3490 = vmatmul.mubr.f32.gmra.mrb[0].mxu0 %v3239
        %v3491 = vpop.f32.mrb[0].mxu0
        %v3492 = vadd.f32 0.0, %v3491
        %v3493 = vpop.f32.mrb[0].mxu0
        %3494 = vmatprep.mubr.f32.mxu0 0.0
        %3495 = vmatmul.mubr.f32.gmra.mrb[0].mxu0 %v3240
        %v3496 = vpop.f32.mrb[0].mxu0
        %v3497 = vadd.f32 0.0, %v3496
        %v3498 = vpop.f32.mrb[0].mxu0
        %3499 = vmatprep.mubr.f32.mxu0 0.0
        %3500 = vmatmul.mubr.f32.gmra.mrb[0].mxu0 %v3241
        %v3501 = vpop.f32.mrb[0].mxu0
        %v3502 = vadd.f32 0.0, %v3501
        %v3503 = vpop.f32.mrb[0].mxu0
        %3504 = vmatprep.mubr.f32.mxu0 0.0
        %3505 = vmatmul.mubr.f32.gmra.mrb[0].mxu0 %v3242
        %v3506 = vpop.f32.mrb[0].mxu0
        %v3507 = vadd.f32 0.0, %v3506
        %v3508 = vpop.f32.mrb[0].mxu0
        %3509 = vdwg.mxu0
        %3510 = vmatprep.subr.mxu0 0.0
        %3511 = vmatpush1.msra.mxu0 %v3292
        %3512 = vmatprep.subr.mxu0 0.0
        %3513 = vmatpush1.msra.mxu0 %v3293
        %3514 = vmatprep.subr.mxu0 0.0
        %3515 = vmatpush1.msra.mxu0 %v3294
        %3516 = vmatprep.subr.mxu0 0.0
        %3517 = vmatpush1.msra.mxu0 %v3295
        %3518 = vmatprep.subr.mxu0 0.0
        %3519 = vmatpush1.msra.mxu0 %v3296
        %3520 = vmatprep.subr.mxu0 0.0
        %3521 = vmatpush1.msra.mxu0 %v3297
        %3522 = vmatprep.subr.mxu0 0.0
        %3523 = vmatpush1.msra.mxu0 %v3298
        %3524 = vmatprep.subr.mxu0 0.0
        %3525 = vmatpush1.msra.mxu0 %v3299
        %3526 = vmatprep.subr.mxu0 0.0
        %3527 = vmatpush1.msra.mxu0 %v3300
        %3528 = vmatprep.subr.mxu0 0.0
        %3529 = vmatpush1.msra.mxu0 %v3301
        %3530 = vmatprep.subr.mxu0 0.0
        %3531 = vmatpush1.msra.mxu0 %v3302
        %3532 = vmatprep.subr.mxu0 0.0
        %3533 = vmatpush1.msra.mxu0 %v3303
        %3534 = vmatprep.subr.mxu0 0.0
        %3535 = vmatpush1.msra.mxu0 %v3304
        %3536 = vmatprep.subr.mxu0 0.0
        %3537 = vmatpush1.msra.mxu0 %v3305
        %3538 = vmatprep.subr.mxu0 0.0
        %3539 = vmatpush1.msra.mxu0 %v3306
        %3540 = vmatprep.subr.mxu0 0.0
        %3541 = vmatpush1.msra.mxu0 %v3307
        %3542 = vmatprep.subr.mxu0 0.0
        %3543 = vmatpush1.msra.mxu0 0.0
        %3544 = vmatprep.subr.mxu0 0.0
        %3545 = vmatpush1.msra.mxu0 0.0
        %3546 = vmatprep.subr.mxu0 0.0
        %3547 = vmatpush1.msra.mxu0 0.0
        %3548 = vmatprep.subr.mxu0 0.0
        %3549 = vmatpush1.msra.mxu0 0.0
        %3550 = vmatprep.subr.mxu0 0.0
        %3551 = vmatpush1.msra.mxu0 0.0
        %3552 = vmatprep.subr.mxu0 0.0
        %3553 = vmatpush1.msra.mxu0 0.0
        %3554 = vmatprep.subr.mxu0 0.0
        %3555 = vmatpush1.msra.mxu0 0.0
        %3556 = vmatprep.subr.mxu0 0.0
        %3557 = vmatpush1.msra.mxu0 0.0
        %3558 = vmatprep.subr.mxu0 0.0
        %3559 = vmatpush1.msra.mxu0 0.0
        %3560 = vmatprep.subr.mxu0 0.0
        %3561 = vmatpush1.msra.mxu0 0.0
        %3562 = vmatprep.subr.mxu0 0.0
        %3563 = vmatpush1.msra.mxu0 0.0
        %3564 = vmatprep.subr.mxu0 0.0
        %3565 = vmatpush1.msra.mxu0 0.0
        %3566 = vmatprep.subr.mxu0 0.0
        %3567 = vmatpush1.msra.mxu0 0.0
        %3568 = vmatprep.subr.mxu0 0.0
        %3569 = vmatpush1.msra.mxu0 0.0
        %3570 = vmatprep.subr.mxu0 0.0
        %3571 = vmatpush1.msra.mxu0 0.0
        %3572 = vmatprep.subr.mxu0 0.0
        %3573 = vmatpush1.msra.mxu0 0.0
        %3574 = vmatprep.mubr.f32.mxu0 0.0
        %3575 = vmatmul.mubr.f32.gmra.mrb[0].mxu0 %v3290
        %v3576 = vpop.f32.mrb[0].mxu0
        %v3577 = vadd.f32 %v3392, %v3576
        %v3578 = vpop.f32.mrb[0].mxu0
        %3579 = vmatprep.mubr.f32.mxu0 0.0
        %3580 = vmatmul.mubr.f32.gmra.mrb[0].mxu0 %v3289
        %v3581 = vpop.f32.mrb[0].mxu0
        %v3582 = vadd.f32 %v3397, %v3581
        %v3583 = vpop.f32.mrb[0].mxu0
        %3584 = vmatprep.mubr.f32.mxu0 0.0
        %3585 = vmatmul.mubr.f32.gmra.mrb[0].mxu0 %v3288
        %v3586 = vpop.f32.mrb[0].mxu0
        %v3587 = vadd.f32 %v3402, %v3586
        %v3588 = vpop.f32.mrb[0].mxu0
        %3589 = vmatprep.mubr.f32.mxu0 0.0
        %3590 = vmatmul.mubr.f32.gmra.mrb[0].mxu0 %v3287
        %v3591 = vpop.f32.mrb[0].mxu0
        %v3592 = vadd.f32 %v3407, %v3591
        %v3593 = vpop.f32.mrb[0].mxu0
        %3594 = vmatprep.mubr.f32.mxu0 0.0
        %3595 = vmatmul.mubr.f32.gmra.mrb[0].mxu0 %v3286
        %v3596 = vpop.f32.mrb[0].mxu0
        %v3597 = vadd.f32 %v3412, %v3596
        %v3598 = vpop.f32.mrb[0].mxu0
        %3599 = vmatprep.mubr.f32.mxu0 0.0
        %3600 = vmatmul.mubr.f32.gmra.mrb[0].mxu0 %v3285
        %v3601 = vpop.f32.mrb[0].mxu0
        %v3602 = vadd.f32 %v3417, %v3601
        %v3603 = vpop.f32.mrb[0].mxu0
        %3604 = vmatprep.mubr.f32.mxu0 0.0
        %3605 = vmatmul.mubr.f32.gmra.mrb[0].mxu0 %v3284
        %v3606 = vpop.f32.mrb[0].mxu0
        %v3607 = vadd.f32 %v3422, %v3606
        %v3608 = vpop.f32.mrb[0].mxu0
        %3609 = vmatprep.mubr.f32.mxu0 0.0
        %3610 = vmatmul.mubr.f32.gmra.mrb[0].mxu0 %v3283
        %v3611 = vpop.f32.mrb[0].mxu0
        %v3612 = vadd.f32 %v3427, %v3611
        %v3613 = vpop.f32.mrb[0].mxu0
        %3614 = vmatprep.mubr.f32.mxu0 0.0
        %3615 = vmatmul.mubr.f32.gmra.mrb[0].mxu0 %v3282
        %v3616 = vpop.f32.mrb[0].mxu0
        %v3617 = vadd.f32 %v3432, %v3616
        %v3618 = vpop.f32.mrb[0].mxu0
        %3619 = vmatprep.mubr.f32.mxu0 0.0
        %3620 = vmatmul.mubr.f32.gmra.mrb[0].mxu0 %v3281
        %v3621 = vpop.f32.mrb[0].mxu0
        %v3622 = vadd.f32 %v3437, %v3621
        %v3623 = vpop.f32.mrb[0].mxu0
        %3624 = vmatprep.mubr.f32.mxu0 0.0
        %3625 = vmatmul.mubr.f32.gmra.mrb[0].mxu0 %v3280
        %v3626 = vpop.f32.mrb[0].mxu0
        %v3627 = vadd.f32 %v3442, %v3626
        %v3628 = vpop.f32.mrb[0].mxu0
        %3629 = vmatprep.mubr.f32.mxu0 0.0
        %3630 = vmatmul.mubr.f32.gmra.mrb[0].mxu0 %v3279
        %v3631 = vpop.f32.mrb[0].mxu0
        %v3632 = vadd.f32 %v3447, %v3631
        %v3633 = vpop.f32.mrb[0].mxu0
        %3634 = vmatprep.mubr.f32.mxu0 0.0
        %3635 = vmatmul.mubr.f32.gmra.mrb[0].mxu0 %v3278
        %v3636 = vpop.f32.mrb[0].mxu0
        %v3637 = vadd.f32 %v3452, %v3636
        %v3638 = vpop.f32.mrb[0].mxu0
        %3639 = vmatprep.mubr.f32.mxu0 0.0
        %3640 = vmatmul.mubr.f32.gmra.mrb[0].mxu0 %v3277
        %v3641 = vpop.f32.mrb[0].mxu0
        %v3642 = vadd.f32 %v3457, %v3641
        %v3643 = vpop.f32.mrb[0].mxu0
        %3644 = vmatprep.mubr.f32.mxu0 0.0
        %3645 = vmatmul.mubr.f32.gmra.mrb[0].mxu0 %v3276
        %v3646 = vpop.f32.mrb[0].mxu0
        %v3647 = vadd.f32 %v3462, %v3646
        %v3648 = vpop.f32.mrb[0].mxu0
        %3649 = vmatprep.mubr.f32.mxu0 0.0
        %3650 = vmatmul.mubr.f32.gmra.mrb[0].mxu0 %v3275
        %v3651 = vpop.f32.mrb[0].mxu0
        %v3652 = vadd.f32 %v3467, %v3651
        %v3653 = vpop.f32.mrb[0].mxu0
        %3654 = vmatprep.mubr.f32.mxu0 0.0
        %3655 = vmatmul.mubr.f32.gmra.mrb[0].mxu0 %v3274
        %v3656 = vpop.f32.mrb[0].mxu0
        %v3657 = vadd.f32 %v3472, %v3656
        %v3658 = vpop.f32.mrb[0].mxu0
        %3659 = vmatprep.mubr.f32.mxu0 0.0
        %3660 = vmatmul.mubr.f32.gmra.mrb[0].mxu0 %v3273
        %v3661 = vpop.f32.mrb[0].mxu0
        %v3662 = vadd.f32 %v3477, %v3661
        %v3663 = vpop.f32.mrb[0].mxu0
        %3664 = vmatprep.mubr.f32.mxu0 0.0
        %3665 = vmatmul.mubr.f32.gmra.mrb[0].mxu0 %v3272
        %v3666 = vpop.f32.mrb[0].mxu0
        %v3667 = vadd.f32 %v3482, %v3666
        %v3668 = vpop.f32.mrb[0].mxu0
        %3669 = vmatprep.mubr.f32.mxu0 0.0
        %3670 = vmatmul.mubr.f32.gmra.mrb[0].mxu0 %v3271
        %v3671 = vpop.f32.mrb[0].mxu0
        %v3672 = vadd.f32 %v3487, %v3671
        %v3673 = vpop.f32.mrb[0].mxu0
        %3674 = vmatprep.mubr.f32.mxu0 0.0
        %3675 = vmatmul.mubr.f32.gmra.mrb[0].mxu0 %v3270
        %v3676 = vpop.f32.mrb[0].mxu0
        %v3677 = vadd.f32 %v3492, %v3676
        %v3678 = vpop.f32.mrb[0].mxu0
        %3679 = vmatprep.mubr.f32.mxu0 0.0
        %3680 = vmatmul.mubr.f32.gmra.mrb[0].mxu0 %v3269
        %v3681 = vpop.f32.mrb[0].mxu0
        %v3682 = vadd.f32 %v3497, %v3681
        %v3683 = vpop.f32.mrb[0].mxu0
        %3684 = vmatprep.mubr.f32.mxu0 0.0
        %3685 = vmatmul.mubr.f32.gmra.mrb[0].mxu0 %v3268
        %v3686 = vpop.f32.mrb[0].mxu0
        %v3687 = vadd.f32 %v3502, %v3686
        %v3688 = vpop.f32.mrb[0].mxu0
        %3689 = vmatprep.mubr.f32.mxu0 0.0
        %3690 = vmatmul.mubr.f32.gmra.mrb[0].mxu0 %v3267
        %v3691 = vpop.f32.mrb[0].mxu0
        %v3692 = vadd.f32 %v3507, %v3691
        %v3693 = vpop.f32.mrb[0].mxu0
        %3694 = vdwg.mxu0
        %v3695 = vrot.slane %v3219, 1
        %v3696 = vrot.slane %v3220, 1
        %v3697 = vrot.slane %v3221, 1
        %v3698 = vrot.slane %v3222, 1
        %v3699 = vrot.slane %v3223, 1
        %v3700 = vrot.slane %v3224, 1
        %v3701 = vrot.slane %v3225, 1
        %v3702 = vrot.slane %v3226, 1
        %v3703 = vrot.slane %v3227, 1
        %v3704 = vrot.slane %v3228, 1
        %v3705 = vrot.slane %v3229, 1
        %v3706 = vrot.slane %v3230, 1
        %v3707 = vrot.slane %v3231, 1
        %v3708 = vrot.slane %v3232, 1
        %v3709 = vrot.slane %v3233, 1
        %v3710 = vrot.slane %v3234, 1
        %v3711 = vrot.slane %v3235, 1
        %v3712 = vrot.slane %v3236, 1
        %v3713 = vrot.slane %v3237, 1
        %v3714 = vrot.slane %v3238, 1
        %v3715 = vrot.slane %v3239, 1
        %v3716 = vrot.slane %v3240, 1
        %v3717 = vrot.slane %v3241, 1
        %v3718 = vrot.slane %v3242, 1
        %v3719 = vsel %vm1131, %v3717, %v3718
        %v3720 = vsel %vm1131, %v3716, %v3717
        %v3721 = vsel %vm1131, %v3715, %v3716
        %v3722 = vsel %vm1131, %v3714, %v3715
        %v3723 = vsel %vm1131, %v3713, %v3714
        %v3724 = vsel %vm1131, %v3712, %v3713
        %v3725 = vsel %vm1131, %v3711, %v3712
        %v3726 = vsel %vm1131, %v3710, %v3711
        %v3727 = vsel %vm1131, %v3709, %v3710
        %v3728 = vsel %vm1131, %v3708, %v3709
        %v3729 = vsel %vm1131, %v3707, %v3708
        %v3730 = vsel %vm1131, %v3706, %v3707
        %v3731 = vsel %vm1131, %v3705, %v3706
        %v3732 = vsel %vm1131, %v3704, %v3705
        %v3733 = vsel %vm1131, %v3703, %v3704
        %v3734 = vsel %vm1131, %v3702, %v3703
        %v3735 = vsel %vm1131, %v3701, %v3702
        %v3736 = vsel %vm1131, %v3700, %v3701
        %v3737 = vsel %vm1131, %v3699, %v3700
        %v3738 = vsel %vm1131, %v3698, %v3699
        %v3739 = vsel %vm1131, %v3697, %v3698
        %v3740 = vsel %vm1131, %v3696, %v3697
        %v3741 = vsel %vm1131, %v3695, %v3696
        %v3742 = vsel %vm1131, %v3718, %v3695
        %s3743 = scalar_lea.vmem %s2, 1408
        %v3744 = vld [vmem:[%s3743] sm:$0xff]
        %v3745 = vld [vmem:[%s3743 + $0x8] sm:$0xff]
        %v3746 = vld [vmem:[%s3743 + $0x10] sm:$0xff]
        %v3747 = vld [vmem:[%s3743 + $0x18] sm:$0xff]
        %v3748 = vld [vmem:[%s3743 + $0x20] sm:$0xff]
        %v3749 = vld [vmem:[%s3743 + $0x28] sm:$0xff]
        %v3750 = vld [vmem:[%s3743 + $0x30] sm:$0xff]
        %v3751 = vld [vmem:[%s3743 + $0x38] sm:$0xff]
        %v3752 = vld [vmem:[%s3743 + $0x40] sm:$0xff]
        %v3753 = vld [vmem:[%s3743 + $0x48] sm:$0xff]
        %v3754 = vld [vmem:[%s3743 + $0x50] sm:$0xff]
        %v3755 = vld [vmem:[%s3743 + $0x58] sm:$0xff]
        %v3756 = vld [vmem:[%s3743 + $0x60] sm:$0xff]
        %v3757 = vld [vmem:[%s3743 + $0x68] sm:$0xff]
        %v3758 = vld [vmem:[%s3743 + $0x70] sm:$0xff]
        %v3759 = vld [vmem:[%s3743 + $0x78] sm:$0xff]
        %3760 = vmatprep.subr.mxu0 0.0
        %3761 = vmatpush1.msra.mxu0 %v3744
        %3762 = vmatprep.subr.mxu0 0.0
        %3763 = vmatpush1.msra.mxu0 %v3745
        %3764 = vmatprep.subr.mxu0 0.0
        %3765 = vmatpush1.msra.mxu0 %v3746
        %3766 = vmatprep.subr.mxu0 0.0
        %3767 = vmatpush1.msra.mxu0 %v3747
        %3768 = vmatprep.subr.mxu0 0.0
        %3769 = vmatpush1.msra.mxu0 %v3748
        %3770 = vmatprep.subr.mxu0 0.0
        %3771 = vmatpush1.msra.mxu0 %v3749
        %3772 = vmatprep.subr.mxu0 0.0
        %3773 = vmatpush1.msra.mxu0 %v3750
        %3774 = vmatprep.subr.mxu0 0.0
        %3775 = vmatpush1.msra.mxu0 %v3751
        %3776 = vmatprep.subr.mxu0 0.0
        %3777 = vmatpush1.msra.mxu0 %v3752
        %3778 = vmatprep.subr.mxu0 0.0
        %3779 = vmatpush1.msra.mxu0 %v3753
        %3780 = vmatprep.subr.mxu0 0.0
        %3781 = vmatpush1.msra.mxu0 %v3754
        %3782 = vmatprep.subr.mxu0 0.0
        %3783 = vmatpush1.msra.mxu0 %v3755
        %3784 = vmatprep.subr.mxu0 0.0
        %3785 = vmatpush1.msra.mxu0 %v3756
        %3786 = vmatprep.subr.mxu0 0.0
        %3787 = vmatpush1.msra.mxu0 %v3757
        %3788 = vmatprep.subr.mxu0 0.0
        %3789 = vmatpush1.msra.mxu0 %v3758
        %3790 = vmatprep.subr.mxu0 0.0
        %3791 = vmatpush1.msra.mxu0 %v3759
        %3792 = vmatprep.subr.mxu0 0.0
        %3793 = vmatpush1.msra.mxu0 0.0
        %3794 = vmatprep.subr.mxu0 0.0
        %3795 = vmatpush1.msra.mxu0 0.0
        %3796 = vmatprep.subr.mxu0 0.0
        %3797 = vmatpush1.msra.mxu0 0.0
        %3798 = vmatprep.subr.mxu0 0.0
        %3799 = vmatpush1.msra.mxu0 0.0
        %3800 = vmatprep.subr.mxu0 0.0
        %3801 = vmatpush1.msra.mxu0 0.0
        %3802 = vmatprep.subr.mxu0 0.0
        %3803 = vmatpush1.msra.mxu0 0.0
        %3804 = vmatprep.subr.mxu0 0.0
        %3805 = vmatpush1.msra.mxu0 0.0
        %3806 = vmatprep.subr.mxu0 0.0
        %3807 = vmatpush1.msra.mxu0 0.0
        %3808 = vmatprep.subr.mxu0 0.0
        %3809 = vmatpush1.msra.mxu0 0.0
        %3810 = vmatprep.subr.mxu0 0.0
        %3811 = vmatpush1.msra.mxu0 0.0
        %3812 = vmatprep.subr.mxu0 0.0
        %3813 = vmatpush1.msra.mxu0 0.0
        %3814 = vmatprep.subr.mxu0 0.0
        %3815 = vmatpush1.msra.mxu0 0.0
        %3816 = vmatprep.subr.mxu0 0.0
        %3817 = vmatpush1.msra.mxu0 0.0
        %3818 = vmatprep.subr.mxu0 0.0
        %3819 = vmatpush1.msra.mxu0 0.0
        %3820 = vmatprep.subr.mxu0 0.0
        %3821 = vmatpush1.msra.mxu0 0.0
        %3822 = vmatprep.subr.mxu0 0.0
        %3823 = vmatpush1.msra.mxu0 0.0
        %3824 = vmatprep.mubr.f32.mxu0 0.0
        %3825 = vmatmul.mubr.f32.gmra.mrb[0].mxu0 %v3741
        %v3826 = vpop.f32.mrb[0].mxu0
        %v3827 = vadd.f32 0.0, %v3826
        %v3828 = vpop.f32.mrb[0].mxu0
        %3829 = vmatprep.mubr.f32.mxu0 0.0
        %3830 = vmatmul.mubr.f32.gmra.mrb[0].mxu0 %v3740
        %v3831 = vpop.f32.mrb[0].mxu0
        %v3832 = vadd.f32 0.0, %v3831
        %v3833 = vpop.f32.mrb[0].mxu0
        %3834 = vmatprep.mubr.f32.mxu0 0.0
        %3835 = vmatmul.mubr.f32.gmra.mrb[0].mxu0 %v3739
        %v3836 = vpop.f32.mrb[0].mxu0
        %v3837 = vadd.f32 0.0, %v3836
        %v3838 = vpop.f32.mrb[0].mxu0
        %3839 = vmatprep.mubr.f32.mxu0 0.0
        %3840 = vmatmul.mubr.f32.gmra.mrb[0].mxu0 %v3738
        %v3841 = vpop.f32.mrb[0].mxu0
        %v3842 = vadd.f32 0.0, %v3841
        %v3843 = vpop.f32.mrb[0].mxu0
        %3844 = vmatprep.mubr.f32.mxu0 0.0
        %3845 = vmatmul.mubr.f32.gmra.mrb[0].mxu0 %v3737
        %v3846 = vpop.f32.mrb[0].mxu0
        %v3847 = vadd.f32 0.0, %v3846
        %v3848 = vpop.f32.mrb[0].mxu0
        %3849 = vmatprep.mubr.f32.mxu0 0.0
        %3850 = vmatmul.mubr.f32.gmra.mrb[0].mxu0 %v3736
        %v3851 = vpop.f32.mrb[0].mxu0
        %v3852 = vadd.f32 0.0, %v3851
        %v3853 = vpop.f32.mrb[0].mxu0
        %3854 = vmatprep.mubr.f32.mxu0 0.0
        %3855 = vmatmul.mubr.f32.gmra.mrb[0].mxu0 %v3735
        %v3856 = vpop.f32.mrb[0].mxu0
        %v3857 = vadd.f32 0.0, %v3856
        %v3858 = vpop.f32.mrb[0].mxu0
        %3859 = vmatprep.mubr.f32.mxu0 0.0
        %3860 = vmatmul.mubr.f32.gmra.mrb[0].mxu0 %v3734
        %v3861 = vpop.f32.mrb[0].mxu0
        %v3862 = vadd.f32 0.0, %v3861
        %v3863 = vpop.f32.mrb[0].mxu0
        %3864 = vmatprep.mubr.f32.mxu0 0.0
        %3865 = vmatmul.mubr.f32.gmra.mrb[0].mxu0 %v3733
        %v3866 = vpop.f32.mrb[0].mxu0
        %v3867 = vadd.f32 0.0, %v3866
        %v3868 = vpop.f32.mrb[0].mxu0
        %3869 = vmatprep.mubr.f32.mxu0 0.0
        %3870 = vmatmul.mubr.f32.gmra.mrb[0].mxu0 %v3732
        %v3871 = vpop.f32.mrb[0].mxu0
        %v3872 = vadd.f32 0.0, %v3871
        %v3873 = vpop.f32.mrb[0].mxu0
        %3874 = vmatprep.mubr.f32.mxu0 0.0
        %3875 = vmatmul.mubr.f32.gmra.mrb[0].mxu0 %v3731
        %v3876 = vpop.f32.mrb[0].mxu0
        %v3877 = vadd.f32 0.0, %v3876
        %v3878 = vpop.f32.mrb[0].mxu0
        %3879 = vmatprep.mubr.f32.mxu0 0.0
        %3880 = vmatmul.mubr.f32.gmra.mrb[0].mxu0 %v3730
        %v3881 = vpop.f32.mrb[0].mxu0
        %v3882 = vadd.f32 0.0, %v3881
        %v3883 = vpop.f32.mrb[0].mxu0
        %3884 = vmatprep.mubr.f32.mxu0 0.0
        %3885 = vmatmul.mubr.f32.gmra.mrb[0].mxu0 %v3729
        %v3886 = vpop.f32.mrb[0].mxu0
        %v3887 = vadd.f32 0.0, %v3886
        %v3888 = vpop.f32.mrb[0].mxu0
        %3889 = vmatprep.mubr.f32.mxu0 0.0
        %3890 = vmatmul.mubr.f32.gmra.mrb[0].mxu0 %v3728
        %v3891 = vpop.f32.mrb[0].mxu0
        %v3892 = vadd.f32 0.0, %v3891
        %v3893 = vpop.f32.mrb[0].mxu0
        %3894 = vmatprep.mubr.f32.mxu0 0.0
        %3895 = vmatmul.mubr.f32.gmra.mrb[0].mxu0 %v3727
        %v3896 = vpop.f32.mrb[0].mxu0
        %v3897 = vadd.f32 0.0, %v3896
        %v3898 = vpop.f32.mrb[0].mxu0
        %3899 = vmatprep.mubr.f32.mxu0 0.0
        %3900 = vmatmul.mubr.f32.gmra.mrb[0].mxu0 %v3726
        %v3901 = vpop.f32.mrb[0].mxu0
        %v3902 = vadd.f32 0.0, %v3901
        %v3903 = vpop.f32.mrb[0].mxu0
        %3904 = vmatprep.mubr.f32.mxu0 0.0
        %3905 = vmatmul.mubr.f32.gmra.mrb[0].mxu0 %v3725
        %v3906 = vpop.f32.mrb[0].mxu0
        %v3907 = vadd.f32 0.0, %v3906
        %v3908 = vpop.f32.mrb[0].mxu0
        %3909 = vmatprep.mubr.f32.mxu0 0.0
        %3910 = vmatmul.mubr.f32.gmra.mrb[0].mxu0 %v3724
        %v3911 = vpop.f32.mrb[0].mxu0
        %v3912 = vadd.f32 0.0, %v3911
        %v3913 = vpop.f32.mrb[0].mxu0
        %3914 = vmatprep.mubr.f32.mxu0 0.0
        %3915 = vmatmul.mubr.f32.gmra.mrb[0].mxu0 %v3723
        %v3916 = vpop.f32.mrb[0].mxu0
        %v3917 = vadd.f32 0.0, %v3916
        %v3918 = vpop.f32.mrb[0].mxu0
        %3919 = vmatprep.mubr.f32.mxu0 0.0
        %3920 = vmatmul.mubr.f32.gmra.mrb[0].mxu0 %v3722
        %v3921 = vpop.f32.mrb[0].mxu0
        %v3922 = vadd.f32 0.0, %v3921
        %v3923 = vpop.f32.mrb[0].mxu0
        %3924 = vmatprep.mubr.f32.mxu0 0.0
        %3925 = vmatmul.mubr.f32.gmra.mrb[0].mxu0 %v3721
        %v3926 = vpop.f32.mrb[0].mxu0
        %v3927 = vadd.f32 0.0, %v3926
        %v3928 = vpop.f32.mrb[0].mxu0
        %3929 = vmatprep.mubr.f32.mxu0 0.0
        %3930 = vmatmul.mubr.f32.gmra.mrb[0].mxu0 %v3720
        %v3931 = vpop.f32.mrb[0].mxu0
        %v3932 = vadd.f32 0.0, %v3931
        %v3933 = vpop.f32.mrb[0].mxu0
        %3934 = vmatprep.mubr.f32.mxu0 0.0
        %3935 = vmatmul.mubr.f32.gmra.mrb[0].mxu0 %v3719
        %v3936 = vpop.f32.mrb[0].mxu0
        %v3937 = vadd.f32 0.0, %v3936
        %v3938 = vpop.f32.mrb[0].mxu0
        %3939 = vmatprep.mubr.f32.mxu0 0.0
        %3940 = vmatmul.mubr.f32.gmra.mrb[0].mxu0 %v3742
        %v3941 = vpop.f32.mrb[0].mxu0
        %v3942 = vadd.f32 0.0, %v3941
        %v3943 = vpop.f32.mrb[0].mxu0
        %3944 = vdwg.mxu0
        %v3945 = vadd.f32 %v3577, %v3827
        %v3946 = vadd.f32 %v3582, %v3832
        %v3947 = vadd.f32 %v3587, %v3837
        %v3948 = vadd.f32 %v3592, %v3842
        %v3949 = vadd.f32 %v3597, %v3847
        %v3950 = vadd.f32 %v3602, %v3852
        %v3951 = vadd.f32 %v3607, %v3857
        %v3952 = vadd.f32 %v3612, %v3862
        %v3953 = vadd.f32 %v3617, %v3867
        %v3954 = vadd.f32 %v3622, %v3872
        %v3955 = vadd.f32 %v3627, %v3877
        %v3956 = vadd.f32 %v3632, %v3882
        %v3957 = vadd.f32 %v3637, %v3887
        %v3958 = vadd.f32 %v3642, %v3892
        %v3959 = vadd.f32 %v3647, %v3897
        %v3960 = vadd.f32 %v3652, %v3902
        %v3961 = vadd.f32 %v3657, %v3907
        %v3962 = vadd.f32 %v3662, %v3912
        %v3963 = vadd.f32 %v3667, %v3917
        %v3964 = vadd.f32 %v3672, %v3922
        %v3965 = vadd.f32 %v3677, %v3927
        %v3966 = vadd.f32 %v3682, %v3932
        %v3967 = vadd.f32 %v3687, %v3937
        %v3968 = vadd.f32 %v3692, %v3942
        %s3969 = scalar_lea.vmem %s3, 3
        %v3970 = vld [vmem:[%s3969] sm:$0x1]
        %v3972 = vlaneseq
        %v3973 = vshrl.u32 %v3972, 7
        %v3974 = vsub.s32 0, %v3973
        %v3975 = vrot.slane %v3970, %v3974
        %v3977 = vadd.f32 %v3945, %v3975
        %v3978 = vadd.f32 %v3946, %v3975
        %v3979 = vadd.f32 %v3947, %v3975
        %v3980 = vadd.f32 %v3948, %v3975
        %v3981 = vadd.f32 %v3949, %v3975
        %v3982 = vadd.f32 %v3950, %v3975
        %v3983 = vadd.f32 %v3951, %v3975
        %v3984 = vadd.f32 %v3952, %v3975
        %v3985 = vadd.f32 %v3953, %v3975
        %v3986 = vadd.f32 %v3954, %v3975
        %v3987 = vadd.f32 %v3955, %v3975
        %v3988 = vadd.f32 %v3956, %v3975
        %v3989 = vadd.f32 %v3957, %v3975
        %v3990 = vadd.f32 %v3958, %v3975
        %v3991 = vadd.f32 %v3959, %v3975
        %v3992 = vadd.f32 %v3960, %v3975
        %v3993 = vadd.f32 %v3961, %v3975
        %v3994 = vadd.f32 %v3962, %v3975
        %v3995 = vadd.f32 %v3963, %v3975
        %v3996 = vadd.f32 %v3964, %v3975
        %v3997 = vadd.f32 %v3965, %v3975
        %v3998 = vadd.f32 %v3966, %v3975
        %v3999 = vadd.f32 %v3967, %v3975
        %v4000 = vadd.f32 %v3968, %v3975
        %v4001 = vadd.f32 %v2267, %v3977
        %v4002 = vadd.f32 %v2268, %v3978
        %v4003 = vadd.f32 %v2269, %v3979
        %v4004 = vadd.f32 %v2270, %v3980
        %v4005 = vadd.f32 %v2271, %v3981
        %v4006 = vadd.f32 %v2272, %v3982
        %v4007 = vadd.f32 %v2273, %v3983
        %v4008 = vadd.f32 %v2274, %v3984
        %v4009 = vadd.f32 %v2275, %v3985
        %v4010 = vadd.f32 %v2276, %v3986
        %v4011 = vadd.f32 %v2277, %v3987
        %v4012 = vadd.f32 %v2278, %v3988
        %v4013 = vadd.f32 %v2279, %v3989
        %v4014 = vadd.f32 %v2280, %v3990
        %v4015 = vadd.f32 %v2281, %v3991
        %v4016 = vadd.f32 %v2282, %v3992
        %v4017 = vadd.f32 %v2283, %v3993
        %v4018 = vadd.f32 %v2284, %v3994
        %v4019 = vadd.f32 %v2285, %v3995
        %v4020 = vadd.f32 %v2286, %v3996
        %v4021 = vadd.f32 %v2287, %v3997
        %v4022 = vadd.f32 %v2288, %v3998
        %v4023 = vadd.f32 %v2289, %v3999
        %v4024 = vadd.f32 %v2290, %v4000
        %vm4025 = vcmp.ge.f32.partialorder %v4001, 0.0
        %vm4026 = vcmp.ge.f32.partialorder %v4002, 0.0
        %vm4027 = vcmp.ge.f32.partialorder %v4003, 0.0
        %vm4028 = vcmp.ge.f32.partialorder %v4004, 0.0
        %vm4029 = vcmp.ge.f32.partialorder %v4005, 0.0
        %vm4030 = vcmp.ge.f32.partialorder %v4006, 0.0
        %vm4031 = vcmp.ge.f32.partialorder %v4007, 0.0
        %vm4032 = vcmp.ge.f32.partialorder %v4008, 0.0
        %vm4033 = vcmp.ge.f32.partialorder %v4009, 0.0
        %vm4034 = vcmp.ge.f32.partialorder %v4010, 0.0
        %vm4035 = vcmp.ge.f32.partialorder %v4011, 0.0
        %vm4036 = vcmp.ge.f32.partialorder %v4012, 0.0
        %vm4037 = vcmp.ge.f32.partialorder %v4013, 0.0
        %vm4038 = vcmp.ge.f32.partialorder %v4014, 0.0
        %vm4039 = vcmp.ge.f32.partialorder %v4015, 0.0
        %vm4040 = vcmp.ge.f32.partialorder %v4016, 0.0
        %vm4041 = vcmp.ge.f32.partialorder %v4017, 0.0
        %vm4042 = vcmp.ge.f32.partialorder %v4018, 0.0
        %vm4043 = vcmp.ge.f32.partialorder %v4019, 0.0
        %vm4044 = vcmp.ge.f32.partialorder %v4020, 0.0
        %vm4045 = vcmp.ge.f32.partialorder %v4021, 0.0
        %vm4046 = vcmp.ge.f32.partialorder %v4022, 0.0
        %vm4047 = vcmp.ge.f32.partialorder %v4023, 0.0
        %vm4048 = vcmp.ge.f32.partialorder %v4024, 0.0
        %v4049 = vmul.f32 %v4001, 0.1
        %v4050 = vmul.f32 %v4002, 0.1
        %v4051 = vmul.f32 %v4003, 0.1
        %v4052 = vmul.f32 %v4004, 0.1
        %v4053 = vmul.f32 %v4005, 0.1
        %v4054 = vmul.f32 %v4006, 0.1
        %v4055 = vmul.f32 %v4007, 0.1
        %v4056 = vmul.f32 %v4008, 0.1
        %v4057 = vmul.f32 %v4009, 0.1
        %v4058 = vmul.f32 %v4010, 0.1
        %v4059 = vmul.f32 %v4011, 0.1
        %v4060 = vmul.f32 %v4012, 0.1
        %v4061 = vmul.f32 %v4013, 0.1
        %v4062 = vmul.f32 %v4014, 0.1
        %v4063 = vmul.f32 %v4015, 0.1
        %v4064 = vmul.f32 %v4016, 0.1
        %v4065 = vmul.f32 %v4017, 0.1
        %v4066 = vmul.f32 %v4018, 0.1
        %v4067 = vmul.f32 %v4019, 0.1
        %v4068 = vmul.f32 %v4020, 0.1
        %v4069 = vmul.f32 %v4021, 0.1
        %v4070 = vmul.f32 %v4022, 0.1
        %v4071 = vmul.f32 %v4023, 0.1
        %v4072 = vmul.f32 %v4024, 0.1
        %v4073 = vsel %vm4025, %v4001, %v4049
        %v4074 = vsel %vm4026, %v4002, %v4050
        %v4075 = vsel %vm4027, %v4003, %v4051
        %v4076 = vsel %vm4028, %v4004, %v4052
        %v4077 = vsel %vm4029, %v4005, %v4053
        %v4078 = vsel %vm4030, %v4006, %v4054
        %v4079 = vsel %vm4031, %v4007, %v4055
        %v4080 = vsel %vm4032, %v4008, %v4056
        %v4081 = vsel %vm4033, %v4009, %v4057
        %v4082 = vsel %vm4034, %v4010, %v4058
        %v4083 = vsel %vm4035, %v4011, %v4059
        %v4084 = vsel %vm4036, %v4012, %v4060
        %v4085 = vsel %vm4037, %v4013, %v4061
        %v4086 = vsel %vm4038, %v4014, %v4062
        %v4087 = vsel %vm4039, %v4015, %v4063
        %v4088 = vsel %vm4040, %v4016, %v4064
        %v4089 = vsel %vm4041, %v4017, %v4065
        %v4090 = vsel %vm4042, %v4018, %v4066
        %v4091 = vsel %vm4043, %v4019, %v4067
        %v4092 = vsel %vm4044, %v4020, %v4068
        %v4093 = vsel %vm4045, %v4021, %v4069
        %v4094 = vsel %vm4046, %v4022, %v4070
        %v4095 = vsel %vm4047, %v4023, %v4071
        %v4096 = vsel %vm4048, %v4024, %v4072
        %v4097 = vsel %vm619, %v4073, 0.0
        %v4098 = vsel %vm620, %v4074, 0.0
        %v4099 = vsel %vm621, %v4075, 0.0
        %v4100 = vsel %vm622, %v4076, 0.0
        %v4101 = vsel %vm623, %v4077, 0.0
        %v4102 = vsel %vm624, %v4078, 0.0
        %v4103 = vsel %vm625, %v4079, 0.0
        %v4104 = vsel %vm626, %v4080, 0.0
        %v4105 = vsel %vm627, %v4081, 0.0
        %v4106 = vsel %vm628, %v4082, 0.0
        %v4107 = vsel %vm629, %v4083, 0.0
        %v4108 = vsel %vm630, %v4084, 0.0
        %v4109 = vsel %vm619, %v4085, 0.0
        %v4110 = vsel %vm620, %v4086, 0.0
        %v4111 = vsel %vm621, %v4087, 0.0
        %v4112 = vsel %vm622, %v4088, 0.0
        %v4113 = vsel %vm623, %v4089, 0.0
        %v4114 = vsel %vm624, %v4090, 0.0
        %v4115 = vsel %vm625, %v4091, 0.0
        %v4116 = vsel %vm626, %v4092, 0.0
        %v4117 = vsel %vm627, %v4093, 0.0
        %v4118 = vsel %vm628, %v4094, 0.0
        %v4119 = vsel %vm629, %v4095, 0.0
        %v4120 = vsel %vm630, %v4096, 0.0
        %v4121 = vrot.slane %v4097, 3
        %v4122 = vrot.slane %v4098, 3
        %v4123 = vrot.slane %v4099, 3
        %v4124 = vrot.slane %v4100, 3
        %v4125 = vrot.slane %v4101, 3
        %v4126 = vrot.slane %v4102, 3
        %v4127 = vrot.slane %v4103, 3
        %v4128 = vrot.slane %v4104, 3
        %v4129 = vrot.slane %v4105, 3
        %v4130 = vrot.slane %v4106, 3
        %v4131 = vrot.slane %v4107, 3
        %v4132 = vrot.slane %v4108, 3
        %v4133 = vrot.slane %v4109, 3
        %v4134 = vrot.slane %v4110, 3
        %v4135 = vrot.slane %v4111, 3
        %v4136 = vrot.slane %v4112, 3
        %v4137 = vrot.slane %v4113, 3
        %v4138 = vrot.slane %v4114, 3
        %v4139 = vrot.slane %v4115, 3
        %v4140 = vrot.slane %v4116, 3
        %v4141 = vrot.slane %v4117, 3
        %v4142 = vrot.slane %v4118, 3
        %v4143 = vrot.slane %v4119, 3
        %v4144 = vrot.slane %v4120, 3
        %v4145 = vsel %vm2864, %v4143, %v4144
        %v4146 = vsel %vm2864, %v4142, %v4143
        %v4147 = vsel %vm2864, %v4141, %v4142
        %v4148 = vsel %vm2864, %v4140, %v4141
        %v4149 = vsel %vm2864, %v4139, %v4140
        %v4150 = vsel %vm2864, %v4138, %v4139
        %v4151 = vsel %vm2864, %v4137, %v4138
        %v4152 = vsel %vm2864, %v4136, %v4137
        %v4153 = vsel %vm2864, %v4135, %v4136
        %v4154 = vsel %vm2864, %v4134, %v4135
        %v4155 = vsel %vm2864, %v4133, %v4134
        %v4156 = vsel %vm2864, %v4132, %v4133
        %v4157 = vsel %vm2864, %v4131, %v4132
        %v4158 = vsel %vm2864, %v4130, %v4131
        %v4159 = vsel %vm2864, %v4129, %v4130
        %v4160 = vsel %vm2864, %v4128, %v4129
        %v4161 = vsel %vm2864, %v4127, %v4128
        %v4162 = vsel %vm2864, %v4126, %v4127
        %v4163 = vsel %vm2864, %v4125, %v4126
        %v4164 = vsel %vm2864, %v4124, %v4125
        %v4165 = vsel %vm2864, %v4123, %v4124
        %v4166 = vsel %vm2864, %v4122, %v4123
        %v4167 = vsel %vm2864, %v4121, %v4122
        %v4168 = vsel %vm2864, %v4144, %v4121
        %s4169 = scalar_lea.vmem %s2, 1536
        %v4170 = vld [vmem:[%s4169] sm:$0xff]
        %v4171 = vld [vmem:[%s4169 + $0x8] sm:$0xff]
        %v4172 = vld [vmem:[%s4169 + $0x10] sm:$0xff]
        %v4173 = vld [vmem:[%s4169 + $0x18] sm:$0xff]
        %v4174 = vld [vmem:[%s4169 + $0x20] sm:$0xff]
        %v4175 = vld [vmem:[%s4169 + $0x28] sm:$0xff]
        %v4176 = vld [vmem:[%s4169 + $0x30] sm:$0xff]
        %v4177 = vld [vmem:[%s4169 + $0x38] sm:$0xff]
        %v4178 = vld [vmem:[%s4169 + $0x40] sm:$0xff]
        %v4179 = vld [vmem:[%s4169 + $0x48] sm:$0xff]
        %v4180 = vld [vmem:[%s4169 + $0x50] sm:$0xff]
        %v4181 = vld [vmem:[%s4169 + $0x58] sm:$0xff]
        %v4182 = vld [vmem:[%s4169 + $0x60] sm:$0xff]
        %v4183 = vld [vmem:[%s4169 + $0x68] sm:$0xff]
        %v4184 = vld [vmem:[%s4169 + $0x70] sm:$0xff]
        %v4185 = vld [vmem:[%s4169 + $0x78] sm:$0xff]
        %s4186 = scalar_lea.vmem %s2, 1664
        %v4187 = vld [vmem:[%s4186] sm:$0xff]
        %v4188 = vld [vmem:[%s4186 + $0x8] sm:$0xff]
        %v4189 = vld [vmem:[%s4186 + $0x10] sm:$0xff]
        %v4190 = vld [vmem:[%s4186 + $0x18] sm:$0xff]
        %v4191 = vld [vmem:[%s4186 + $0x20] sm:$0xff]
        %v4192 = vld [vmem:[%s4186 + $0x28] sm:$0xff]
        %v4193 = vld [vmem:[%s4186 + $0x30] sm:$0xff]
        %v4194 = vld [vmem:[%s4186 + $0x38] sm:$0xff]
        %v4195 = vld [vmem:[%s4186 + $0x40] sm:$0xff]
        %v4196 = vld [vmem:[%s4186 + $0x48] sm:$0xff]
        %v4197 = vld [vmem:[%s4186 + $0x50] sm:$0xff]
        %v4198 = vld [vmem:[%s4186 + $0x58] sm:$0xff]
        %v4199 = vld [vmem:[%s4186 + $0x60] sm:$0xff]
        %v4200 = vld [vmem:[%s4186 + $0x68] sm:$0xff]
        %v4201 = vld [vmem:[%s4186 + $0x70] sm:$0xff]
        %v4202 = vld [vmem:[%s4186 + $0x78] sm:$0xff]
        %4203 = vmatprep.subr.mxu0 0.0
        %4204 = vmatpush1.msra.mxu0 %v4187
        %4205 = vmatprep.subr.mxu0 0.0
        %4206 = vmatpush1.msra.mxu0 %v4188
        %4207 = vmatprep.subr.mxu0 0.0
        %4208 = vmatpush1.msra.mxu0 %v4189
        %4209 = vmatprep.subr.mxu0 0.0
        %4210 = vmatpush1.msra.mxu0 %v4190
        %4211 = vmatprep.subr.mxu0 0.0
        %4212 = vmatpush1.msra.mxu0 %v4191
        %4213 = vmatprep.subr.mxu0 0.0
        %4214 = vmatpush1.msra.mxu0 %v4192
        %4215 = vmatprep.subr.mxu0 0.0
        %4216 = vmatpush1.msra.mxu0 %v4193
        %4217 = vmatprep.subr.mxu0 0.0
        %4218 = vmatpush1.msra.mxu0 %v4194
        %4219 = vmatprep.subr.mxu0 0.0
        %4220 = vmatpush1.msra.mxu0 %v4195
        %4221 = vmatprep.subr.mxu0 0.0
        %4222 = vmatpush1.msra.mxu0 %v4196
        %4223 = vmatprep.subr.mxu0 0.0
        %4224 = vmatpush1.msra.mxu0 %v4197
        %4225 = vmatprep.subr.mxu0 0.0
        %4226 = vmatpush1.msra.mxu0 %v4198
        %4227 = vmatprep.subr.mxu0 0.0
        %4228 = vmatpush1.msra.mxu0 %v4199
        %4229 = vmatprep.subr.mxu0 0.0
        %4230 = vmatpush1.msra.mxu0 %v4200
        %4231 = vmatprep.subr.mxu0 0.0
        %4232 = vmatpush1.msra.mxu0 %v4201
        %4233 = vmatprep.subr.mxu0 0.0
        %4234 = vmatpush1.msra.mxu0 %v4202
        %4235 = vmatprep.subr.mxu0 0.0
        %4236 = vmatpush1.msra.mxu0 0.0
        %4237 = vmatprep.subr.mxu0 0.0
        %4238 = vmatpush1.msra.mxu0 0.0
        %4239 = vmatprep.subr.mxu0 0.0
        %4240 = vmatpush1.msra.mxu0 0.0
        %4241 = vmatprep.subr.mxu0 0.0
        %4242 = vmatpush1.msra.mxu0 0.0
        %4243 = vmatprep.subr.mxu0 0.0
        %4244 = vmatpush1.msra.mxu0 0.0
        %4245 = vmatprep.subr.mxu0 0.0
        %4246 = vmatpush1.msra.mxu0 0.0
        %4247 = vmatprep.subr.mxu0 0.0
        %4248 = vmatpush1.msra.mxu0 0.0
        %4249 = vmatprep.subr.mxu0 0.0
        %4250 = vmatpush1.msra.mxu0 0.0
        %4251 = vmatprep.subr.mxu0 0.0
        %4252 = vmatpush1.msra.mxu0 0.0
        %4253 = vmatprep.subr.mxu0 0.0
        %4254 = vmatpush1.msra.mxu0 0.0
        %4255 = vmatprep.subr.mxu0 0.0
        %4256 = vmatpush1.msra.mxu0 0.0
        %4257 = vmatprep.subr.mxu0 0.0
        %4258 = vmatpush1.msra.mxu0 0.0
        %4259 = vmatprep.subr.mxu0 0.0
        %4260 = vmatpush1.msra.mxu0 0.0
        %4261 = vmatprep.subr.mxu0 0.0
        %4262 = vmatpush1.msra.mxu0 0.0
        %4263 = vmatprep.subr.mxu0 0.0
        %4264 = vmatpush1.msra.mxu0 0.0
        %4265 = vmatprep.subr.mxu0 0.0
        %4266 = vmatpush1.msra.mxu0 0.0
        %4267 = vmatprep.mubr.f32.mxu0 0.0
        %4268 = vmatmul.mubr.f32.gmra.mrb[0].mxu0 %v4097
        %v4269 = vpop.f32.mrb[0].mxu0
        %v4270 = vadd.f32 0.0, %v4269
        %v4271 = vpop.f32.mrb[0].mxu0
        %4272 = vmatprep.mubr.f32.mxu0 0.0
        %4273 = vmatmul.mubr.f32.gmra.mrb[0].mxu0 %v4098
        %v4274 = vpop.f32.mrb[0].mxu0
        %v4275 = vadd.f32 0.0, %v4274
        %v4276 = vpop.f32.mrb[0].mxu0
        %4277 = vmatprep.mubr.f32.mxu0 0.0
        %4278 = vmatmul.mubr.f32.gmra.mrb[0].mxu0 %v4099
        %v4279 = vpop.f32.mrb[0].mxu0
        %v4280 = vadd.f32 0.0, %v4279
        %v4281 = vpop.f32.mrb[0].mxu0
        %4282 = vmatprep.mubr.f32.mxu0 0.0
        %4283 = vmatmul.mubr.f32.gmra.mrb[0].mxu0 %v4100
        %v4284 = vpop.f32.mrb[0].mxu0
        %v4285 = vadd.f32 0.0, %v4284
        %v4286 = vpop.f32.mrb[0].mxu0
        %4287 = vmatprep.mubr.f32.mxu0 0.0
        %4288 = vmatmul.mubr.f32.gmra.mrb[0].mxu0 %v4101
        %v4289 = vpop.f32.mrb[0].mxu0
        %v4290 = vadd.f32 0.0, %v4289
        %v4291 = vpop.f32.mrb[0].mxu0
        %4292 = vmatprep.mubr.f32.mxu0 0.0
        %4293 = vmatmul.mubr.f32.gmra.mrb[0].mxu0 %v4102
        %v4294 = vpop.f32.mrb[0].mxu0
        %v4295 = vadd.f32 0.0, %v4294
        %v4296 = vpop.f32.mrb[0].mxu0
        %4297 = vmatprep.mubr.f32.mxu0 0.0
        %4298 = vmatmul.mubr.f32.gmra.mrb[0].mxu0 %v4103
        %v4299 = vpop.f32.mrb[0].mxu0
        %v4300 = vadd.f32 0.0, %v4299
        %v4301 = vpop.f32.mrb[0].mxu0
        %4302 = vmatprep.mubr.f32.mxu0 0.0
        %4303 = vmatmul.mubr.f32.gmra.mrb[0].mxu0 %v4104
        %v4304 = vpop.f32.mrb[0].mxu0
        %v4305 = vadd.f32 0.0, %v4304
        %v4306 = vpop.f32.mrb[0].mxu0
        %4307 = vmatprep.mubr.f32.mxu0 0.0
        %4308 = vmatmul.mubr.f32.gmra.mrb[0].mxu0 %v4105
        %v4309 = vpop.f32.mrb[0].mxu0
        %v4310 = vadd.f32 0.0, %v4309
        %v4311 = vpop.f32.mrb[0].mxu0
        %4312 = vmatprep.mubr.f32.mxu0 0.0
        %4313 = vmatmul.mubr.f32.gmra.mrb[0].mxu0 %v4106
        %v4314 = vpop.f32.mrb[0].mxu0
        %v4315 = vadd.f32 0.0, %v4314
        %v4316 = vpop.f32.mrb[0].mxu0
        %4317 = vmatprep.mubr.f32.mxu0 0.0
        %4318 = vmatmul.mubr.f32.gmra.mrb[0].mxu0 %v4107
        %v4319 = vpop.f32.mrb[0].mxu0
        %v4320 = vadd.f32 0.0, %v4319
        %v4321 = vpop.f32.mrb[0].mxu0
        %4322 = vmatprep.mubr.f32.mxu0 0.0
        %4323 = vmatmul.mubr.f32.gmra.mrb[0].mxu0 %v4108
        %v4324 = vpop.f32.mrb[0].mxu0
        %v4325 = vadd.f32 0.0, %v4324
        %v4326 = vpop.f32.mrb[0].mxu0
        %4327 = vmatprep.mubr.f32.mxu0 0.0
        %4328 = vmatmul.mubr.f32.gmra.mrb[0].mxu0 %v4109
        %v4329 = vpop.f32.mrb[0].mxu0
        %v4330 = vadd.f32 0.0, %v4329
        %v4331 = vpop.f32.mrb[0].mxu0
        %4332 = vmatprep.mubr.f32.mxu0 0.0
        %4333 = vmatmul.mubr.f32.gmra.mrb[0].mxu0 %v4110
        %v4334 = vpop.f32.mrb[0].mxu0
        %v4335 = vadd.f32 0.0, %v4334
        %v4336 = vpop.f32.mrb[0].mxu0
        %4337 = vmatprep.mubr.f32.mxu0 0.0
        %4338 = vmatmul.mubr.f32.gmra.mrb[0].mxu0 %v4111
        %v4339 = vpop.f32.mrb[0].mxu0
        %v4340 = vadd.f32 0.0, %v4339
        %v4341 = vpop.f32.mrb[0].mxu0
        %4342 = vmatprep.mubr.f32.mxu0 0.0
        %4343 = vmatmul.mubr.f32.gmra.mrb[0].mxu0 %v4112
        %v4344 = vpop.f32.mrb[0].mxu0
        %v4345 = vadd.f32 0.0, %v4344
        %v4346 = vpop.f32.mrb[0].mxu0
        %4347 = vmatprep.mubr.f32.mxu0 0.0
        %4348 = vmatmul.mubr.f32.gmra.mrb[0].mxu0 %v4113
        %v4349 = vpop.f32.mrb[0].mxu0
        %v4350 = vadd.f32 0.0, %v4349
        %v4351 = vpop.f32.mrb[0].mxu0
        %4352 = vmatprep.mubr.f32.mxu0 0.0
        %4353 = vmatmul.mubr.f32.gmra.mrb[0].mxu0 %v4114
        %v4354 = vpop.f32.mrb[0].mxu0
        %v4355 = vadd.f32 0.0, %v4354
        %v4356 = vpop.f32.mrb[0].mxu0
        %4357 = vmatprep.mubr.f32.mxu0 0.0
        %4358 = vmatmul.mubr.f32.gmra.mrb[0].mxu0 %v4115
        %v4359 = vpop.f32.mrb[0].mxu0
        %v4360 = vadd.f32 0.0, %v4359
        %v4361 = vpop.f32.mrb[0].mxu0
        %4362 = vmatprep.mubr.f32.mxu0 0.0
        %4363 = vmatmul.mubr.f32.gmra.mrb[0].mxu0 %v4116
        %v4364 = vpop.f32.mrb[0].mxu0
        %v4365 = vadd.f32 0.0, %v4364
        %v4366 = vpop.f32.mrb[0].mxu0
        %4367 = vmatprep.mubr.f32.mxu0 0.0
        %4368 = vmatmul.mubr.f32.gmra.mrb[0].mxu0 %v4117
        %v4369 = vpop.f32.mrb[0].mxu0
        %v4370 = vadd.f32 0.0, %v4369
        %v4371 = vpop.f32.mrb[0].mxu0
        %4372 = vmatprep.mubr.f32.mxu0 0.0
        %4373 = vmatmul.mubr.f32.gmra.mrb[0].mxu0 %v4118
        %v4374 = vpop.f32.mrb[0].mxu0
        %v4375 = vadd.f32 0.0, %v4374
        %v4376 = vpop.f32.mrb[0].mxu0
        %4377 = vmatprep.mubr.f32.mxu0 0.0
        %4378 = vmatmul.mubr.f32.gmra.mrb[0].mxu0 %v4119
        %v4379 = vpop.f32.mrb[0].mxu0
        %v4380 = vadd.f32 0.0, %v4379
        %v4381 = vpop.f32.mrb[0].mxu0
        %4382 = vmatprep.mubr.f32.mxu0 0.0
        %4383 = vmatmul.mubr.f32.gmra.mrb[0].mxu0 %v4120
        %v4384 = vpop.f32.mrb[0].mxu0
        %v4385 = vadd.f32 0.0, %v4384
        %v4386 = vpop.f32.mrb[0].mxu0
        %4387 = vdwg.mxu0
        %4388 = vmatprep.subr.mxu0 0.0
        %4389 = vmatpush1.msra.mxu0 %v4170
        %4390 = vmatprep.subr.mxu0 0.0
        %4391 = vmatpush1.msra.mxu0 %v4171
        %4392 = vmatprep.subr.mxu0 0.0
        %4393 = vmatpush1.msra.mxu0 %v4172
        %4394 = vmatprep.subr.mxu0 0.0
        %4395 = vmatpush1.msra.mxu0 %v4173
        %4396 = vmatprep.subr.mxu0 0.0
        %4397 = vmatpush1.msra.mxu0 %v4174
        %4398 = vmatprep.subr.mxu0 0.0
        %4399 = vmatpush1.msra.mxu0 %v4175
        %4400 = vmatprep.subr.mxu0 0.0
        %4401 = vmatpush1.msra.mxu0 %v4176
        %4402 = vmatprep.subr.mxu0 0.0
        %4403 = vmatpush1.msra.mxu0 %v4177
        %4404 = vmatprep.subr.mxu0 0.0
        %4405 = vmatpush1.msra.mxu0 %v4178
        %4406 = vmatprep.subr.mxu0 0.0
        %4407 = vmatpush1.msra.mxu0 %v4179
        %4408 = vmatprep.subr.mxu0 0.0
        %4409 = vmatpush1.msra.mxu0 %v4180
        %4410 = vmatprep.subr.mxu0 0.0
        %4411 = vmatpush1.msra.mxu0 %v4181
        %4412 = vmatprep.subr.mxu0 0.0
        %4413 = vmatpush1.msra.mxu0 %v4182
        %4414 = vmatprep.subr.mxu0 0.0
        %4415 = vmatpush1.msra.mxu0 %v4183
        %4416 = vmatprep.subr.mxu0 0.0
        %4417 = vmatpush1.msra.mxu0 %v4184
        %4418 = vmatprep.subr.mxu0 0.0
        %4419 = vmatpush1.msra.mxu0 %v4185
        %4420 = vmatprep.subr.mxu0 0.0
        %4421 = vmatpush1.msra.mxu0 0.0
        %4422 = vmatprep.subr.mxu0 0.0
        %4423 = vmatpush1.msra.mxu0 0.0
        %4424 = vmatprep.subr.mxu0 0.0
        %4425 = vmatpush1.msra.mxu0 0.0
        %4426 = vmatprep.subr.mxu0 0.0
        %4427 = vmatpush1.msra.mxu0 0.0
        %4428 = vmatprep.subr.mxu0 0.0
        %4429 = vmatpush1.msra.mxu0 0.0
        %4430 = vmatprep.subr.mxu0 0.0
        %4431 = vmatpush1.msra.mxu0 0.0
        %4432 = vmatprep.subr.mxu0 0.0
        %4433 = vmatpush1.msra.mxu0 0.0
        %4434 = vmatprep.subr.mxu0 0.0
        %4435 = vmatpush1.msra.mxu0 0.0
        %4436 = vmatprep.subr.mxu0 0.0
        %4437 = vmatpush1.msra.mxu0 0.0
        %4438 = vmatprep.subr.mxu0 0.0
        %4439 = vmatpush1.msra.mxu0 0.0
        %4440 = vmatprep.subr.mxu0 0.0
        %4441 = vmatpush1.msra.mxu0 0.0
        %4442 = vmatprep.subr.mxu0 0.0
        %4443 = vmatpush1.msra.mxu0 0.0
        %4444 = vmatprep.subr.mxu0 0.0
        %4445 = vmatpush1.msra.mxu0 0.0
        %4446 = vmatprep.subr.mxu0 0.0
        %4447 = vmatpush1.msra.mxu0 0.0
        %4448 = vmatprep.subr.mxu0 0.0
        %4449 = vmatpush1.msra.mxu0 0.0
        %4450 = vmatprep.subr.mxu0 0.0
        %4451 = vmatpush1.msra.mxu0 0.0
        %4452 = vmatprep.mubr.f32.mxu0 0.0
        %4453 = vmatmul.mubr.f32.gmra.mrb[0].mxu0 %v4168
        %v4454 = vpop.f32.mrb[0].mxu0
        %v4455 = vadd.f32 %v4270, %v4454
        %v4456 = vpop.f32.mrb[0].mxu0
        %4457 = vmatprep.mubr.f32.mxu0 0.0
        %4458 = vmatmul.mubr.f32.gmra.mrb[0].mxu0 %v4167
        %v4459 = vpop.f32.mrb[0].mxu0
        %v4460 = vadd.f32 %v4275, %v4459
        %v4461 = vpop.f32.mrb[0].mxu0
        %4462 = vmatprep.mubr.f32.mxu0 0.0
        %4463 = vmatmul.mubr.f32.gmra.mrb[0].mxu0 %v4166
        %v4464 = vpop.f32.mrb[0].mxu0
        %v4465 = vadd.f32 %v4280, %v4464
        %v4466 = vpop.f32.mrb[0].mxu0
        %4467 = vmatprep.mubr.f32.mxu0 0.0
        %4468 = vmatmul.mubr.f32.gmra.mrb[0].mxu0 %v4165
        %v4469 = vpop.f32.mrb[0].mxu0
        %v4470 = vadd.f32 %v4285, %v4469
        %v4471 = vpop.f32.mrb[0].mxu0
        %4472 = vmatprep.mubr.f32.mxu0 0.0
        %4473 = vmatmul.mubr.f32.gmra.mrb[0].mxu0 %v4164
        %v4474 = vpop.f32.mrb[0].mxu0
        %v4475 = vadd.f32 %v4290, %v4474
        %v4476 = vpop.f32.mrb[0].mxu0
        %4477 = vmatprep.mubr.f32.mxu0 0.0
        %4478 = vmatmul.mubr.f32.gmra.mrb[0].mxu0 %v4163
        %v4479 = vpop.f32.mrb[0].mxu0
        %v4480 = vadd.f32 %v4295, %v4479
        %v4481 = vpop.f32.mrb[0].mxu0
        %4482 = vmatprep.mubr.f32.mxu0 0.0
        %4483 = vmatmul.mubr.f32.gmra.mrb[0].mxu0 %v4162
        %v4484 = vpop.f32.mrb[0].mxu0
        %v4485 = vadd.f32 %v4300, %v4484
        %v4486 = vpop.f32.mrb[0].mxu0
        %4487 = vmatprep.mubr.f32.mxu0 0.0
        %4488 = vmatmul.mubr.f32.gmra.mrb[0].mxu0 %v4161
        %v4489 = vpop.f32.mrb[0].mxu0
        %v4490 = vadd.f32 %v4305, %v4489
        %v4491 = vpop.f32.mrb[0].mxu0
        %4492 = vmatprep.mubr.f32.mxu0 0.0
        %4493 = vmatmul.mubr.f32.gmra.mrb[0].mxu0 %v4160
        %v4494 = vpop.f32.mrb[0].mxu0
        %v4495 = vadd.f32 %v4310, %v4494
        %v4496 = vpop.f32.mrb[0].mxu0
        %4497 = vmatprep.mubr.f32.mxu0 0.0
        %4498 = vmatmul.mubr.f32.gmra.mrb[0].mxu0 %v4159
        %v4499 = vpop.f32.mrb[0].mxu0
        %v4500 = vadd.f32 %v4315, %v4499
        %v4501 = vpop.f32.mrb[0].mxu0
        %4502 = vmatprep.mubr.f32.mxu0 0.0
        %4503 = vmatmul.mubr.f32.gmra.mrb[0].mxu0 %v4158
        %v4504 = vpop.f32.mrb[0].mxu0
        %v4505 = vadd.f32 %v4320, %v4504
        %v4506 = vpop.f32.mrb[0].mxu0
        %4507 = vmatprep.mubr.f32.mxu0 0.0
        %4508 = vmatmul.mubr.f32.gmra.mrb[0].mxu0 %v4157
        %v4509 = vpop.f32.mrb[0].mxu0
        %v4510 = vadd.f32 %v4325, %v4509
        %v4511 = vpop.f32.mrb[0].mxu0
        %4512 = vmatprep.mubr.f32.mxu0 0.0
        %4513 = vmatmul.mubr.f32.gmra.mrb[0].mxu0 %v4156
        %v4514 = vpop.f32.mrb[0].mxu0
        %v4515 = vadd.f32 %v4330, %v4514
        %v4516 = vpop.f32.mrb[0].mxu0
        %4517 = vmatprep.mubr.f32.mxu0 0.0
        %4518 = vmatmul.mubr.f32.gmra.mrb[0].mxu0 %v4155
        %v4519 = vpop.f32.mrb[0].mxu0
        %v4520 = vadd.f32 %v4335, %v4519
        %v4521 = vpop.f32.mrb[0].mxu0
        %4522 = vmatprep.mubr.f32.mxu0 0.0
        %4523 = vmatmul.mubr.f32.gmra.mrb[0].mxu0 %v4154
        %v4524 = vpop.f32.mrb[0].mxu0
        %v4525 = vadd.f32 %v4340, %v4524
        %v4526 = vpop.f32.mrb[0].mxu0
        %4527 = vmatprep.mubr.f32.mxu0 0.0
        %4528 = vmatmul.mubr.f32.gmra.mrb[0].mxu0 %v4153
        %v4529 = vpop.f32.mrb[0].mxu0
        %v4530 = vadd.f32 %v4345, %v4529
        %v4531 = vpop.f32.mrb[0].mxu0
        %4532 = vmatprep.mubr.f32.mxu0 0.0
        %4533 = vmatmul.mubr.f32.gmra.mrb[0].mxu0 %v4152
        %v4534 = vpop.f32.mrb[0].mxu0
        %v4535 = vadd.f32 %v4350, %v4534
        %v4536 = vpop.f32.mrb[0].mxu0
        %4537 = vmatprep.mubr.f32.mxu0 0.0
        %4538 = vmatmul.mubr.f32.gmra.mrb[0].mxu0 %v4151
        %v4539 = vpop.f32.mrb[0].mxu0
        %v4540 = vadd.f32 %v4355, %v4539
        %v4541 = vpop.f32.mrb[0].mxu0
        %4542 = vmatprep.mubr.f32.mxu0 0.0
        %4543 = vmatmul.mubr.f32.gmra.mrb[0].mxu0 %v4150
        %v4544 = vpop.f32.mrb[0].mxu0
        %v4545 = vadd.f32 %v4360, %v4544
        %v4546 = vpop.f32.mrb[0].mxu0
        %4547 = vmatprep.mubr.f32.mxu0 0.0
        %4548 = vmatmul.mubr.f32.gmra.mrb[0].mxu0 %v4149
        %v4549 = vpop.f32.mrb[0].mxu0
        %v4550 = vadd.f32 %v4365, %v4549
        %v4551 = vpop.f32.mrb[0].mxu0
        %4552 = vmatprep.mubr.f32.mxu0 0.0
        %4553 = vmatmul.mubr.f32.gmra.mrb[0].mxu0 %v4148
        %v4554 = vpop.f32.mrb[0].mxu0
        %v4555 = vadd.f32 %v4370, %v4554
        %v4556 = vpop.f32.mrb[0].mxu0
        %4557 = vmatprep.mubr.f32.mxu0 0.0
        %4558 = vmatmul.mubr.f32.gmra.mrb[0].mxu0 %v4147
        %v4559 = vpop.f32.mrb[0].mxu0
        %v4560 = vadd.f32 %v4375, %v4559
        %v4561 = vpop.f32.mrb[0].mxu0
        %4562 = vmatprep.mubr.f32.mxu0 0.0
        %4563 = vmatmul.mubr.f32.gmra.mrb[0].mxu0 %v4146
        %v4564 = vpop.f32.mrb[0].mxu0
        %v4565 = vadd.f32 %v4380, %v4564
        %v4566 = vpop.f32.mrb[0].mxu0
        %4567 = vmatprep.mubr.f32.mxu0 0.0
        %4568 = vmatmul.mubr.f32.gmra.mrb[0].mxu0 %v4145
        %v4569 = vpop.f32.mrb[0].mxu0
        %v4570 = vadd.f32 %v4385, %v4569
        %v4571 = vpop.f32.mrb[0].mxu0
        %4572 = vdwg.mxu0
        %v4573 = vrot.slane %v4097, 5
        %v4574 = vrot.slane %v4098, 5
        %v4575 = vrot.slane %v4099, 5
        %v4576 = vrot.slane %v4100, 5
        %v4577 = vrot.slane %v4101, 5
        %v4578 = vrot.slane %v4102, 5
        %v4579 = vrot.slane %v4103, 5
        %v4580 = vrot.slane %v4104, 5
        %v4581 = vrot.slane %v4105, 5
        %v4582 = vrot.slane %v4106, 5
        %v4583 = vrot.slane %v4107, 5
        %v4584 = vrot.slane %v4108, 5
        %v4585 = vrot.slane %v4109, 5
        %v4586 = vrot.slane %v4110, 5
        %v4587 = vrot.slane %v4111, 5
        %v4588 = vrot.slane %v4112, 5
        %v4589 = vrot.slane %v4113, 5
        %v4590 = vrot.slane %v4114, 5
        %v4591 = vrot.slane %v4115, 5
        %v4592 = vrot.slane %v4116, 5
        %v4593 = vrot.slane %v4117, 5
        %v4594 = vrot.slane %v4118, 5
        %v4595 = vrot.slane %v4119, 5
        %v4596 = vrot.slane %v4120, 5
        %v4597 = vsel %vm2411, %v4595, %v4596
        %v4598 = vsel %vm2411, %v4594, %v4595
        %v4599 = vsel %vm2411, %v4593, %v4594
        %v4600 = vsel %vm2411, %v4592, %v4593
        %v4601 = vsel %vm2411, %v4591, %v4592
        %v4602 = vsel %vm2411, %v4590, %v4591
        %v4603 = vsel %vm2411, %v4589, %v4590
        %v4604 = vsel %vm2411, %v4588, %v4589
        %v4605 = vsel %vm2411, %v4587, %v4588
        %v4606 = vsel %vm2411, %v4586, %v4587
        %v4607 = vsel %vm2411, %v4585, %v4586
        %v4608 = vsel %vm2411, %v4584, %v4585
        %v4609 = vsel %vm2411, %v4583, %v4584
        %v4610 = vsel %vm2411, %v4582, %v4583
        %v4611 = vsel %vm2411, %v4581, %v4582
        %v4612 = vsel %vm2411, %v4580, %v4581
        %v4613 = vsel %vm2411, %v4579, %v4580
        %v4614 = vsel %vm2411, %v4578, %v4579
        %v4615 = vsel %vm2411, %v4577, %v4578
        %v4616 = vsel %vm2411, %v4576, %v4577
        %v4617 = vsel %vm2411, %v4575, %v4576
        %v4618 = vsel %vm2411, %v4574, %v4575
        %v4619 = vsel %vm2411, %v4573, %v4574
        %v4620 = vsel %vm2411, %v4596, %v4573
        %s4621 = scalar_lea.vmem %s2, 1792
        %v4622 = vld [vmem:[%s4621] sm:$0xff]
        %v4623 = vld [vmem:[%s4621 + $0x8] sm:$0xff]
        %v4624 = vld [vmem:[%s4621 + $0x10] sm:$0xff]
        %v4625 = vld [vmem:[%s4621 + $0x18] sm:$0xff]
        %v4626 = vld [vmem:[%s4621 + $0x20] sm:$0xff]
        %v4627 = vld [vmem:[%s4621 + $0x28] sm:$0xff]
        %v4628 = vld [vmem:[%s4621 + $0x30] sm:$0xff]
        %v4629 = vld [vmem:[%s4621 + $0x38] sm:$0xff]
        %v4630 = vld [vmem:[%s4621 + $0x40] sm:$0xff]
        %v4631 = vld [vmem:[%s4621 + $0x48] sm:$0xff]
        %v4632 = vld [vmem:[%s4621 + $0x50] sm:$0xff]
        %v4633 = vld [vmem:[%s4621 + $0x58] sm:$0xff]
        %v4634 = vld [vmem:[%s4621 + $0x60] sm:$0xff]
        %v4635 = vld [vmem:[%s4621 + $0x68] sm:$0xff]
        %v4636 = vld [vmem:[%s4621 + $0x70] sm:$0xff]
        %v4637 = vld [vmem:[%s4621 + $0x78] sm:$0xff]
        %4638 = vmatprep.subr.mxu0 0.0
        %4639 = vmatpush1.msra.mxu0 %v4622
        %4640 = vmatprep.subr.mxu0 0.0
        %4641 = vmatpush1.msra.mxu0 %v4623
        %4642 = vmatprep.subr.mxu0 0.0
        %4643 = vmatpush1.msra.mxu0 %v4624
        %4644 = vmatprep.subr.mxu0 0.0
        %4645 = vmatpush1.msra.mxu0 %v4625
        %4646 = vmatprep.subr.mxu0 0.0
        %4647 = vmatpush1.msra.mxu0 %v4626
        %4648 = vmatprep.subr.mxu0 0.0
        %4649 = vmatpush1.msra.mxu0 %v4627
        %4650 = vmatprep.subr.mxu0 0.0
        %4651 = vmatpush1.msra.mxu0 %v4628
        %4652 = vmatprep.subr.mxu0 0.0
        %4653 = vmatpush1.msra.mxu0 %v4629
        %4654 = vmatprep.subr.mxu0 0.0
        %4655 = vmatpush1.msra.mxu0 %v4630
        %4656 = vmatprep.subr.mxu0 0.0
        %4657 = vmatpush1.msra.mxu0 %v4631
        %4658 = vmatprep.subr.mxu0 0.0
        %4659 = vmatpush1.msra.mxu0 %v4632
        %4660 = vmatprep.subr.mxu0 0.0
        %4661 = vmatpush1.msra.mxu0 %v4633
        %4662 = vmatprep.subr.mxu0 0.0
        %4663 = vmatpush1.msra.mxu0 %v4634
        %4664 = vmatprep.subr.mxu0 0.0
        %4665 = vmatpush1.msra.mxu0 %v4635
        %4666 = vmatprep.subr.mxu0 0.0
        %4667 = vmatpush1.msra.mxu0 %v4636
        %4668 = vmatprep.subr.mxu0 0.0
        %4669 = vmatpush1.msra.mxu0 %v4637
        %4670 = vmatprep.subr.mxu0 0.0
        %4671 = vmatpush1.msra.mxu0 0.0
        %4672 = vmatprep.subr.mxu0 0.0
        %4673 = vmatpush1.msra.mxu0 0.0
        %4674 = vmatprep.subr.mxu0 0.0
        %4675 = vmatpush1.msra.mxu0 0.0
        %4676 = vmatprep.subr.mxu0 0.0
        %4677 = vmatpush1.msra.mxu0 0.0
        %4678 = vmatprep.subr.mxu0 0.0
        %4679 = vmatpush1.msra.mxu0 0.0
        %4680 = vmatprep.subr.mxu0 0.0
        %4681 = vmatpush1.msra.mxu0 0.0
        %4682 = vmatprep.subr.mxu0 0.0
        %4683 = vmatpush1.msra.mxu0 0.0
        %4684 = vmatprep.subr.mxu0 0.0
        %4685 = vmatpush1.msra.mxu0 0.0
        %4686 = vmatprep.subr.mxu0 0.0
        %4687 = vmatpush1.msra.mxu0 0.0
        %4688 = vmatprep.subr.mxu0 0.0
        %4689 = vmatpush1.msra.mxu0 0.0
        %4690 = vmatprep.subr.mxu0 0.0
        %4691 = vmatpush1.msra.mxu0 0.0
        %4692 = vmatprep.subr.mxu0 0.0
        %4693 = vmatpush1.msra.mxu0 0.0
        %4694 = vmatprep.subr.mxu0 0.0
        %4695 = vmatpush1.msra.mxu0 0.0
        %4696 = vmatprep.subr.mxu0 0.0
        %4697 = vmatpush1.msra.mxu0 0.0
        %4698 = vmatprep.subr.mxu0 0.0
        %4699 = vmatpush1.msra.mxu0 0.0
        %4700 = vmatprep.subr.mxu0 0.0
        %4701 = vmatpush1.msra.mxu0 0.0
        %4702 = vmatprep.mubr.f32.mxu0 0.0
        %4703 = vmatmul.mubr.f32.gmra.mrb[0].mxu0 %v4619
        %v4704 = vpop.f32.mrb[0].mxu0
        %v4705 = vadd.f32 0.0, %v4704
        %v4706 = vpop.f32.mrb[0].mxu0
        %4707 = vmatprep.mubr.f32.mxu0 0.0
        %4708 = vmatmul.mubr.f32.gmra.mrb[0].mxu0 %v4618
        %v4709 = vpop.f32.mrb[0].mxu0
        %v4710 = vadd.f32 0.0, %v4709
        %v4711 = vpop.f32.mrb[0].mxu0
        %4712 = vmatprep.mubr.f32.mxu0 0.0
        %4713 = vmatmul.mubr.f32.gmra.mrb[0].mxu0 %v4617
        %v4714 = vpop.f32.mrb[0].mxu0
        %v4715 = vadd.f32 0.0, %v4714
        %v4716 = vpop.f32.mrb[0].mxu0
        %4717 = vmatprep.mubr.f32.mxu0 0.0
        %4718 = vmatmul.mubr.f32.gmra.mrb[0].mxu0 %v4616
        %v4719 = vpop.f32.mrb[0].mxu0
        %v4720 = vadd.f32 0.0, %v4719
        %v4721 = vpop.f32.mrb[0].mxu0
        %4722 = vmatprep.mubr.f32.mxu0 0.0
        %4723 = vmatmul.mubr.f32.gmra.mrb[0].mxu0 %v4615
        %v4724 = vpop.f32.mrb[0].mxu0
        %v4725 = vadd.f32 0.0, %v4724
        %v4726 = vpop.f32.mrb[0].mxu0
        %4727 = vmatprep.mubr.f32.mxu0 0.0
        %4728 = vmatmul.mubr.f32.gmra.mrb[0].mxu0 %v4614
        %v4729 = vpop.f32.mrb[0].mxu0
        %v4730 = vadd.f32 0.0, %v4729
        %v4731 = vpop.f32.mrb[0].mxu0
        %4732 = vmatprep.mubr.f32.mxu0 0.0
        %4733 = vmatmul.mubr.f32.gmra.mrb[0].mxu0 %v4613
        %v4734 = vpop.f32.mrb[0].mxu0
        %v4735 = vadd.f32 0.0, %v4734
        %v4736 = vpop.f32.mrb[0].mxu0
        %4737 = vmatprep.mubr.f32.mxu0 0.0
        %4738 = vmatmul.mubr.f32.gmra.mrb[0].mxu0 %v4612
        %v4739 = vpop.f32.mrb[0].mxu0
        %v4740 = vadd.f32 0.0, %v4739
        %v4741 = vpop.f32.mrb[0].mxu0
        %4742 = vmatprep.mubr.f32.mxu0 0.0
        %4743 = vmatmul.mubr.f32.gmra.mrb[0].mxu0 %v4611
        %v4744 = vpop.f32.mrb[0].mxu0
        %v4745 = vadd.f32 0.0, %v4744
        %v4746 = vpop.f32.mrb[0].mxu0
        %4747 = vmatprep.mubr.f32.mxu0 0.0
        %4748 = vmatmul.mubr.f32.gmra.mrb[0].mxu0 %v4610
        %v4749 = vpop.f32.mrb[0].mxu0
        %v4750 = vadd.f32 0.0, %v4749
        %v4751 = vpop.f32.mrb[0].mxu0
        %4752 = vmatprep.mubr.f32.mxu0 0.0
        %4753 = vmatmul.mubr.f32.gmra.mrb[0].mxu0 %v4609
        %v4754 = vpop.f32.mrb[0].mxu0
        %v4755 = vadd.f32 0.0, %v4754
        %v4756 = vpop.f32.mrb[0].mxu0
        %4757 = vmatprep.mubr.f32.mxu0 0.0
        %4758 = vmatmul.mubr.f32.gmra.mrb[0].mxu0 %v4608
        %v4759 = vpop.f32.mrb[0].mxu0
        %v4760 = vadd.f32 0.0, %v4759
        %v4761 = vpop.f32.mrb[0].mxu0
        %4762 = vmatprep.mubr.f32.mxu0 0.0
        %4763 = vmatmul.mubr.f32.gmra.mrb[0].mxu0 %v4607
        %v4764 = vpop.f32.mrb[0].mxu0
        %v4765 = vadd.f32 0.0, %v4764
        %v4766 = vpop.f32.mrb[0].mxu0
        %4767 = vmatprep.mubr.f32.mxu0 0.0
        %4768 = vmatmul.mubr.f32.gmra.mrb[0].mxu0 %v4606
        %v4769 = vpop.f32.mrb[0].mxu0
        %v4770 = vadd.f32 0.0, %v4769
        %v4771 = vpop.f32.mrb[0].mxu0
        %4772 = vmatprep.mubr.f32.mxu0 0.0
        %4773 = vmatmul.mubr.f32.gmra.mrb[0].mxu0 %v4605
        %v4774 = vpop.f32.mrb[0].mxu0
        %v4775 = vadd.f32 0.0, %v4774
        %v4776 = vpop.f32.mrb[0].mxu0
        %4777 = vmatprep.mubr.f32.mxu0 0.0
        %4778 = vmatmul.mubr.f32.gmra.mrb[0].mxu0 %v4604
        %v4779 = vpop.f32.mrb[0].mxu0
        %v4780 = vadd.f32 0.0, %v4779
        %v4781 = vpop.f32.mrb[0].mxu0
        %4782 = vmatprep.mubr.f32.mxu0 0.0
        %4783 = vmatmul.mubr.f32.gmra.mrb[0].mxu0 %v4603
        %v4784 = vpop.f32.mrb[0].mxu0
        %v4785 = vadd.f32 0.0, %v4784
        %v4786 = vpop.f32.mrb[0].mxu0
        %4787 = vmatprep.mubr.f32.mxu0 0.0
        %4788 = vmatmul.mubr.f32.gmra.mrb[0].mxu0 %v4602
        %v4789 = vpop.f32.mrb[0].mxu0
        %v4790 = vadd.f32 0.0, %v4789
        %v4791 = vpop.f32.mrb[0].mxu0
        %4792 = vmatprep.mubr.f32.mxu0 0.0
        %4793 = vmatmul.mubr.f32.gmra.mrb[0].mxu0 %v4601
        %v4794 = vpop.f32.mrb[0].mxu0
        %v4795 = vadd.f32 0.0, %v4794
        %v4796 = vpop.f32.mrb[0].mxu0
        %4797 = vmatprep.mubr.f32.mxu0 0.0
        %4798 = vmatmul.mubr.f32.gmra.mrb[0].mxu0 %v4600
        %v4799 = vpop.f32.mrb[0].mxu0
        %v4800 = vadd.f32 0.0, %v4799
        %v4801 = vpop.f32.mrb[0].mxu0
        %4802 = vmatprep.mubr.f32.mxu0 0.0
        %4803 = vmatmul.mubr.f32.gmra.mrb[0].mxu0 %v4599
        %v4804 = vpop.f32.mrb[0].mxu0
        %v4805 = vadd.f32 0.0, %v4804
        %v4806 = vpop.f32.mrb[0].mxu0
        %4807 = vmatprep.mubr.f32.mxu0 0.0
        %4808 = vmatmul.mubr.f32.gmra.mrb[0].mxu0 %v4598
        %v4809 = vpop.f32.mrb[0].mxu0
        %v4810 = vadd.f32 0.0, %v4809
        %v4811 = vpop.f32.mrb[0].mxu0
        %4812 = vmatprep.mubr.f32.mxu0 0.0
        %4813 = vmatmul.mubr.f32.gmra.mrb[0].mxu0 %v4597
        %v4814 = vpop.f32.mrb[0].mxu0
        %v4815 = vadd.f32 0.0, %v4814
        %v4816 = vpop.f32.mrb[0].mxu0
        %4817 = vmatprep.mubr.f32.mxu0 0.0
        %4818 = vmatmul.mubr.f32.gmra.mrb[0].mxu0 %v4620
        %v4819 = vpop.f32.mrb[0].mxu0
        %v4820 = vadd.f32 0.0, %v4819
        %v4821 = vpop.f32.mrb[0].mxu0
        %4822 = vdwg.mxu0
        %v4823 = vadd.f32 %v4455, %v4705
        %v4824 = vadd.f32 %v4460, %v4710
        %v4825 = vadd.f32 %v4465, %v4715
        %v4826 = vadd.f32 %v4470, %v4720
        %v4827 = vadd.f32 %v4475, %v4725
        %v4828 = vadd.f32 %v4480, %v4730
        %v4829 = vadd.f32 %v4485, %v4735
        %v4830 = vadd.f32 %v4490, %v4740
        %v4831 = vadd.f32 %v4495, %v4745
        %v4832 = vadd.f32 %v4500, %v4750
        %v4833 = vadd.f32 %v4505, %v4755
        %v4834 = vadd.f32 %v4510, %v4760
        %v4835 = vadd.f32 %v4515, %v4765
        %v4836 = vadd.f32 %v4520, %v4770
        %v4837 = vadd.f32 %v4525, %v4775
        %v4838 = vadd.f32 %v4530, %v4780
        %v4839 = vadd.f32 %v4535, %v4785
        %v4840 = vadd.f32 %v4540, %v4790
        %v4841 = vadd.f32 %v4545, %v4795
        %v4842 = vadd.f32 %v4550, %v4800
        %v4843 = vadd.f32 %v4555, %v4805
        %v4844 = vadd.f32 %v4560, %v4810
        %v4845 = vadd.f32 %v4565, %v4815
        %v4846 = vadd.f32 %v4570, %v4820
        %s4847 = scalar_lea.vmem %s3, 4
        %v4848 = vld [vmem:[%s4847] sm:$0x1]
        %v4850 = vlaneseq
        %v4851 = vshrl.u32 %v4850, 7
        %v4852 = vsub.s32 0, %v4851
        %v4853 = vrot.slane %v4848, %v4852
        %v4855 = vadd.f32 %v4823, %v4853
        %v4856 = vadd.f32 %v4824, %v4853
        %v4857 = vadd.f32 %v4825, %v4853
        %v4858 = vadd.f32 %v4826, %v4853
        %v4859 = vadd.f32 %v4827, %v4853
        %v4860 = vadd.f32 %v4828, %v4853
        %v4861 = vadd.f32 %v4829, %v4853
        %v4862 = vadd.f32 %v4830, %v4853
        %v4863 = vadd.f32 %v4831, %v4853
        %v4864 = vadd.f32 %v4832, %v4853
        %v4865 = vadd.f32 %v4833, %v4853
        %v4866 = vadd.f32 %v4834, %v4853
        %v4867 = vadd.f32 %v4835, %v4853
        %v4868 = vadd.f32 %v4836, %v4853
        %v4869 = vadd.f32 %v4837, %v4853
        %v4870 = vadd.f32 %v4838, %v4853
        %v4871 = vadd.f32 %v4839, %v4853
        %v4872 = vadd.f32 %v4840, %v4853
        %v4873 = vadd.f32 %v4841, %v4853
        %v4874 = vadd.f32 %v4842, %v4853
        %v4875 = vadd.f32 %v4843, %v4853
        %v4876 = vadd.f32 %v4844, %v4853
        %v4877 = vadd.f32 %v4845, %v4853
        %v4878 = vadd.f32 %v4846, %v4853
        %vm4879 = vcmp.ge.f32.partialorder %v4855, 0.0
        %vm4880 = vcmp.ge.f32.partialorder %v4856, 0.0
        %vm4881 = vcmp.ge.f32.partialorder %v4857, 0.0
        %vm4882 = vcmp.ge.f32.partialorder %v4858, 0.0
        %vm4883 = vcmp.ge.f32.partialorder %v4859, 0.0
        %vm4884 = vcmp.ge.f32.partialorder %v4860, 0.0
        %vm4885 = vcmp.ge.f32.partialorder %v4861, 0.0
        %vm4886 = vcmp.ge.f32.partialorder %v4862, 0.0
        %vm4887 = vcmp.ge.f32.partialorder %v4863, 0.0
        %vm4888 = vcmp.ge.f32.partialorder %v4864, 0.0
        %vm4889 = vcmp.ge.f32.partialorder %v4865, 0.0
        %vm4890 = vcmp.ge.f32.partialorder %v4866, 0.0
        %vm4891 = vcmp.ge.f32.partialorder %v4867, 0.0
        %vm4892 = vcmp.ge.f32.partialorder %v4868, 0.0
        %vm4893 = vcmp.ge.f32.partialorder %v4869, 0.0
        %vm4894 = vcmp.ge.f32.partialorder %v4870, 0.0
        %vm4895 = vcmp.ge.f32.partialorder %v4871, 0.0
        %vm4896 = vcmp.ge.f32.partialorder %v4872, 0.0
        %vm4897 = vcmp.ge.f32.partialorder %v4873, 0.0
        %vm4898 = vcmp.ge.f32.partialorder %v4874, 0.0
        %vm4899 = vcmp.ge.f32.partialorder %v4875, 0.0
        %vm4900 = vcmp.ge.f32.partialorder %v4876, 0.0
        %vm4901 = vcmp.ge.f32.partialorder %v4877, 0.0
        %vm4902 = vcmp.ge.f32.partialorder %v4878, 0.0
        %v4903 = vmul.f32 %v4855, 0.1
        %v4904 = vmul.f32 %v4856, 0.1
        %v4905 = vmul.f32 %v4857, 0.1
        %v4906 = vmul.f32 %v4858, 0.1
        %v4907 = vmul.f32 %v4859, 0.1
        %v4908 = vmul.f32 %v4860, 0.1
        %v4909 = vmul.f32 %v4861, 0.1
        %v4910 = vmul.f32 %v4862, 0.1
        %v4911 = vmul.f32 %v4863, 0.1
        %v4912 = vmul.f32 %v4864, 0.1
        %v4913 = vmul.f32 %v4865, 0.1
        %v4914 = vmul.f32 %v4866, 0.1
        %v4915 = vmul.f32 %v4867, 0.1
        %v4916 = vmul.f32 %v4868, 0.1
        %v4917 = vmul.f32 %v4869, 0.1
        %v4918 = vmul.f32 %v4870, 0.1
        %v4919 = vmul.f32 %v4871, 0.1
        %v4920 = vmul.f32 %v4872, 0.1
        %v4921 = vmul.f32 %v4873, 0.1
        %v4922 = vmul.f32 %v4874, 0.1
        %v4923 = vmul.f32 %v4875, 0.1
        %v4924 = vmul.f32 %v4876, 0.1
        %v4925 = vmul.f32 %v4877, 0.1
        %v4926 = vmul.f32 %v4878, 0.1
        %v4927 = vsel %vm4879, %v4855, %v4903
        %v4928 = vsel %vm4880, %v4856, %v4904
        %v4929 = vsel %vm4881, %v4857, %v4905
        %v4930 = vsel %vm4882, %v4858, %v4906
        %v4931 = vsel %vm4883, %v4859, %v4907
        %v4932 = vsel %vm4884, %v4860, %v4908
        %v4933 = vsel %vm4885, %v4861, %v4909
        %v4934 = vsel %vm4886, %v4862, %v4910
        %v4935 = vsel %vm4887, %v4863, %v4911
        %v4936 = vsel %vm4888, %v4864, %v4912
        %v4937 = vsel %vm4889, %v4865, %v4913
        %v4938 = vsel %vm4890, %v4866, %v4914
        %v4939 = vsel %vm4891, %v4867, %v4915
        %v4940 = vsel %vm4892, %v4868, %v4916
        %v4941 = vsel %vm4893, %v4869, %v4917
        %v4942 = vsel %vm4894, %v4870, %v4918
        %v4943 = vsel %vm4895, %v4871, %v4919
        %v4944 = vsel %vm4896, %v4872, %v4920
        %v4945 = vsel %vm4897, %v4873, %v4921
        %v4946 = vsel %vm4898, %v4874, %v4922
        %v4947 = vsel %vm4899, %v4875, %v4923
        %v4948 = vsel %vm4900, %v4876, %v4924
        %v4949 = vsel %vm4901, %v4877, %v4925
        %v4950 = vsel %vm4902, %v4878, %v4926
        %v4951 = vsel %vm619, %v4927, 0.0
        %v4952 = vsel %vm620, %v4928, 0.0
        %v4953 = vsel %vm621, %v4929, 0.0
        %v4954 = vsel %vm622, %v4930, 0.0
        %v4955 = vsel %vm623, %v4931, 0.0
        %v4956 = vsel %vm624, %v4932, 0.0
        %v4957 = vsel %vm625, %v4933, 0.0
        %v4958 = vsel %vm626, %v4934, 0.0
        %v4959 = vsel %vm627, %v4935, 0.0
        %v4960 = vsel %vm628, %v4936, 0.0
        %v4961 = vsel %vm629, %v4937, 0.0
        %v4962 = vsel %vm630, %v4938, 0.0
        %v4963 = vsel %vm619, %v4939, 0.0
        %v4964 = vsel %vm620, %v4940, 0.0
        %v4965 = vsel %vm621, %v4941, 0.0
        %v4966 = vsel %vm622, %v4942, 0.0
        %v4967 = vsel %vm623, %v4943, 0.0
        %v4968 = vsel %vm624, %v4944, 0.0
        %v4969 = vsel %vm625, %v4945, 0.0
        %v4970 = vsel %vm626, %v4946, 0.0
        %v4971 = vsel %vm627, %v4947, 0.0
        %v4972 = vsel %vm628, %v4948, 0.0
        %v4973 = vsel %vm629, %v4949, 0.0
        %v4974 = vsel %vm630, %v4950, 0.0
        %v4975 = vrot.slane %v4951, 7
        %v4976 = vrot.slane %v4952, 7
        %v4977 = vrot.slane %v4953, 7
        %v4978 = vrot.slane %v4954, 7
        %v4979 = vrot.slane %v4955, 7
        %v4980 = vrot.slane %v4956, 7
        %v4981 = vrot.slane %v4957, 7
        %v4982 = vrot.slane %v4958, 7
        %v4983 = vrot.slane %v4959, 7
        %v4984 = vrot.slane %v4960, 7
        %v4985 = vrot.slane %v4961, 7
        %v4986 = vrot.slane %v4962, 7
        %v4987 = vrot.slane %v4963, 7
        %v4988 = vrot.slane %v4964, 7
        %v4989 = vrot.slane %v4965, 7
        %v4990 = vrot.slane %v4966, 7
        %v4991 = vrot.slane %v4967, 7
        %v4992 = vrot.slane %v4968, 7
        %v4993 = vrot.slane %v4969, 7
        %v4994 = vrot.slane %v4970, 7
        %v4995 = vrot.slane %v4971, 7
        %v4996 = vrot.slane %v4972, 7
        %v4997 = vrot.slane %v4973, 7
        %v4998 = vrot.slane %v4974, 7
        %v4999 = vsel %vm679, %v4997, %v4998
        %v5000 = vsel %vm679, %v4996, %v4997
        %v5001 = vsel %vm679, %v4995, %v4996
        %v5002 = vsel %vm679, %v4994, %v4995
        %v5003 = vsel %vm679, %v4993, %v4994
        %v5004 = vsel %vm679, %v4992, %v4993
        %v5005 = vsel %vm679, %v4991, %v4992
        %v5006 = vsel %vm679, %v4990, %v4991
        %v5007 = vsel %vm679, %v4989, %v4990
        %v5008 = vsel %vm679, %v4988, %v4989
        %v5009 = vsel %vm679, %v4987, %v4988
        %v5010 = vsel %vm679, %v4986, %v4987
        %v5011 = vsel %vm679, %v4985, %v4986
        %v5012 = vsel %vm679, %v4984, %v4985
        %v5013 = vsel %vm679, %v4983, %v4984
        %v5014 = vsel %vm679, %v4982, %v4983
        %v5015 = vsel %vm679, %v4981, %v4982
        %v5016 = vsel %vm679, %v4980, %v4981
        %v5017 = vsel %vm679, %v4979, %v4980
        %v5018 = vsel %vm679, %v4978, %v4979
        %v5019 = vsel %vm679, %v4977, %v4978
        %v5020 = vsel %vm679, %v4976, %v4977
        %v5021 = vsel %vm679, %v4975, %v4976
        %v5022 = vsel %vm679, %v4998, %v4975
        %s5023 = scalar_lea.vmem %s2, 1920
        %v5024 = vld [vmem:[%s5023] sm:$0xff]
        %v5025 = vld [vmem:[%s5023 + $0x8] sm:$0xff]
        %v5026 = vld [vmem:[%s5023 + $0x10] sm:$0xff]
        %v5027 = vld [vmem:[%s5023 + $0x18] sm:$0xff]
        %v5028 = vld [vmem:[%s5023 + $0x20] sm:$0xff]
        %v5029 = vld [vmem:[%s5023 + $0x28] sm:$0xff]
        %v5030 = vld [vmem:[%s5023 + $0x30] sm:$0xff]
        %v5031 = vld [vmem:[%s5023 + $0x38] sm:$0xff]
        %v5032 = vld [vmem:[%s5023 + $0x40] sm:$0xff]
        %v5033 = vld [vmem:[%s5023 + $0x48] sm:$0xff]
        %v5034 = vld [vmem:[%s5023 + $0x50] sm:$0xff]
        %v5035 = vld [vmem:[%s5023 + $0x58] sm:$0xff]
        %v5036 = vld [vmem:[%s5023 + $0x60] sm:$0xff]
        %v5037 = vld [vmem:[%s5023 + $0x68] sm:$0xff]
        %v5038 = vld [vmem:[%s5023 + $0x70] sm:$0xff]
        %v5039 = vld [vmem:[%s5023 + $0x78] sm:$0xff]
        %s5040 = scalar_lea.vmem %s2, 2048
        %v5041 = vld [vmem:[%s5040] sm:$0xff]
        %v5042 = vld [vmem:[%s5040 + $0x8] sm:$0xff]
        %v5043 = vld [vmem:[%s5040 + $0x10] sm:$0xff]
        %v5044 = vld [vmem:[%s5040 + $0x18] sm:$0xff]
        %v5045 = vld [vmem:[%s5040 + $0x20] sm:$0xff]
        %v5046 = vld [vmem:[%s5040 + $0x28] sm:$0xff]
        %v5047 = vld [vmem:[%s5040 + $0x30] sm:$0xff]
        %v5048 = vld [vmem:[%s5040 + $0x38] sm:$0xff]
        %v5049 = vld [vmem:[%s5040 + $0x40] sm:$0xff]
        %v5050 = vld [vmem:[%s5040 + $0x48] sm:$0xff]
        %v5051 = vld [vmem:[%s5040 + $0x50] sm:$0xff]
        %v5052 = vld [vmem:[%s5040 + $0x58] sm:$0xff]
        %v5053 = vld [vmem:[%s5040 + $0x60] sm:$0xff]
        %v5054 = vld [vmem:[%s5040 + $0x68] sm:$0xff]
        %v5055 = vld [vmem:[%s5040 + $0x70] sm:$0xff]
        %v5056 = vld [vmem:[%s5040 + $0x78] sm:$0xff]
        %5057 = vmatprep.subr.mxu0 0.0
        %5058 = vmatpush1.msra.mxu0 %v5041
        %5059 = vmatprep.subr.mxu0 0.0
        %5060 = vmatpush1.msra.mxu0 %v5042
        %5061 = vmatprep.subr.mxu0 0.0
        %5062 = vmatpush1.msra.mxu0 %v5043
        %5063 = vmatprep.subr.mxu0 0.0
        %5064 = vmatpush1.msra.mxu0 %v5044
        %5065 = vmatprep.subr.mxu0 0.0
        %5066 = vmatpush1.msra.mxu0 %v5045
        %5067 = vmatprep.subr.mxu0 0.0
        %5068 = vmatpush1.msra.mxu0 %v5046
        %5069 = vmatprep.subr.mxu0 0.0
        %5070 = vmatpush1.msra.mxu0 %v5047
        %5071 = vmatprep.subr.mxu0 0.0
        %5072 = vmatpush1.msra.mxu0 %v5048
        %5073 = vmatprep.subr.mxu0 0.0
        %5074 = vmatpush1.msra.mxu0 %v5049
        %5075 = vmatprep.subr.mxu0 0.0
        %5076 = vmatpush1.msra.mxu0 %v5050
        %5077 = vmatprep.subr.mxu0 0.0
        %5078 = vmatpush1.msra.mxu0 %v5051
        %5079 = vmatprep.subr.mxu0 0.0
        %5080 = vmatpush1.msra.mxu0 %v5052
        %5081 = vmatprep.subr.mxu0 0.0
        %5082 = vmatpush1.msra.mxu0 %v5053
        %5083 = vmatprep.subr.mxu0 0.0
        %5084 = vmatpush1.msra.mxu0 %v5054
        %5085 = vmatprep.subr.mxu0 0.0
        %5086 = vmatpush1.msra.mxu0 %v5055
        %5087 = vmatprep.subr.mxu0 0.0
        %5088 = vmatpush1.msra.mxu0 %v5056
        %5089 = vmatprep.subr.mxu0 0.0
        %5090 = vmatpush1.msra.mxu0 0.0
        %5091 = vmatprep.subr.mxu0 0.0
        %5092 = vmatpush1.msra.mxu0 0.0
        %5093 = vmatprep.subr.mxu0 0.0
        %5094 = vmatpush1.msra.mxu0 0.0
        %5095 = vmatprep.subr.mxu0 0.0
        %5096 = vmatpush1.msra.mxu0 0.0
        %5097 = vmatprep.subr.mxu0 0.0
        %5098 = vmatpush1.msra.mxu0 0.0
        %5099 = vmatprep.subr.mxu0 0.0
        %5100 = vmatpush1.msra.mxu0 0.0
        %5101 = vmatprep.subr.mxu0 0.0
        %5102 = vmatpush1.msra.mxu0 0.0
        %5103 = vmatprep.subr.mxu0 0.0
        %5104 = vmatpush1.msra.mxu0 0.0
        %5105 = vmatprep.subr.mxu0 0.0
        %5106 = vmatpush1.msra.mxu0 0.0
        %5107 = vmatprep.subr.mxu0 0.0
        %5108 = vmatpush1.msra.mxu0 0.0
        %5109 = vmatprep.subr.mxu0 0.0
        %5110 = vmatpush1.msra.mxu0 0.0
        %5111 = vmatprep.subr.mxu0 0.0
        %5112 = vmatpush1.msra.mxu0 0.0
        %5113 = vmatprep.subr.mxu0 0.0
        %5114 = vmatpush1.msra.mxu0 0.0
        %5115 = vmatprep.subr.mxu0 0.0
        %5116 = vmatpush1.msra.mxu0 0.0
        %5117 = vmatprep.subr.mxu0 0.0
        %5118 = vmatpush1.msra.mxu0 0.0
        %5119 = vmatprep.subr.mxu0 0.0
        %5120 = vmatpush1.msra.mxu0 0.0
        %5121 = vmatprep.mubr.f32.mxu0 0.0
        %5122 = vmatmul.mubr.f32.gmra.mrb[0].mxu0 %v4951
        %v5123 = vpop.f32.mrb[0].mxu0
        %v5124 = vpop.f32.mrb[0].mxu0
        %5125 = vmatprep.mubr.f32.mxu0 0.0
        %5126 = vmatmul.mubr.f32.gmra.mrb[0].mxu0 %v4952
        %v5127 = vpop.f32.mrb[0].mxu0
        %v5128 = vpop.f32.mrb[0].mxu0
        %5129 = vmatprep.mubr.f32.mxu0 0.0
        %5130 = vmatmul.mubr.f32.gmra.mrb[0].mxu0 %v4953
        %v5131 = vpop.f32.mrb[0].mxu0
        %v5132 = vadd.f32 0.0, %v5131
        %v5133 = vpop.f32.mrb[0].mxu0
        %5134 = vmatprep.mubr.f32.mxu0 0.0
        %5135 = vmatmul.mubr.f32.gmra.mrb[0].mxu0 %v4954
        %v5136 = vpop.f32.mrb[0].mxu0
        %v5137 = vadd.f32 0.0, %v5136
        %v5138 = vpop.f32.mrb[0].mxu0
        %5139 = vmatprep.mubr.f32.mxu0 0.0
        %5140 = vmatmul.mubr.f32.gmra.mrb[0].mxu0 %v4955
        %v5141 = vpop.f32.mrb[0].mxu0
        %v5142 = vadd.f32 0.0, %v5141
        %v5143 = vpop.f32.mrb[0].mxu0
        %5144 = vmatprep.mubr.f32.mxu0 0.0
        %5145 = vmatmul.mubr.f32.gmra.mrb[0].mxu0 %v4956
        %v5146 = vpop.f32.mrb[0].mxu0
        %v5147 = vadd.f32 0.0, %v5146
        %v5148 = vpop.f32.mrb[0].mxu0
        %5149 = vmatprep.mubr.f32.mxu0 0.0
        %5150 = vmatmul.mubr.f32.gmra.mrb[0].mxu0 %v4957
        %v5151 = vpop.f32.mrb[0].mxu0
        %v5152 = vadd.f32 0.0, %v5151
        %v5153 = vpop.f32.mrb[0].mxu0
        %5154 = vmatprep.mubr.f32.mxu0 0.0
        %5155 = vmatmul.mubr.f32.gmra.mrb[0].mxu0 %v4958
        %v5156 = vpop.f32.mrb[0].mxu0
        %v5157 = vadd.f32 0.0, %v5156
        %v5158 = vpop.f32.mrb[0].mxu0
        %5159 = vmatprep.mubr.f32.mxu0 0.0
        %5160 = vmatmul.mubr.f32.gmra.mrb[0].mxu0 %v4959
        %v5161 = vpop.f32.mrb[0].mxu0
        %v5162 = vadd.f32 0.0, %v5161
        %v5163 = vpop.f32.mrb[0].mxu0
        %5164 = vmatprep.mubr.f32.mxu0 0.0
        %5165 = vmatmul.mubr.f32.gmra.mrb[0].mxu0 %v4960
        %v5166 = vpop.f32.mrb[0].mxu0
        %v5167 = vadd.f32 0.0, %v5166
        %v5168 = vpop.f32.mrb[0].mxu0
        %5169 = vmatprep.mubr.f32.mxu0 0.0
        %5170 = vmatmul.mubr.f32.gmra.mrb[0].mxu0 %v4961
        %v5171 = vpop.f32.mrb[0].mxu0
        %v5172 = vpop.f32.mrb[0].mxu0
        %5173 = vmatprep.mubr.f32.mxu0 0.0
        %5174 = vmatmul.mubr.f32.gmra.mrb[0].mxu0 %v4962
        %v5175 = vpop.f32.mrb[0].mxu0
        %v5176 = vpop.f32.mrb[0].mxu0
        %5177 = vmatprep.mubr.f32.mxu0 0.0
        %5178 = vmatmul.mubr.f32.gmra.mrb[0].mxu0 %v4963
        %v5179 = vpop.f32.mrb[0].mxu0
        %v5180 = vpop.f32.mrb[0].mxu0
        %5181 = vmatprep.mubr.f32.mxu0 0.0
        %5182 = vmatmul.mubr.f32.gmra.mrb[0].mxu0 %v4964
        %v5183 = vpop.f32.mrb[0].mxu0
        %v5184 = vpop.f32.mrb[0].mxu0
        %5185 = vmatprep.mubr.f32.mxu0 0.0
        %5186 = vmatmul.mubr.f32.gmra.mrb[0].mxu0 %v4965
        %v5187 = vpop.f32.mrb[0].mxu0
        %v5188 = vadd.f32 0.0, %v5187
        %v5189 = vpop.f32.mrb[0].mxu0
        %5190 = vmatprep.mubr.f32.mxu0 0.0
        %5191 = vmatmul.mubr.f32.gmra.mrb[0].mxu0 %v4966
        %v5192 = vpop.f32.mrb[0].mxu0
        %v5193 = vadd.f32 0.0, %v5192
        %v5194 = vpop.f32.mrb[0].mxu0
        %5195 = vmatprep.mubr.f32.mxu0 0.0
        %5196 = vmatmul.mubr.f32.gmra.mrb[0].mxu0 %v4967
        %v5197 = vpop.f32.mrb[0].mxu0
        %v5198 = vadd.f32 0.0, %v5197
        %v5199 = vpop.f32.mrb[0].mxu0
        %5200 = vmatprep.mubr.f32.mxu0 0.0
        %5201 = vmatmul.mubr.f32.gmra.mrb[0].mxu0 %v4968
        %v5202 = vpop.f32.mrb[0].mxu0
        %v5203 = vadd.f32 0.0, %v5202
        %v5204 = vpop.f32.mrb[0].mxu0
        %5205 = vmatprep.mubr.f32.mxu0 0.0
        %5206 = vmatmul.mubr.f32.gmra.mrb[0].mxu0 %v4969
        %v5207 = vpop.f32.mrb[0].mxu0
        %v5208 = vadd.f32 0.0, %v5207
        %v5209 = vpop.f32.mrb[0].mxu0
        %5210 = vmatprep.mubr.f32.mxu0 0.0
        %5211 = vmatmul.mubr.f32.gmra.mrb[0].mxu0 %v4970
        %v5212 = vpop.f32.mrb[0].mxu0
        %v5213 = vadd.f32 0.0, %v5212
        %v5214 = vpop.f32.mrb[0].mxu0
        %5215 = vmatprep.mubr.f32.mxu0 0.0
        %5216 = vmatmul.mubr.f32.gmra.mrb[0].mxu0 %v4971
        %v5217 = vpop.f32.mrb[0].mxu0
        %v5218 = vadd.f32 0.0, %v5217
        %v5219 = vpop.f32.mrb[0].mxu0
        %5220 = vmatprep.mubr.f32.mxu0 0.0
        %5221 = vmatmul.mubr.f32.gmra.mrb[0].mxu0 %v4972
        %v5222 = vpop.f32.mrb[0].mxu0
        %v5223 = vadd.f32 0.0, %v5222
        %v5224 = vpop.f32.mrb[0].mxu0
        %5225 = vmatprep.mubr.f32.mxu0 0.0
        %5226 = vmatmul.mubr.f32.gmra.mrb[0].mxu0 %v4973
        %v5227 = vpop.f32.mrb[0].mxu0
        %v5228 = vpop.f32.mrb[0].mxu0
        %5229 = vmatprep.mubr.f32.mxu0 0.0
        %5230 = vmatmul.mubr.f32.gmra.mrb[0].mxu0 %v4974
        %v5231 = vpop.f32.mrb[0].mxu0
        %v5232 = vpop.f32.mrb[0].mxu0
        %5233 = vdwg.mxu0
        %5234 = vmatprep.subr.mxu0 0.0
        %5235 = vmatpush1.msra.mxu0 %v5024
        %5236 = vmatprep.subr.mxu0 0.0
        %5237 = vmatpush1.msra.mxu0 %v5025
        %5238 = vmatprep.subr.mxu0 0.0
        %5239 = vmatpush1.msra.mxu0 %v5026
        %5240 = vmatprep.subr.mxu0 0.0
        %5241 = vmatpush1.msra.mxu0 %v5027
        %5242 = vmatprep.subr.mxu0 0.0
        %5243 = vmatpush1.msra.mxu0 %v5028
        %5244 = vmatprep.subr.mxu0 0.0
        %5245 = vmatpush1.msra.mxu0 %v5029
        %5246 = vmatprep.subr.mxu0 0.0
        %5247 = vmatpush1.msra.mxu0 %v5030
        %5248 = vmatprep.subr.mxu0 0.0
        %5249 = vmatpush1.msra.mxu0 %v5031
        %5250 = vmatprep.subr.mxu0 0.0
        %5251 = vmatpush1.msra.mxu0 %v5032
        %5252 = vmatprep.subr.mxu0 0.0
        %5253 = vmatpush1.msra.mxu0 %v5033
        %5254 = vmatprep.subr.mxu0 0.0
        %5255 = vmatpush1.msra.mxu0 %v5034
        %5256 = vmatprep.subr.mxu0 0.0
        %5257 = vmatpush1.msra.mxu0 %v5035
        %5258 = vmatprep.subr.mxu0 0.0
        %5259 = vmatpush1.msra.mxu0 %v5036
        %5260 = vmatprep.subr.mxu0 0.0
        %5261 = vmatpush1.msra.mxu0 %v5037
        %5262 = vmatprep.subr.mxu0 0.0
        %5263 = vmatpush1.msra.mxu0 %v5038
        %5264 = vmatprep.subr.mxu0 0.0
        %5265 = vmatpush1.msra.mxu0 %v5039
        %5266 = vmatprep.subr.mxu0 0.0
        %5267 = vmatpush1.msra.mxu0 0.0
        %5268 = vmatprep.subr.mxu0 0.0
        %5269 = vmatpush1.msra.mxu0 0.0
        %5270 = vmatprep.subr.mxu0 0.0
        %5271 = vmatpush1.msra.mxu0 0.0
        %5272 = vmatprep.subr.mxu0 0.0
        %5273 = vmatpush1.msra.mxu0 0.0
        %5274 = vmatprep.subr.mxu0 0.0
        %5275 = vmatpush1.msra.mxu0 0.0
        %5276 = vmatprep.subr.mxu0 0.0
        %5277 = vmatpush1.msra.mxu0 0.0
        %5278 = vmatprep.subr.mxu0 0.0
        %5279 = vmatpush1.msra.mxu0 0.0
        %5280 = vmatprep.subr.mxu0 0.0
        %5281 = vmatpush1.msra.mxu0 0.0
        %5282 = vmatprep.subr.mxu0 0.0
        %5283 = vmatpush1.msra.mxu0 0.0
        %5284 = vmatprep.subr.mxu0 0.0
        %5285 = vmatpush1.msra.mxu0 0.0
        %5286 = vmatprep.subr.mxu0 0.0
        %5287 = vmatpush1.msra.mxu0 0.0
        %5288 = vmatprep.subr.mxu0 0.0
        %5289 = vmatpush1.msra.mxu0 0.0
        %5290 = vmatprep.subr.mxu0 0.0
        %5291 = vmatpush1.msra.mxu0 0.0
        %5292 = vmatprep.subr.mxu0 0.0
        %5293 = vmatpush1.msra.mxu0 0.0
        %5294 = vmatprep.subr.mxu0 0.0
        %5295 = vmatpush1.msra.mxu0 0.0
        %5296 = vmatprep.subr.mxu0 0.0
        %5297 = vmatpush1.msra.mxu0 0.0
        %5298 = vmatprep.mubr.f32.mxu0 0.0
        %5299 = vmatmul.mubr.f32.gmra.mrb[0].mxu0 %v5022
        %v5300 = vpop.f32.mrb[0].mxu0
        %v5301 = vpop.f32.mrb[0].mxu0
        %5302 = vmatprep.mubr.f32.mxu0 0.0
        %5303 = vmatmul.mubr.f32.gmra.mrb[0].mxu0 %v5021
        %v5304 = vpop.f32.mrb[0].mxu0
        %v5305 = vpop.f32.mrb[0].mxu0
        %5306 = vmatprep.mubr.f32.mxu0 0.0
        %5307 = vmatmul.mubr.f32.gmra.mrb[0].mxu0 %v5020
        %v5308 = vpop.f32.mrb[0].mxu0
        %v5309 = vadd.f32 %v5132, %v5308
        %v5310 = vpop.f32.mrb[0].mxu0
        %5311 = vmatprep.mubr.f32.mxu0 0.0
        %5312 = vmatmul.mubr.f32.gmra.mrb[0].mxu0 %v5019
        %v5313 = vpop.f32.mrb[0].mxu0
        %v5314 = vadd.f32 %v5137, %v5313
        %v5315 = vpop.f32.mrb[0].mxu0
        %5316 = vmatprep.mubr.f32.mxu0 0.0
        %5317 = vmatmul.mubr.f32.gmra.mrb[0].mxu0 %v5018
        %v5318 = vpop.f32.mrb[0].mxu0
        %v5319 = vadd.f32 %v5142, %v5318
        %v5320 = vpop.f32.mrb[0].mxu0
        %5321 = vmatprep.mubr.f32.mxu0 0.0
        %5322 = vmatmul.mubr.f32.gmra.mrb[0].mxu0 %v5017
        %v5323 = vpop.f32.mrb[0].mxu0
        %v5324 = vadd.f32 %v5147, %v5323
        %v5325 = vpop.f32.mrb[0].mxu0
        %5326 = vmatprep.mubr.f32.mxu0 0.0
        %5327 = vmatmul.mubr.f32.gmra.mrb[0].mxu0 %v5016
        %v5328 = vpop.f32.mrb[0].mxu0
        %v5329 = vadd.f32 %v5152, %v5328
        %v5330 = vpop.f32.mrb[0].mxu0
        %5331 = vmatprep.mubr.f32.mxu0 0.0
        %5332 = vmatmul.mubr.f32.gmra.mrb[0].mxu0 %v5015
        %v5333 = vpop.f32.mrb[0].mxu0
        %v5334 = vadd.f32 %v5157, %v5333
        %v5335 = vpop.f32.mrb[0].mxu0
        %5336 = vmatprep.mubr.f32.mxu0 0.0
        %5337 = vmatmul.mubr.f32.gmra.mrb[0].mxu0 %v5014
        %v5338 = vpop.f32.mrb[0].mxu0
        %v5339 = vadd.f32 %v5162, %v5338
        %v5340 = vpop.f32.mrb[0].mxu0
        %5341 = vmatprep.mubr.f32.mxu0 0.0
        %5342 = vmatmul.mubr.f32.gmra.mrb[0].mxu0 %v5013
        %v5343 = vpop.f32.mrb[0].mxu0
        %v5344 = vadd.f32 %v5167, %v5343
        %v5345 = vpop.f32.mrb[0].mxu0
        %5346 = vmatprep.mubr.f32.mxu0 0.0
        %5347 = vmatmul.mubr.f32.gmra.mrb[0].mxu0 %v5012
        %v5348 = vpop.f32.mrb[0].mxu0
        %v5349 = vpop.f32.mrb[0].mxu0
        %5350 = vmatprep.mubr.f32.mxu0 0.0
        %5351 = vmatmul.mubr.f32.gmra.mrb[0].mxu0 %v5011
        %v5352 = vpop.f32.mrb[0].mxu0
        %v5353 = vpop.f32.mrb[0].mxu0
        %5354 = vmatprep.mubr.f32.mxu0 0.0
        %5355 = vmatmul.mubr.f32.gmra.mrb[0].mxu0 %v5010
        %v5356 = vpop.f32.mrb[0].mxu0
        %v5357 = vpop.f32.mrb[0].mxu0
        %5358 = vmatprep.mubr.f32.mxu0 0.0
        %5359 = vmatmul.mubr.f32.gmra.mrb[0].mxu0 %v5009
        %v5360 = vpop.f32.mrb[0].mxu0
        %v5361 = vpop.f32.mrb[0].mxu0
        %5362 = vmatprep.mubr.f32.mxu0 0.0
        %5363 = vmatmul.mubr.f32.gmra.mrb[0].mxu0 %v5008
        %v5364 = vpop.f32.mrb[0].mxu0
        %v5365 = vadd.f32 %v5188, %v5364
        %v5366 = vpop.f32.mrb[0].mxu0
        %5367 = vmatprep.mubr.f32.mxu0 0.0
        %5368 = vmatmul.mubr.f32.gmra.mrb[0].mxu0 %v5007
        %v5369 = vpop.f32.mrb[0].mxu0
        %v5370 = vadd.f32 %v5193, %v5369
        %v5371 = vpop.f32.mrb[0].mxu0
        %5372 = vmatprep.mubr.f32.mxu0 0.0
        %5373 = vmatmul.mubr.f32.gmra.mrb[0].mxu0 %v5006
        %v5374 = vpop.f32.mrb[0].mxu0
        %v5375 = vadd.f32 %v5198, %v5374
        %v5376 = vpop.f32.mrb[0].mxu0
        %5377 = vmatprep.mubr.f32.mxu0 0.0
        %5378 = vmatmul.mubr.f32.gmra.mrb[0].mxu0 %v5005
        %v5379 = vpop.f32.mrb[0].mxu0
        %v5380 = vadd.f32 %v5203, %v5379
        %v5381 = vpop.f32.mrb[0].mxu0
        %5382 = vmatprep.mubr.f32.mxu0 0.0
        %5383 = vmatmul.mubr.f32.gmra.mrb[0].mxu0 %v5004
        %v5384 = vpop.f32.mrb[0].mxu0
        %v5385 = vadd.f32 %v5208, %v5384
        %v5386 = vpop.f32.mrb[0].mxu0
        %5387 = vmatprep.mubr.f32.mxu0 0.0
        %5388 = vmatmul.mubr.f32.gmra.mrb[0].mxu0 %v5003
        %v5389 = vpop.f32.mrb[0].mxu0
        %v5390 = vadd.f32 %v5213, %v5389
        %v5391 = vpop.f32.mrb[0].mxu0
        %5392 = vmatprep.mubr.f32.mxu0 0.0
        %5393 = vmatmul.mubr.f32.gmra.mrb[0].mxu0 %v5002
        %v5394 = vpop.f32.mrb[0].mxu0
        %v5395 = vadd.f32 %v5218, %v5394
        %v5396 = vpop.f32.mrb[0].mxu0
        %5397 = vmatprep.mubr.f32.mxu0 0.0
        %5398 = vmatmul.mubr.f32.gmra.mrb[0].mxu0 %v5001
        %v5399 = vpop.f32.mrb[0].mxu0
        %v5400 = vadd.f32 %v5223, %v5399
        %v5401 = vpop.f32.mrb[0].mxu0
        %5402 = vmatprep.mubr.f32.mxu0 0.0
        %5403 = vmatmul.mubr.f32.gmra.mrb[0].mxu0 %v5000
        %v5404 = vpop.f32.mrb[0].mxu0
        %v5405 = vpop.f32.mrb[0].mxu0
        %5406 = vmatprep.mubr.f32.mxu0 0.0
        %5407 = vmatmul.mubr.f32.gmra.mrb[0].mxu0 %v4999
        %v5408 = vpop.f32.mrb[0].mxu0
        %v5409 = vpop.f32.mrb[0].mxu0
        %5410 = vdwg.mxu0
        %v5411 = vrot.slane %v4951, 1
        %v5412 = vrot.slane %v4952, 1
        %v5413 = vrot.slane %v4953, 1
        %v5414 = vrot.slane %v4954, 1
        %v5415 = vrot.slane %v4955, 1
        %v5416 = vrot.slane %v4956, 1
        %v5417 = vrot.slane %v4957, 1
        %v5418 = vrot.slane %v4958, 1
        %v5419 = vrot.slane %v4959, 1
        %v5420 = vrot.slane %v4960, 1
        %v5421 = vrot.slane %v4961, 1
        %v5422 = vrot.slane %v4962, 1
        %v5423 = vrot.slane %v4963, 1
        %v5424 = vrot.slane %v4964, 1
        %v5425 = vrot.slane %v4965, 1
        %v5426 = vrot.slane %v4966, 1
        %v5427 = vrot.slane %v4967, 1
        %v5428 = vrot.slane %v4968, 1
        %v5429 = vrot.slane %v4969, 1
        %v5430 = vrot.slane %v4970, 1
        %v5431 = vrot.slane %v4971, 1
        %v5432 = vrot.slane %v4972, 1
        %v5433 = vrot.slane %v4973, 1
        %v5434 = vrot.slane %v4974, 1
        %v5435 = vsel %vm1131, %v5433, %v5434
        %v5436 = vsel %vm1131, %v5432, %v5433
        %v5437 = vsel %vm1131, %v5431, %v5432
        %v5438 = vsel %vm1131, %v5430, %v5431
        %v5439 = vsel %vm1131, %v5429, %v5430
        %v5440 = vsel %vm1131, %v5428, %v5429
        %v5441 = vsel %vm1131, %v5427, %v5428
        %v5442 = vsel %vm1131, %v5426, %v5427
        %v5443 = vsel %vm1131, %v5425, %v5426
        %v5444 = vsel %vm1131, %v5424, %v5425
        %v5445 = vsel %vm1131, %v5423, %v5424
        %v5446 = vsel %vm1131, %v5422, %v5423
        %v5447 = vsel %vm1131, %v5421, %v5422
        %v5448 = vsel %vm1131, %v5420, %v5421
        %v5449 = vsel %vm1131, %v5419, %v5420
        %v5450 = vsel %vm1131, %v5418, %v5419
        %v5451 = vsel %vm1131, %v5417, %v5418
        %v5452 = vsel %vm1131, %v5416, %v5417
        %v5453 = vsel %vm1131, %v5415, %v5416
        %v5454 = vsel %vm1131, %v5414, %v5415
        %v5455 = vsel %vm1131, %v5413, %v5414
        %v5456 = vsel %vm1131, %v5412, %v5413
        %v5457 = vsel %vm1131, %v5411, %v5412
        %v5458 = vsel %vm1131, %v5434, %v5411
        %s5459 = scalar_lea.vmem %s2, 2176
        %v5460 = vld [vmem:[%s5459] sm:$0xff]
        %v5461 = vld [vmem:[%s5459 + $0x8] sm:$0xff]
        %v5462 = vld [vmem:[%s5459 + $0x10] sm:$0xff]
        %v5463 = vld [vmem:[%s5459 + $0x18] sm:$0xff]
        %v5464 = vld [vmem:[%s5459 + $0x20] sm:$0xff]
        %v5465 = vld [vmem:[%s5459 + $0x28] sm:$0xff]
        %v5466 = vld [vmem:[%s5459 + $0x30] sm:$0xff]
        %v5467 = vld [vmem:[%s5459 + $0x38] sm:$0xff]
        %v5468 = vld [vmem:[%s5459 + $0x40] sm:$0xff]
        %v5469 = vld [vmem:[%s5459 + $0x48] sm:$0xff]
        %v5470 = vld [vmem:[%s5459 + $0x50] sm:$0xff]
        %v5471 = vld [vmem:[%s5459 + $0x58] sm:$0xff]
        %v5472 = vld [vmem:[%s5459 + $0x60] sm:$0xff]
        %v5473 = vld [vmem:[%s5459 + $0x68] sm:$0xff]
        %v5474 = vld [vmem:[%s5459 + $0x70] sm:$0xff]
        %v5475 = vld [vmem:[%s5459 + $0x78] sm:$0xff]
        %5476 = vmatprep.subr.mxu0 0.0
        %5477 = vmatpush1.msra.mxu0 %v5460
        %5478 = vmatprep.subr.mxu0 0.0
        %5479 = vmatpush1.msra.mxu0 %v5461
        %5480 = vmatprep.subr.mxu0 0.0
        %5481 = vmatpush1.msra.mxu0 %v5462
        %5482 = vmatprep.subr.mxu0 0.0
        %5483 = vmatpush1.msra.mxu0 %v5463
        %5484 = vmatprep.subr.mxu0 0.0
        %5485 = vmatpush1.msra.mxu0 %v5464
        %5486 = vmatprep.subr.mxu0 0.0
        %5487 = vmatpush1.msra.mxu0 %v5465
        %5488 = vmatprep.subr.mxu0 0.0
        %5489 = vmatpush1.msra.mxu0 %v5466
        %5490 = vmatprep.subr.mxu0 0.0
        %5491 = vmatpush1.msra.mxu0 %v5467
        %5492 = vmatprep.subr.mxu0 0.0
        %5493 = vmatpush1.msra.mxu0 %v5468
        %5494 = vmatprep.subr.mxu0 0.0
        %5495 = vmatpush1.msra.mxu0 %v5469
        %5496 = vmatprep.subr.mxu0 0.0
        %5497 = vmatpush1.msra.mxu0 %v5470
        %5498 = vmatprep.subr.mxu0 0.0
        %5499 = vmatpush1.msra.mxu0 %v5471
        %5500 = vmatprep.subr.mxu0 0.0
        %5501 = vmatpush1.msra.mxu0 %v5472
        %5502 = vmatprep.subr.mxu0 0.0
        %5503 = vmatpush1.msra.mxu0 %v5473
        %5504 = vmatprep.subr.mxu0 0.0
        %5505 = vmatpush1.msra.mxu0 %v5474
        %5506 = vmatprep.subr.mxu0 0.0
        %5507 = vmatpush1.msra.mxu0 %v5475
        %5508 = vmatprep.subr.mxu0 0.0
        %5509 = vmatpush1.msra.mxu0 0.0
        %5510 = vmatprep.subr.mxu0 0.0
        %5511 = vmatpush1.msra.mxu0 0.0
        %5512 = vmatprep.subr.mxu0 0.0
        %5513 = vmatpush1.msra.mxu0 0.0
        %5514 = vmatprep.subr.mxu0 0.0
        %5515 = vmatpush1.msra.mxu0 0.0
        %5516 = vmatprep.subr.mxu0 0.0
        %5517 = vmatpush1.msra.mxu0 0.0
        %5518 = vmatprep.subr.mxu0 0.0
        %5519 = vmatpush1.msra.mxu0 0.0
        %5520 = vmatprep.subr.mxu0 0.0
        %5521 = vmatpush1.msra.mxu0 0.0
        %5522 = vmatprep.subr.mxu0 0.0
        %5523 = vmatpush1.msra.mxu0 0.0
        %5524 = vmatprep.subr.mxu0 0.0
        %5525 = vmatpush1.msra.mxu0 0.0
        %5526 = vmatprep.subr.mxu0 0.0
        %5527 = vmatpush1.msra.mxu0 0.0
        %5528 = vmatprep.subr.mxu0 0.0
        %5529 = vmatpush1.msra.mxu0 0.0
        %5530 = vmatprep.subr.mxu0 0.0
        %5531 = vmatpush1.msra.mxu0 0.0
        %5532 = vmatprep.subr.mxu0 0.0
        %5533 = vmatpush1.msra.mxu0 0.0
        %5534 = vmatprep.subr.mxu0 0.0
        %5535 = vmatpush1.msra.mxu0 0.0
        %5536 = vmatprep.subr.mxu0 0.0
        %5537 = vmatpush1.msra.mxu0 0.0
        %5538 = vmatprep.subr.mxu0 0.0
        %5539 = vmatpush1.msra.mxu0 0.0
        %5540 = vmatprep.mubr.f32.mxu0 0.0
        %5541 = vmatmul.mubr.f32.gmra.mrb[0].mxu0 %v5457
        %v5542 = vpop.f32.mrb[0].mxu0
        %v5543 = vpop.f32.mrb[0].mxu0
        %5544 = vmatprep.mubr.f32.mxu0 0.0
        %5545 = vmatmul.mubr.f32.gmra.mrb[0].mxu0 %v5456
        %v5546 = vpop.f32.mrb[0].mxu0
        %v5547 = vpop.f32.mrb[0].mxu0
        %5548 = vmatprep.mubr.f32.mxu0 0.0
        %5549 = vmatmul.mubr.f32.gmra.mrb[0].mxu0 %v5455
        %v5550 = vpop.f32.mrb[0].mxu0
        %v5551 = vadd.f32 0.0, %v5550
        %v5552 = vpop.f32.mrb[0].mxu0
        %5553 = vmatprep.mubr.f32.mxu0 0.0
        %5554 = vmatmul.mubr.f32.gmra.mrb[0].mxu0 %v5454
        %v5555 = vpop.f32.mrb[0].mxu0
        %v5556 = vadd.f32 0.0, %v5555
        %v5557 = vpop.f32.mrb[0].mxu0
        %5558 = vmatprep.mubr.f32.mxu0 0.0
        %5559 = vmatmul.mubr.f32.gmra.mrb[0].mxu0 %v5453
        %v5560 = vpop.f32.mrb[0].mxu0
        %v5561 = vadd.f32 0.0, %v5560
        %v5562 = vpop.f32.mrb[0].mxu0
        %5563 = vmatprep.mubr.f32.mxu0 0.0
        %5564 = vmatmul.mubr.f32.gmra.mrb[0].mxu0 %v5452
        %v5565 = vpop.f32.mrb[0].mxu0
        %v5566 = vadd.f32 0.0, %v5565
        %v5567 = vpop.f32.mrb[0].mxu0
        %5568 = vmatprep.mubr.f32.mxu0 0.0
        %5569 = vmatmul.mubr.f32.gmra.mrb[0].mxu0 %v5451
        %v5570 = vpop.f32.mrb[0].mxu0
        %v5571 = vadd.f32 0.0, %v5570
        %v5572 = vpop.f32.mrb[0].mxu0
        %5573 = vmatprep.mubr.f32.mxu0 0.0
        %5574 = vmatmul.mubr.f32.gmra.mrb[0].mxu0 %v5450
        %v5575 = vpop.f32.mrb[0].mxu0
        %v5576 = vadd.f32 0.0, %v5575
        %v5577 = vpop.f32.mrb[0].mxu0
        %5578 = vmatprep.mubr.f32.mxu0 0.0
        %5579 = vmatmul.mubr.f32.gmra.mrb[0].mxu0 %v5449
        %v5580 = vpop.f32.mrb[0].mxu0
        %v5581 = vadd.f32 0.0, %v5580
        %v5582 = vpop.f32.mrb[0].mxu0
        %5583 = vmatprep.mubr.f32.mxu0 0.0
        %5584 = vmatmul.mubr.f32.gmra.mrb[0].mxu0 %v5448
        %v5585 = vpop.f32.mrb[0].mxu0
        %v5586 = vadd.f32 0.0, %v5585
        %v5587 = vpop.f32.mrb[0].mxu0
        %5588 = vmatprep.mubr.f32.mxu0 0.0
        %5589 = vmatmul.mubr.f32.gmra.mrb[0].mxu0 %v5447
        %v5590 = vpop.f32.mrb[0].mxu0
        %v5591 = vpop.f32.mrb[0].mxu0
        %5592 = vmatprep.mubr.f32.mxu0 0.0
        %5593 = vmatmul.mubr.f32.gmra.mrb[0].mxu0 %v5446
        %v5594 = vpop.f32.mrb[0].mxu0
        %v5595 = vpop.f32.mrb[0].mxu0
        %5596 = vmatprep.mubr.f32.mxu0 0.0
        %5597 = vmatmul.mubr.f32.gmra.mrb[0].mxu0 %v5445
        %v5598 = vpop.f32.mrb[0].mxu0
        %v5599 = vpop.f32.mrb[0].mxu0
        %5600 = vmatprep.mubr.f32.mxu0 0.0
        %5601 = vmatmul.mubr.f32.gmra.mrb[0].mxu0 %v5444
        %v5602 = vpop.f32.mrb[0].mxu0
        %v5603 = vpop.f32.mrb[0].mxu0
        %5604 = vmatprep.mubr.f32.mxu0 0.0
        %5605 = vmatmul.mubr.f32.gmra.mrb[0].mxu0 %v5443
        %v5606 = vpop.f32.mrb[0].mxu0
        %v5607 = vadd.f32 0.0, %v5606
        %v5608 = vpop.f32.mrb[0].mxu0
        %5609 = vmatprep.mubr.f32.mxu0 0.0
        %5610 = vmatmul.mubr.f32.gmra.mrb[0].mxu0 %v5442
        %v5611 = vpop.f32.mrb[0].mxu0
        %v5612 = vadd.f32 0.0, %v5611
        %v5613 = vpop.f32.mrb[0].mxu0
        %5614 = vmatprep.mubr.f32.mxu0 0.0
        %5615 = vmatmul.mubr.f32.gmra.mrb[0].mxu0 %v5441
        %v5616 = vpop.f32.mrb[0].mxu0
        %v5617 = vadd.f32 0.0, %v5616
        %v5618 = vpop.f32.mrb[0].mxu0
        %5619 = vmatprep.mubr.f32.mxu0 0.0
        %5620 = vmatmul.mubr.f32.gmra.mrb[0].mxu0 %v5440
        %v5621 = vpop.f32.mrb[0].mxu0
        %v5622 = vadd.f32 0.0, %v5621
        %v5623 = vpop.f32.mrb[0].mxu0
        %5624 = vmatprep.mubr.f32.mxu0 0.0
        %5625 = vmatmul.mubr.f32.gmra.mrb[0].mxu0 %v5439
        %v5626 = vpop.f32.mrb[0].mxu0
        %v5627 = vadd.f32 0.0, %v5626
        %v5628 = vpop.f32.mrb[0].mxu0
        %5629 = vmatprep.mubr.f32.mxu0 0.0
        %5630 = vmatmul.mubr.f32.gmra.mrb[0].mxu0 %v5438
        %v5631 = vpop.f32.mrb[0].mxu0
        %v5632 = vadd.f32 0.0, %v5631
        %v5633 = vpop.f32.mrb[0].mxu0
        %5634 = vmatprep.mubr.f32.mxu0 0.0
        %5635 = vmatmul.mubr.f32.gmra.mrb[0].mxu0 %v5437
        %v5636 = vpop.f32.mrb[0].mxu0
        %v5637 = vadd.f32 0.0, %v5636
        %v5638 = vpop.f32.mrb[0].mxu0
        %5639 = vmatprep.mubr.f32.mxu0 0.0
        %5640 = vmatmul.mubr.f32.gmra.mrb[0].mxu0 %v5436
        %v5641 = vpop.f32.mrb[0].mxu0
        %v5642 = vadd.f32 0.0, %v5641
        %v5643 = vpop.f32.mrb[0].mxu0
        %5644 = vmatprep.mubr.f32.mxu0 0.0
        %5645 = vmatmul.mubr.f32.gmra.mrb[0].mxu0 %v5435
        %v5646 = vpop.f32.mrb[0].mxu0
        %v5647 = vpop.f32.mrb[0].mxu0
        %5648 = vmatprep.mubr.f32.mxu0 0.0
        %5649 = vmatmul.mubr.f32.gmra.mrb[0].mxu0 %v5458
        %v5650 = vpop.f32.mrb[0].mxu0
        %v5651 = vpop.f32.mrb[0].mxu0
        %5652 = vdwg.mxu0
        %v5653 = vadd.f32 %v5309, %v5551
        %v5654 = vadd.f32 %v5314, %v5556
        %v5655 = vadd.f32 %v5319, %v5561
        %v5656 = vadd.f32 %v5324, %v5566
        %v5657 = vadd.f32 %v5329, %v5571
        %v5658 = vadd.f32 %v5334, %v5576
        %v5659 = vadd.f32 %v5339, %v5581
        %v5660 = vadd.f32 %v5344, %v5586
        %v5661 = vadd.f32 %v5365, %v5607
        %v5662 = vadd.f32 %v5370, %v5612
        %v5663 = vadd.f32 %v5375, %v5617
        %v5664 = vadd.f32 %v5380, %v5622
        %v5665 = vadd.f32 %v5385, %v5627
        %v5666 = vadd.f32 %v5390, %v5632
        %v5667 = vadd.f32 %v5395, %v5637
        %v5668 = vadd.f32 %v5400, %v5642
        %s5669 = scalar_lea.vmem %s3, 5
        %v5670 = vld [vmem:[%s5669] sm:$0x1]
        %v5672 = vlaneseq
        %v5673 = vshrl.u32 %v5672, 7
        %v5674 = vsub.s32 0, %v5673
        %v5675 = vrot.slane %v5670, %v5674
        %v5677 = vadd.f32 %v5653, %v5675
        %v5678 = vadd.f32 %v5654, %v5675
        %v5679 = vadd.f32 %v5655, %v5675
        %v5680 = vadd.f32 %v5656, %v5675
        %v5681 = vadd.f32 %v5657, %v5675
        %v5682 = vadd.f32 %v5658, %v5675
        %v5683 = vadd.f32 %v5659, %v5675
        %v5684 = vadd.f32 %v5660, %v5675
        %v5685 = vadd.f32 %v5661, %v5675
        %v5686 = vadd.f32 %v5662, %v5675
        %v5687 = vadd.f32 %v5663, %v5675
        %v5688 = vadd.f32 %v5664, %v5675
        %v5689 = vadd.f32 %v5665, %v5675
        %v5690 = vadd.f32 %v5666, %v5675
        %v5691 = vadd.f32 %v5667, %v5675
        %v5692 = vadd.f32 %v5668, %v5675
        %v5693 = vadd.f32 %v4003, %v5677
        %v5694 = vadd.f32 %v4004, %v5678
        %v5695 = vadd.f32 %v4005, %v5679
        %v5696 = vadd.f32 %v4006, %v5680
        %v5697 = vadd.f32 %v4007, %v5681
        %v5698 = vadd.f32 %v4008, %v5682
        %v5699 = vadd.f32 %v4009, %v5683
        %v5700 = vadd.f32 %v4010, %v5684
        %v5701 = vadd.f32 %v4015, %v5685
        %v5702 = vadd.f32 %v4016, %v5686
        %v5703 = vadd.f32 %v4017, %v5687
        %v5704 = vadd.f32 %v4018, %v5688
        %v5705 = vadd.f32 %v4019, %v5689
        %v5706 = vadd.f32 %v4020, %v5690
        %v5707 = vadd.f32 %v4021, %v5691
        %v5708 = vadd.f32 %v4022, %v5692
        %5709 = vst [vmem:[%s383] sm:$0xff] %v5693
        %5710 = vst [vmem:[%s383 + $0x8] sm:$0xff] %v5694
        %5711 = vst [vmem:[%s383 + $0x10] sm:$0xff] %v5695
        %5712 = vst [vmem:[%s383 + $0x18] sm:$0xff] %v5696
        %5713 = vst [vmem:[%s383 + $0x20] sm:$0xff] %v5697
        %5714 = vst [vmem:[%s383 + $0x28] sm:$0xff] %v5698
        %5715 = vst [vmem:[%s383 + $0x30] sm:$0xff] %v5699
        %5716 = vst [vmem:[%s383 + $0x38] sm:$0xff] %v5700
        %5717 = vst [vmem:[%s383 + $0x40] sm:$0xff] %v5701
        %5718 = vst [vmem:[%s383 + $0x48] sm:$0xff] %v5702
        %5719 = vst [vmem:[%s383 + $0x50] sm:$0xff] %v5703
        %5720 = vst [vmem:[%s383 + $0x58] sm:$0xff] %v5704
        %5721 = vst [vmem:[%s383 + $0x60] sm:$0xff] %v5705
        %5722 = vst [vmem:[%s383 + $0x68] sm:$0xff] %v5706
        %5723 = vst [vmem:[%s383 + $0x70] sm:$0xff] %v5707
        %5724 = vst [vmem:[%s383 + $0x78] sm:$0xff] %v5708
        %s5725 = sand.u32 %s120, 1
        %s5726 = scalar_lea.sflag [#allocation5], %s5725
        %s5727 = sand.u32 %s120, 1
        %s5728 = smul.addr %s5727, 128
        %s5729 = scalar_lea.vmem [#allocation4], %s5728
        // Predicated region
        $region89: #{resblock1_forward_nlc.1} parent=83 // pred_check
          %p5730 = pneg %p130
        $region90: #{resblock1_forward_nlc.1} parent=83 // pred_check_branch
          %5732 = sbr.rel (%p5730) target = $region92
        $region91: #{resblock1_forward_nlc.1} parent=83 // pred_region
          #allocation7 [shape = 'u32[6]{0}', space=smem, size = 0x18, scoped, tag = 'DMA stride descriptor']
          %s5733 = smul.u32 8, %s18
          %s5734 = ssub.s32 25, %s5733
          %p5735 = scmp.lt.s32.totalorder %s5734, 8
          %s5736 = scalar_select %p5735, %s5734, 8
          %s5737 = smul.u32 256, %s5736
          %s5739 = ssub.s32 2048, %s5737
          %5740 = vsyncadd %s5726, %s5739
          %p5741 = scmp.ne.s32.totalorder 0, %s5737
          %s5742 = smul.addr %s5733, 128
          %s5743 = scalar_lea.hbm %s4, %s5742
          %s5744 = smul.u32 8, %s5736
          %s5745 = smul.u32 %s5744, 2
          %s5747 = sshll.u32 1, 14
          %s5748 = sxor.u32 4294967295, %s5747
          %s5751 = sshll.u32 7, 18
          %s5752 = sxor.u32 4294967295, %s5751
          %s5753 = sand.u32 0, %s5752
          %s5755 = sor.u32 %s5753, 0
          %s5757 = sshll.u32 3, 24
          %s5758 = sxor.u32 4294967295, %s5757
          %s5759 = sand.u32 %s5755, %s5758
          %s5761 = sor.u32 %s5759, 0
          %s5762 = sshll.u32 %s5729, 4
          %s5763 = int_to_ptr.vmem [resolvable:$true] %s5762
          %s5764 = sshll.u32 %s5745, 4
          %5769 = sst [smem:[#allocation7]] 1024
          %s5770 = scalar_lea.smem [#allocation7], 1
          %5771 = sst [smem:[%s5770]] 3200
          %s5772 = scalar_lea.smem [#allocation7], 2
          %5773 = sst [smem:[%s5772]] %s5736
          %s5774 = scalar_lea.smem [#allocation7], 3
          %5775 = sst [smem:[%s5774]] 128
          %s5776 = scalar_lea.smem [#allocation7], 4
          %5777 = sst [smem:[%s5776]] 128
          %s5778 = scalar_lea.smem [#allocation7], 5
          %5779 = sst [smem:[%s5778]] 8
          %5781 = dma.general (%p5741), %s5763, %s5764, %s5743, %s5726, [#allocation6], [#allocation7], %s5761, 0
        $region92: #{resblock1_forward_nlc.1} parent=83 // pred_fallthru
          _
      $region84: #{resblock1_forward_nlc.1} parent=5 // pred_fallthru
        _
      %p5782 = scmp.le.s32.totalorder 2, %s13
      // Predicated region
      $region93: #{resblock1_forward_nlc.1} parent=5 // pred_check
        %p5783 = pneg %p5782
      $region94: #{resblock1_forward_nlc.1} parent=5 // pred_check_branch
        %5785 = sbr.rel (%p5783) target = $region96
      $region95: #{resblock1_forward_nlc.1} parent=5 // pred_region
        %s5786 = ssub.s32 %s13, 2
        // Predicated region
        $region97: #{resblock1_forward_nlc.1} parent=95 // pred_check
          %p5787 = pneg %p136
        $region98: #{resblock1_forward_nlc.1} parent=95 // pred_check_branch
          %5789 = sbr.rel (%p5787) target = $region100
        $region99: #{resblock1_forward_nlc.1} parent=95 // pred_region
          %s5790 = sand.u32 %s121, 1
          %s5791 = scalar_lea.sflag [#allocation5], %s5790
          %s5792 = sand.u32 %s121, 1
          %s5793 = smul.addr %s5792, 128
          %s5794 = scalar_lea.vmem [#allocation4], %s5793
          %5795 = dma.done %s5791, 2048
        $region100: #{resblock1_forward_nlc.1} parent=95 // pred_fallthru
          _
      $region96: #{resblock1_forward_nlc.1} parent=5 // pred_fallthru
        _
    $region6: #{resblock1_forward_nlc.1} parent=1 // loop_footer
      %s17 = sadd.s32 1, %s13
    $region7: #{resblock1_forward_nlc.1} parent=1 // loop_footer_branch
      %12 = sbr.rel target = $region3
    $region8: #{resblock1_forward_nlc.1} parent=1 // loop_exit
      _
    %5796 = vsyncpa [#allocation5], 1
    %s5797 = scalar_lea.sflag [#allocation5], 1
    %5798 = vsyncpa %s5797, 1

</llo_original>
